<compile_context>
chip_gen: v5e
topology: v5e:2x2
jax: 0.10.0
libtpu: 0.0.40
codegen_flags: <defaults>
</compile_context>

<pallas_src>
import functools
from typing import NamedTuple, Tuple

import jax
import jax.numpy as jnp
from jax.experimental import pallas as pl
from jax.experimental.pallas import tpu as pltpu


# ----------------------------------------------------------------------------
# Static block configuration (hashable -> usable as a jit static argument)
# ----------------------------------------------------------------------------
class BlockCfg(NamedTuple):
    B: int
    H: int
    W: int
    in_planes: int
    planes: int
    hidden: int
    stride: int
    has_proj: bool
    has_att_fc: bool
    Hp: int          # (possibly space-to-depth folded) input spatial
    Wp: int
    cg: int          # channel groups after the space-to-depth fold (1 or 4)
    Ho: int          # output spatial
    Wo: int
    B_blk: int       # images per grid step (merged into the matmul M dim)
    taps1: Tuple     # conv1 taps: (row0, col0, chan_group_offset) into the padded scratch
    sc_tap: Tuple    # 1x1 strided shortcut tap
    taps2: Tuple     # conv2 taps (stride 1)


def make_cfg(B, H, W, in_planes, planes, stride, reduction=16, min_grid_steps=2):
    has_proj = (stride != 1) or (in_planes != planes)
    has_att_fc = (in_planes != planes)
    hidden = max(planes // reduction, 1)
    Ho = (H + 2 - 3) // stride + 1
    Wo = (W + 2 - 3) // stride + 1

    if stride == 1:
        Hp, Wp, cg = H, W, 1
        taps1 = tuple((kh, kw, 0) for kh in range(3) for kw in range(3))
    elif stride == 2:
        assert H % 2 == 0 and W % 2 == 0
        Hp, Wp, cg = H // 2, W // 2, 4
        t = []
        for kh in range(3):
            ph = (kh - 1) % 2
            rh = (kh - 1 - ph) // 2
            for kw in range(3):
                pw = (kw - 1) % 2
                rw = (kw - 1 - pw) // 2
                t.append((1 + rh, 1 + rw, (ph * 2 + pw) * in_planes))
        taps1 = tuple(t)
    else:
        raise NotImplementedError("stride must be 1 or 2")  # TODO(synk): general stride

    taps2 = tuple((kh, kw, 0) for kh in range(3) for kw in range(3))
    sc_tap = (1, 1, 0)

    steps = max(1, min(min_grid_steps, B))
    while B % steps != 0:
        steps -= 1
    B_blk = B // steps

    return BlockCfg(B=B, H=H, W=W, in_planes=in_planes, planes=planes, hidden=hidden,
                    stride=stride, has_proj=has_proj, has_att_fc=has_att_fc,
                    Hp=Hp, Wp=Wp, cg=cg, Ho=Ho, Wo=Wo, B_blk=B_blk,
                    taps1=taps1, sc_tap=sc_tap, taps2=taps2)


# ----------------------------------------------------------------------------
# The fused kernel
# ----------------------------------------------------------------------------
def _make_kernel(cfg: BlockCfg):
    Ho, Wo = cfg.Ho, cfg.Wo
    HW = Ho * Wo
    B_blk = cfg.B_blk
    M = B_blk * HW
    cin, planes = cfg.in_planes, cfg.planes
    attc = cfg.in_planes if cfg.has_att_fc else cfg.planes
    inv_hw = 1.0 / float(HW)
    bf16 = jnp.bfloat16

    def kernel(*refs):
        it = iter(refs)
        x_ref = next(it)
        s1_ref, b1_ref, w1k_ref = next(it), next(it), next(it)
        s2_ref, b2_ref, w2k_ref = next(it), next(it), next(it)
        wfc1_ref, wfc2t_ref = next(it), next(it)
        att_ref = next(it)
        watt_ref = next(it) if cfg.has_att_fc else None
        out_ref, attout_ref = next(it), next(it)
        h1p_ref, h2p_ref, im1_ref, im2_ref = next(it), next(it), next(it), next(it)

        # ---- prologue: h1 = relu(bn1(x)) -> bf16 zero-padded scratch (halo-only zero) --
        x = x_ref[...]                                           # (B_blk, Hp, Wp, cg*cin) f32
        h1 = jnp.maximum(x * s1_ref[...] + b1_ref[...], 0.0).astype(bf16)

        _, H1R, W1C, C1 = h1p_ref.shape
        zr1 = jnp.zeros((B_blk, 1, W1C, C1), bf16)
        zc1 = jnp.zeros((B_blk, H1R, 1, C1), bf16)
        h1p_ref[:, 0:1, :, :] = zr1
        h1p_ref[:, :, 0:1, :] = zc1
        if cfg.stride == 1:
            h1p_ref[:, H1R - 1:H1R, :, :] = zr1
            h1p_ref[:, :, W1C - 1:W1C, :] = zc1
        h1p_ref[:, 1:1 + cfg.Hp, 1:1 + cfg.Wp, :] = h1

        # ---- conv1 (+ folded 1x1 shortcut): K-stacked im2col, ONE MXU matmul -----------
        for b in range(B_blk):
            rb = b * HW
            for t, (r0, c0, g0) in enumerate(cfg.taps1):
                sl = h1p_ref[b, r0:r0 + Ho, c0:c0 + Wo, g0:g0 + cin]   # (Ho, Wo, cin) bf16
                im1_ref[rb:rb + HW, t * cin:(t + 1) * cin] = sl.reshape(HW, cin)

        acc = jnp.dot(im1_ref[...], w1k_ref[...],
                      preferred_element_type=jnp.float32)        # (M, planes[*2]) f32
        if cfg.has_proj:
            c1 = acc[:, :planes]
            sc3 = acc[:, planes:2 * planes].reshape(B_blk, HW, planes)
        else:
            c1 = acc
            sc3 = x.reshape(B_blk, HW, planes)                   # identity shortcut = x (pre-BN)

        # ---- bn2 + relu -> bf16 zero-padded scratch (halo-only zero) -------------------
        h2 = jnp.maximum(c1 * s2_ref[...] + b2_ref[...], 0.0)    # (M, planes) f32
        _, H2R, W2C, _ = h2p_ref.shape
        zr2 = jnp.zeros((B_blk, 1, W2C, planes), bf16)
        zc2 = jnp.zeros((B_blk, H2R, 1, planes), bf16)
        h2p_ref[:, 0:1, :, :] = zr2
        h2p_ref[:, H2R - 1:H2R, :, :] = zr2
        h2p_ref[:, :, 0:1, :] = zc2
        h2p_ref[:, :, W2C - 1:W2C, :] = zc2
        for b in range(B_blk):
            hb = h2[b * HW:(b + 1) * HW, :].reshape(Ho, Wo, planes).astype(bf16)
            h2p_ref[b, 1:1 + Ho, 1:1 + Wo, :] = hb

        # ---- conv2: K-stacked im2col, ONE MXU matmul ------------------------------------
        for b in range(B_blk):
            rb = b * HW
            for t, (r0, c0, _) in enumerate(cfg.taps2):
                sl = h2p_ref[b, r0:r0 + Ho, c0:c0 + Wo, :]             # (Ho, Wo, planes) bf16
                im2_ref[rb:rb + HW, t * planes:(t + 1) * planes] = sl.reshape(HW, planes)

        c2 = jnp.dot(im2_ref[...], w2k_ref[...],
                     preferred_element_type=jnp.float32)         # (M, planes) f32
        c2_3 = c2.reshape(B_blk, HW, planes)

        # ---- RSE squeeze-excite epilogue (f32 on VPU/XLU/EUP) ---------------------------
        y = jnp.sum(c2_3, axis=1) * inv_hw                       # (B_blk, planes)
        hfc = jnp.maximum(jnp.sum(y[:, None, :] * wfc1_ref[...], axis=-1), 0.0)   # (B_blk, hid)
        fc = jnp.sum(hfc[:, None, :] * wfc2t_ref[...], axis=-1)                   # (B_blk, C)
        att_v = att_ref[...].reshape(B_blk, attc)
        if cfg.has_att_fc:
            pre = jnp.sum(att_v[:, None, :] * watt_ref[...], axis=-1)             # (B_blk, C)
        else:
            pre = att_v
        all_att = fc + pre
        attout_ref[...] = all_att.reshape(B_blk, 1, planes)

        gate = pl.reciprocal(1.0 + jnp.exp(-all_att), approx=True)   # sigmoid on the EUP
        out_ref[...] = (c2_3 * gate[:, None, :] + sc3).astype(out_ref.dtype)

    return kernel


# ----------------------------------------------------------------------------
# pallas_call wrapper
# ----------------------------------------------------------------------------
def _run_block_kernel(cfg: BlockCfg, xin, kp, att_in):
    B, planes = cfg.B, cfg.planes
    B_blk = cfg.B_blk
    steps = B // B_blk
    HW = cfg.Ho * cfg.Wo
    M = B_blk * HW

    def full(a):
        nd = a.ndim
        return pl.BlockSpec(a.shape, lambda i: (0,) * nd)

    in_arrays = [xin, kp["s1"], kp["b1"], kp["w1k"], kp["s2"], kp["b2"], kp["w2k"],
                 kp["wfc1"], kp["wfc2t"], att_in]
    in_specs = [
        pl.BlockSpec((B_blk,) + xin.shape[1:], lambda i: (i, 0, 0, 0)),
        full(kp["s1"]), full(kp["b1"]), full(kp["w1k"]),
        full(kp["s2"]), full(kp["b2"]), full(kp["w2k"]),
        full(kp["wfc1"]), full(kp["wfc2t"]),
        pl.BlockSpec((B_blk, 1, att_in.shape[2]), lambda i: (i, 0, 0)),
    ]
    if cfg.has_att_fc:
        in_arrays.append(kp["watt_t"])
        in_specs.append(full(kp["watt_t"]))

    out_shape = (jax.ShapeDtypeStruct((B, HW, planes), jnp.float32),
                 jax.ShapeDtypeStruct((B, 1, planes), jnp.float32))
    out_specs = (pl.BlockSpec((B_blk, HW, planes), lambda i: (i, 0, 0)),
                 pl.BlockSpec((B_blk, 1, planes), lambda i: (i, 0, 0)))

    cgc = cfg.cg * cfg.in_planes
    pad = 2 if cfg.stride == 1 else 1          # stride 2: only top/left padding is needed
    scratch = [
        pltpu.VMEM((B_blk, cfg.Hp + pad, cfg.Wp + pad, cgc), jnp.bfloat16),   # padded h1
        pltpu.VMEM((B_blk, cfg.Ho + 2, cfg.Wo + 2, planes), jnp.bfloat16),    # padded h2
        pltpu.VMEM((M, 9 * cfg.in_planes), jnp.bfloat16),                     # im2col conv1
        pltpu.VMEM((M, 9 * planes), jnp.bfloat16),                            # im2col conv2
    ]

    return pl.pallas_call(
        _make_kernel(cfg),
        grid=(steps,),
        in_specs=in_specs,
        out_specs=out_specs,
        out_shape=out_shape,
        scratch_shapes=scratch,
        compiler_params=pltpu.CompilerParams(dimension_semantics=("parallel",)),
    )(*in_arrays)


# ----------------------------------------------------------------------------
# Parameters
# ----------------------------------------------------------------------------
def init_params(key, in_planes, planes, reduction=16):
    hidden = max(planes // reduction, 1)
    ks = jax.random.split(key, 10)
    eps = 1e-5

    def bn(kg, kb, c):
        gamma = 1.0 + 0.1 * jax.random.normal(kg, (c,), jnp.float32)
        beta = 0.1 * jax.random.normal(kb, (c,), jnp.float32)
        mean = jnp.zeros((c,), jnp.float32)   # running stats (inference-mode fold)
        var = jnp.ones((c,), jnp.float32)
        scale = gamma / jnp.sqrt(var + eps)
        return scale, beta - mean * scale

    p = {}
    p["bn1_scale"], p["bn1_bias"] = bn(ks[0], ks[1], in_planes)
    p["bn2_scale"], p["bn2_bias"] = bn(ks[2], ks[3], planes)
    p["w_conv1"] = 0.05 * jax.random.normal(ks[4], (3, 3, in_planes, planes), jnp.float32)
    p["w_conv2"] = 0.05 * jax.random.normal(ks[5], (3, 3, planes, planes), jnp.float32)
    p["w_sc"] = 0.05 * jax.random.normal(ks[6], (in_planes, planes), jnp.float32)
    p["w_fc1t"] = 0.1 * jax.random.normal(ks[7], (hidden, planes), jnp.float32)
    p["w_fc2"] = 0.1 * jax.random.normal(ks[8], (hidden, planes), jnp.float32)
    p["w_att"] = 0.1 * jax.random.normal(ks[9], (in_planes, planes), jnp.float32)
    return p


def prepare_kernel_params(p, cfg: BlockCfg):
    """Host-side repack: folded BN params (tiled for the s2d channel order), K-stacked
    bf16 conv weight slabs (shortcut folded into conv1's output columns), f32 SE weights."""
    cin, planes = cfg.in_planes, cfg.planes
    kp = {}
    kp["s1"] = jnp.tile(p["bn1_scale"], cfg.cg).reshape(1, 1, 1, cfg.cg * cin)
    kp["b1"] = jnp.tile(p["bn1_bias"], cfg.cg).reshape(1, 1, 1, cfg.cg * cin)
    kp["s2"] = p["bn2_scale"].reshape(1, planes)
    kp["b2"] = p["bn2_bias"].reshape(1, planes)

    w1 = p["w_conv1"].reshape(9 * cin, planes)           # tap-major (kh,kw), channel-minor
    if cfg.has_proj:
        sc_idx = cfg.taps1.index(cfg.sc_tap)             # center tap carries the 1x1 shortcut
        wsc_block = jnp.zeros((9 * cin, planes), jnp.float32)
        wsc_block = wsc_block.at[sc_idx * cin:(sc_idx + 1) * cin, :].set(p["w_sc"])
        w1 = jnp.concatenate([w1, wsc_block], axis=1)    # (9*cin, 2*planes)
    kp["w1k"] = w1.astype(jnp.bfloat16)
    kp["w2k"] = p["w_conv2"].reshape(9 * planes, planes).astype(jnp.bfloat16)

    kp["wfc1"] = p["w_fc1t"]                             # (hidden, planes)
    kp["wfc2t"] = p["w_fc2"].T                           # (planes, hidden)
    if cfg.has_att_fc:
        kp["watt_t"] = p["w_att"].T                      # (planes, in_planes)
    return kp


# ----------------------------------------------------------------------------
# Forward pass (NCHW in / NCHW out, matching the PyTorch module)
# ----------------------------------------------------------------------------
@functools.partial(jax.jit, static_argnames=("cfg",))
def preact_block(x_nchw, att, kparams, cfg: BlockCfg):
    x = jnp.transpose(x_nchw, (0, 2, 3, 1))               # NCHW -> NHWC (model boundary)
    if cfg.stride == 1:
        xin = x
    else:
        s = cfg.stride                                     # space-to-depth fold of x
        xin = x.reshape(cfg.B, cfg.Hp, s, cfg.Wp, s, cfg.in_planes)
        xin = xin.transpose(0, 1, 3, 2, 4, 5).reshape(cfg.B, cfg.Hp, cfg.Wp,
                                                      s * s * cfg.in_planes)
    att_in = att.reshape(cfg.B, 1, att.shape[-1])

    out_flat, att_out = _run_block_kernel(cfg, xin, kparams, att_in)
    out = out_flat.reshape(cfg.B, cfg.Ho, cfg.Wo, cfg.planes)
    out = jnp.transpose(out, (0, 3, 1, 2))                 # NHWC -> NCHW (model boundary)
    return out, att_out.reshape(cfg.B, cfg.planes)


# ----------------------------------------------------------------------------
# Pure-JAX reference (f32) for correctness checking
# ----------------------------------------------------------------------------
def reference_forward(x_nchw, att, p, cfg: BlockCfg):
    dn = ("NHWC", "HWIO", "NHWC")
    s = cfg.stride
    x = jnp.transpose(x_nchw, (0, 2, 3, 1))
    h1 = jnp.maximum(x * p["bn1_scale"] + p["bn1_bias"], 0.0)
    c1 = jax.lax.conv_general_dilated(h1, p["w_conv1"], (s, s), ((1, 1), (1, 1)),
                                      dimension_numbers=dn)
    if cfg.has_proj:
        wsc4 = p["w_sc"].reshape(1, 1, cfg.in_planes, cfg.planes)
        sc = jax.lax.conv_general_dilated(h1, wsc4, (s, s), ((0, 0), (0, 0)),
                                          dimension_numbers=dn)
    else:
        sc = x
    h2 = jnp.maximum(c1 * p["bn2_scale"] + p["bn2_bias"], 0.0)
    c2 = jax.lax.conv_general_dilated(h2, p["w_conv2"], (1, 1), ((1, 1), (1, 1)),
                                      dimension_numbers=dn)
    y = c2.mean(axis=(1, 2))
    hfc = jnp.maximum(y @ p["w_fc1t"].T, 0.0)
    fc = hfc @ p["w_fc2"]
    pre = att @ p["w_att"] if cfg.has_att_fc else att
    all_att = fc + pre
    out = c2 * jax.nn.sigmoid(all_att)[:, None, None, :] + sc
    return jnp.transpose(out, (0, 3, 1, 2)), all_att


# ----------------------------------------------------------------------------
if __name__ == "__main__":
    key = jax.random.PRNGKey(0)

    def run_case(B, in_planes, H, W, planes, stride, case_key):
        k_x, k_att, k_p = jax.random.split(case_key, 3)
        cfg = make_cfg(B, H, W, in_planes, planes, stride)
        x = jax.random.normal(k_x, (B, in_planes, H, W), jnp.float32)
        att_dim = in_planes if cfg.has_att_fc else planes
        att = jax.random.normal(k_att, (B, att_dim), jnp.float32)
        params = init_params(k_p, in_planes, planes)
        kparams = prepare_kernel_params(params, cfg)

        out, all_att = preact_block(x, att, kparams, cfg=cfg)
        out, all_att = jax.block_until_ready((out, all_att))
        assert out.shape == (B, planes, cfg.Ho, cfg.Wo), out.shape
        assert all_att.shape == (B, planes), all_att.shape

        # Loose tolerance: conv/shortcut matmul operands are bf16 (f32 accumulate),
        # reference is pure f32.
        ref_out, ref_att = reference_forward(x, att, params, cfg)
        err_o = float(jnp.max(jnp.abs(out - ref_out)))
        err_a = float(jnp.max(jnp.abs(all_att - ref_att)))
        assert err_o < 5e-2 and err_a < 5e-2, (err_o, err_a)

    k1, k2 = jax.random.split(key)
    # projection shortcut + att_fc (stride 2); batch merged into M (B_blk=2, 2 parallel steps)
    run_case(B=4, in_planes=16, H=16, W=16, planes=32, stride=2, case_key=k1)
    # identity shortcut (stride 1, in_planes == planes)
    run_case(B=4, in_planes=32, H=8, W=8, planes=32, stride=1, case_key=k2)

    print("KERNEL_OK")
</pallas_src>

<mosaic_0001>
module attributes {stable_mosaic.version = 11 : i64} {
  func.func @kernel(%arg0: i32, %arg1: memref<2x8x8x64xf32, #tpu.memory_space<vmem>>, %arg2: memref<1x1x1x64xf32, #tpu.memory_space<vmem>>, %arg3: memref<1x1x1x64xf32, #tpu.memory_space<vmem>>, %arg4: memref<144x64xbf16, #tpu.memory_space<vmem>>, %arg5: memref<1x32xf32, #tpu.memory_space<vmem>>, %arg6: memref<1x32xf32, #tpu.memory_space<vmem>>, %arg7: memref<288x32xbf16, #tpu.memory_space<vmem>>, %arg8: memref<2x32xf32, #tpu.memory_space<vmem>>, %arg9: memref<32x2xf32, #tpu.memory_space<vmem>>, %arg10: memref<2x1x16xf32, #tpu.memory_space<vmem>>, %arg11: memref<32x16xf32, #tpu.memory_space<vmem>>, %arg12: memref<2x64x32xf32, #tpu.memory_space<vmem>>, %arg13: memref<2x1x32xf32, #tpu.memory_space<vmem>>, %arg14: memref<2x9x9x64xbf16, #tpu.memory_space<vmem>>, %arg15: memref<2x10x10x32xbf16, #tpu.memory_space<vmem>>, %arg16: memref<128x144xbf16, #tpu.memory_space<vmem>>, %arg17: memref<128x288xbf16, #tpu.memory_space<vmem>>) attributes {dimension_semantics = [#tpu.dimension_semantics<parallel>], iteration_bounds = array<i64: 2>, scalar_prefetch = 0 : i64, scratch_operands = 4 : i64, tpu.core_type = #tpu.core_type<tc>, window_params = [{transform_indices = @transform_0, window_bounds = array<i64: 2, 8, 8, 64>}, {pipeline_mode = #tpu.pipeline_mode<synchronous>, transform_indices = @transform_1, window_bounds = array<i64: 1, 1, 1, 64>}, {pipeline_mode = #tpu.pipeline_mode<synchronous>, transform_indices = @transform_2, window_bounds = array<i64: 1, 1, 1, 64>}, {pipeline_mode = #tpu.pipeline_mode<synchronous>, transform_indices = @transform_3, window_bounds = array<i64: 144, 64>}, {pipeline_mode = #tpu.pipeline_mode<synchronous>, transform_indices = @transform_4, window_bounds = array<i64: 1, 32>}, {pipeline_mode = #tpu.pipeline_mode<synchronous>, transform_indices = @transform_5, window_bounds = array<i64: 1, 32>}, {pipeline_mode = #tpu.pipeline_mode<synchronous>, transform_indices = @transform_6, window_bounds = array<i64: 288, 32>}, {pipeline_mode = #tpu.pipeline_mode<synchronous>, transform_indices = @transform_7, window_bounds = array<i64: 2, 32>}, {pipeline_mode = #tpu.pipeline_mode<synchronous>, transform_indices = @transform_8, window_bounds = array<i64: 32, 2>}, {transform_indices = @transform_9, window_bounds = array<i64: 2, 1, 16>}, {pipeline_mode = #tpu.pipeline_mode<synchronous>, transform_indices = @transform_10, window_bounds = array<i64: 32, 16>}, {transform_indices = @transform_11, window_bounds = array<i64: 2, 64, 32>}, {transform_indices = @transform_12, window_bounds = array<i64: 2, 1, 32>}]} {
    %c0 = arith.constant 0 : index
    %c0_0 = arith.constant 0 : index
    %c0_1 = arith.constant 0 : index
    %c0_2 = arith.constant 0 : index
    %0 = vector.load %arg1[%c0, %c0_0, %c0_1, %c0_2] : memref<2x8x8x64xf32, #tpu.memory_space<vmem>>, vector<2x8x8x64xf32>
    %c0_3 = arith.constant 0 : index
    %c0_4 = arith.constant 0 : index
    %c0_5 = arith.constant 0 : index
    %c0_6 = arith.constant 0 : index
    %1 = vector.load %arg2[%c0_3, %c0_4, %c0_5, %c0_6] : memref<1x1x1x64xf32, #tpu.memory_space<vmem>>, vector<1x1x1x64xf32>
    %2 = vector.broadcast %1 : vector<1x1x1x64xf32> to vector<2x8x8x64xf32>
    %3 = arith.mulf %0, %2 : vector<2x8x8x64xf32>
    %c0_7 = arith.constant 0 : index
    %c0_8 = arith.constant 0 : index
    %c0_9 = arith.constant 0 : index
    %c0_10 = arith.constant 0 : index
    %4 = vector.load %arg3[%c0_7, %c0_8, %c0_9, %c0_10] : memref<1x1x1x64xf32, #tpu.memory_space<vmem>>, vector<1x1x1x64xf32>
    %5 = vector.broadcast %4 : vector<1x1x1x64xf32> to vector<2x8x8x64xf32>
    %6 = arith.addf %3, %5 : vector<2x8x8x64xf32>
    %cst = arith.constant 0.000000e+00 : f32
    %7 = vector.broadcast %cst : f32 to vector<2x8x8x64xf32>
    %8 = arith.maximumf %6, %7 : vector<2x8x8x64xf32>
    %9 = arith.truncf %8 : vector<2x8x8x64xf32> to vector<2x8x8x64xbf16>
    %cst_11 = arith.constant 0.000000e+00 : bf16
    %10 = vector.broadcast %cst_11 : bf16 to vector<2x1x9x64xbf16>
    %cst_12 = arith.constant 0.000000e+00 : bf16
    %11 = vector.broadcast %cst_12 : bf16 to vector<2x9x1x64xbf16>
    %c0_13 = arith.constant 0 : index
    %c0_14 = arith.constant 0 : index
    %c0_15 = arith.constant 0 : index
    %c0_16 = arith.constant 0 : index
    %12 = vector.load %arg14[%c0_13, %c0_14, %c0_15, %c0_16] : memref<2x9x9x64xbf16, #tpu.memory_space<vmem>>, vector<2x1x9x64xbf16>
    tpu.vector_store %arg14[%c0_13, %c0_14, %c0_15, %c0_16], %10 {strides = array<i32>} : memref<2x9x9x64xbf16, #tpu.memory_space<vmem>>, vector<2x1x9x64xbf16>,
    %c0_17 = arith.constant 0 : index
    %c0_18 = arith.constant 0 : index
    %c0_19 = arith.constant 0 : index
    %c0_20 = arith.constant 0 : index
    %13 = vector.load %arg14[%c0_17, %c0_18, %c0_19, %c0_20] : memref<2x9x9x64xbf16, #tpu.memory_space<vmem>>, vector<2x9x1x64xbf16>
    tpu.vector_store %arg14[%c0_17, %c0_18, %c0_19, %c0_20], %11 {strides = array<i32>} : memref<2x9x9x64xbf16, #tpu.memory_space<vmem>>, vector<2x9x1x64xbf16>,
    %c0_21 = arith.constant 0 : index
    %c1 = arith.constant 1 : index
    %c1_22 = arith.constant 1 : index
    %c0_23 = arith.constant 0 : index
    %14 = vector.load %arg14[%c0_21, %c1, %c1_22, %c0_23] : memref<2x9x9x64xbf16, #tpu.memory_space<vmem>>, vector<2x8x8x64xbf16>
    tpu.vector_store %arg14[%c0_21, %c1, %c1_22, %c0_23], %9 {strides = array<i32>} : memref<2x9x9x64xbf16, #tpu.memory_space<vmem>>, vector<2x8x8x64xbf16>,
    %c0_24 = arith.constant 0 : index
    %c0_25 = arith.constant 0 : index
    %c0_26 = arith.constant 0 : index
    %c48 = arith.constant 48 : index
    %15 = vector.load %arg14[%c0_24, %c0_25, %c0_26, %c48] : memref<2x9x9x64xbf16, #tpu.memory_space<vmem>>, vector<1x8x8x16xbf16>
    %16 = vector.shape_cast %15 : vector<1x8x8x16xbf16> to vector<8x8x16xbf16>
    %17 = vector.shape_cast %16 : vector<8x8x16xbf16> to vector<64x16xbf16>
    %c0_27 = arith.constant 0 : index
    %c0_28 = arith.constant 0 : index
    %18 = vector.load %arg16[%c0_27, %c0_28] : memref<128x144xbf16, #tpu.memory_space<vmem>>, vector<64x16xbf16>
    tpu.vector_store %arg16[%c0_27, %c0_28], %17 {strides = array<i32>} : memref<128x144xbf16, #tpu.memory_space<vmem>>, vector<64x16xbf16>,
    %c0_29 = arith.constant 0 : index
    %c0_30 = arith.constant 0 : index
    %c1_31 = arith.constant 1 : index
    %c32 = arith.constant 32 : index
    %19 = vector.load %arg14[%c0_29, %c0_30, %c1_31, %c32] : memref<2x9x9x64xbf16, #tpu.memory_space<vmem>>, vector<1x8x8x16xbf16>
    %20 = vector.shape_cast %19 : vector<1x8x8x16xbf16> to vector<8x8x16xbf16>
    %21 = vector.shape_cast %20 : vector<8x8x16xbf16> to vector<64x16xbf16>
    %c0_32 = arith.constant 0 : index
    %c16 = arith.constant 16 : index
    %22 = vector.load %arg16[%c0_32, %c16] : memref<128x144xbf16, #tpu.memory_space<vmem>>, vector<64x16xbf16>
    tpu.vector_store %arg16[%c0_32, %c16], %21 {strides = array<i32>} : memref<128x144xbf16, #tpu.memory_space<vmem>>, vector<64x16xbf16>,
    %c0_33 = arith.constant 0 : index
    %c0_34 = arith.constant 0 : index
    %c1_35 = arith.constant 1 : index
    %c48_36 = arith.constant 48 : index
    %23 = vector.load %arg14[%c0_33, %c0_34, %c1_35, %c48_36] : memref<2x9x9x64xbf16, #tpu.memory_space<vmem>>, vector<1x8x8x16xbf16>
    %24 = vector.shape_cast %23 : vector<1x8x8x16xbf16> to vector<8x8x16xbf16>
    %25 = vector.shape_cast %24 : vector<8x8x16xbf16> to vector<64x16xbf16>
    %c0_37 = arith.constant 0 : index
    %c32_38 = arith.constant 32 : index
    %26 = vector.load %arg16[%c0_37, %c32_38] : memref<128x144xbf16, #tpu.memory_space<vmem>>, vector<64x16xbf16>
    tpu.vector_store %arg16[%c0_37, %c32_38], %25 {strides = array<i32>} : memref<128x144xbf16, #tpu.memory_space<vmem>>, vector<64x16xbf16>,
    %c0_39 = arith.constant 0 : index
    %c1_40 = arith.constant 1 : index
    %c0_41 = arith.constant 0 : index
    %c16_42 = arith.constant 16 : index
    %27 = vector.load %arg14[%c0_39, %c1_40, %c0_41, %c16_42] : memref<2x9x9x64xbf16, #tpu.memory_space<vmem>>, vector<1x8x8x16xbf16>
    %28 = vector.shape_cast %27 : vector<1x8x8x16xbf16> to vector<8x8x16xbf16>
    %29 = vector.shape_cast %28 : vector<8x8x16xbf16> to vector<64x16xbf16>
    %c0_43 = arith.constant 0 : index
    %c48_44 = arith.constant 48 : index
    %30 = vector.load %arg16[%c0_43, %c48_44] : memref<128x144xbf16, #tpu.memory_space<vmem>>, vector<64x16xbf16>
    tpu.vector_store %arg16[%c0_43, %c48_44], %29 {strides = array<i32>} : memref<128x144xbf16, #tpu.memory_space<vmem>>, vector<64x16xbf16>,
    %c0_45 = arith.constant 0 : index
    %c1_46 = arith.constant 1 : index
    %c1_47 = arith.constant 1 : index
    %c0_48 = arith.constant 0 : index
    %31 = vector.load %arg14[%c0_45, %c1_46, %c1_47, %c0_48] : memref<2x9x9x64xbf16, #tpu.memory_space<vmem>>, vector<1x8x8x16xbf16>
    %32 = vector.shape_cast %31 : vector<1x8x8x16xbf16> to vector<8x8x16xbf16>
    %33 = vector.shape_cast %32 : vector<8x8x16xbf16> to vector<64x16xbf16>
    %c0_49 = arith.constant 0 : index
    %c64 = arith.constant 64 : index
    %34 = vector.load %arg16[%c0_49, %c64] : memref<128x144xbf16, #tpu.memory_space<vmem>>, vector<64x16xbf16>
    tpu.vector_store %arg16[%c0_49, %c64], %33 {strides = array<i32>} : memref<128x144xbf16, #tpu.memory_space<vmem>>, vector<64x16xbf16>,
    %c0_50 = arith.constant 0 : index
    %c1_51 = arith.constant 1 : index
    %c1_52 = arith.constant 1 : index
    %c16_53 = arith.constant 16 : index
    %35 = vector.load %arg14[%c0_50, %c1_51, %c1_52, %c16_53] : memref<2x9x9x64xbf16, #tpu.memory_space<vmem>>, vector<1x8x8x16xbf16>
    %36 = vector.shape_cast %35 : vector<1x8x8x16xbf16> to vector<8x8x16xbf16>
    %37 = vector.shape_cast %36 : vector<8x8x16xbf16> to vector<64x16xbf16>
    %c0_54 = arith.constant 0 : index
    %c80 = arith.constant 80 : index
    %38 = vector.load %arg16[%c0_54, %c80] : memref<128x144xbf16, #tpu.memory_space<vmem>>, vector<64x16xbf16>
    tpu.vector_store %arg16[%c0_54, %c80], %37 {strides = array<i32>} : memref<128x144xbf16, #tpu.memory_space<vmem>>, vector<64x16xbf16>,
    %c0_55 = arith.constant 0 : index
    %c1_56 = arith.constant 1 : index
    %c0_57 = arith.constant 0 : index
    %c48_58 = arith.constant 48 : index
    %39 = vector.load %arg14[%c0_55, %c1_56, %c0_57, %c48_58] : memref<2x9x9x64xbf16, #tpu.memory_space<vmem>>, vector<1x8x8x16xbf16>
    %40 = vector.shape_cast %39 : vector<1x8x8x16xbf16> to vector<8x8x16xbf16>
    %41 = vector.shape_cast %40 : vector<8x8x16xbf16> to vector<64x16xbf16>
    %c0_59 = arith.constant 0 : index
    %c96 = arith.constant 96 : index
    %42 = vector.load %arg16[%c0_59, %c96] : memref<128x144xbf16, #tpu.memory_space<vmem>>, vector<64x16xbf16>
    tpu.vector_store %arg16[%c0_59, %c96], %41 {strides = array<i32>} : memref<128x144xbf16, #tpu.memory_space<vmem>>, vector<64x16xbf16>,
    %c0_60 = arith.constant 0 : index
    %c1_61 = arith.constant 1 : index
    %c1_62 = arith.constant 1 : index
    %c32_63 = arith.constant 32 : index
    %43 = vector.load %arg14[%c0_60, %c1_61, %c1_62, %c32_63] : memref<2x9x9x64xbf16, #tpu.memory_space<vmem>>, vector<1x8x8x16xbf16>
    %44 = vector.shape_cast %43 : vector<1x8x8x16xbf16> to vector<8x8x16xbf16>
    %45 = vector.shape_cast %44 : vector<8x8x16xbf16> to vector<64x16xbf16>
    %c0_64 = arith.constant 0 : index
    %c112 = arith.constant 112 : index
    %46 = vector.load %arg16[%c0_64, %c112] : memref<128x144xbf16, #tpu.memory_space<vmem>>, vector<64x16xbf16>
    tpu.vector_store %arg16[%c0_64, %c112], %45 {strides = array<i32>} : memref<128x144xbf16, #tpu.memory_space<vmem>>, vector<64x16xbf16>,
    %c0_65 = arith.constant 0 : index
    %c1_66 = arith.constant 1 : index
    %c1_67 = arith.constant 1 : index
    %c48_68 = arith.constant 48 : index
    %47 = vector.load %arg14[%c0_65, %c1_66, %c1_67, %c48_68] : memref<2x9x9x64xbf16, #tpu.memory_space<vmem>>, vector<1x8x8x16xbf16>
    %48 = vector.shape_cast %47 : vector<1x8x8x16xbf16> to vector<8x8x16xbf16>
    %49 = vector.shape_cast %48 : vector<8x8x16xbf16> to vector<64x16xbf16>
    %c0_69 = arith.constant 0 : index
    %c128 = arith.constant 128 : index
    %50 = vector.load %arg16[%c0_69, %c128] : memref<128x144xbf16, #tpu.memory_space<vmem>>, vector<64x16xbf16>
    tpu.vector_store %arg16[%c0_69, %c128], %49 {strides = array<i32>} : memref<128x144xbf16, #tpu.memory_space<vmem>>, vector<64x16xbf16>,
    %c1_70 = arith.constant 1 : index
    %c0_71 = arith.constant 0 : index
    %c0_72 = arith.constant 0 : index
    %c48_73 = arith.constant 48 : index
    %51 = vector.load %arg14[%c1_70, %c0_71, %c0_72, %c48_73] : memref<2x9x9x64xbf16, #tpu.memory_space<vmem>>, vector<1x8x8x16xbf16>
    %52 = vector.shape_cast %51 : vector<1x8x8x16xbf16> to vector<8x8x16xbf16>
    %53 = vector.shape_cast %52 : vector<8x8x16xbf16> to vector<64x16xbf16>
    %c64_74 = arith.constant 64 : index
    %c0_75 = arith.constant 0 : index
    %54 = vector.load %arg16[%c64_74, %c0_75] : memref<128x144xbf16, #tpu.memory_space<vmem>>, vector<64x16xbf16>
    tpu.vector_store %arg16[%c64_74, %c0_75], %53 {strides = array<i32>} : memref<128x144xbf16, #tpu.memory_space<vmem>>, vector<64x16xbf16>,
    %c1_76 = arith.constant 1 : index
    %c0_77 = arith.constant 0 : index
    %c1_78 = arith.constant 1 : index
    %c32_79 = arith.constant 32 : index
    %55 = vector.load %arg14[%c1_76, %c0_77, %c1_78, %c32_79] : memref<2x9x9x64xbf16, #tpu.memory_space<vmem>>, vector<1x8x8x16xbf16>
    %56 = vector.shape_cast %55 : vector<1x8x8x16xbf16> to vector<8x8x16xbf16>
    %57 = vector.shape_cast %56 : vector<8x8x16xbf16> to vector<64x16xbf16>
    %c64_80 = arith.constant 64 : index
    %c16_81 = arith.constant 16 : index
    %58 = vector.load %arg16[%c64_80, %c16_81] : memref<128x144xbf16, #tpu.memory_space<vmem>>, vector<64x16xbf16>
    tpu.vector_store %arg16[%c64_80, %c16_81], %57 {strides = array<i32>} : memref<128x144xbf16, #tpu.memory_space<vmem>>, vector<64x16xbf16>,
    %c1_82 = arith.constant 1 : index
    %c0_83 = arith.constant 0 : index
    %c1_84 = arith.constant 1 : index
    %c48_85 = arith.constant 48 : index
    %59 = vector.load %arg14[%c1_82, %c0_83, %c1_84, %c48_85] : memref<2x9x9x64xbf16, #tpu.memory_space<vmem>>, vector<1x8x8x16xbf16>
    %60 = vector.shape_cast %59 : vector<1x8x8x16xbf16> to vector<8x8x16xbf16>
    %61 = vector.shape_cast %60 : vector<8x8x16xbf16> to vector<64x16xbf16>
    %c64_86 = arith.constant 64 : index
    %c32_87 = arith.constant 32 : index
    %62 = vector.load %arg16[%c64_86, %c32_87] : memref<128x144xbf16, #tpu.memory_space<vmem>>, vector<64x16xbf16>
    tpu.vector_store %arg16[%c64_86, %c32_87], %61 {strides = array<i32>} : memref<128x144xbf16, #tpu.memory_space<vmem>>, vector<64x16xbf16>,
    %c1_88 = arith.constant 1 : index
    %c1_89 = arith.constant 1 : index
    %c0_90 = arith.constant 0 : index
    %c16_91 = arith.constant 16 : index
    %63 = vector.load %arg14[%c1_88, %c1_89, %c0_90, %c16_91] : memref<2x9x9x64xbf16, #tpu.memory_space<vmem>>, vector<1x8x8x16xbf16>
    %64 = vector.shape_cast %63 : vector<1x8x8x16xbf16> to vector<8x8x16xbf16>
    %65 = vector.shape_cast %64 : vector<8x8x16xbf16> to vector<64x16xbf16>
    %c64_92 = arith.constant 64 : index
    %c48_93 = arith.constant 48 : index
    %66 = vector.load %arg16[%c64_92, %c48_93] : memref<128x144xbf16, #tpu.memory_space<vmem>>, vector<64x16xbf16>
    tpu.vector_store %arg16[%c64_92, %c48_93], %65 {strides = array<i32>} : memref<128x144xbf16, #tpu.memory_space<vmem>>, vector<64x16xbf16>,
    %c1_94 = arith.constant 1 : index
    %c1_95 = arith.constant 1 : index
    %c1_96 = arith.constant 1 : index
    %c0_97 = arith.constant 0 : index
    %67 = vector.load %arg14[%c1_94, %c1_95, %c1_96, %c0_97] : memref<2x9x9x64xbf16, #tpu.memory_space<vmem>>, vector<1x8x8x16xbf16>
    %68 = vector.shape_cast %67 : vector<1x8x8x16xbf16> to vector<8x8x16xbf16>
    %69 = vector.shape_cast %68 : vector<8x8x16xbf16> to vector<64x16xbf16>
    %c64_98 = arith.constant 64 : index
    %c64_99 = arith.constant 64 : index
    %70 = vector.load %arg16[%c64_98, %c64_99] : memref<128x144xbf16, #tpu.memory_space<vmem>>, vector<64x16xbf16>
    tpu.vector_store %arg16[%c64_98, %c64_99], %69 {strides = array<i32>} : memref<128x144xbf16, #tpu.memory_space<vmem>>, vector<64x16xbf16>,
    %c1_100 = arith.constant 1 : index
    %c1_101 = arith.constant 1 : index
    %c1_102 = arith.constant 1 : index
    %c16_103 = arith.constant 16 : index
    %71 = vector.load %arg14[%c1_100, %c1_101, %c1_102, %c16_103] : memref<2x9x9x64xbf16, #tpu.memory_space<vmem>>, vector<1x8x8x16xbf16>
    %72 = vector.shape_cast %71 : vector<1x8x8x16xbf16> to vector<8x8x16xbf16>
    %73 = vector.shape_cast %72 : vector<8x8x16xbf16> to vector<64x16xbf16>
    %c64_104 = arith.constant 64 : index
    %c80_105 = arith.constant 80 : index
    %74 = vector.load %arg16[%c64_104, %c80_105] : memref<128x144xbf16, #tpu.memory_space<vmem>>, vector<64x16xbf16>
    tpu.vector_store %arg16[%c64_104, %c80_105], %73 {strides = array<i32>} : memref<128x144xbf16, #tpu.memory_space<vmem>>, vector<64x16xbf16>,
    %c1_106 = arith.constant 1 : index
    %c1_107 = arith.constant 1 : index
    %c0_108 = arith.constant 0 : index
    %c48_109 = arith.constant 48 : index
    %75 = vector.load %arg14[%c1_106, %c1_107, %c0_108, %c48_109] : memref<2x9x9x64xbf16, #tpu.memory_space<vmem>>, vector<1x8x8x16xbf16>
    %76 = vector.shape_cast %75 : vector<1x8x8x16xbf16> to vector<8x8x16xbf16>
    %77 = vector.shape_cast %76 : vector<8x8x16xbf16> to vector<64x16xbf16>
    %c64_110 = arith.constant 64 : index
    %c96_111 = arith.constant 96 : index
    %78 = vector.load %arg16[%c64_110, %c96_111] : memref<128x144xbf16, #tpu.memory_space<vmem>>, vector<64x16xbf16>
    tpu.vector_store %arg16[%c64_110, %c96_111], %77 {strides = array<i32>} : memref<128x144xbf16, #tpu.memory_space<vmem>>, vector<64x16xbf16>,
    %c1_112 = arith.constant 1 : index
    %c1_113 = arith.constant 1 : index
    %c1_114 = arith.constant 1 : index
    %c32_115 = arith.constant 32 : index
    %79 = vector.load %arg14[%c1_112, %c1_113, %c1_114, %c32_115] : memref<2x9x9x64xbf16, #tpu.memory_space<vmem>>, vector<1x8x8x16xbf16>
    %80 = vector.shape_cast %79 : vector<1x8x8x16xbf16> to vector<8x8x16xbf16>
    %81 = vector.shape_cast %80 : vector<8x8x16xbf16> to vector<64x16xbf16>
    %c64_116 = arith.constant 64 : index
    %c112_117 = arith.constant 112 : index
    %82 = vector.load %arg16[%c64_116, %c112_117] : memref<128x144xbf16, #tpu.memory_space<vmem>>, vector<64x16xbf16>
    tpu.vector_store %arg16[%c64_116, %c112_117], %81 {strides = array<i32>} : memref<128x144xbf16, #tpu.memory_space<vmem>>, vector<64x16xbf16>,
    %c1_118 = arith.constant 1 : index
    %c1_119 = arith.constant 1 : index
    %c1_120 = arith.constant 1 : index
    %c48_121 = arith.constant 48 : index
    %83 = vector.load %arg14[%c1_118, %c1_119, %c1_120, %c48_121] : memref<2x9x9x64xbf16, #tpu.memory_space<vmem>>, vector<1x8x8x16xbf16>
    %84 = vector.shape_cast %83 : vector<1x8x8x16xbf16> to vector<8x8x16xbf16>
    %85 = vector.shape_cast %84 : vector<8x8x16xbf16> to vector<64x16xbf16>
    %c64_122 = arith.constant 64 : index
    %c128_123 = arith.constant 128 : index
    %86 = vector.load %arg16[%c64_122, %c128_123] : memref<128x144xbf16, #tpu.memory_space<vmem>>, vector<64x16xbf16>
    tpu.vector_store %arg16[%c64_122, %c128_123], %85 {strides = array<i32>} : memref<128x144xbf16, #tpu.memory_space<vmem>>, vector<64x16xbf16>,
    %c0_124 = arith.constant 0 : index
    %c0_125 = arith.constant 0 : index
    %87 = vector.load %arg16[%c0_124, %c0_125] : memref<128x144xbf16, #tpu.memory_space<vmem>>, vector<128x144xbf16>
    %c0_126 = arith.constant 0 : index
    %c0_127 = arith.constant 0 : index
    %88 = vector.load %arg4[%c0_126, %c0_127] : memref<144x64xbf16, #tpu.memory_space<vmem>>, vector<144x64xbf16>
    %cst_128 = arith.constant dense<0.000000e+00> : vector<128x64xf32>
    %89 = tpu.matmul %87, %88, %cst_128 {dimension_numbers = #tpu.dot_dimension_numbers<[1], [0], [0], [1], [0, 0, 1, 1], [], []>} : vector<128x144xbf16>, vector<144x64xbf16>, vector<128x64xf32> -> vector<128x64xf32>
    %90 = vector.extract_strided_slice %89 {offsets = [0, 0], sizes = [128, 32], strides = [1, 1]} : vector<128x64xf32> to vector<128x32xf32>
    %91 = vector.extract_strided_slice %89 {offsets = [0, 32], sizes = [128, 32], strides = [1, 1]} : vector<128x64xf32> to vector<128x32xf32>
    %92 = vector.shape_cast %91 : vector<128x32xf32> to vector<2x64x32xf32>
    %c0_129 = arith.constant 0 : index
    %c0_130 = arith.constant 0 : index
    %93 = vector.load %arg5[%c0_129, %c0_130] : memref<1x32xf32, #tpu.memory_space<vmem>>, vector<1x32xf32>
    %94 = vector.broadcast %93 : vector<1x32xf32> to vector<128x32xf32>
    %95 = arith.mulf %90, %94 : vector<128x32xf32>
    %c0_131 = arith.constant 0 : index
    %c0_132 = arith.constant 0 : index
    %96 = vector.load %arg6[%c0_131, %c0_132] : memref<1x32xf32, #tpu.memory_space<vmem>>, vector<1x32xf32>
    %97 = vector.broadcast %96 : vector<1x32xf32> to vector<128x32xf32>
    %98 = arith.addf %95, %97 : vector<128x32xf32>
    %cst_133 = arith.constant 0.000000e+00 : f32
    %99 = vector.broadcast %cst_133 : f32 to vector<128x32xf32>
    %100 = arith.maximumf %98, %99 : vector<128x32xf32>
    %cst_134 = arith.constant 0.000000e+00 : bf16
    %101 = vector.broadcast %cst_134 : bf16 to vector<2x1x10x32xbf16>
    %cst_135 = arith.constant 0.000000e+00 : bf16
    %102 = vector.broadcast %cst_135 : bf16 to vector<2x10x1x32xbf16>
    %c0_136 = arith.constant 0 : index
    %c0_137 = arith.constant 0 : index
    %c0_138 = arith.constant 0 : index
    %c0_139 = arith.constant 0 : index
    %103 = vector.load %arg15[%c0_136, %c0_137, %c0_138, %c0_139] : memref<2x10x10x32xbf16, #tpu.memory_space<vmem>>, vector<2x1x10x32xbf16>
    tpu.vector_store %arg15[%c0_136, %c0_137, %c0_138, %c0_139], %101 {strides = array<i32>} : memref<2x10x10x32xbf16, #tpu.memory_space<vmem>>, vector<2x1x10x32xbf16>,
    %c0_140 = arith.constant 0 : index
    %c9 = arith.constant 9 : index
    %c0_141 = arith.constant 0 : index
    %c0_142 = arith.constant 0 : index
    %104 = vector.load %arg15[%c0_140, %c9, %c0_141, %c0_142] : memref<2x10x10x32xbf16, #tpu.memory_space<vmem>>, vector<2x1x10x32xbf16>
    tpu.vector_store %arg15[%c0_140, %c9, %c0_141, %c0_142], %101 {strides = array<i32>} : memref<2x10x10x32xbf16, #tpu.memory_space<vmem>>, vector<2x1x10x32xbf16>,
    %c0_143 = arith.constant 0 : index
    %c0_144 = arith.constant 0 : index
    %c0_145 = arith.constant 0 : index
    %c0_146 = arith.constant 0 : index
    %105 = vector.load %arg15[%c0_143, %c0_144, %c0_145, %c0_146] : memref<2x10x10x32xbf16, #tpu.memory_space<vmem>>, vector<2x10x1x32xbf16>
    tpu.vector_store %arg15[%c0_143, %c0_144, %c0_145, %c0_146], %102 {strides = array<i32>} : memref<2x10x10x32xbf16, #tpu.memory_space<vmem>>, vector<2x10x1x32xbf16>,
    %c0_147 = arith.constant 0 : index
    %c0_148 = arith.constant 0 : index
    %c9_149 = arith.constant 9 : index
    %c0_150 = arith.constant 0 : index
    %106 = vector.load %arg15[%c0_147, %c0_148, %c9_149, %c0_150] : memref<2x10x10x32xbf16, #tpu.memory_space<vmem>>, vector<2x10x1x32xbf16>
    tpu.vector_store %arg15[%c0_147, %c0_148, %c9_149, %c0_150], %102 {strides = array<i32>} : memref<2x10x10x32xbf16, #tpu.memory_space<vmem>>, vector<2x10x1x32xbf16>,
    %107 = vector.extract_strided_slice %100 {offsets = [0, 0], sizes = [64, 32], strides = [1, 1]} : vector<128x32xf32> to vector<64x32xf32>
    %108 = vector.shape_cast %107 : vector<64x32xf32> to vector<8x8x32xf32>
    %109 = arith.truncf %108 : vector<8x8x32xf32> to vector<8x8x32xbf16>
    %c0_151 = arith.constant 0 : index
    %c1_152 = arith.constant 1 : index
    %c1_153 = arith.constant 1 : index
    %c0_154 = arith.constant 0 : index
    %110 = vector.load %arg15[%c0_151, %c1_152, %c1_153, %c0_154] : memref<2x10x10x32xbf16, #tpu.memory_space<vmem>>, vector<1x8x8x32xbf16>
    %111 = vector.shape_cast %110 : vector<1x8x8x32xbf16> to vector<8x8x32xbf16>
    %112 = vector.shape_cast %109 : vector<8x8x32xbf16> to vector<1x8x8x32xbf16>
    tpu.vector_store %arg15[%c0_151, %c1_152, %c1_153, %c0_154], %112 {strides = array<i32>} : memref<2x10x10x32xbf16, #tpu.memory_space<vmem>>, vector<1x8x8x32xbf16>,
    %113 = vector.extract_strided_slice %100 {offsets = [64, 0], sizes = [64, 32], strides = [1, 1]} : vector<128x32xf32> to vector<64x32xf32>
    %114 = vector.shape_cast %113 : vector<64x32xf32> to vector<8x8x32xf32>
    %115 = arith.truncf %114 : vector<8x8x32xf32> to vector<8x8x32xbf16>
    %c1_155 = arith.constant 1 : index
    %c1_156 = arith.constant 1 : index
    %c1_157 = arith.constant 1 : index
    %c0_158 = arith.constant 0 : index
    %116 = vector.load %arg15[%c1_155, %c1_156, %c1_157, %c0_158] : memref<2x10x10x32xbf16, #tpu.memory_space<vmem>>, vector<1x8x8x32xbf16>
    %117 = vector.shape_cast %116 : vector<1x8x8x32xbf16> to vector<8x8x32xbf16>
    %118 = vector.shape_cast %115 : vector<8x8x32xbf16> to vector<1x8x8x32xbf16>
    tpu.vector_store %arg15[%c1_155, %c1_156, %c1_157, %c0_158], %118 {strides = array<i32>} : memref<2x10x10x32xbf16, #tpu.memory_space<vmem>>, vector<1x8x8x32xbf16>,
    %c0_159 = arith.constant 0 : index
    %c0_160 = arith.constant 0 : index
    %c0_161 = arith.constant 0 : index
    %c0_162 = arith.constant 0 : index
    %119 = vector.load %arg15[%c0_159, %c0_160, %c0_161, %c0_162] : memref<2x10x10x32xbf16, #tpu.memory_space<vmem>>, vector<1x8x8x32xbf16>
    %120 = vector.shape_cast %119 : vector<1x8x8x32xbf16> to vector<8x8x32xbf16>
    %121 = vector.shape_cast %120 : vector<8x8x32xbf16> to vector<64x32xbf16>
    %c0_163 = arith.constant 0 : index
    %c0_164 = arith.constant 0 : index
    %122 = vector.load %arg17[%c0_163, %c0_164] : memref<128x288xbf16, #tpu.memory_space<vmem>>, vector<64x32xbf16>
    tpu.vector_store %arg17[%c0_163, %c0_164], %121 {strides = array<i32>} : memref<128x288xbf16, #tpu.memory_space<vmem>>, vector<64x32xbf16>,
    %c0_165 = arith.constant 0 : index
    %c0_166 = arith.constant 0 : index
    %c1_167 = arith.constant 1 : index
    %c0_168 = arith.constant 0 : index
    %123 = vector.load %arg15[%c0_165, %c0_166, %c1_167, %c0_168] : memref<2x10x10x32xbf16, #tpu.memory_space<vmem>>, vector<1x8x8x32xbf16>
    %124 = vector.shape_cast %123 : vector<1x8x8x32xbf16> to vector<8x8x32xbf16>
    %125 = vector.shape_cast %124 : vector<8x8x32xbf16> to vector<64x32xbf16>
    %c0_169 = arith.constant 0 : index
    %c32_170 = arith.constant 32 : index
    %126 = vector.load %arg17[%c0_169, %c32_170] : memref<128x288xbf16, #tpu.memory_space<vmem>>, vector<64x32xbf16>
    tpu.vector_store %arg17[%c0_169, %c32_170], %125 {strides = array<i32>} : memref<128x288xbf16, #tpu.memory_space<vmem>>, vector<64x32xbf16>,
    %c0_171 = arith.constant 0 : index
    %c0_172 = arith.constant 0 : index
    %c2 = arith.constant 2 : index
    %c0_173 = arith.constant 0 : index
    %127 = vector.load %arg15[%c0_171, %c0_172, %c2, %c0_173] : memref<2x10x10x32xbf16, #tpu.memory_space<vmem>>, vector<1x8x8x32xbf16>
    %128 = vector.shape_cast %127 : vector<1x8x8x32xbf16> to vector<8x8x32xbf16>
    %129 = vector.shape_cast %128 : vector<8x8x32xbf16> to vector<64x32xbf16>
    %c0_174 = arith.constant 0 : index
    %c64_175 = arith.constant 64 : index
    %130 = vector.load %arg17[%c0_174, %c64_175] : memref<128x288xbf16, #tpu.memory_space<vmem>>, vector<64x32xbf16>
    tpu.vector_store %arg17[%c0_174, %c64_175], %129 {strides = array<i32>} : memref<128x288xbf16, #tpu.memory_space<vmem>>, vector<64x32xbf16>,
    %c0_176 = arith.constant 0 : index
    %c1_177 = arith.constant 1 : index
    %c0_178 = arith.constant 0 : index
    %c0_179 = arith.constant 0 : index
    %131 = vector.load %arg15[%c0_176, %c1_177, %c0_178, %c0_179] : memref<2x10x10x32xbf16, #tpu.memory_space<vmem>>, vector<1x8x8x32xbf16>
    %132 = vector.shape_cast %131 : vector<1x8x8x32xbf16> to vector<8x8x32xbf16>
    %133 = vector.shape_cast %132 : vector<8x8x32xbf16> to vector<64x32xbf16>
    %c0_180 = arith.constant 0 : index
    %c96_181 = arith.constant 96 : index
    %134 = vector.load %arg17[%c0_180, %c96_181] : memref<128x288xbf16, #tpu.memory_space<vmem>>, vector<64x32xbf16>
    tpu.vector_store %arg17[%c0_180, %c96_181], %133 {strides = array<i32>} : memref<128x288xbf16, #tpu.memory_space<vmem>>, vector<64x32xbf16>,
    %c0_182 = arith.constant 0 : index
    %c1_183 = arith.constant 1 : index
    %c1_184 = arith.constant 1 : index
    %c0_185 = arith.constant 0 : index
    %135 = vector.load %arg15[%c0_182, %c1_183, %c1_184, %c0_185] : memref<2x10x10x32xbf16, #tpu.memory_space<vmem>>, vector<1x8x8x32xbf16>
    %136 = vector.shape_cast %135 : vector<1x8x8x32xbf16> to vector<8x8x32xbf16>
    %137 = vector.shape_cast %136 : vector<8x8x32xbf16> to vector<64x32xbf16>
    %c0_186 = arith.constant 0 : index
    %c128_187 = arith.constant 128 : index
    %138 = vector.load %arg17[%c0_186, %c128_187] : memref<128x288xbf16, #tpu.memory_space<vmem>>, vector<64x32xbf16>
    tpu.vector_store %arg17[%c0_186, %c128_187], %137 {strides = array<i32>} : memref<128x288xbf16, #tpu.memory_space<vmem>>, vector<64x32xbf16>,
    %c0_188 = arith.constant 0 : index
    %c1_189 = arith.constant 1 : index
    %c2_190 = arith.constant 2 : index
    %c0_191 = arith.constant 0 : index
    %139 = vector.load %arg15[%c0_188, %c1_189, %c2_190, %c0_191] : memref<2x10x10x32xbf16, #tpu.memory_space<vmem>>, vector<1x8x8x32xbf16>
    %140 = vector.shape_cast %139 : vector<1x8x8x32xbf16> to vector<8x8x32xbf16>
    %141 = vector.shape_cast %140 : vector<8x8x32xbf16> to vector<64x32xbf16>
    %c0_192 = arith.constant 0 : index
    %c160 = arith.constant 160 : index
    %142 = vector.load %arg17[%c0_192, %c160] : memref<128x288xbf16, #tpu.memory_space<vmem>>, vector<64x32xbf16>
    tpu.vector_store %arg17[%c0_192, %c160], %141 {strides = array<i32>} : memref<128x288xbf16, #tpu.memory_space<vmem>>, vector<64x32xbf16>,
    %c0_193 = arith.constant 0 : index
    %c2_194 = arith.constant 2 : index
    %c0_195 = arith.constant 0 : index
    %c0_196 = arith.constant 0 : index
    %143 = vector.load %arg15[%c0_193, %c2_194, %c0_195, %c0_196] : memref<2x10x10x32xbf16, #tpu.memory_space<vmem>>, vector<1x8x8x32xbf16>
    %144 = vector.shape_cast %143 : vector<1x8x8x32xbf16> to vector<8x8x32xbf16>
    %145 = vector.shape_cast %144 : vector<8x8x32xbf16> to vector<64x32xbf16>
    %c0_197 = arith.constant 0 : index
    %c192 = arith.constant 192 : index
    %146 = vector.load %arg17[%c0_197, %c192] : memref<128x288xbf16, #tpu.memory_space<vmem>>, vector<64x32xbf16>
    tpu.vector_store %arg17[%c0_197, %c192], %145 {strides = array<i32>} : memref<128x288xbf16, #tpu.memory_space<vmem>>, vector<64x32xbf16>,
    %c0_198 = arith.constant 0 : index
    %c2_199 = arith.constant 2 : index
    %c1_200 = arith.constant 1 : index
    %c0_201 = arith.constant 0 : index
    %147 = vector.load %arg15[%c0_198, %c2_199, %c1_200, %c0_201] : memref<2x10x10x32xbf16, #tpu.memory_space<vmem>>, vector<1x8x8x32xbf16>
    %148 = vector.shape_cast %147 : vector<1x8x8x32xbf16> to vector<8x8x32xbf16>
    %149 = vector.shape_cast %148 : vector<8x8x32xbf16> to vector<64x32xbf16>
    %c0_202 = arith.constant 0 : index
    %c224 = arith.constant 224 : index
    %150 = vector.load %arg17[%c0_202, %c224] : memref<128x288xbf16, #tpu.memory_space<vmem>>, vector<64x32xbf16>
    tpu.vector_store %arg17[%c0_202, %c224], %149 {strides = array<i32>} : memref<128x288xbf16, #tpu.memory_space<vmem>>, vector<64x32xbf16>,
    %c0_203 = arith.constant 0 : index
    %c2_204 = arith.constant 2 : index
    %c2_205 = arith.constant 2 : index
    %c0_206 = arith.constant 0 : index
    %151 = vector.load %arg15[%c0_203, %c2_204, %c2_205, %c0_206] : memref<2x10x10x32xbf16, #tpu.memory_space<vmem>>, vector<1x8x8x32xbf16>
    %152 = vector.shape_cast %151 : vector<1x8x8x32xbf16> to vector<8x8x32xbf16>
    %153 = vector.shape_cast %152 : vector<8x8x32xbf16> to vector<64x32xbf16>
    %c0_207 = arith.constant 0 : index
    %c256 = arith.constant 256 : index
    %154 = vector.load %arg17[%c0_207, %c256] : memref<128x288xbf16, #tpu.memory_space<vmem>>, vector<64x32xbf16>
    tpu.vector_store %arg17[%c0_207, %c256], %153 {strides = array<i32>} : memref<128x288xbf16, #tpu.memory_space<vmem>>, vector<64x32xbf16>,
    %c1_208 = arith.constant 1 : index
    %c0_209 = arith.constant 0 : index
    %c0_210 = arith.constant 0 : index
    %c0_211 = arith.constant 0 : index
    %155 = vector.load %arg15[%c1_208, %c0_209, %c0_210, %c0_211] : memref<2x10x10x32xbf16, #tpu.memory_space<vmem>>, vector<1x8x8x32xbf16>
    %156 = vector.shape_cast %155 : vector<1x8x8x32xbf16> to vector<8x8x32xbf16>
    %157 = vector.shape_cast %156 : vector<8x8x32xbf16> to vector<64x32xbf16>
    %c64_212 = arith.constant 64 : index
    %c0_213 = arith.constant 0 : index
    %158 = vector.load %arg17[%c64_212, %c0_213] : memref<128x288xbf16, #tpu.memory_space<vmem>>, vector<64x32xbf16>
    tpu.vector_store %arg17[%c64_212, %c0_213], %157 {strides = array<i32>} : memref<128x288xbf16, #tpu.memory_space<vmem>>, vector<64x32xbf16>,
    %c1_214 = arith.constant 1 : index
    %c0_215 = arith.constant 0 : index
    %c1_216 = arith.constant 1 : index
    %c0_217 = arith.constant 0 : index
    %159 = vector.load %arg15[%c1_214, %c0_215, %c1_216, %c0_217] : memref<2x10x10x32xbf16, #tpu.memory_space<vmem>>, vector<1x8x8x32xbf16>
    %160 = vector.shape_cast %159 : vector<1x8x8x32xbf16> to vector<8x8x32xbf16>
    %161 = vector.shape_cast %160 : vector<8x8x32xbf16> to vector<64x32xbf16>
    %c64_218 = arith.constant 64 : index
    %c32_219 = arith.constant 32 : index
    %162 = vector.load %arg17[%c64_218, %c32_219] : memref<128x288xbf16, #tpu.memory_space<vmem>>, vector<64x32xbf16>
    tpu.vector_store %arg17[%c64_218, %c32_219], %161 {strides = array<i32>} : memref<128x288xbf16, #tpu.memory_space<vmem>>, vector<64x32xbf16>,
    %c1_220 = arith.constant 1 : index
    %c0_221 = arith.constant 0 : index
    %c2_222 = arith.constant 2 : index
    %c0_223 = arith.constant 0 : index
    %163 = vector.load %arg15[%c1_220, %c0_221, %c2_222, %c0_223] : memref<2x10x10x32xbf16, #tpu.memory_space<vmem>>, vector<1x8x8x32xbf16>
    %164 = vector.shape_cast %163 : vector<1x8x8x32xbf16> to vector<8x8x32xbf16>
    %165 = vector.shape_cast %164 : vector<8x8x32xbf16> to vector<64x32xbf16>
    %c64_224 = arith.constant 64 : index
    %c64_225 = arith.constant 64 : index
    %166 = vector.load %arg17[%c64_224, %c64_225] : memref<128x288xbf16, #tpu.memory_space<vmem>>, vector<64x32xbf16>
    tpu.vector_store %arg17[%c64_224, %c64_225], %165 {strides = array<i32>} : memref<128x288xbf16, #tpu.memory_space<vmem>>, vector<64x32xbf16>,
    %c1_226 = arith.constant 1 : index
    %c1_227 = arith.constant 1 : index
    %c0_228 = arith.constant 0 : index
    %c0_229 = arith.constant 0 : index
    %167 = vector.load %arg15[%c1_226, %c1_227, %c0_228, %c0_229] : memref<2x10x10x32xbf16, #tpu.memory_space<vmem>>, vector<1x8x8x32xbf16>
    %168 = vector.shape_cast %167 : vector<1x8x8x32xbf16> to vector<8x8x32xbf16>
    %169 = vector.shape_cast %168 : vector<8x8x32xbf16> to vector<64x32xbf16>
    %c64_230 = arith.constant 64 : index
    %c96_231 = arith.constant 96 : index
    %170 = vector.load %arg17[%c64_230, %c96_231] : memref<128x288xbf16, #tpu.memory_space<vmem>>, vector<64x32xbf16>
    tpu.vector_store %arg17[%c64_230, %c96_231], %169 {strides = array<i32>} : memref<128x288xbf16, #tpu.memory_space<vmem>>, vector<64x32xbf16>,
    %c1_232 = arith.constant 1 : index
    %c1_233 = arith.constant 1 : index
    %c1_234 = arith.constant 1 : index
    %c0_235 = arith.constant 0 : index
    %171 = vector.load %arg15[%c1_232, %c1_233, %c1_234, %c0_235] : memref<2x10x10x32xbf16, #tpu.memory_space<vmem>>, vector<1x8x8x32xbf16>
    %172 = vector.shape_cast %171 : vector<1x8x8x32xbf16> to vector<8x8x32xbf16>
    %173 = vector.shape_cast %172 : vector<8x8x32xbf16> to vector<64x32xbf16>
    %c64_236 = arith.constant 64 : index
    %c128_237 = arith.constant 128 : index
    %174 = vector.load %arg17[%c64_236, %c128_237] : memref<128x288xbf16, #tpu.memory_space<vmem>>, vector<64x32xbf16>
    tpu.vector_store %arg17[%c64_236, %c128_237], %173 {strides = array<i32>} : memref<128x288xbf16, #tpu.memory_space<vmem>>, vector<64x32xbf16>,
    %c1_238 = arith.constant 1 : index
    %c1_239 = arith.constant 1 : index
    %c2_240 = arith.constant 2 : index
    %c0_241 = arith.constant 0 : index
    %175 = vector.load %arg15[%c1_238, %c1_239, %c2_240, %c0_241] : memref<2x10x10x32xbf16, #tpu.memory_space<vmem>>, vector<1x8x8x32xbf16>
    %176 = vector.shape_cast %175 : vector<1x8x8x32xbf16> to vector<8x8x32xbf16>
    %177 = vector.shape_cast %176 : vector<8x8x32xbf16> to vector<64x32xbf16>
    %c64_242 = arith.constant 64 : index
    %c160_243 = arith.constant 160 : index
    %178 = vector.load %arg17[%c64_242, %c160_243] : memref<128x288xbf16, #tpu.memory_space<vmem>>, vector<64x32xbf16>
    tpu.vector_store %arg17[%c64_242, %c160_243], %177 {strides = array<i32>} : memref<128x288xbf16, #tpu.memory_space<vmem>>, vector<64x32xbf16>,
    %c1_244 = arith.constant 1 : index
    %c2_245 = arith.constant 2 : index
    %c0_246 = arith.constant 0 : index
    %c0_247 = arith.constant 0 : index
    %179 = vector.load %arg15[%c1_244, %c2_245, %c0_246, %c0_247] : memref<2x10x10x32xbf16, #tpu.memory_space<vmem>>, vector<1x8x8x32xbf16>
    %180 = vector.shape_cast %179 : vector<1x8x8x32xbf16> to vector<8x8x32xbf16>
    %181 = vector.shape_cast %180 : vector<8x8x32xbf16> to vector<64x32xbf16>
    %c64_248 = arith.constant 64 : index
    %c192_249 = arith.constant 192 : index
    %182 = vector.load %arg17[%c64_248, %c192_249] : memref<128x288xbf16, #tpu.memory_space<vmem>>, vector<64x32xbf16>
    tpu.vector_store %arg17[%c64_248, %c192_249], %181 {strides = array<i32>} : memref<128x288xbf16, #tpu.memory_space<vmem>>, vector<64x32xbf16>,
    %c1_250 = arith.constant 1 : index
    %c2_251 = arith.constant 2 : index
    %c1_252 = arith.constant 1 : index
    %c0_253 = arith.constant 0 : index
    %183 = vector.load %arg15[%c1_250, %c2_251, %c1_252, %c0_253] : memref<2x10x10x32xbf16, #tpu.memory_space<vmem>>, vector<1x8x8x32xbf16>
    %184 = vector.shape_cast %183 : vector<1x8x8x32xbf16> to vector<8x8x32xbf16>
    %185 = vector.shape_cast %184 : vector<8x8x32xbf16> to vector<64x32xbf16>
    %c64_254 = arith.constant 64 : index
    %c224_255 = arith.constant 224 : index
    %186 = vector.load %arg17[%c64_254, %c224_255] : memref<128x288xbf16, #tpu.memory_space<vmem>>, vector<64x32xbf16>
    tpu.vector_store %arg17[%c64_254, %c224_255], %185 {strides = array<i32>} : memref<128x288xbf16, #tpu.memory_space<vmem>>, vector<64x32xbf16>,
    %c1_256 = arith.constant 1 : index
    %c2_257 = arith.constant 2 : index
    %c2_258 = arith.constant 2 : index
    %c0_259 = arith.constant 0 : index
    %187 = vector.load %arg15[%c1_256, %c2_257, %c2_258, %c0_259] : memref<2x10x10x32xbf16, #tpu.memory_space<vmem>>, vector<1x8x8x32xbf16>
    %188 = vector.shape_cast %187 : vector<1x8x8x32xbf16> to vector<8x8x32xbf16>
    %189 = vector.shape_cast %188 : vector<8x8x32xbf16> to vector<64x32xbf16>
    %c64_260 = arith.constant 64 : index
    %c256_261 = arith.constant 256 : index
    %190 = vector.load %arg17[%c64_260, %c256_261] : memref<128x288xbf16, #tpu.memory_space<vmem>>, vector<64x32xbf16>
    tpu.vector_store %arg17[%c64_260, %c256_261], %189 {strides = array<i32>} : memref<128x288xbf16, #tpu.memory_space<vmem>>, vector<64x32xbf16>,
    %c0_262 = arith.constant 0 : index
    %c0_263 = arith.constant 0 : index
    %191 = vector.load %arg17[%c0_262, %c0_263] : memref<128x288xbf16, #tpu.memory_space<vmem>>, vector<128x288xbf16>
    %c0_264 = arith.constant 0 : index
    %c0_265 = arith.constant 0 : index
    %192 = vector.load %arg7[%c0_264, %c0_265] : memref<288x32xbf16, #tpu.memory_space<vmem>>, vector<288x32xbf16>
    %cst_266 = arith.constant dense<0.000000e+00> : vector<128x32xf32>
    %193 = tpu.matmul %191, %192, %cst_266 {dimension_numbers = #tpu.dot_dimension_numbers<[1], [0], [0], [1], [0, 0, 1, 1], [], []>} : vector<128x288xbf16>, vector<288x32xbf16>, vector<128x32xf32> -> vector<128x32xf32>
    %194 = vector.shape_cast %193 : vector<128x32xf32> to vector<2x64x32xf32>
    %cst_267 = arith.constant dense<0.000000e+00> : vector<2x32xf32>
    %195 = vector.multi_reduction <add>, %194, %cst_267 [1] : vector<2x64x32xf32> to vector<2x32xf32>
    %cst_268 = arith.constant 1.562500e-02 : f32
    %196 = vector.broadcast %cst_268 : f32 to vector<2x32xf32>
    %197 = arith.mulf %195, %196 : vector<2x32xf32>
    %198 = vector.shape_cast %197 : vector<2x32xf32> to vector<2x1x32xf32>
    %c0_269 = arith.constant 0 : index
    %c0_270 = arith.constant 0 : index
    %199 = vector.load %arg8[%c0_269, %c0_270] : memref<2x32xf32, #tpu.memory_space<vmem>>, vector<2x32xf32>
    %200 = vector.shape_cast %199 : vector<2x32xf32> to vector<1x2x32xf32>
    %201 = vector.broadcast %198 : vector<2x1x32xf32> to vector<2x2x32xf32>
    %202 = vector.broadcast %200 : vector<1x2x32xf32> to vector<2x2x32xf32>
    %203 = arith.mulf %201, %202 : vector<2x2x32xf32>
    %cst_271 = arith.constant dense<0.000000e+00> : vector<2x2xf32>
    %204 = vector.multi_reduction <add>, %203, %cst_271 [2] : vector<2x2x32xf32> to vector<2x2xf32>
    %cst_272 = arith.constant 0.000000e+00 : f32
    %205 = vector.broadcast %cst_272 : f32 to vector<2x2xf32>
    %206 = arith.maximumf %204, %205 : vector<2x2xf32>
    %207 = vector.shape_cast %206 : vector<2x2xf32> to vector<2x1x2xf32>
    %c0_273 = arith.constant 0 : index
    %c0_274 = arith.constant 0 : index
    %208 = vector.load %arg9[%c0_273, %c0_274] : memref<32x2xf32, #tpu.memory_space<vmem>>, vector<32x2xf32>
    %209 = vector.shape_cast %208 : vector<32x2xf32> to vector<1x32x2xf32>
    %210 = vector.broadcast %207 : vector<2x1x2xf32> to vector<2x32x2xf32>
    %211 = vector.broadcast %209 : vector<1x32x2xf32> to vector<2x32x2xf32>
    %212 = arith.mulf %210, %211 : vector<2x32x2xf32>
    %cst_275 = arith.constant dense<0.000000e+00> : vector<2x32xf32>
    %213 = vector.multi_reduction <add>, %212, %cst_275 [2] : vector<2x32x2xf32> to vector<2x32xf32>
    %c0_276 = arith.constant 0 : index
    %c0_277 = arith.constant 0 : index
    %c0_278 = arith.constant 0 : index
    %214 = vector.load %arg10[%c0_276, %c0_277, %c0_278] : memref<2x1x16xf32, #tpu.memory_space<vmem>>, vector<2x1x16xf32>
    %215 = vector.shape_cast %214 : vector<2x1x16xf32> to vector<2x16xf32>
    %216 = vector.shape_cast %215 : vector<2x16xf32> to vector<2x1x16xf32>
    %c0_279 = arith.constant 0 : index
    %c0_280 = arith.constant 0 : index
    %217 = vector.load %arg11[%c0_279, %c0_280] : memref<32x16xf32, #tpu.memory_space<vmem>>, vector<32x16xf32>
    %218 = vector.shape_cast %217 : vector<32x16xf32> to vector<1x32x16xf32>
    %219 = vector.broadcast %216 : vector<2x1x16xf32> to vector<2x32x16xf32>
    %220 = vector.broadcast %218 : vector<1x32x16xf32> to vector<2x32x16xf32>
    %221 = arith.mulf %219, %220 : vector<2x32x16xf32>
    %cst_281 = arith.constant dense<0.000000e+00> : vector<2x32xf32>
    %222 = vector.multi_reduction <add>, %221, %cst_281 [2] : vector<2x32x16xf32> to vector<2x32xf32>
    %223 = arith.addf %213, %222 : vector<2x32xf32>
    %224 = vector.shape_cast %223 : vector<2x32xf32> to vector<2x1x32xf32>
    %c0_282 = arith.constant 0 : index
    %c0_283 = arith.constant 0 : index
    %c0_284 = arith.constant 0 : index
    %225 = vector.load %arg13[%c0_282, %c0_283, %c0_284] : memref<2x1x32xf32, #tpu.memory_space<vmem>>, vector<2x1x32xf32>
    tpu.vector_store %arg13[%c0_282, %c0_283, %c0_284], %224 {strides = array<i32>} : memref<2x1x32xf32, #tpu.memory_space<vmem>>, vector<2x1x32xf32>,
    %cst_285 = arith.constant 0.000000e+00 : f32
    %226 = vector.broadcast %cst_285 : f32 to vector<2x32xf32>
    %227 = arith.subf %226, %223 : vector<2x32xf32>
    %228 = math.exp %227 : vector<2x32xf32>
    %cst_286 = arith.constant 1.000000e+00 : f32
    %229 = vector.broadcast %cst_286 : f32 to vector<2x32xf32>
    %230 = arith.addf %229, %228 : vector<2x32xf32>
    %231 = tpu.reciprocal %230 {approx = true} : vector<2x32xf32> -> vector<2x32xf32>
    %232 = vector.shape_cast %231 : vector<2x32xf32> to vector<2x1x32xf32>
    %233 = vector.broadcast %232 : vector<2x1x32xf32> to vector<2x64x32xf32>
    %234 = arith.mulf %194, %233 : vector<2x64x32xf32>
    %235 = arith.addf %234, %92 : vector<2x64x32xf32>
    %c0_287 = arith.constant 0 : index
    %c0_288 = arith.constant 0 : index
    %c0_289 = arith.constant 0 : index
    %236 = vector.load %arg12[%c0_287, %c0_288, %c0_289] : memref<2x64x32xf32, #tpu.memory_space<vmem>>, vector<2x64x32xf32>
    tpu.vector_store %arg12[%c0_287, %c0_288, %c0_289], %235 {strides = array<i32>} : memref<2x64x32xf32, #tpu.memory_space<vmem>>, vector<2x64x32xf32>,
    return
  }
  func.func @transform_0(%arg0: i32) -> (i32, i32, i32, i32) {
    %c0_i32 = arith.constant 0 : i32
    %c0_i32_0 = arith.constant 0 : i32
    %c0_i32_1 = arith.constant 0 : i32
    %c0_i32_2 = arith.constant 0 : i32
    return %arg0, %c0_i32, %c0_i32_0, %c0_i32_1 : i32, i32, i32, i32
  }
  func.func @transform_1(%arg0: i32) -> (i32, i32, i32, i32) {
    %c0_i32 = arith.constant 0 : i32
    %c0_i32_0 = arith.constant 0 : i32
    %c0_i32_1 = arith.constant 0 : i32
    %c0_i32_2 = arith.constant 0 : i32
    %c0_i32_3 = arith.constant 0 : i32
    return %c0_i32, %c0_i32_0, %c0_i32_1, %c0_i32_2 : i32, i32, i32, i32
  }
  func.func @transform_2(%arg0: i32) -> (i32, i32, i32, i32) {
    %c0_i32 = arith.constant 0 : i32
    %c0_i32_0 = arith.constant 0 : i32
    %c0_i32_1 = arith.constant 0 : i32
    %c0_i32_2 = arith.constant 0 : i32
    %c0_i32_3 = arith.constant 0 : i32
    return %c0_i32, %c0_i32_0, %c0_i32_1, %c0_i32_2 : i32, i32, i32, i32
  }
  func.func @transform_3(%arg0: i32) -> (i32, i32) {
    %c0_i32 = arith.constant 0 : i32
    %c0_i32_0 = arith.constant 0 : i32
    %c0_i32_1 = arith.constant 0 : i32
    return %c0_i32, %c0_i32_0 : i32, i32
  }
  func.func @transform_4(%arg0: i32) -> (i32, i32) {
    %c0_i32 = arith.constant 0 : i32
    %c0_i32_0 = arith.constant 0 : i32
    %c0_i32_1 = arith.constant 0 : i32
    return %c0_i32, %c0_i32_0 : i32, i32
  }
  func.func @transform_5(%arg0: i32) -> (i32, i32) {
    %c0_i32 = arith.constant 0 : i32
    %c0_i32_0 = arith.constant 0 : i32
    %c0_i32_1 = arith.constant 0 : i32
    return %c0_i32, %c0_i32_0 : i32, i32
  }
  func.func @transform_6(%arg0: i32) -> (i32, i32) {
    %c0_i32 = arith.constant 0 : i32
    %c0_i32_0 = arith.constant 0 : i32
    %c0_i32_1 = arith.constant 0 : i32
    return %c0_i32, %c0_i32_0 : i32, i32
  }
  func.func @transform_7(%arg0: i32) -> (i32, i32) {
    %c0_i32 = arith.constant 0 : i32
    %c0_i32_0 = arith.constant 0 : i32
    %c0_i32_1 = arith.constant 0 : i32
    return %c0_i32, %c0_i32_0 : i32, i32
  }
  func.func @transform_8(%arg0: i32) -> (i32, i32) {
    %c0_i32 = arith.constant 0 : i32
    %c0_i32_0 = arith.constant 0 : i32
    %c0_i32_1 = arith.constant 0 : i32
    return %c0_i32, %c0_i32_0 : i32, i32
  }
  func.func @transform_9(%arg0: i32) -> (i32, i32, i32) {
    %c0_i32 = arith.constant 0 : i32
    %c0_i32_0 = arith.constant 0 : i32
    %c0_i32_1 = arith.constant 0 : i32
    return %arg0, %c0_i32, %c0_i32_0 : i32, i32, i32
  }
  func.func @transform_10(%arg0: i32) -> (i32, i32) {
    %c0_i32 = arith.constant 0 : i32
    %c0_i32_0 = arith.constant 0 : i32
    %c0_i32_1 = arith.constant 0 : i32
    return %c0_i32, %c0_i32_0 : i32, i32
  }
  func.func @transform_11(%arg0: i32) -> (i32, i32, i32) {
    %c0_i32 = arith.constant 0 : i32
    %c0_i32_0 = arith.constant 0 : i32
    %c0_i32_1 = arith.constant 0 : i32
    return %arg0, %c0_i32, %c0_i32_0 : i32, i32, i32
  }
  func.func @transform_12(%arg0: i32) -> (i32, i32, i32) {
    %c0_i32 = arith.constant 0 : i32
    %c0_i32_0 = arith.constant 0 : i32
    %c0_i32_1 = arith.constant 0 : i32
    return %arg0, %c0_i32, %c0_i32_0 : i32, i32, i32
  }
}

</mosaic_0001>

<llo_original>
// kernel: preact_block.1
$region0: #{preact_block.1}
  #allocation0 [shape = 'u32[]', space=smem, size = 0x4, offset = 0x4, fixed_abs, tag = 'smem constant byte address 0x4 - core index']
  #allocation1 [shape = 'u32[72,128]{1,0:T(1,128)}', space=vmem, size = 0x9000, scoped, tag = 'internal scratch']
  #allocation2 [shape = 'bf16[2,9,9,64]{3,2,1,0:T(8,128)(2,1)}', space=vmem, size = 0x12000, scoped, tag = 'scratch operand']
  #allocation3 [shape = 'bf16[2,10,10,32]{3,2,1,0:T(8,128)(2,1)}', space=vmem, size = 0x14000, scoped, tag = 'scratch operand']
  #allocation4 [shape = 'bf16[128,144]{1,0:T(8,128)(2,1)}', space=vmem, size = 0x10000, scoped, tag = 'scratch operand']
  #allocation5 [shape = 'bf16[128,288]{1,0:T(8,128)(2,1)}', space=vmem, size = 0x18000, scoped, tag = 'scratch operand']
  %s0 = inlined_call_operand.vmem [shape: f32[4,8,8,64], index: 0, kind: input, shape index: {}]
  %s1 = inlined_call_operand.vmem [shape: f32[1,1,1,64], index: 1, kind: input, shape index: {}]
  %s2 = inlined_call_operand.vmem [shape: f32[1,1,1,64], index: 2, kind: input, shape index: {}]
  %s3 = inlined_call_operand.vmem [shape: bf16[144,64], index: 3, kind: input, shape index: {}]
  %s4 = inlined_call_operand.vmem [shape: f32[1,32], index: 4, kind: input, shape index: {}]
  %s5 = inlined_call_operand.vmem [shape: f32[1,32], index: 5, kind: input, shape index: {}]
  %s6 = inlined_call_operand.vmem [shape: bf16[288,32], index: 6, kind: input, shape index: {}]
  %s7 = inlined_call_operand.vmem [shape: f32[2,32], index: 7, kind: input, shape index: {}]
  %s8 = inlined_call_operand.vmem [shape: f32[32,2], index: 8, kind: input, shape index: {}]
  %s9 = inlined_call_operand.vmem [shape: f32[4,1,16], index: 9, kind: input, shape index: {}]
  %s10 = inlined_call_operand.vmem [shape: f32[32,16], index: 10, kind: input, shape index: {}]
  %s11 = inlined_call_operand.hbm [shape: f32[4,64,32], index: 11, kind: output, shape index: {0}]
  %s12 = inlined_call_operand.hbm [shape: f32[4,1,32], index: 12, kind: output, shape index: {1}]
  %13 = xla_tuple %s11, %s12
  %s14 = sld [smem:[#allocation0]]
  $region85: #{preact_block.1} parent=0
    _
  %s16 = ssub.s32 1, %s14
  %s17 = scalar_select 0, %s16, %s14
  $region1: #{preact_block.1} parent=0
    #allocation6 [shape = 'u8[131072]{0}', space=vmem, size = 0x20000, scoped, tag = 'output window, operand 0']
    #allocation7 [shape = 's32[2]{0}', space=sflag, size = 0x8, scoped, tag = 'scoped memory for preact_block.1']
    #allocation8 [shape = 'u8[2048]{0}', space=vmem, size = 0x800, scoped, tag = 'output window, operand 1']
    #allocation9 [shape = 's32[2]{0}', space=sflag, size = 0x8, scoped, tag = 'scoped memory for preact_block.1']
    %18 = vsyncpa [#allocation7], 0
    %s19 = scalar_lea.sflag [#allocation7], 1
    %20 = vsyncpa %s19, 0
    %21 = vsyncpa [#allocation9], 0
    %s22 = scalar_lea.sflag [#allocation9], 1
    %23 = vsyncpa %s22, 0
    loop: start=0, step=1, limit=4
    $region2: #{preact_block.1} parent=1 // loop_pre_header
      _
    $region3: #{preact_block.1} parent=1 // loop_header
      %s25 = sphi 0, %s29
      %p26 = scmp.ge.s32.totalorder %s25, 4
      %s35 = sphi 0, %s37
      %s38 = sphi 0, %s35
      %s39 = sphi 0, %s38
      %s55 = sphi 0, %s39
      %s59 = sphi 0, %s59
      %s61 = sphi 0, %s59
      %s62 = sphi 0, %s61
      %s76 = sphi 0, %s62
      %s80 = sphi 0, %s80
      %s82 = sphi 0, %s80
      %s83 = sphi 0, %s82
      %s97 = sphi 0, %s83
      %s101 = sphi 0, %s101
      %s103 = sphi 0, %s101
      %s104 = sphi 0, %s103
      %s118 = sphi 0, %s104
      %s122 = sphi 0, %s122
      %s124 = sphi 0, %s122
      %s125 = sphi 0, %s124
      %s139 = sphi 0, %s125
      %s143 = sphi 0, %s143
      %s145 = sphi 0, %s143
      %s146 = sphi 0, %s145
      %s160 = sphi 0, %s146
      %s164 = sphi 0, %s164
      %s166 = sphi 0, %s164
      %s167 = sphi 0, %s166
      %s181 = sphi 0, %s167
      %s185 = sphi 0, %s185
      %s187 = sphi 0, %s185
      %s188 = sphi 0, %s187
      %s202 = sphi 0, %s188
      %s206 = sphi 0, %s206
      %s208 = sphi 0, %s206
      %s209 = sphi 0, %s208
      %s223 = sphi 0, %s209
      %s229 = sphi 0, %s231
      %s232 = sphi 0, %s229
      %s233 = sphi 0, %s232
      %s249 = sphi 0, %s233
      %s253 = sphi 0, %s253
      %s255 = sphi 0, %s253
      %s256 = sphi 0, %s255
      %s270 = sphi 0, %s256
      %s276 = sphi 0, %s278
      %s279 = sphi 0, %s276
      %s280 = sphi 0, %s279
      %s296 = sphi 0, %s280
      %s302 = sphi 0, %s304
      %s305 = sphi 0, %s302
      %s306 = sphi 0, %s305
      %s322 = sphi 0, %s306
    $region4: #{preact_block.1} parent=1 // loop_header_branch
      %28 = sbr.rel (%p26) target = $region8
    $region5: #{preact_block.1} parent=1 // loop_body
      %s30 = ssub.s32 %s25, 1
      %s31 = ssub.s32 %s25, 2
      %s32 = sadd.s32 %s25, 1
      %s33 = ssub.s32 %s25, %s32
      %p34 = scmp.eq.s32.totalorder %s33, 0
      %s36 = sadd.s32 %s35, 1
      %s37 = scalar_select %p34, %s35, %s36
      %p40 = pneg %p34
      %p41 = scmp.eq.s32.totalorder %s25, 1
      %p42 = por %p40, %p41
      %p43 = scmp.ne.s32.totalorder %s35, %s38
      %p44 = scmp.eq.s32.totalorder %s25, 0
      %p45 = por %p43, %p44
      %p46 = scmp.ne.s32.totalorder %s35, %s38
      %p47 = scmp.eq.s32.totalorder %s30, 1
      %p48 = por %p46, %p47
      %p49 = scmp.ne.s32.totalorder %s38, %s39
      %p50 = scmp.eq.s32.totalorder %s30, 0
      %p51 = por %p49, %p50
      %p52 = scmp.ne.s32.totalorder %s38, %s39
      %p53 = scmp.eq.s32.totalorder %s31, 1
      %p54 = por %p52, %p53
      %p56 = scmp.ne.s32.totalorder %s39, %s55
      %p57 = scmp.eq.s32.totalorder %s31, 0
      %p58 = por %p56, %p57
      %s60 = sadd.s32 %s59, 1
      %p63 = scmp.eq.s32.totalorder %s25, 1
      %p64 = scmp.ne.s32.totalorder %s59, %s61
      %p65 = scmp.eq.s32.totalorder %s25, 0
      %p66 = por %p64, %p65
      %p67 = scmp.ne.s32.totalorder %s59, %s61
      %p68 = scmp.eq.s32.totalorder %s30, 1
      %p69 = por %p67, %p68
      %p70 = scmp.ne.s32.totalorder %s61, %s62
      %p71 = scmp.eq.s32.totalorder %s30, 0
      %p72 = por %p70, %p71
      %p73 = scmp.ne.s32.totalorder %s61, %s62
      %p74 = scmp.eq.s32.totalorder %s31, 1
      %p75 = por %p73, %p74
      %p77 = scmp.ne.s32.totalorder %s62, %s76
      %p78 = scmp.eq.s32.totalorder %s31, 0
      %p79 = por %p77, %p78
      %s81 = sadd.s32 %s80, 1
      %p84 = scmp.eq.s32.totalorder %s25, 1
      %p85 = scmp.ne.s32.totalorder %s80, %s82
      %p86 = scmp.eq.s32.totalorder %s25, 0
      %p87 = por %p85, %p86
      %p88 = scmp.ne.s32.totalorder %s80, %s82
      %p89 = scmp.eq.s32.totalorder %s30, 1
      %p90 = por %p88, %p89
      %p91 = scmp.ne.s32.totalorder %s82, %s83
      %p92 = scmp.eq.s32.totalorder %s30, 0
      %p93 = por %p91, %p92
      %p94 = scmp.ne.s32.totalorder %s82, %s83
      %p95 = scmp.eq.s32.totalorder %s31, 1
      %p96 = por %p94, %p95
      %p98 = scmp.ne.s32.totalorder %s83, %s97
      %p99 = scmp.eq.s32.totalorder %s31, 0
      %p100 = por %p98, %p99
      %s102 = sadd.s32 %s101, 1
      %p105 = scmp.eq.s32.totalorder %s25, 1
      %p106 = scmp.ne.s32.totalorder %s101, %s103
      %p107 = scmp.eq.s32.totalorder %s25, 0
      %p108 = por %p106, %p107
      %p109 = scmp.ne.s32.totalorder %s101, %s103
      %p110 = scmp.eq.s32.totalorder %s30, 1
      %p111 = por %p109, %p110
      %p112 = scmp.ne.s32.totalorder %s103, %s104
      %p113 = scmp.eq.s32.totalorder %s30, 0
      %p114 = por %p112, %p113
      %p115 = scmp.ne.s32.totalorder %s103, %s104
      %p116 = scmp.eq.s32.totalorder %s31, 1
      %p117 = por %p115, %p116
      %p119 = scmp.ne.s32.totalorder %s104, %s118
      %p120 = scmp.eq.s32.totalorder %s31, 0
      %p121 = por %p119, %p120
      %s123 = sadd.s32 %s122, 1
      %p126 = scmp.eq.s32.totalorder %s25, 1
      %p127 = scmp.ne.s32.totalorder %s122, %s124
      %p128 = scmp.eq.s32.totalorder %s25, 0
      %p129 = por %p127, %p128
      %p130 = scmp.ne.s32.totalorder %s122, %s124
      %p131 = scmp.eq.s32.totalorder %s30, 1
      %p132 = por %p130, %p131
      %p133 = scmp.ne.s32.totalorder %s124, %s125
      %p134 = scmp.eq.s32.totalorder %s30, 0
      %p135 = por %p133, %p134
      %p136 = scmp.ne.s32.totalorder %s124, %s125
      %p137 = scmp.eq.s32.totalorder %s31, 1
      %p138 = por %p136, %p137
      %p140 = scmp.ne.s32.totalorder %s125, %s139
      %p141 = scmp.eq.s32.totalorder %s31, 0
      %p142 = por %p140, %p141
      %s144 = sadd.s32 %s143, 1
      %p147 = scmp.eq.s32.totalorder %s25, 1
      %p148 = scmp.ne.s32.totalorder %s143, %s145
      %p149 = scmp.eq.s32.totalorder %s25, 0
      %p150 = por %p148, %p149
      %p151 = scmp.ne.s32.totalorder %s143, %s145
      %p152 = scmp.eq.s32.totalorder %s30, 1
      %p153 = por %p151, %p152
      %p154 = scmp.ne.s32.totalorder %s145, %s146
      %p155 = scmp.eq.s32.totalorder %s30, 0
      %p156 = por %p154, %p155
      %p157 = scmp.ne.s32.totalorder %s145, %s146
      %p158 = scmp.eq.s32.totalorder %s31, 1
      %p159 = por %p157, %p158
      %p161 = scmp.ne.s32.totalorder %s146, %s160
      %p162 = scmp.eq.s32.totalorder %s31, 0
      %p163 = por %p161, %p162
      %s165 = sadd.s32 %s164, 1
      %p168 = scmp.eq.s32.totalorder %s25, 1
      %p169 = scmp.ne.s32.totalorder %s164, %s166
      %p170 = scmp.eq.s32.totalorder %s25, 0
      %p171 = por %p169, %p170
      %p172 = scmp.ne.s32.totalorder %s164, %s166
      %p173 = scmp.eq.s32.totalorder %s30, 1
      %p174 = por %p172, %p173
      %p175 = scmp.ne.s32.totalorder %s166, %s167
      %p176 = scmp.eq.s32.totalorder %s30, 0
      %p177 = por %p175, %p176
      %p178 = scmp.ne.s32.totalorder %s166, %s167
      %p179 = scmp.eq.s32.totalorder %s31, 1
      %p180 = por %p178, %p179
      %p182 = scmp.ne.s32.totalorder %s167, %s181
      %p183 = scmp.eq.s32.totalorder %s31, 0
      %p184 = por %p182, %p183
      %s186 = sadd.s32 %s185, 1
      %p189 = scmp.eq.s32.totalorder %s25, 1
      %p190 = scmp.ne.s32.totalorder %s185, %s187
      %p191 = scmp.eq.s32.totalorder %s25, 0
      %p192 = por %p190, %p191
      %p193 = scmp.ne.s32.totalorder %s185, %s187
      %p194 = scmp.eq.s32.totalorder %s30, 1
      %p195 = por %p193, %p194
      %p196 = scmp.ne.s32.totalorder %s187, %s188
      %p197 = scmp.eq.s32.totalorder %s30, 0
      %p198 = por %p196, %p197
      %p199 = scmp.ne.s32.totalorder %s187, %s188
      %p200 = scmp.eq.s32.totalorder %s31, 1
      %p201 = por %p199, %p200
      %p203 = scmp.ne.s32.totalorder %s188, %s202
      %p204 = scmp.eq.s32.totalorder %s31, 0
      %p205 = por %p203, %p204
      %s207 = sadd.s32 %s206, 1
      %p210 = scmp.eq.s32.totalorder %s25, 1
      %p211 = scmp.ne.s32.totalorder %s206, %s208
      %p212 = scmp.eq.s32.totalorder %s25, 0
      %p213 = por %p211, %p212
      %p214 = scmp.ne.s32.totalorder %s206, %s208
      %p215 = scmp.eq.s32.totalorder %s30, 1
      %p216 = por %p214, %p215
      %p217 = scmp.ne.s32.totalorder %s208, %s209
      %p218 = scmp.eq.s32.totalorder %s30, 0
      %p219 = por %p217, %p218
      %p220 = scmp.ne.s32.totalorder %s208, %s209
      %p221 = scmp.eq.s32.totalorder %s31, 1
      %p222 = por %p220, %p221
      %p224 = scmp.ne.s32.totalorder %s209, %s223
      %p225 = scmp.eq.s32.totalorder %s31, 0
      %p226 = por %p224, %p225
      %s227 = ssub.s32 %s25, %s32
      %p228 = scmp.eq.s32.totalorder %s227, 0
      %s230 = sadd.s32 %s229, 1
      %s231 = scalar_select %p228, %s229, %s230
      %p234 = pneg %p228
      %p235 = scmp.eq.s32.totalorder %s25, 1
      %p236 = por %p234, %p235
      %p237 = scmp.ne.s32.totalorder %s229, %s232
      %p238 = scmp.eq.s32.totalorder %s25, 0
      %p239 = por %p237, %p238
      %p240 = scmp.ne.s32.totalorder %s229, %s232
      %p241 = scmp.eq.s32.totalorder %s30, 1
      %p242 = por %p240, %p241
      %p243 = scmp.ne.s32.totalorder %s232, %s233
      %p244 = scmp.eq.s32.totalorder %s30, 0
      %p245 = por %p243, %p244
      %p246 = scmp.ne.s32.totalorder %s232, %s233
      %p247 = scmp.eq.s32.totalorder %s31, 1
      %p248 = por %p246, %p247
      %p250 = scmp.ne.s32.totalorder %s233, %s249
      %p251 = scmp.eq.s32.totalorder %s31, 0
      %p252 = por %p250, %p251
      %s254 = sadd.s32 %s253, 1
      %p257 = scmp.eq.s32.totalorder %s25, 1
      %p258 = scmp.ne.s32.totalorder %s253, %s255
      %p259 = scmp.eq.s32.totalorder %s25, 0
      %p260 = por %p258, %p259
      %p261 = scmp.ne.s32.totalorder %s253, %s255
      %p262 = scmp.eq.s32.totalorder %s30, 1
      %p263 = por %p261, %p262
      %p264 = scmp.ne.s32.totalorder %s255, %s256
      %p265 = scmp.eq.s32.totalorder %s30, 0
      %p266 = por %p264, %p265
      %p267 = scmp.ne.s32.totalorder %s255, %s256
      %p268 = scmp.eq.s32.totalorder %s31, 1
      %p269 = por %p267, %p268
      %p271 = scmp.ne.s32.totalorder %s256, %s270
      %p272 = scmp.eq.s32.totalorder %s31, 0
      %p273 = por %p271, %p272
      %s274 = ssub.s32 %s25, %s32
      %p275 = scmp.eq.s32.totalorder %s274, 0
      %s277 = sadd.s32 %s276, 1
      %s278 = scalar_select %p275, %s276, %s277
      %p281 = pneg %p275
      %p282 = scmp.eq.s32.totalorder %s25, 1
      %p283 = por %p281, %p282
      %p284 = scmp.ne.s32.totalorder %s276, %s279
      %p285 = scmp.eq.s32.totalorder %s25, 0
      %p286 = por %p284, %p285
      %p287 = scmp.ne.s32.totalorder %s276, %s279
      %p288 = scmp.eq.s32.totalorder %s30, 1
      %p289 = por %p287, %p288
      %p290 = scmp.ne.s32.totalorder %s279, %s280
      %p291 = scmp.eq.s32.totalorder %s30, 0
      %p292 = por %p290, %p291
      %p293 = scmp.ne.s32.totalorder %s279, %s280
      %p294 = scmp.eq.s32.totalorder %s31, 1
      %p295 = por %p293, %p294
      %p297 = scmp.ne.s32.totalorder %s280, %s296
      %p298 = scmp.eq.s32.totalorder %s31, 0
      %p299 = por %p297, %p298
      %s300 = ssub.s32 %s25, %s32
      %p301 = scmp.eq.s32.totalorder %s300, 0
      %s303 = sadd.s32 %s302, 1
      %s304 = scalar_select %p301, %s302, %s303
      %p307 = pneg %p301
      %p308 = scmp.eq.s32.totalorder %s25, 1
      %p309 = por %p307, %p308
      %p310 = scmp.ne.s32.totalorder %s302, %s305
      %p311 = scmp.eq.s32.totalorder %s25, 0
      %p312 = por %p310, %p311
      %p313 = scmp.ne.s32.totalorder %s302, %s305
      %p314 = scmp.eq.s32.totalorder %s30, 1
      %p315 = por %p313, %p314
      %p316 = scmp.ne.s32.totalorder %s305, %s306
      %p317 = scmp.eq.s32.totalorder %s30, 0
      %p318 = por %p316, %p317
      %p319 = scmp.ne.s32.totalorder %s305, %s306
      %p320 = scmp.eq.s32.totalorder %s31, 1
      %p321 = por %p319, %p320
      %p323 = scmp.ne.s32.totalorder %s306, %s322
      %p324 = scmp.eq.s32.totalorder %s31, 0
      %p325 = por %p323, %p324
      %p326 = scmp.le.s32.totalorder 1, %s25
      %p327 = scmp.lt.s32.totalorder %s25, 3
      %p328 = pnand %p326, %p327
      %p329 = pneg %p328
      // Predicated region
      $region9: #{preact_block.1} parent=5 // pred_check
        _
      $region10: #{preact_block.1} parent=5 // pred_check_branch
        %331 = sbr.rel (%p328) target = $region12
      $region11: #{preact_block.1} parent=5 // pred_region
        %s332 = ssub.s32 %s25, 1
        // Predicated region
        $region13: #{preact_block.1} parent=11 // pred_check
          %p333 = pneg %p72
        $region14: #{preact_block.1} parent=11 // pred_check_branch
          %335 = sbr.rel (%p333) target = $region16
        $region15: #{preact_block.1} parent=11 // pred_region
          _
        $region16: #{preact_block.1} parent=11 // pred_fallthru
          _
        // Predicated region
        $region17: #{preact_block.1} parent=11 // pred_check
          %p336 = pneg %p93
        $region18: #{preact_block.1} parent=11 // pred_check_branch
          %338 = sbr.rel (%p336) target = $region20
        $region19: #{preact_block.1} parent=11 // pred_region
          _
        $region20: #{preact_block.1} parent=11 // pred_fallthru
          _
        // Predicated region
        $region21: #{preact_block.1} parent=11 // pred_check
          %p339 = pneg %p114
        $region22: #{preact_block.1} parent=11 // pred_check_branch
          %341 = sbr.rel (%p339) target = $region24
        $region23: #{preact_block.1} parent=11 // pred_region
          _
        $region24: #{preact_block.1} parent=11 // pred_fallthru
          _
        // Predicated region
        $region25: #{preact_block.1} parent=11 // pred_check
          %p342 = pneg %p135
        $region26: #{preact_block.1} parent=11 // pred_check_branch
          %344 = sbr.rel (%p342) target = $region28
        $region27: #{preact_block.1} parent=11 // pred_region
          _
        $region28: #{preact_block.1} parent=11 // pred_fallthru
          _
        // Predicated region
        $region29: #{preact_block.1} parent=11 // pred_check
          %p345 = pneg %p156
        $region30: #{preact_block.1} parent=11 // pred_check_branch
          %347 = sbr.rel (%p345) target = $region32
        $region31: #{preact_block.1} parent=11 // pred_region
          _
        $region32: #{preact_block.1} parent=11 // pred_fallthru
          _
        // Predicated region
        $region33: #{preact_block.1} parent=11 // pred_check
          %p348 = pneg %p177
        $region34: #{preact_block.1} parent=11 // pred_check_branch
          %350 = sbr.rel (%p348) target = $region36
        $region35: #{preact_block.1} parent=11 // pred_region
          _
        $region36: #{preact_block.1} parent=11 // pred_fallthru
          _
        // Predicated region
        $region37: #{preact_block.1} parent=11 // pred_check
          %p351 = pneg %p198
        $region38: #{preact_block.1} parent=11 // pred_check_branch
          %353 = sbr.rel (%p351) target = $region40
        $region39: #{preact_block.1} parent=11 // pred_region
          _
        $region40: #{preact_block.1} parent=11 // pred_fallthru
          _
        // Predicated region
        $region41: #{preact_block.1} parent=11 // pred_check
          %p354 = pneg %p219
        $region42: #{preact_block.1} parent=11 // pred_check_branch
          %356 = sbr.rel (%p354) target = $region44
        $region43: #{preact_block.1} parent=11 // pred_region
          _
        $region44: #{preact_block.1} parent=11 // pred_fallthru
          _
        // Predicated region
        $region45: #{preact_block.1} parent=11 // pred_check
          %p357 = pneg %p266
        $region46: #{preact_block.1} parent=11 // pred_check_branch
          %359 = sbr.rel (%p357) target = $region48
        $region47: #{preact_block.1} parent=11 // pred_region
          _
        $region48: #{preact_block.1} parent=11 // pred_fallthru
          _
      $region12: #{preact_block.1} parent=5 // pred_fallthru
        _
      %p360 = scmp.lt.s32.totalorder %s25, 2
      // Predicated region
      $region49: #{preact_block.1} parent=5 // pred_check
        %p361 = pneg %p360
      $region50: #{preact_block.1} parent=5 // pred_check_branch
        %363 = sbr.rel (%p361) target = $region52
      $region51: #{preact_block.1} parent=5 // pred_region
        // Predicated region
        $region53: #{preact_block.1} parent=51 // pred_check
          %p364 = pneg %p45
        $region54: #{preact_block.1} parent=51 // pred_check_branch
          %366 = sbr.rel (%p364) target = $region56
        $region55: #{preact_block.1} parent=51 // pred_region
          %s367 = smul.u32 2, %s25
          %p368 = scmp.lt.s32.totalorder %s367, 3
          %s369 = scalar_select %p368, %s367, 3
          %s370 = smul.addr %s369, 8
          %s371 = smul.addr %s370, 8
          %s372 = scalar_lea.vmem %s0, %s371
          %s373 = smul.u32 2, %s25
        $region56: #{preact_block.1} parent=51 // pred_fallthru
          _
        // Predicated region
        $region57: #{preact_block.1} parent=51 // pred_check
          %p374 = pneg %p239
        $region58: #{preact_block.1} parent=51 // pred_check_branch
          %376 = sbr.rel (%p374) target = $region60
        $region59: #{preact_block.1} parent=51 // pred_region
          %s377 = smul.u32 2, %s25
          %p378 = scmp.lt.s32.totalorder %s377, 3
          %s379 = scalar_select %p378, %s377, 3
          %s380 = scalar_lea.vmem %s9, %s379
          %s381 = smul.u32 2, %s25
        $region60: #{preact_block.1} parent=51 // pred_fallthru
          _
      $region52: #{preact_block.1} parent=5 // pred_fallthru
        _
      %p382 = scmp.le.s32.totalorder 1, %s25
      %p383 = scmp.lt.s32.totalorder %s25, 3
      %p384 = pnand %p382, %p383
      %p385 = pneg %p384
      // Predicated region
      $region61: #{preact_block.1} parent=5 // pred_check
        _
      $region62: #{preact_block.1} parent=5 // pred_check_branch
        %387 = sbr.rel (%p384) target = $region64
      $region63: #{preact_block.1} parent=5 // pred_region
        %s388 = ssub.s32 %s25, 1
        %s389 = smul.u32 2, %s30
        %p390 = scmp.lt.s32.totalorder %s389, 3
        %s391 = scalar_select %p390, %s389, 3
        %s392 = smul.addr %s391, 8
        %s393 = smul.addr %s392, 8
        %s394 = scalar_lea.vmem %s0, %s393
        %p395 = pneg %p51
        %p396 = pneg %p48
        %p397 = pneg %p72
        %p398 = pneg %p69
        %p399 = pneg %p93
        %p400 = pneg %p90
        %p401 = pneg %p114
        %p402 = pneg %p111
        %p403 = pneg %p135
        %p404 = pneg %p132
        %p405 = pneg %p156
        %p406 = pneg %p153
        %p407 = pneg %p177
        %p408 = pneg %p174
        %p409 = pneg %p198
        %p410 = pneg %p195
        %p411 = pneg %p219
        %p412 = pneg %p216
        %s413 = smul.u32 2, %s30
        %p414 = scmp.lt.s32.totalorder %s413, 3
        %s415 = scalar_select %p414, %s413, 3
        %s416 = scalar_lea.vmem %s9, %s415
        %p417 = pneg %p245
        %p418 = pneg %p242
        %p419 = pneg %p266
        %p420 = pneg %p263
        %p421 = pneg %p292
        %p422 = pneg %p289
        %s423 = sand.u32 %s279, 1
        %s424 = scalar_lea.sflag [#allocation7], %s423
        %s425 = sand.u32 %s279, 1
        %s426 = smul.addr %s425, 128
        %s427 = scalar_lea.vmem [#allocation6], %s426
        %p428 = pneg %p318
        %p429 = pneg %p315
        %s430 = sand.u32 %s305, 1
        %s431 = scalar_lea.sflag [#allocation9], %s430
        %s432 = sand.u32 %s305, 1
        %s433 = smul.addr %s432, 2
        %s434 = scalar_lea.vmem [#allocation8], %s433
        %s435 = smul.u32 2, %s30
        %p436 = scmp.lt.s32.totalorder %s435, 3
        %s437 = scalar_select %p436, %s435, 3
        %s438 = smul.addr %s437, 8
        %s439 = smul.addr %s438, 8
        %s440 = scalar_lea.vmem %s0, %s439
        %s441 = smul.u32 2, %s30
        %s442 = smul.u32 2, %s30
        %p443 = scmp.lt.s32.totalorder %s442, 3
        %s444 = scalar_select %p443, %s442, 3
        %s445 = scalar_lea.vmem %s9, %s444
        %s446 = smul.u32 2, %s30
        %s447 = smul.u32 2, %s30
        %s448 = smul.u32 2, %s30
        %v450 = vld [vmem:[%s440] sm:$0xff]
        %v451 = vld [vmem:[%s440 + $0x8] sm:$0xff]
        %v452 = vld [vmem:[%s440 + $0x10] sm:$0xff]
        %v453 = vld [vmem:[%s440 + $0x18] sm:$0xff]
        %v454 = vld [vmem:[%s440 + $0x20] sm:$0xff]
        %v455 = vld [vmem:[%s440 + $0x28] sm:$0xff]
        %v456 = vld [vmem:[%s440 + $0x30] sm:$0xff]
        %v457 = vld [vmem:[%s440 + $0x38] sm:$0xff]
        %v458 = vld [vmem:[%s440 + $0x40] sm:$0xff]
        %v459 = vld [vmem:[%s440 + $0x48] sm:$0xff]
        %v460 = vld [vmem:[%s440 + $0x50] sm:$0xff]
        %v461 = vld [vmem:[%s440 + $0x58] sm:$0xff]
        %v462 = vld [vmem:[%s440 + $0x60] sm:$0xff]
        %v463 = vld [vmem:[%s440 + $0x68] sm:$0xff]
        %v464 = vld [vmem:[%s440 + $0x70] sm:$0xff]
        %v465 = vld [vmem:[%s440 + $0x78] sm:$0xff]
        %v466 = vld [vmem:[%s1] sm:$0x1]
        %v468 = vperm.slane %v466, 0
        %v470 = vmul.f32 %v450, %v468
        %v471 = vmul.f32 %v451, %v468
        %v472 = vmul.f32 %v452, %v468
        %v473 = vmul.f32 %v453, %v468
        %v474 = vmul.f32 %v454, %v468
        %v475 = vmul.f32 %v455, %v468
        %v476 = vmul.f32 %v456, %v468
        %v477 = vmul.f32 %v457, %v468
        %v478 = vmul.f32 %v458, %v468
        %v479 = vmul.f32 %v459, %v468
        %v480 = vmul.f32 %v460, %v468
        %v481 = vmul.f32 %v461, %v468
        %v482 = vmul.f32 %v462, %v468
        %v483 = vmul.f32 %v463, %v468
        %v484 = vmul.f32 %v464, %v468
        %v485 = vmul.f32 %v465, %v468
        %v486 = vld [vmem:[%s2] sm:$0x1]
        %v488 = vperm.slane %v486, 0
        %v490 = vadd.f32 %v470, %v488
        %v491 = vadd.f32 %v471, %v488
        %v492 = vadd.f32 %v472, %v488
        %v493 = vadd.f32 %v473, %v488
        %v494 = vadd.f32 %v474, %v488
        %v495 = vadd.f32 %v475, %v488
        %v496 = vadd.f32 %v476, %v488
        %v497 = vadd.f32 %v477, %v488
        %v498 = vadd.f32 %v478, %v488
        %v499 = vadd.f32 %v479, %v488
        %v500 = vadd.f32 %v480, %v488
        %v501 = vadd.f32 %v481, %v488
        %v502 = vadd.f32 %v482, %v488
        %v503 = vadd.f32 %v483, %v488
        %v504 = vadd.f32 %v484, %v488
        %v505 = vadd.f32 %v485, %v488
        %v506 = vmax.f32 %v490, 0.0
        %v507 = vmax.f32 %v491, 0.0
        %v508 = vmax.f32 %v492, 0.0
        %v509 = vmax.f32 %v493, 0.0
        %v510 = vmax.f32 %v494, 0.0
        %v511 = vmax.f32 %v495, 0.0
        %v512 = vmax.f32 %v496, 0.0
        %v513 = vmax.f32 %v497, 0.0
        %v514 = vmax.f32 %v498, 0.0
        %v515 = vmax.f32 %v499, 0.0
        %v516 = vmax.f32 %v500, 0.0
        %v517 = vmax.f32 %v501, 0.0
        %v518 = vmax.f32 %v502, 0.0
        %v519 = vmax.f32 %v503, 0.0
        %v520 = vmax.f32 %v504, 0.0
        %v521 = vmax.f32 %v505, 0.0
        %v522 = vpack.c.bf16 %v506, %v506
        %v523 = vpack.c.bf16 %v507, %v507
        %v524 = vpack.c.bf16 %v508, %v508
        %v525 = vpack.c.bf16 %v509, %v509
        %v526 = vpack.c.bf16 %v510, %v510
        %v527 = vpack.c.bf16 %v511, %v511
        %v528 = vpack.c.bf16 %v512, %v512
        %v529 = vpack.c.bf16 %v513, %v513
        %v530 = vpack.c.bf16 %v514, %v514
        %v531 = vpack.c.bf16 %v515, %v515
        %v532 = vpack.c.bf16 %v516, %v516
        %v533 = vpack.c.bf16 %v517, %v517
        %v534 = vpack.c.bf16 %v518, %v518
        %v535 = vpack.c.bf16 %v519, %v519
        %v536 = vpack.c.bf16 %v520, %v520
        %v537 = vpack.c.bf16 %v521, %v521
        %vm538 = vcmask 519168
        %539 = vst.msk [vmem:[#allocation2] sm:$0xf] %vm538, 0
        %vm540 = vcmask 516096
        %vm541 = vsmask.f32 256
        %vm542 = vmand %vm540, %vm541
        %v543 = vld [vmem:[#allocation2 + $0x4] sm:$0x1]
        %v544 = vsel %vm542, 0, %v543
        %545 = vst [vmem:[#allocation2 + $0x4] sm:$0x1] %v544
        %546 = vst.msk [vmem:[#allocation2 + $0x48] sm:$0xf] %vm538, 0
        %v547 = vld [vmem:[#allocation2 + $0x4c] sm:$0x1]
        %v548 = vsel %vm542, 0, %v547
        %549 = vst [vmem:[#allocation2 + $0x4c] sm:$0x1] %v548
        %v550 = vld [vmem:[#allocation2] sm:$0x1]
        %v551 = vsel %vm542, 0, %v550
        %552 = vst [vmem:[#allocation2] sm:$0x1] %v551
        %v553 = vld [vmem:[#allocation2 + $0x8] sm:$0x1]
        %v554 = vsel %vm542, 0, %v553
        %555 = vst [vmem:[#allocation2 + $0x8] sm:$0x1] %v554
        %v556 = vld [vmem:[#allocation2 + $0x10] sm:$0x1]
        %v557 = vsel %vm542, 0, %v556
        %558 = vst [vmem:[#allocation2 + $0x10] sm:$0x1] %v557
        %v559 = vld [vmem:[#allocation2 + $0x18] sm:$0x1]
        %v560 = vsel %vm542, 0, %v559
        %561 = vst [vmem:[#allocation2 + $0x18] sm:$0x1] %v560
        %v562 = vld [vmem:[#allocation2 + $0x20] sm:$0x1]
        %v563 = vsel %vm542, 0, %v562
        %564 = vst [vmem:[#allocation2 + $0x20] sm:$0x1] %v563
        %v565 = vld [vmem:[#allocation2 + $0x28] sm:$0x1]
        %v566 = vsel %vm542, 0, %v565
        %567 = vst [vmem:[#allocation2 + $0x28] sm:$0x1] %v566
        %v568 = vld [vmem:[#allocation2 + $0x30] sm:$0x1]
        %v569 = vsel %vm542, 0, %v568
        %570 = vst [vmem:[#allocation2 + $0x30] sm:$0x1] %v569
        %v571 = vld [vmem:[#allocation2 + $0x38] sm:$0x1]
        %v572 = vsel %vm542, 0, %v571
        %573 = vst [vmem:[#allocation2 + $0x38] sm:$0x1] %v572
        %v574 = vld [vmem:[#allocation2 + $0x40] sm:$0x1]
        %v575 = vsel %vm542, 0, %v574
        %576 = vst [vmem:[#allocation2 + $0x40] sm:$0x1] %v575
        %v577 = vld [vmem:[#allocation2 + $0x48] sm:$0x1]
        %v578 = vsel %vm542, 0, %v577
        %579 = vst [vmem:[#allocation2 + $0x48] sm:$0x1] %v578
        %v580 = vld [vmem:[#allocation2 + $0x50] sm:$0x1]
        %v581 = vsel %vm542, 0, %v580
        %582 = vst [vmem:[#allocation2 + $0x50] sm:$0x1] %v581
        %v583 = vld [vmem:[#allocation2 + $0x58] sm:$0x1]
        %v584 = vsel %vm542, 0, %v583
        %585 = vst [vmem:[#allocation2 + $0x58] sm:$0x1] %v584
        %v586 = vld [vmem:[#allocation2 + $0x60] sm:$0x1]
        %v587 = vsel %vm542, 0, %v586
        %588 = vst [vmem:[#allocation2 + $0x60] sm:$0x1] %v587
        %v589 = vld [vmem:[#allocation2 + $0x68] sm:$0x1]
        %v590 = vsel %vm542, 0, %v589
        %591 = vst [vmem:[#allocation2 + $0x68] sm:$0x1] %v590
        %v592 = vld [vmem:[#allocation2 + $0x70] sm:$0x1]
        %v593 = vsel %vm542, 0, %v592
        %594 = vst [vmem:[#allocation2 + $0x70] sm:$0x1] %v593
        %v595 = vld [vmem:[#allocation2 + $0x78] sm:$0x1]
        %v596 = vsel %vm542, 0, %v595
        %597 = vst [vmem:[#allocation2 + $0x78] sm:$0x1] %v596
        %v598 = vld [vmem:[#allocation2 + $0x80] sm:$0x1]
        %v599 = vsel %vm542, 0, %v598
        %600 = vst [vmem:[#allocation2 + $0x80] sm:$0x1] %v599
        %v601 = vld [vmem:[#allocation2 + $0x88] sm:$0x1]
        %v602 = vsel %vm542, 0, %v601
        %603 = vst [vmem:[#allocation2 + $0x88] sm:$0x1] %v602
        %v605 = vshrl.u32 %v522, 16
        %v607 = vrot.slane %v605, 7
        %v608 = vshll.u32 %v522, 16
        %v610 = vor.u32 %v607, %v608
        %v611 = vrot.slane %v607, 4
        %v613 = vshrl.u32 %v523, 16
        %v615 = vrot.slane %v613, 7
        %v616 = vshll.u32 %v523, 16
        %v618 = vor.u32 %v615, %v616
        %v619 = vrot.slane %v615, 4
        %v621 = vshrl.u32 %v524, 16
        %v623 = vrot.slane %v621, 7
        %v624 = vshll.u32 %v524, 16
        %v626 = vor.u32 %v623, %v624
        %v627 = vrot.slane %v623, 4
        %v629 = vshrl.u32 %v525, 16
        %v631 = vrot.slane %v629, 7
        %v632 = vshll.u32 %v525, 16
        %v634 = vor.u32 %v631, %v632
        %v635 = vrot.slane %v631, 4
        %v637 = vshrl.u32 %v526, 16
        %v639 = vrot.slane %v637, 7
        %v640 = vshll.u32 %v526, 16
        %v642 = vor.u32 %v639, %v640
        %v643 = vrot.slane %v639, 4
        %v645 = vshrl.u32 %v527, 16
        %v647 = vrot.slane %v645, 7
        %v648 = vshll.u32 %v527, 16
        %v650 = vor.u32 %v647, %v648
        %v651 = vrot.slane %v647, 4
        %v653 = vshrl.u32 %v528, 16
        %v655 = vrot.slane %v653, 7
        %v656 = vshll.u32 %v528, 16
        %v658 = vor.u32 %v655, %v656
        %v659 = vrot.slane %v655, 4
        %v661 = vshrl.u32 %v529, 16
        %v663 = vrot.slane %v661, 7
        %v664 = vshll.u32 %v529, 16
        %v666 = vor.u32 %v663, %v664
        %v667 = vrot.slane %v663, 4
        %v669 = vshrl.u32 %v530, 16
        %v671 = vrot.slane %v669, 7
        %v672 = vshll.u32 %v530, 16
        %v674 = vor.u32 %v671, %v672
        %v675 = vrot.slane %v671, 4
        %v677 = vshrl.u32 %v531, 16
        %v679 = vrot.slane %v677, 7
        %v680 = vshll.u32 %v531, 16
        %v682 = vor.u32 %v679, %v680
        %v683 = vrot.slane %v679, 4
        %v685 = vshrl.u32 %v532, 16
        %v687 = vrot.slane %v685, 7
        %v688 = vshll.u32 %v532, 16
        %v690 = vor.u32 %v687, %v688
        %v691 = vrot.slane %v687, 4
        %v693 = vshrl.u32 %v533, 16
        %v695 = vrot.slane %v693, 7
        %v696 = vshll.u32 %v533, 16
        %v698 = vor.u32 %v695, %v696
        %v699 = vrot.slane %v695, 4
        %v701 = vshrl.u32 %v534, 16
        %v703 = vrot.slane %v701, 7
        %v704 = vshll.u32 %v534, 16
        %v706 = vor.u32 %v703, %v704
        %v707 = vrot.slane %v703, 4
        %v709 = vshrl.u32 %v535, 16
        %v711 = vrot.slane %v709, 7
        %v712 = vshll.u32 %v535, 16
        %v714 = vor.u32 %v711, %v712
        %v715 = vrot.slane %v711, 4
        %v717 = vshrl.u32 %v536, 16
        %v719 = vrot.slane %v717, 7
        %v720 = vshll.u32 %v536, 16
        %v722 = vor.u32 %v719, %v720
        %v723 = vrot.slane %v719, 4
        %v725 = vshrl.u32 %v537, 16
        %v727 = vrot.slane %v725, 7
        %v728 = vshll.u32 %v537, 16
        %v730 = vor.u32 %v727, %v728
        %v731 = vrot.slane %v727, 4
        %s764 = scalar_lea.vmem [#allocation2], 8
        %vm765 = vcmask 519168
        %vm766 = vsmask.f32 7938
        %vm767 = vmand %vm765, %vm766
        %v768 = vld [vmem:[%s764] sm:$0xf]
        %v769 = vsel %vm767, %v610, %v768
        %770 = vst [vmem:[%s764] sm:$0xf] %v769
        %v771 = vld [vmem:[%s764 + $0x4] sm:$0x1]
        %v772 = vsel %vm542, %v611, %v771
        %773 = vst [vmem:[%s764 + $0x4] sm:$0x1] %v772
        %v774 = vld [vmem:[%s764 + $0x8] sm:$0xf]
        %v775 = vsel %vm767, %v618, %v774
        %776 = vst [vmem:[%s764 + $0x8] sm:$0xf] %v775
        %v777 = vld [vmem:[%s764 + $0xc] sm:$0x1]
        %v778 = vsel %vm542, %v619, %v777
        %779 = vst [vmem:[%s764 + $0xc] sm:$0x1] %v778
        %v780 = vld [vmem:[%s764 + $0x10] sm:$0xf]
        %v781 = vsel %vm767, %v626, %v780
        %782 = vst [vmem:[%s764 + $0x10] sm:$0xf] %v781
        %v783 = vld [vmem:[%s764 + $0x14] sm:$0x1]
        %v784 = vsel %vm542, %v627, %v783
        %785 = vst [vmem:[%s764 + $0x14] sm:$0x1] %v784
        %v786 = vld [vmem:[%s764 + $0x18] sm:$0xf]
        %v787 = vsel %vm767, %v634, %v786
        %788 = vst [vmem:[%s764 + $0x18] sm:$0xf] %v787
        %v789 = vld [vmem:[%s764 + $0x1c] sm:$0x1]
        %v790 = vsel %vm542, %v635, %v789
        %791 = vst [vmem:[%s764 + $0x1c] sm:$0x1] %v790
        %v792 = vld [vmem:[%s764 + $0x20] sm:$0xf]
        %v793 = vsel %vm767, %v642, %v792
        %794 = vst [vmem:[%s764 + $0x20] sm:$0xf] %v793
        %v795 = vld [vmem:[%s764 + $0x24] sm:$0x1]
        %v796 = vsel %vm542, %v643, %v795
        %797 = vst [vmem:[%s764 + $0x24] sm:$0x1] %v796
        %v798 = vld [vmem:[%s764 + $0x28] sm:$0xf]
        %v799 = vsel %vm767, %v650, %v798
        %800 = vst [vmem:[%s764 + $0x28] sm:$0xf] %v799
        %v801 = vld [vmem:[%s764 + $0x2c] sm:$0x1]
        %v802 = vsel %vm542, %v651, %v801
        %803 = vst [vmem:[%s764 + $0x2c] sm:$0x1] %v802
        %v804 = vld [vmem:[%s764 + $0x30] sm:$0xf]
        %v805 = vsel %vm767, %v658, %v804
        %806 = vst [vmem:[%s764 + $0x30] sm:$0xf] %v805
        %v807 = vld [vmem:[%s764 + $0x34] sm:$0x1]
        %v808 = vsel %vm542, %v659, %v807
        %809 = vst [vmem:[%s764 + $0x34] sm:$0x1] %v808
        %v810 = vld [vmem:[%s764 + $0x38] sm:$0xf]
        %v811 = vsel %vm767, %v666, %v810
        %812 = vst [vmem:[%s764 + $0x38] sm:$0xf] %v811
        %v813 = vld [vmem:[%s764 + $0x3c] sm:$0x1]
        %v814 = vsel %vm542, %v667, %v813
        %815 = vst [vmem:[%s764 + $0x3c] sm:$0x1] %v814
        %v816 = vld [vmem:[%s764 + $0x48] sm:$0xf]
        %v817 = vsel %vm767, %v674, %v816
        %818 = vst [vmem:[%s764 + $0x48] sm:$0xf] %v817
        %v819 = vld [vmem:[%s764 + $0x4c] sm:$0x1]
        %v820 = vsel %vm542, %v675, %v819
        %821 = vst [vmem:[%s764 + $0x4c] sm:$0x1] %v820
        %v822 = vld [vmem:[%s764 + $0x50] sm:$0xf]
        %v823 = vsel %vm767, %v682, %v822
        %824 = vst [vmem:[%s764 + $0x50] sm:$0xf] %v823
        %v825 = vld [vmem:[%s764 + $0x54] sm:$0x1]
        %v826 = vsel %vm542, %v683, %v825
        %827 = vst [vmem:[%s764 + $0x54] sm:$0x1] %v826
        %v828 = vld [vmem:[%s764 + $0x58] sm:$0xf]
        %v829 = vsel %vm767, %v690, %v828
        %830 = vst [vmem:[%s764 + $0x58] sm:$0xf] %v829
        %v831 = vld [vmem:[%s764 + $0x5c] sm:$0x1]
        %v832 = vsel %vm542, %v691, %v831
        %833 = vst [vmem:[%s764 + $0x5c] sm:$0x1] %v832
        %v834 = vld [vmem:[%s764 + $0x60] sm:$0xf]
        %v835 = vsel %vm767, %v698, %v834
        %836 = vst [vmem:[%s764 + $0x60] sm:$0xf] %v835
        %v837 = vld [vmem:[%s764 + $0x64] sm:$0x1]
        %v838 = vsel %vm542, %v699, %v837
        %839 = vst [vmem:[%s764 + $0x64] sm:$0x1] %v838
        %v840 = vld [vmem:[%s764 + $0x68] sm:$0xf]
        %v841 = vsel %vm767, %v706, %v840
        %842 = vst [vmem:[%s764 + $0x68] sm:$0xf] %v841
        %v843 = vld [vmem:[%s764 + $0x6c] sm:$0x1]
        %v844 = vsel %vm542, %v707, %v843
        %845 = vst [vmem:[%s764 + $0x6c] sm:$0x1] %v844
        %v846 = vld [vmem:[%s764 + $0x70] sm:$0xf]
        %v847 = vsel %vm767, %v714, %v846
        %848 = vst [vmem:[%s764 + $0x70] sm:$0xf] %v847
        %v849 = vld [vmem:[%s764 + $0x74] sm:$0x1]
        %v850 = vsel %vm542, %v715, %v849
        %851 = vst [vmem:[%s764 + $0x74] sm:$0x1] %v850
        %v852 = vld [vmem:[%s764 + $0x78] sm:$0xf]
        %v853 = vsel %vm767, %v722, %v852
        %854 = vst [vmem:[%s764 + $0x78] sm:$0xf] %v853
        %v855 = vld [vmem:[%s764 + $0x7c] sm:$0x1]
        %v856 = vsel %vm542, %v723, %v855
        %857 = vst [vmem:[%s764 + $0x7c] sm:$0x1] %v856
        %v858 = vld [vmem:[%s764 + $0x80] sm:$0xf]
        %v859 = vsel %vm767, %v730, %v858
        %860 = vst [vmem:[%s764 + $0x80] sm:$0xf] %v859
        %v861 = vld [vmem:[%s764 + $0x84] sm:$0x1]
        %v862 = vsel %vm542, %v731, %v861
        %863 = vst [vmem:[%s764 + $0x84] sm:$0x1] %v862
        %v864 = vld [vmem:[#allocation2] sm:$0xf]
        %v865 = vld [vmem:[#allocation2 + $0x8] sm:$0xf]
        %v866 = vld [vmem:[#allocation2 + $0x10] sm:$0xf]
        %v867 = vld [vmem:[#allocation2 + $0x18] sm:$0xf]
        %v868 = vld [vmem:[#allocation2 + $0x20] sm:$0xf]
        %v869 = vld [vmem:[#allocation2 + $0x28] sm:$0xf]
        %v870 = vld [vmem:[#allocation2 + $0x30] sm:$0xf]
        %v871 = vld [vmem:[#allocation2 + $0x38] sm:$0xf]
        %880 = vrot.lane.b32.xlu0 %v864, 80
        %v881 = vpop.permute.xlu0 %880
        %882 = vrot.lane.b32.xlu0 %v865, 80
        %v883 = vpop.permute.xlu0 %882
        %884 = vrot.lane.b32.xlu0 %v866, 80
        %v885 = vpop.permute.xlu0 %884
        %886 = vrot.lane.b32.xlu0 %v867, 80
        %v887 = vpop.permute.xlu0 %886
        %888 = vrot.lane.b32.xlu0 %v868, 80
        %v889 = vpop.permute.xlu0 %888
        %890 = vrot.lane.b32.xlu0 %v869, 80
        %v891 = vpop.permute.xlu0 %890
        %892 = vrot.lane.b32.xlu0 %v870, 80
        %v893 = vpop.permute.xlu0 %892
        %894 = vrot.lane.b32.xlu0 %v871, 80
        %v895 = vpop.permute.xlu0 %894
        %vm904 = vcmask 125952
        %905 = vst.msk [vmem:[#allocation4] sm:$0xf] %vm904, %v881
        %906 = vst.msk [vmem:[#allocation4 + $0x8] sm:$0xf] %vm904, %v883
        %907 = vst.msk [vmem:[#allocation4 + $0x10] sm:$0xf] %vm904, %v885
        %908 = vst.msk [vmem:[#allocation4 + $0x18] sm:$0xf] %vm904, %v887
        %909 = vst.msk [vmem:[#allocation4 + $0x20] sm:$0xf] %vm904, %v889
        %910 = vst.msk [vmem:[#allocation4 + $0x28] sm:$0xf] %vm904, %v891
        %911 = vst.msk [vmem:[#allocation4 + $0x30] sm:$0xf] %vm904, %v893
        %912 = vst.msk [vmem:[#allocation4 + $0x38] sm:$0xf] %vm904, %v895
        %v913 = vld [vmem:[#allocation2] sm:$0xf]
        %v914 = vld [vmem:[#allocation2 + $0x4] sm:$0x1]
        %v915 = vld [vmem:[#allocation2 + $0x8] sm:$0xf]
        %v916 = vld [vmem:[#allocation2 + $0xc] sm:$0x1]
        %v917 = vld [vmem:[#allocation2 + $0x10] sm:$0xf]
        %v918 = vld [vmem:[#allocation2 + $0x14] sm:$0x1]
        %v919 = vld [vmem:[#allocation2 + $0x18] sm:$0xf]
        %v920 = vld [vmem:[#allocation2 + $0x1c] sm:$0x1]
        %v921 = vld [vmem:[#allocation2 + $0x20] sm:$0xf]
        %v922 = vld [vmem:[#allocation2 + $0x24] sm:$0x1]
        %v923 = vld [vmem:[#allocation2 + $0x28] sm:$0xf]
        %v924 = vld [vmem:[#allocation2 + $0x2c] sm:$0x1]
        %v925 = vld [vmem:[#allocation2 + $0x30] sm:$0xf]
        %v926 = vld [vmem:[#allocation2 + $0x34] sm:$0x1]
        %v927 = vld [vmem:[#allocation2 + $0x38] sm:$0xf]
        %v928 = vld [vmem:[#allocation2 + $0x3c] sm:$0x1]
        %vm929 = vsmask.f32 3328
        %vm930 = vsmask.f32 7440
        %vm931 = vmor %vm929, %vm930
        %v933 = vshrl.u32 %v913, 16
        %v935 = vrot.slane %v933, 4
        %v936 = vshll.u32 %v913, 16
        %v938 = vrot.slane %v936, 5
        %v939 = vor.u32 %v935, %v938
        %v940 = vrot.slane %v939, 4
        %v942 = vshll.u32 %v914, 16
        %v944 = vrot.slane %v942, 5
        %v945 = vsel %vm931, %v940, %v944
        %v947 = vshrl.u32 %v915, 16
        %v949 = vrot.slane %v947, 4
        %v950 = vshll.u32 %v915, 16
        %v952 = vrot.slane %v950, 5
        %v953 = vor.u32 %v949, %v952
        %v954 = vrot.slane %v953, 4
        %v956 = vshll.u32 %v916, 16
        %v958 = vrot.slane %v956, 5
        %v959 = vsel %vm931, %v954, %v958
        %v961 = vshrl.u32 %v917, 16
        %v963 = vrot.slane %v961, 4
        %v964 = vshll.u32 %v917, 16
        %v966 = vrot.slane %v964, 5
        %v967 = vor.u32 %v963, %v966
        %v968 = vrot.slane %v967, 4
        %v970 = vshll.u32 %v918, 16
        %v972 = vrot.slane %v970, 5
        %v973 = vsel %vm931, %v968, %v972
        %v975 = vshrl.u32 %v919, 16
        %v977 = vrot.slane %v975, 4
        %v978 = vshll.u32 %v919, 16
        %v980 = vrot.slane %v978, 5
        %v981 = vor.u32 %v977, %v980
        %v982 = vrot.slane %v981, 4
        %v984 = vshll.u32 %v920, 16
        %v986 = vrot.slane %v984, 5
        %v987 = vsel %vm931, %v982, %v986
        %v989 = vshrl.u32 %v921, 16
        %v991 = vrot.slane %v989, 4
        %v992 = vshll.u32 %v921, 16
        %v994 = vrot.slane %v992, 5
        %v995 = vor.u32 %v991, %v994
        %v996 = vrot.slane %v995, 4
        %v998 = vshll.u32 %v922, 16
        %v1000 = vrot.slane %v998, 5
        %v1001 = vsel %vm931, %v996, %v1000
        %v1003 = vshrl.u32 %v923, 16
        %v1005 = vrot.slane %v1003, 4
        %v1006 = vshll.u32 %v923, 16
        %v1008 = vrot.slane %v1006, 5
        %v1009 = vor.u32 %v1005, %v1008
        %v1010 = vrot.slane %v1009, 4
        %v1012 = vshll.u32 %v924, 16
        %v1014 = vrot.slane %v1012, 5
        %v1015 = vsel %vm931, %v1010, %v1014
        %v1017 = vshrl.u32 %v925, 16
        %v1019 = vrot.slane %v1017, 4
        %v1020 = vshll.u32 %v925, 16
        %v1022 = vrot.slane %v1020, 5
        %v1023 = vor.u32 %v1019, %v1022
        %v1024 = vrot.slane %v1023, 4
        %v1026 = vshll.u32 %v926, 16
        %v1028 = vrot.slane %v1026, 5
        %v1029 = vsel %vm931, %v1024, %v1028
        %v1031 = vshrl.u32 %v927, 16
        %v1033 = vrot.slane %v1031, 4
        %v1034 = vshll.u32 %v927, 16
        %v1036 = vrot.slane %v1034, 5
        %v1037 = vor.u32 %v1033, %v1036
        %v1038 = vrot.slane %v1037, 4
        %v1040 = vshll.u32 %v928, 16
        %v1042 = vrot.slane %v1040, 5
        %v1043 = vsel %vm931, %v1038, %v1042
        %1044 = vrot.lane.b32.xlu0 %v945, 112
        %v1045 = vpop.permute.xlu0 %1044
        %1046 = vrot.lane.b32.xlu0 %v959, 112
        %v1047 = vpop.permute.xlu0 %1046
        %1048 = vrot.lane.b32.xlu0 %v973, 112
        %v1049 = vpop.permute.xlu0 %1048
        %1050 = vrot.lane.b32.xlu0 %v987, 112
        %v1051 = vpop.permute.xlu0 %1050
        %1052 = vrot.lane.b32.xlu0 %v1001, 112
        %v1053 = vpop.permute.xlu0 %1052
        %1054 = vrot.lane.b32.xlu0 %v1015, 112
        %v1055 = vpop.permute.xlu0 %1054
        %1056 = vrot.lane.b32.xlu0 %v1029, 112
        %v1057 = vpop.permute.xlu0 %1056
        %1058 = vrot.lane.b32.xlu0 %v1043, 112
        %v1059 = vpop.permute.xlu0 %1058
        %vm1068 = vcmask 257152
        %1069 = vst.msk [vmem:[#allocation4] sm:$0xf] %vm1068, %v1045
        %1070 = vst.msk [vmem:[#allocation4 + $0x8] sm:$0xf] %vm1068, %v1047
        %1071 = vst.msk [vmem:[#allocation4 + $0x10] sm:$0xf] %vm1068, %v1049
        %1072 = vst.msk [vmem:[#allocation4 + $0x18] sm:$0xf] %vm1068, %v1051
        %1073 = vst.msk [vmem:[#allocation4 + $0x20] sm:$0xf] %vm1068, %v1053
        %1074 = vst.msk [vmem:[#allocation4 + $0x28] sm:$0xf] %vm1068, %v1055
        %1075 = vst.msk [vmem:[#allocation4 + $0x30] sm:$0xf] %vm1068, %v1057
        %1076 = vst.msk [vmem:[#allocation4 + $0x38] sm:$0xf] %vm1068, %v1059
        %v1077 = vld [vmem:[#allocation2] sm:$0xf]
        %v1078 = vld [vmem:[#allocation2 + $0x4] sm:$0x1]
        %v1079 = vld [vmem:[#allocation2 + $0x8] sm:$0xf]
        %v1080 = vld [vmem:[#allocation2 + $0xc] sm:$0x1]
        %v1081 = vld [vmem:[#allocation2 + $0x10] sm:$0xf]
        %v1082 = vld [vmem:[#allocation2 + $0x14] sm:$0x1]
        %v1083 = vld [vmem:[#allocation2 + $0x18] sm:$0xf]
        %v1084 = vld [vmem:[#allocation2 + $0x1c] sm:$0x1]
        %v1085 = vld [vmem:[#allocation2 + $0x20] sm:$0xf]
        %v1086 = vld [vmem:[#allocation2 + $0x24] sm:$0x1]
        %v1087 = vld [vmem:[#allocation2 + $0x28] sm:$0xf]
        %v1088 = vld [vmem:[#allocation2 + $0x2c] sm:$0x1]
        %v1089 = vld [vmem:[#allocation2 + $0x30] sm:$0xf]
        %v1090 = vld [vmem:[#allocation2 + $0x34] sm:$0x1]
        %v1091 = vld [vmem:[#allocation2 + $0x38] sm:$0xf]
        %v1092 = vld [vmem:[#allocation2 + $0x3c] sm:$0x1]
        %v1094 = vshrl.u32 %v1077, 16
        %v1096 = vrot.slane %v1094, 4
        %v1097 = vshll.u32 %v1077, 16
        %v1099 = vrot.slane %v1097, 5
        %v1100 = vor.u32 %v1096, %v1099
        %v1101 = vrot.slane %v1100, 4
        %v1103 = vshll.u32 %v1078, 16
        %v1105 = vrot.slane %v1103, 5
        %v1106 = vsel %vm931, %v1101, %v1105
        %v1108 = vshrl.u32 %v1079, 16
        %v1110 = vrot.slane %v1108, 4
        %v1111 = vshll.u32 %v1079, 16
        %v1113 = vrot.slane %v1111, 5
        %v1114 = vor.u32 %v1110, %v1113
        %v1115 = vrot.slane %v1114, 4
        %v1117 = vshll.u32 %v1080, 16
        %v1119 = vrot.slane %v1117, 5
        %v1120 = vsel %vm931, %v1115, %v1119
        %v1122 = vshrl.u32 %v1081, 16
        %v1124 = vrot.slane %v1122, 4
        %v1125 = vshll.u32 %v1081, 16
        %v1127 = vrot.slane %v1125, 5
        %v1128 = vor.u32 %v1124, %v1127
        %v1129 = vrot.slane %v1128, 4
        %v1131 = vshll.u32 %v1082, 16
        %v1133 = vrot.slane %v1131, 5
        %v1134 = vsel %vm931, %v1129, %v1133
        %v1136 = vshrl.u32 %v1083, 16
        %v1138 = vrot.slane %v1136, 4
        %v1139 = vshll.u32 %v1083, 16
        %v1141 = vrot.slane %v1139, 5
        %v1142 = vor.u32 %v1138, %v1141
        %v1143 = vrot.slane %v1142, 4
        %v1145 = vshll.u32 %v1084, 16
        %v1147 = vrot.slane %v1145, 5
        %v1148 = vsel %vm931, %v1143, %v1147
        %v1150 = vshrl.u32 %v1085, 16
        %v1152 = vrot.slane %v1150, 4
        %v1153 = vshll.u32 %v1085, 16
        %v1155 = vrot.slane %v1153, 5
        %v1156 = vor.u32 %v1152, %v1155
        %v1157 = vrot.slane %v1156, 4
        %v1159 = vshll.u32 %v1086, 16
        %v1161 = vrot.slane %v1159, 5
        %v1162 = vsel %vm931, %v1157, %v1161
        %v1164 = vshrl.u32 %v1087, 16
        %v1166 = vrot.slane %v1164, 4
        %v1167 = vshll.u32 %v1087, 16
        %v1169 = vrot.slane %v1167, 5
        %v1170 = vor.u32 %v1166, %v1169
        %v1171 = vrot.slane %v1170, 4
        %v1173 = vshll.u32 %v1088, 16
        %v1175 = vrot.slane %v1173, 5
        %v1176 = vsel %vm931, %v1171, %v1175
        %v1178 = vshrl.u32 %v1089, 16
        %v1180 = vrot.slane %v1178, 4
        %v1181 = vshll.u32 %v1089, 16
        %v1183 = vrot.slane %v1181, 5
        %v1184 = vor.u32 %v1180, %v1183
        %v1185 = vrot.slane %v1184, 4
        %v1187 = vshll.u32 %v1090, 16
        %v1189 = vrot.slane %v1187, 5
        %v1190 = vsel %vm931, %v1185, %v1189
        %v1192 = vshrl.u32 %v1091, 16
        %v1194 = vrot.slane %v1192, 4
        %v1195 = vshll.u32 %v1091, 16
        %v1197 = vrot.slane %v1195, 5
        %v1198 = vor.u32 %v1194, %v1197
        %v1199 = vrot.slane %v1198, 4
        %v1201 = vshll.u32 %v1092, 16
        %v1203 = vrot.slane %v1201, 5
        %v1204 = vsel %vm931, %v1199, %v1203
        %1205 = vrot.lane.b32.xlu0 %v1106, 112
        %v1206 = vpop.permute.xlu0 %1205
        %1207 = vrot.lane.b32.xlu0 %v1120, 112
        %v1208 = vpop.permute.xlu0 %1207
        %1209 = vrot.lane.b32.xlu0 %v1134, 112
        %v1210 = vpop.permute.xlu0 %1209
        %1211 = vrot.lane.b32.xlu0 %v1148, 112
        %v1212 = vpop.permute.xlu0 %1211
        %1213 = vrot.lane.b32.xlu0 %v1162, 112
        %v1214 = vpop.permute.xlu0 %1213
        %1215 = vrot.lane.b32.xlu0 %v1176, 112
        %v1216 = vpop.permute.xlu0 %1215
        %1217 = vrot.lane.b32.xlu0 %v1190, 112
        %v1218 = vpop.permute.xlu0 %1217
        %1219 = vrot.lane.b32.xlu0 %v1204, 112
        %v1220 = vpop.permute.xlu0 %1219
        %vm1229 = vcmask 388352
        %1230 = vst.msk [vmem:[#allocation4] sm:$0xf] %vm1229, %v1206
        %1231 = vst.msk [vmem:[#allocation4 + $0x8] sm:$0xf] %vm1229, %v1208
        %1232 = vst.msk [vmem:[#allocation4 + $0x10] sm:$0xf] %vm1229, %v1210
        %1233 = vst.msk [vmem:[#allocation4 + $0x18] sm:$0xf] %vm1229, %v1212
        %1234 = vst.msk [vmem:[#allocation4 + $0x20] sm:$0xf] %vm1229, %v1214
        %1235 = vst.msk [vmem:[#allocation4 + $0x28] sm:$0xf] %vm1229, %v1216
        %1236 = vst.msk [vmem:[#allocation4 + $0x30] sm:$0xf] %vm1229, %v1218
        %1237 = vst.msk [vmem:[#allocation4 + $0x38] sm:$0xf] %vm1229, %v1220
        %v1238 = vld [vmem:[%s764] sm:$0xf]
        %v1239 = vld [vmem:[%s764 + $0x8] sm:$0xf]
        %v1240 = vld [vmem:[%s764 + $0x10] sm:$0xf]
        %v1241 = vld [vmem:[%s764 + $0x18] sm:$0xf]
        %v1242 = vld [vmem:[%s764 + $0x20] sm:$0xf]
        %v1243 = vld [vmem:[%s764 + $0x28] sm:$0xf]
        %v1244 = vld [vmem:[%s764 + $0x30] sm:$0xf]
        %v1245 = vld [vmem:[%s764 + $0x38] sm:$0xf]
        %1254 = vrot.lane.b32.xlu0 %v1238, 32
        %v1255 = vpop.permute.xlu0 %1254
        %1256 = vrot.lane.b32.xlu0 %v1239, 32
        %v1257 = vpop.permute.xlu0 %1256
        %1258 = vrot.lane.b32.xlu0 %v1240, 32
        %v1259 = vpop.permute.xlu0 %1258
        %1260 = vrot.lane.b32.xlu0 %v1241, 32
        %v1261 = vpop.permute.xlu0 %1260
        %1262 = vrot.lane.b32.xlu0 %v1242, 32
        %v1263 = vpop.permute.xlu0 %1262
        %1264 = vrot.lane.b32.xlu0 %v1243, 32
        %v1265 = vpop.permute.xlu0 %1264
        %1266 = vrot.lane.b32.xlu0 %v1244, 32
        %v1267 = vpop.permute.xlu0 %1266
        %1268 = vrot.lane.b32.xlu0 %v1245, 32
        %v1269 = vpop.permute.xlu0 %1268
        %vm1278 = vcmask 519552
        %1279 = vst.msk [vmem:[#allocation4] sm:$0xf] %vm1278, %v1255
        %1280 = vst.msk [vmem:[#allocation4 + $0x8] sm:$0xf] %vm1278, %v1257
        %1281 = vst.msk [vmem:[#allocation4 + $0x10] sm:$0xf] %vm1278, %v1259
        %1282 = vst.msk [vmem:[#allocation4 + $0x18] sm:$0xf] %vm1278, %v1261
        %1283 = vst.msk [vmem:[#allocation4 + $0x20] sm:$0xf] %vm1278, %v1263
        %1284 = vst.msk [vmem:[#allocation4 + $0x28] sm:$0xf] %vm1278, %v1265
        %1285 = vst.msk [vmem:[#allocation4 + $0x30] sm:$0xf] %vm1278, %v1267
        %1286 = vst.msk [vmem:[#allocation4 + $0x38] sm:$0xf] %vm1278, %v1269
        %v1287 = vld [vmem:[%s764] sm:$0xf]
        %v1288 = vld [vmem:[%s764 + $0x4] sm:$0x1]
        %v1289 = vld [vmem:[%s764 + $0x8] sm:$0xf]
        %v1290 = vld [vmem:[%s764 + $0xc] sm:$0x1]
        %v1291 = vld [vmem:[%s764 + $0x10] sm:$0xf]
        %v1292 = vld [vmem:[%s764 + $0x14] sm:$0x1]
        %v1293 = vld [vmem:[%s764 + $0x18] sm:$0xf]
        %v1294 = vld [vmem:[%s764 + $0x1c] sm:$0x1]
        %v1295 = vld [vmem:[%s764 + $0x20] sm:$0xf]
        %v1296 = vld [vmem:[%s764 + $0x24] sm:$0x1]
        %v1297 = vld [vmem:[%s764 + $0x28] sm:$0xf]
        %v1298 = vld [vmem:[%s764 + $0x2c] sm:$0x1]
        %v1299 = vld [vmem:[%s764 + $0x30] sm:$0xf]
        %v1300 = vld [vmem:[%s764 + $0x34] sm:$0x1]
        %v1301 = vld [vmem:[%s764 + $0x38] sm:$0xf]
        %v1302 = vld [vmem:[%s764 + $0x3c] sm:$0x1]
        %v1304 = vshrl.u32 %v1287, 16
        %v1306 = vrot.slane %v1304, 4
        %v1307 = vshll.u32 %v1287, 16
        %v1309 = vrot.slane %v1307, 5
        %v1310 = vor.u32 %v1306, %v1309
        %v1311 = vrot.slane %v1310, 4
        %v1313 = vshll.u32 %v1288, 16
        %v1315 = vrot.slane %v1313, 5
        %v1316 = vsel %vm931, %v1311, %v1315
        %v1318 = vshrl.u32 %v1289, 16
        %v1320 = vrot.slane %v1318, 4
        %v1321 = vshll.u32 %v1289, 16
        %v1323 = vrot.slane %v1321, 5
        %v1324 = vor.u32 %v1320, %v1323
        %v1325 = vrot.slane %v1324, 4
        %v1327 = vshll.u32 %v1290, 16
        %v1329 = vrot.slane %v1327, 5
        %v1330 = vsel %vm931, %v1325, %v1329
        %v1332 = vshrl.u32 %v1291, 16
        %v1334 = vrot.slane %v1332, 4
        %v1335 = vshll.u32 %v1291, 16
        %v1337 = vrot.slane %v1335, 5
        %v1338 = vor.u32 %v1334, %v1337
        %v1339 = vrot.slane %v1338, 4
        %v1341 = vshll.u32 %v1292, 16
        %v1343 = vrot.slane %v1341, 5
        %v1344 = vsel %vm931, %v1339, %v1343
        %v1346 = vshrl.u32 %v1293, 16
        %v1348 = vrot.slane %v1346, 4
        %v1349 = vshll.u32 %v1293, 16
        %v1351 = vrot.slane %v1349, 5
        %v1352 = vor.u32 %v1348, %v1351
        %v1353 = vrot.slane %v1352, 4
        %v1355 = vshll.u32 %v1294, 16
        %v1357 = vrot.slane %v1355, 5
        %v1358 = vsel %vm931, %v1353, %v1357
        %v1360 = vshrl.u32 %v1295, 16
        %v1362 = vrot.slane %v1360, 4
        %v1363 = vshll.u32 %v1295, 16
        %v1365 = vrot.slane %v1363, 5
        %v1366 = vor.u32 %v1362, %v1365
        %v1367 = vrot.slane %v1366, 4
        %v1369 = vshll.u32 %v1296, 16
        %v1371 = vrot.slane %v1369, 5
        %v1372 = vsel %vm931, %v1367, %v1371
        %v1374 = vshrl.u32 %v1297, 16
        %v1376 = vrot.slane %v1374, 4
        %v1377 = vshll.u32 %v1297, 16
        %v1379 = vrot.slane %v1377, 5
        %v1380 = vor.u32 %v1376, %v1379
        %v1381 = vrot.slane %v1380, 4
        %v1383 = vshll.u32 %v1298, 16
        %v1385 = vrot.slane %v1383, 5
        %v1386 = vsel %vm931, %v1381, %v1385
        %v1388 = vshrl.u32 %v1299, 16
        %v1390 = vrot.slane %v1388, 4
        %v1391 = vshll.u32 %v1299, 16
        %v1393 = vrot.slane %v1391, 5
        %v1394 = vor.u32 %v1390, %v1393
        %v1395 = vrot.slane %v1394, 4
        %v1397 = vshll.u32 %v1300, 16
        %v1399 = vrot.slane %v1397, 5
        %v1400 = vsel %vm931, %v1395, %v1399
        %v1402 = vshrl.u32 %v1301, 16
        %v1404 = vrot.slane %v1402, 4
        %v1405 = vshll.u32 %v1301, 16
        %v1407 = vrot.slane %v1405, 5
        %v1408 = vor.u32 %v1404, %v1407
        %v1409 = vrot.slane %v1408, 4
        %v1411 = vshll.u32 %v1302, 16
        %v1413 = vrot.slane %v1411, 5
        %v1414 = vsel %vm931, %v1409, %v1413
        %1415 = vrot.lane.b32.xlu0 %v1316, 64
        %v1416 = vpop.permute.xlu0 %1415
        %1417 = vrot.lane.b32.xlu0 %v1330, 64
        %v1418 = vpop.permute.xlu0 %1417
        %1419 = vrot.lane.b32.xlu0 %v1344, 64
        %v1420 = vpop.permute.xlu0 %1419
        %1421 = vrot.lane.b32.xlu0 %v1358, 64
        %v1422 = vpop.permute.xlu0 %1421
        %1423 = vrot.lane.b32.xlu0 %v1372, 64
        %v1424 = vpop.permute.xlu0 %1423
        %1425 = vrot.lane.b32.xlu0 %v1386, 64
        %v1426 = vpop.permute.xlu0 %1425
        %1427 = vrot.lane.b32.xlu0 %v1400, 64
        %v1428 = vpop.permute.xlu0 %1427
        %1429 = vrot.lane.b32.xlu0 %v1414, 64
        %v1430 = vpop.permute.xlu0 %1429
        %vm1439 = vcmask 650752
        %1440 = vst.msk [vmem:[#allocation4] sm:$0xf] %vm1439, %v1416
        %1441 = vst.msk [vmem:[#allocation4 + $0x8] sm:$0xf] %vm1439, %v1418
        %1442 = vst.msk [vmem:[#allocation4 + $0x10] sm:$0xf] %vm1439, %v1420
        %1443 = vst.msk [vmem:[#allocation4 + $0x18] sm:$0xf] %vm1439, %v1422
        %1444 = vst.msk [vmem:[#allocation4 + $0x20] sm:$0xf] %vm1439, %v1424
        %1445 = vst.msk [vmem:[#allocation4 + $0x28] sm:$0xf] %vm1439, %v1426
        %1446 = vst.msk [vmem:[#allocation4 + $0x30] sm:$0xf] %vm1439, %v1428
        %1447 = vst.msk [vmem:[#allocation4 + $0x38] sm:$0xf] %vm1439, %v1430
        %v1448 = vld [vmem:[%s764] sm:$0xf]
        %v1449 = vld [vmem:[%s764 + $0x4] sm:$0x1]
        %v1450 = vld [vmem:[%s764 + $0x8] sm:$0xf]
        %v1451 = vld [vmem:[%s764 + $0xc] sm:$0x1]
        %v1452 = vld [vmem:[%s764 + $0x10] sm:$0xf]
        %v1453 = vld [vmem:[%s764 + $0x14] sm:$0x1]
        %v1454 = vld [vmem:[%s764 + $0x18] sm:$0xf]
        %v1455 = vld [vmem:[%s764 + $0x1c] sm:$0x1]
        %v1456 = vld [vmem:[%s764 + $0x20] sm:$0xf]
        %v1457 = vld [vmem:[%s764 + $0x24] sm:$0x1]
        %v1458 = vld [vmem:[%s764 + $0x28] sm:$0xf]
        %v1459 = vld [vmem:[%s764 + $0x2c] sm:$0x1]
        %v1460 = vld [vmem:[%s764 + $0x30] sm:$0xf]
        %v1461 = vld [vmem:[%s764 + $0x34] sm:$0x1]
        %v1462 = vld [vmem:[%s764 + $0x38] sm:$0xf]
        %v1463 = vld [vmem:[%s764 + $0x3c] sm:$0x1]
        %v1465 = vshrl.u32 %v1448, 16
        %v1467 = vrot.slane %v1465, 4
        %v1468 = vshll.u32 %v1448, 16
        %v1470 = vrot.slane %v1468, 5
        %v1471 = vor.u32 %v1467, %v1470
        %v1472 = vrot.slane %v1471, 4
        %v1474 = vshll.u32 %v1449, 16
        %v1476 = vrot.slane %v1474, 5
        %v1477 = vsel %vm931, %v1472, %v1476
        %v1479 = vshrl.u32 %v1450, 16
        %v1481 = vrot.slane %v1479, 4
        %v1482 = vshll.u32 %v1450, 16
        %v1484 = vrot.slane %v1482, 5
        %v1485 = vor.u32 %v1481, %v1484
        %v1486 = vrot.slane %v1485, 4
        %v1488 = vshll.u32 %v1451, 16
        %v1490 = vrot.slane %v1488, 5
        %v1491 = vsel %vm931, %v1486, %v1490
        %v1493 = vshrl.u32 %v1452, 16
        %v1495 = vrot.slane %v1493, 4
        %v1496 = vshll.u32 %v1452, 16
        %v1498 = vrot.slane %v1496, 5
        %v1499 = vor.u32 %v1495, %v1498
        %v1500 = vrot.slane %v1499, 4
        %v1502 = vshll.u32 %v1453, 16
        %v1504 = vrot.slane %v1502, 5
        %v1505 = vsel %vm931, %v1500, %v1504
        %v1507 = vshrl.u32 %v1454, 16
        %v1509 = vrot.slane %v1507, 4
        %v1510 = vshll.u32 %v1454, 16
        %v1512 = vrot.slane %v1510, 5
        %v1513 = vor.u32 %v1509, %v1512
        %v1514 = vrot.slane %v1513, 4
        %v1516 = vshll.u32 %v1455, 16
        %v1518 = vrot.slane %v1516, 5
        %v1519 = vsel %vm931, %v1514, %v1518
        %v1521 = vshrl.u32 %v1456, 16
        %v1523 = vrot.slane %v1521, 4
        %v1524 = vshll.u32 %v1456, 16
        %v1526 = vrot.slane %v1524, 5
        %v1527 = vor.u32 %v1523, %v1526
        %v1528 = vrot.slane %v1527, 4
        %v1530 = vshll.u32 %v1457, 16
        %v1532 = vrot.slane %v1530, 5
        %v1533 = vsel %vm931, %v1528, %v1532
        %v1535 = vshrl.u32 %v1458, 16
        %v1537 = vrot.slane %v1535, 4
        %v1538 = vshll.u32 %v1458, 16
        %v1540 = vrot.slane %v1538, 5
        %v1541 = vor.u32 %v1537, %v1540
        %v1542 = vrot.slane %v1541, 4
        %v1544 = vshll.u32 %v1459, 16
        %v1546 = vrot.slane %v1544, 5
        %v1547 = vsel %vm931, %v1542, %v1546
        %v1549 = vshrl.u32 %v1460, 16
        %v1551 = vrot.slane %v1549, 4
        %v1552 = vshll.u32 %v1460, 16
        %v1554 = vrot.slane %v1552, 5
        %v1555 = vor.u32 %v1551, %v1554
        %v1556 = vrot.slane %v1555, 4
        %v1558 = vshll.u32 %v1461, 16
        %v1560 = vrot.slane %v1558, 5
        %v1561 = vsel %vm931, %v1556, %v1560
        %v1563 = vshrl.u32 %v1462, 16
        %v1565 = vrot.slane %v1563, 4
        %v1566 = vshll.u32 %v1462, 16
        %v1568 = vrot.slane %v1566, 5
        %v1569 = vor.u32 %v1565, %v1568
        %v1570 = vrot.slane %v1569, 4
        %v1572 = vshll.u32 %v1463, 16
        %v1574 = vrot.slane %v1572, 5
        %v1575 = vsel %vm931, %v1570, %v1574
        %1576 = vrot.lane.b32.xlu0 %v1477, 64
        %v1577 = vpop.permute.xlu0 %1576
        %1578 = vrot.lane.b32.xlu0 %v1491, 64
        %v1579 = vpop.permute.xlu0 %1578
        %1580 = vrot.lane.b32.xlu0 %v1505, 64
        %v1581 = vpop.permute.xlu0 %1580
        %1582 = vrot.lane.b32.xlu0 %v1519, 64
        %v1583 = vpop.permute.xlu0 %1582
        %1584 = vrot.lane.b32.xlu0 %v1533, 64
        %v1585 = vpop.permute.xlu0 %1584
        %1586 = vrot.lane.b32.xlu0 %v1547, 64
        %v1587 = vpop.permute.xlu0 %1586
        %1588 = vrot.lane.b32.xlu0 %v1561, 64
        %v1589 = vpop.permute.xlu0 %1588
        %1590 = vrot.lane.b32.xlu0 %v1575, 64
        %v1591 = vpop.permute.xlu0 %1590
        %vm1600 = vcmask 781952
        %1601 = vst.msk [vmem:[#allocation4] sm:$0xf] %vm1600, %v1577
        %1602 = vst.msk [vmem:[#allocation4 + $0x8] sm:$0xf] %vm1600, %v1579
        %1603 = vst.msk [vmem:[#allocation4 + $0x10] sm:$0xf] %vm1600, %v1581
        %1604 = vst.msk [vmem:[#allocation4 + $0x18] sm:$0xf] %vm1600, %v1583
        %1605 = vst.msk [vmem:[#allocation4 + $0x20] sm:$0xf] %vm1600, %v1585
        %1606 = vst.msk [vmem:[#allocation4 + $0x28] sm:$0xf] %vm1600, %v1587
        %1607 = vst.msk [vmem:[#allocation4 + $0x30] sm:$0xf] %vm1600, %v1589
        %1608 = vst.msk [vmem:[#allocation4 + $0x38] sm:$0xf] %vm1600, %v1591
        %v1609 = vld [vmem:[%s764] sm:$0xf]
        %v1610 = vld [vmem:[%s764 + $0x8] sm:$0xf]
        %v1611 = vld [vmem:[%s764 + $0x10] sm:$0xf]
        %v1612 = vld [vmem:[%s764 + $0x18] sm:$0xf]
        %v1613 = vld [vmem:[%s764 + $0x20] sm:$0xf]
        %v1614 = vld [vmem:[%s764 + $0x28] sm:$0xf]
        %v1615 = vld [vmem:[%s764 + $0x30] sm:$0xf]
        %v1616 = vld [vmem:[%s764 + $0x38] sm:$0xf]
        %1625 = vrot.lane.b32.xlu0 %v1609, 48
        %v1626 = vpop.permute.xlu0 %1625
        %1627 = vrot.lane.b32.xlu0 %v1610, 48
        %v1628 = vpop.permute.xlu0 %1627
        %1629 = vrot.lane.b32.xlu0 %v1611, 48
        %v1630 = vpop.permute.xlu0 %1629
        %1631 = vrot.lane.b32.xlu0 %v1612, 48
        %v1632 = vpop.permute.xlu0 %1631
        %1633 = vrot.lane.b32.xlu0 %v1613, 48
        %v1634 = vpop.permute.xlu0 %1633
        %1635 = vrot.lane.b32.xlu0 %v1614, 48
        %v1636 = vpop.permute.xlu0 %1635
        %1637 = vrot.lane.b32.xlu0 %v1615, 48
        %v1638 = vpop.permute.xlu0 %1637
        %1639 = vrot.lane.b32.xlu0 %v1616, 48
        %v1640 = vpop.permute.xlu0 %1639
        %vm1649 = vcmask 913152
        %1650 = vst.msk [vmem:[#allocation4] sm:$0xf] %vm1649, %v1626
        %1651 = vst.msk [vmem:[#allocation4 + $0x8] sm:$0xf] %vm1649, %v1628
        %1652 = vst.msk [vmem:[#allocation4 + $0x10] sm:$0xf] %vm1649, %v1630
        %1653 = vst.msk [vmem:[#allocation4 + $0x18] sm:$0xf] %vm1649, %v1632
        %1654 = vst.msk [vmem:[#allocation4 + $0x20] sm:$0xf] %vm1649, %v1634
        %1655 = vst.msk [vmem:[#allocation4 + $0x28] sm:$0xf] %vm1649, %v1636
        %1656 = vst.msk [vmem:[#allocation4 + $0x30] sm:$0xf] %vm1649, %v1638
        %1657 = vst.msk [vmem:[#allocation4 + $0x38] sm:$0xf] %vm1649, %v1640
        %v1658 = vld [vmem:[%s764] sm:$0xf]
        %v1659 = vld [vmem:[%s764 + $0x4] sm:$0x1]
        %v1660 = vld [vmem:[%s764 + $0x8] sm:$0xf]
        %v1661 = vld [vmem:[%s764 + $0xc] sm:$0x1]
        %v1662 = vld [vmem:[%s764 + $0x10] sm:$0xf]
        %v1663 = vld [vmem:[%s764 + $0x14] sm:$0x1]
        %v1664 = vld [vmem:[%s764 + $0x18] sm:$0xf]
        %v1665 = vld [vmem:[%s764 + $0x1c] sm:$0x1]
        %v1666 = vld [vmem:[%s764 + $0x20] sm:$0xf]
        %v1667 = vld [vmem:[%s764 + $0x24] sm:$0x1]
        %v1668 = vld [vmem:[%s764 + $0x28] sm:$0xf]
        %v1669 = vld [vmem:[%s764 + $0x2c] sm:$0x1]
        %v1670 = vld [vmem:[%s764 + $0x30] sm:$0xf]
        %v1671 = vld [vmem:[%s764 + $0x34] sm:$0x1]
        %v1672 = vld [vmem:[%s764 + $0x38] sm:$0xf]
        %v1673 = vld [vmem:[%s764 + $0x3c] sm:$0x1]
        %v1675 = vshrl.u32 %v1658, 16
        %v1677 = vrot.slane %v1675, 4
        %v1678 = vshll.u32 %v1658, 16
        %v1680 = vrot.slane %v1678, 5
        %v1681 = vor.u32 %v1677, %v1680
        %v1682 = vrot.slane %v1681, 4
        %v1684 = vshll.u32 %v1659, 16
        %v1686 = vrot.slane %v1684, 5
        %v1687 = vsel %vm931, %v1682, %v1686
        %v1689 = vshrl.u32 %v1660, 16
        %v1691 = vrot.slane %v1689, 4
        %v1692 = vshll.u32 %v1660, 16
        %v1694 = vrot.slane %v1692, 5
        %v1695 = vor.u32 %v1691, %v1694
        %v1696 = vrot.slane %v1695, 4
        %v1698 = vshll.u32 %v1661, 16
        %v1700 = vrot.slane %v1698, 5
        %v1701 = vsel %vm931, %v1696, %v1700
        %v1703 = vshrl.u32 %v1662, 16
        %v1705 = vrot.slane %v1703, 4
        %v1706 = vshll.u32 %v1662, 16
        %v1708 = vrot.slane %v1706, 5
        %v1709 = vor.u32 %v1705, %v1708
        %v1710 = vrot.slane %v1709, 4
        %v1712 = vshll.u32 %v1663, 16
        %v1714 = vrot.slane %v1712, 5
        %v1715 = vsel %vm931, %v1710, %v1714
        %v1717 = vshrl.u32 %v1664, 16
        %v1719 = vrot.slane %v1717, 4
        %v1720 = vshll.u32 %v1664, 16
        %v1722 = vrot.slane %v1720, 5
        %v1723 = vor.u32 %v1719, %v1722
        %v1724 = vrot.slane %v1723, 4
        %v1726 = vshll.u32 %v1665, 16
        %v1728 = vrot.slane %v1726, 5
        %v1729 = vsel %vm931, %v1724, %v1728
        %v1731 = vshrl.u32 %v1666, 16
        %v1733 = vrot.slane %v1731, 4
        %v1734 = vshll.u32 %v1666, 16
        %v1736 = vrot.slane %v1734, 5
        %v1737 = vor.u32 %v1733, %v1736
        %v1738 = vrot.slane %v1737, 4
        %v1740 = vshll.u32 %v1667, 16
        %v1742 = vrot.slane %v1740, 5
        %v1743 = vsel %vm931, %v1738, %v1742
        %v1745 = vshrl.u32 %v1668, 16
        %v1747 = vrot.slane %v1745, 4
        %v1748 = vshll.u32 %v1668, 16
        %v1750 = vrot.slane %v1748, 5
        %v1751 = vor.u32 %v1747, %v1750
        %v1752 = vrot.slane %v1751, 4
        %v1754 = vshll.u32 %v1669, 16
        %v1756 = vrot.slane %v1754, 5
        %v1757 = vsel %vm931, %v1752, %v1756
        %v1759 = vshrl.u32 %v1670, 16
        %v1761 = vrot.slane %v1759, 4
        %v1762 = vshll.u32 %v1670, 16
        %v1764 = vrot.slane %v1762, 5
        %v1765 = vor.u32 %v1761, %v1764
        %v1766 = vrot.slane %v1765, 4
        %v1768 = vshll.u32 %v1671, 16
        %v1770 = vrot.slane %v1768, 5
        %v1771 = vsel %vm931, %v1766, %v1770
        %v1773 = vshrl.u32 %v1672, 16
        %v1775 = vrot.slane %v1773, 4
        %v1776 = vshll.u32 %v1672, 16
        %v1778 = vrot.slane %v1776, 5
        %v1779 = vor.u32 %v1775, %v1778
        %v1780 = vrot.slane %v1779, 4
        %v1782 = vshll.u32 %v1673, 16
        %v1784 = vrot.slane %v1782, 5
        %v1785 = vsel %vm931, %v1780, %v1784
        %1786 = vrot.lane.b32.xlu0 %v1687, 80
        %v1787 = vpop.permute.xlu0 %1786
        %1788 = vrot.lane.b32.xlu0 %v1701, 80
        %v1789 = vpop.permute.xlu0 %1788
        %1790 = vrot.lane.b32.xlu0 %v1715, 80
        %v1791 = vpop.permute.xlu0 %1790
        %1792 = vrot.lane.b32.xlu0 %v1729, 80
        %v1793 = vpop.permute.xlu0 %1792
        %1794 = vrot.lane.b32.xlu0 %v1743, 80
        %v1795 = vpop.permute.xlu0 %1794
        %1796 = vrot.lane.b32.xlu0 %v1757, 80
        %v1797 = vpop.permute.xlu0 %1796
        %1798 = vrot.lane.b32.xlu0 %v1771, 80
        %v1799 = vpop.permute.xlu0 %1798
        %1800 = vrot.lane.b32.xlu0 %v1785, 80
        %v1801 = vpop.permute.xlu0 %1800
        %vm1810 = vcmask 1044352
        %1811 = vst.msk [vmem:[#allocation4] sm:$0xf] %vm1810, %v1787
        %1812 = vst.msk [vmem:[#allocation4 + $0x8] sm:$0xf] %vm1810, %v1789
        %1813 = vst.msk [vmem:[#allocation4 + $0x10] sm:$0xf] %vm1810, %v1791
        %1814 = vst.msk [vmem:[#allocation4 + $0x18] sm:$0xf] %vm1810, %v1793
        %1815 = vst.msk [vmem:[#allocation4 + $0x20] sm:$0xf] %vm1810, %v1795
        %1816 = vst.msk [vmem:[#allocation4 + $0x28] sm:$0xf] %vm1810, %v1797
        %1817 = vst.msk [vmem:[#allocation4 + $0x30] sm:$0xf] %vm1810, %v1799
        %1818 = vst.msk [vmem:[#allocation4 + $0x38] sm:$0xf] %vm1810, %v1801
        %v1819 = vld [vmem:[%s764] sm:$0xf]
        %v1820 = vld [vmem:[%s764 + $0x4] sm:$0x1]
        %v1821 = vld [vmem:[%s764 + $0x8] sm:$0xf]
        %v1822 = vld [vmem:[%s764 + $0xc] sm:$0x1]
        %v1823 = vld [vmem:[%s764 + $0x10] sm:$0xf]
        %v1824 = vld [vmem:[%s764 + $0x14] sm:$0x1]
        %v1825 = vld [vmem:[%s764 + $0x18] sm:$0xf]
        %v1826 = vld [vmem:[%s764 + $0x1c] sm:$0x1]
        %v1827 = vld [vmem:[%s764 + $0x20] sm:$0xf]
        %v1828 = vld [vmem:[%s764 + $0x24] sm:$0x1]
        %v1829 = vld [vmem:[%s764 + $0x28] sm:$0xf]
        %v1830 = vld [vmem:[%s764 + $0x2c] sm:$0x1]
        %v1831 = vld [vmem:[%s764 + $0x30] sm:$0xf]
        %v1832 = vld [vmem:[%s764 + $0x34] sm:$0x1]
        %v1833 = vld [vmem:[%s764 + $0x38] sm:$0xf]
        %v1834 = vld [vmem:[%s764 + $0x3c] sm:$0x1]
        %v1836 = vshrl.u32 %v1819, 16
        %v1838 = vrot.slane %v1836, 4
        %v1839 = vshll.u32 %v1819, 16
        %v1841 = vrot.slane %v1839, 5
        %v1842 = vor.u32 %v1838, %v1841
        %v1843 = vrot.slane %v1842, 4
        %v1845 = vshll.u32 %v1820, 16
        %v1847 = vrot.slane %v1845, 5
        %v1848 = vsel %vm931, %v1843, %v1847
        %v1850 = vshrl.u32 %v1821, 16
        %v1852 = vrot.slane %v1850, 4
        %v1853 = vshll.u32 %v1821, 16
        %v1855 = vrot.slane %v1853, 5
        %v1856 = vor.u32 %v1852, %v1855
        %v1857 = vrot.slane %v1856, 4
        %v1859 = vshll.u32 %v1822, 16
        %v1861 = vrot.slane %v1859, 5
        %v1862 = vsel %vm931, %v1857, %v1861
        %v1864 = vshrl.u32 %v1823, 16
        %v1866 = vrot.slane %v1864, 4
        %v1867 = vshll.u32 %v1823, 16
        %v1869 = vrot.slane %v1867, 5
        %v1870 = vor.u32 %v1866, %v1869
        %v1871 = vrot.slane %v1870, 4
        %v1873 = vshll.u32 %v1824, 16
        %v1875 = vrot.slane %v1873, 5
        %v1876 = vsel %vm931, %v1871, %v1875
        %v1878 = vshrl.u32 %v1825, 16
        %v1880 = vrot.slane %v1878, 4
        %v1881 = vshll.u32 %v1825, 16
        %v1883 = vrot.slane %v1881, 5
        %v1884 = vor.u32 %v1880, %v1883
        %v1885 = vrot.slane %v1884, 4
        %v1887 = vshll.u32 %v1826, 16
        %v1889 = vrot.slane %v1887, 5
        %v1890 = vsel %vm931, %v1885, %v1889
        %v1892 = vshrl.u32 %v1827, 16
        %v1894 = vrot.slane %v1892, 4
        %v1895 = vshll.u32 %v1827, 16
        %v1897 = vrot.slane %v1895, 5
        %v1898 = vor.u32 %v1894, %v1897
        %v1899 = vrot.slane %v1898, 4
        %v1901 = vshll.u32 %v1828, 16
        %v1903 = vrot.slane %v1901, 5
        %v1904 = vsel %vm931, %v1899, %v1903
        %v1906 = vshrl.u32 %v1829, 16
        %v1908 = vrot.slane %v1906, 4
        %v1909 = vshll.u32 %v1829, 16
        %v1911 = vrot.slane %v1909, 5
        %v1912 = vor.u32 %v1908, %v1911
        %v1913 = vrot.slane %v1912, 4
        %v1915 = vshll.u32 %v1830, 16
        %v1917 = vrot.slane %v1915, 5
        %v1918 = vsel %vm931, %v1913, %v1917
        %v1920 = vshrl.u32 %v1831, 16
        %v1922 = vrot.slane %v1920, 4
        %v1923 = vshll.u32 %v1831, 16
        %v1925 = vrot.slane %v1923, 5
        %v1926 = vor.u32 %v1922, %v1925
        %v1927 = vrot.slane %v1926, 4
        %v1929 = vshll.u32 %v1832, 16
        %v1931 = vrot.slane %v1929, 5
        %v1932 = vsel %vm931, %v1927, %v1931
        %v1934 = vshrl.u32 %v1833, 16
        %v1936 = vrot.slane %v1934, 4
        %v1937 = vshll.u32 %v1833, 16
        %v1939 = vrot.slane %v1937, 5
        %v1940 = vor.u32 %v1936, %v1939
        %v1941 = vrot.slane %v1940, 4
        %v1943 = vshll.u32 %v1834, 16
        %v1945 = vrot.slane %v1943, 5
        %v1946 = vsel %vm931, %v1941, %v1945
        %1947 = vrot.lane.b32.xlu0 %v1848, 80
        %v1948 = vpop.permute.xlu0 %1947
        %1949 = vrot.lane.b32.xlu0 %v1862, 80
        %v1950 = vpop.permute.xlu0 %1949
        %1951 = vrot.lane.b32.xlu0 %v1876, 80
        %v1952 = vpop.permute.xlu0 %1951
        %1953 = vrot.lane.b32.xlu0 %v1890, 80
        %v1954 = vpop.permute.xlu0 %1953
        %1955 = vrot.lane.b32.xlu0 %v1904, 80
        %v1956 = vpop.permute.xlu0 %1955
        %1957 = vrot.lane.b32.xlu0 %v1918, 80
        %v1958 = vpop.permute.xlu0 %1957
        %1959 = vrot.lane.b32.xlu0 %v1932, 80
        %v1960 = vpop.permute.xlu0 %1959
        %1961 = vrot.lane.b32.xlu0 %v1946, 80
        %v1962 = vpop.permute.xlu0 %1961
        %1971 = vst.msk [vmem:[#allocation4 + $0x4] sm:$0xf] %vm904, %v1948
        %1972 = vst.msk [vmem:[#allocation4 + $0xc] sm:$0xf] %vm904, %v1950
        %1973 = vst.msk [vmem:[#allocation4 + $0x14] sm:$0xf] %vm904, %v1952
        %1974 = vst.msk [vmem:[#allocation4 + $0x1c] sm:$0xf] %vm904, %v1954
        %1975 = vst.msk [vmem:[#allocation4 + $0x24] sm:$0xf] %vm904, %v1956
        %1976 = vst.msk [vmem:[#allocation4 + $0x2c] sm:$0xf] %vm904, %v1958
        %1977 = vst.msk [vmem:[#allocation4 + $0x34] sm:$0xf] %vm904, %v1960
        %1978 = vst.msk [vmem:[#allocation4 + $0x3c] sm:$0xf] %vm904, %v1962
        %s1979 = scalar_lea.vmem [#allocation2], 72
        %v1980 = vld [vmem:[%s1979] sm:$0xf]
        %v1981 = vld [vmem:[%s1979 + $0x8] sm:$0xf]
        %v1982 = vld [vmem:[%s1979 + $0x10] sm:$0xf]
        %v1983 = vld [vmem:[%s1979 + $0x18] sm:$0xf]
        %v1984 = vld [vmem:[%s1979 + $0x20] sm:$0xf]
        %v1985 = vld [vmem:[%s1979 + $0x28] sm:$0xf]
        %v1986 = vld [vmem:[%s1979 + $0x30] sm:$0xf]
        %v1987 = vld [vmem:[%s1979 + $0x38] sm:$0xf]
        %1996 = vrot.lane.b32.xlu0 %v1980, 80
        %v1997 = vpop.permute.xlu0 %1996
        %1998 = vrot.lane.b32.xlu0 %v1981, 80
        %v1999 = vpop.permute.xlu0 %1998
        %2000 = vrot.lane.b32.xlu0 %v1982, 80
        %v2001 = vpop.permute.xlu0 %2000
        %2002 = vrot.lane.b32.xlu0 %v1983, 80
        %v2003 = vpop.permute.xlu0 %2002
        %2004 = vrot.lane.b32.xlu0 %v1984, 80
        %v2005 = vpop.permute.xlu0 %2004
        %2006 = vrot.lane.b32.xlu0 %v1985, 80
        %v2007 = vpop.permute.xlu0 %2006
        %2008 = vrot.lane.b32.xlu0 %v1986, 80
        %v2009 = vpop.permute.xlu0 %2008
        %2010 = vrot.lane.b32.xlu0 %v1987, 80
        %v2011 = vpop.permute.xlu0 %2010
        %2020 = vst.msk [vmem:[#allocation4 + $0x40] sm:$0xf] %vm904, %v1997
        %2021 = vst.msk [vmem:[#allocation4 + $0x48] sm:$0xf] %vm904, %v1999
        %2022 = vst.msk [vmem:[#allocation4 + $0x50] sm:$0xf] %vm904, %v2001
        %2023 = vst.msk [vmem:[#allocation4 + $0x58] sm:$0xf] %vm904, %v2003
        %2024 = vst.msk [vmem:[#allocation4 + $0x60] sm:$0xf] %vm904, %v2005
        %2025 = vst.msk [vmem:[#allocation4 + $0x68] sm:$0xf] %vm904, %v2007
        %2026 = vst.msk [vmem:[#allocation4 + $0x70] sm:$0xf] %vm904, %v2009
        %2027 = vst.msk [vmem:[#allocation4 + $0x78] sm:$0xf] %vm904, %v2011
        %v2028 = vld [vmem:[%s1979] sm:$0xf]
        %v2029 = vld [vmem:[%s1979 + $0x4] sm:$0x1]
        %v2030 = vld [vmem:[%s1979 + $0x8] sm:$0xf]
        %v2031 = vld [vmem:[%s1979 + $0xc] sm:$0x1]
        %v2032 = vld [vmem:[%s1979 + $0x10] sm:$0xf]
        %v2033 = vld [vmem:[%s1979 + $0x14] sm:$0x1]
        %v2034 = vld [vmem:[%s1979 + $0x18] sm:$0xf]
        %v2035 = vld [vmem:[%s1979 + $0x1c] sm:$0x1]
        %v2036 = vld [vmem:[%s1979 + $0x20] sm:$0xf]
        %v2037 = vld [vmem:[%s1979 + $0x24] sm:$0x1]
        %v2038 = vld [vmem:[%s1979 + $0x28] sm:$0xf]
        %v2039 = vld [vmem:[%s1979 + $0x2c] sm:$0x1]
        %v2040 = vld [vmem:[%s1979 + $0x30] sm:$0xf]
        %v2041 = vld [vmem:[%s1979 + $0x34] sm:$0x1]
        %v2042 = vld [vmem:[%s1979 + $0x38] sm:$0xf]
        %v2043 = vld [vmem:[%s1979 + $0x3c] sm:$0x1]
        %v2045 = vshrl.u32 %v2028, 16
        %v2047 = vrot.slane %v2045, 4
        %v2048 = vshll.u32 %v2028, 16
        %v2050 = vrot.slane %v2048, 5
        %v2051 = vor.u32 %v2047, %v2050
        %v2052 = vrot.slane %v2051, 4
        %v2054 = vshll.u32 %v2029, 16
        %v2056 = vrot.slane %v2054, 5
        %v2057 = vsel %vm931, %v2052, %v2056
        %v2059 = vshrl.u32 %v2030, 16
        %v2061 = vrot.slane %v2059, 4
        %v2062 = vshll.u32 %v2030, 16
        %v2064 = vrot.slane %v2062, 5
        %v2065 = vor.u32 %v2061, %v2064
        %v2066 = vrot.slane %v2065, 4
        %v2068 = vshll.u32 %v2031, 16
        %v2070 = vrot.slane %v2068, 5
        %v2071 = vsel %vm931, %v2066, %v2070
        %v2073 = vshrl.u32 %v2032, 16
        %v2075 = vrot.slane %v2073, 4
        %v2076 = vshll.u32 %v2032, 16
        %v2078 = vrot.slane %v2076, 5
        %v2079 = vor.u32 %v2075, %v2078
        %v2080 = vrot.slane %v2079, 4
        %v2082 = vshll.u32 %v2033, 16
        %v2084 = vrot.slane %v2082, 5
        %v2085 = vsel %vm931, %v2080, %v2084
        %v2087 = vshrl.u32 %v2034, 16
        %v2089 = vrot.slane %v2087, 4
        %v2090 = vshll.u32 %v2034, 16
        %v2092 = vrot.slane %v2090, 5
        %v2093 = vor.u32 %v2089, %v2092
        %v2094 = vrot.slane %v2093, 4
        %v2096 = vshll.u32 %v2035, 16
        %v2098 = vrot.slane %v2096, 5
        %v2099 = vsel %vm931, %v2094, %v2098
        %v2101 = vshrl.u32 %v2036, 16
        %v2103 = vrot.slane %v2101, 4
        %v2104 = vshll.u32 %v2036, 16
        %v2106 = vrot.slane %v2104, 5
        %v2107 = vor.u32 %v2103, %v2106
        %v2108 = vrot.slane %v2107, 4
        %v2110 = vshll.u32 %v2037, 16
        %v2112 = vrot.slane %v2110, 5
        %v2113 = vsel %vm931, %v2108, %v2112
        %v2115 = vshrl.u32 %v2038, 16
        %v2117 = vrot.slane %v2115, 4
        %v2118 = vshll.u32 %v2038, 16
        %v2120 = vrot.slane %v2118, 5
        %v2121 = vor.u32 %v2117, %v2120
        %v2122 = vrot.slane %v2121, 4
        %v2124 = vshll.u32 %v2039, 16
        %v2126 = vrot.slane %v2124, 5
        %v2127 = vsel %vm931, %v2122, %v2126
        %v2129 = vshrl.u32 %v2040, 16
        %v2131 = vrot.slane %v2129, 4
        %v2132 = vshll.u32 %v2040, 16
        %v2134 = vrot.slane %v2132, 5
        %v2135 = vor.u32 %v2131, %v2134
        %v2136 = vrot.slane %v2135, 4
        %v2138 = vshll.u32 %v2041, 16
        %v2140 = vrot.slane %v2138, 5
        %v2141 = vsel %vm931, %v2136, %v2140
        %v2143 = vshrl.u32 %v2042, 16
        %v2145 = vrot.slane %v2143, 4
        %v2146 = vshll.u32 %v2042, 16
        %v2148 = vrot.slane %v2146, 5
        %v2149 = vor.u32 %v2145, %v2148
        %v2150 = vrot.slane %v2149, 4
        %v2152 = vshll.u32 %v2043, 16
        %v2154 = vrot.slane %v2152, 5
        %v2155 = vsel %vm931, %v2150, %v2154
        %2156 = vrot.lane.b32.xlu0 %v2057, 112
        %v2157 = vpop.permute.xlu0 %2156
        %2158 = vrot.lane.b32.xlu0 %v2071, 112
        %v2159 = vpop.permute.xlu0 %2158
        %2160 = vrot.lane.b32.xlu0 %v2085, 112
        %v2161 = vpop.permute.xlu0 %2160
        %2162 = vrot.lane.b32.xlu0 %v2099, 112
        %v2163 = vpop.permute.xlu0 %2162
        %2164 = vrot.lane.b32.xlu0 %v2113, 112
        %v2165 = vpop.permute.xlu0 %2164
        %2166 = vrot.lane.b32.xlu0 %v2127, 112
        %v2167 = vpop.permute.xlu0 %2166
        %2168 = vrot.lane.b32.xlu0 %v2141, 112
        %v2169 = vpop.permute.xlu0 %2168
        %2170 = vrot.lane.b32.xlu0 %v2155, 112
        %v2171 = vpop.permute.xlu0 %2170
        %2180 = vst.msk [vmem:[#allocation4 + $0x40] sm:$0xf] %vm1068, %v2157
        %2181 = vst.msk [vmem:[#allocation4 + $0x48] sm:$0xf] %vm1068, %v2159
        %2182 = vst.msk [vmem:[#allocation4 + $0x50] sm:$0xf] %vm1068, %v2161
        %2183 = vst.msk [vmem:[#allocation4 + $0x58] sm:$0xf] %vm1068, %v2163
        %2184 = vst.msk [vmem:[#allocation4 + $0x60] sm:$0xf] %vm1068, %v2165
        %2185 = vst.msk [vmem:[#allocation4 + $0x68] sm:$0xf] %vm1068, %v2167
        %2186 = vst.msk [vmem:[#allocation4 + $0x70] sm:$0xf] %vm1068, %v2169
        %2187 = vst.msk [vmem:[#allocation4 + $0x78] sm:$0xf] %vm1068, %v2171
        %v2188 = vld [vmem:[%s1979] sm:$0xf]
        %v2189 = vld [vmem:[%s1979 + $0x4] sm:$0x1]
        %v2190 = vld [vmem:[%s1979 + $0x8] sm:$0xf]
        %v2191 = vld [vmem:[%s1979 + $0xc] sm:$0x1]
        %v2192 = vld [vmem:[%s1979 + $0x10] sm:$0xf]
        %v2193 = vld [vmem:[%s1979 + $0x14] sm:$0x1]
        %v2194 = vld [vmem:[%s1979 + $0x18] sm:$0xf]
        %v2195 = vld [vmem:[%s1979 + $0x1c] sm:$0x1]
        %v2196 = vld [vmem:[%s1979 + $0x20] sm:$0xf]
        %v2197 = vld [vmem:[%s1979 + $0x24] sm:$0x1]
        %v2198 = vld [vmem:[%s1979 + $0x28] sm:$0xf]
        %v2199 = vld [vmem:[%s1979 + $0x2c] sm:$0x1]
        %v2200 = vld [vmem:[%s1979 + $0x30] sm:$0xf]
        %v2201 = vld [vmem:[%s1979 + $0x34] sm:$0x1]
        %v2202 = vld [vmem:[%s1979 + $0x38] sm:$0xf]
        %v2203 = vld [vmem:[%s1979 + $0x3c] sm:$0x1]
        %v2205 = vshrl.u32 %v2188, 16
        %v2207 = vrot.slane %v2205, 4
        %v2208 = vshll.u32 %v2188, 16
        %v2210 = vrot.slane %v2208, 5
        %v2211 = vor.u32 %v2207, %v2210
        %v2212 = vrot.slane %v2211, 4
        %v2214 = vshll.u32 %v2189, 16
        %v2216 = vrot.slane %v2214, 5
        %v2217 = vsel %vm931, %v2212, %v2216
        %v2219 = vshrl.u32 %v2190, 16
        %v2221 = vrot.slane %v2219, 4
        %v2222 = vshll.u32 %v2190, 16
        %v2224 = vrot.slane %v2222, 5
        %v2225 = vor.u32 %v2221, %v2224
        %v2226 = vrot.slane %v2225, 4
        %v2228 = vshll.u32 %v2191, 16
        %v2230 = vrot.slane %v2228, 5
        %v2231 = vsel %vm931, %v2226, %v2230
        %v2233 = vshrl.u32 %v2192, 16
        %v2235 = vrot.slane %v2233, 4
        %v2236 = vshll.u32 %v2192, 16
        %v2238 = vrot.slane %v2236, 5
        %v2239 = vor.u32 %v2235, %v2238
        %v2240 = vrot.slane %v2239, 4
        %v2242 = vshll.u32 %v2193, 16
        %v2244 = vrot.slane %v2242, 5
        %v2245 = vsel %vm931, %v2240, %v2244
        %v2247 = vshrl.u32 %v2194, 16
        %v2249 = vrot.slane %v2247, 4
        %v2250 = vshll.u32 %v2194, 16
        %v2252 = vrot.slane %v2250, 5
        %v2253 = vor.u32 %v2249, %v2252
        %v2254 = vrot.slane %v2253, 4
        %v2256 = vshll.u32 %v2195, 16
        %v2258 = vrot.slane %v2256, 5
        %v2259 = vsel %vm931, %v2254, %v2258
        %v2261 = vshrl.u32 %v2196, 16
        %v2263 = vrot.slane %v2261, 4
        %v2264 = vshll.u32 %v2196, 16
        %v2266 = vrot.slane %v2264, 5
        %v2267 = vor.u32 %v2263, %v2266
        %v2268 = vrot.slane %v2267, 4
        %v2270 = vshll.u32 %v2197, 16
        %v2272 = vrot.slane %v2270, 5
        %v2273 = vsel %vm931, %v2268, %v2272
        %v2275 = vshrl.u32 %v2198, 16
        %v2277 = vrot.slane %v2275, 4
        %v2278 = vshll.u32 %v2198, 16
        %v2280 = vrot.slane %v2278, 5
        %v2281 = vor.u32 %v2277, %v2280
        %v2282 = vrot.slane %v2281, 4
        %v2284 = vshll.u32 %v2199, 16
        %v2286 = vrot.slane %v2284, 5
        %v2287 = vsel %vm931, %v2282, %v2286
        %v2289 = vshrl.u32 %v2200, 16
        %v2291 = vrot.slane %v2289, 4
        %v2292 = vshll.u32 %v2200, 16
        %v2294 = vrot.slane %v2292, 5
        %v2295 = vor.u32 %v2291, %v2294
        %v2296 = vrot.slane %v2295, 4
        %v2298 = vshll.u32 %v2201, 16
        %v2300 = vrot.slane %v2298, 5
        %v2301 = vsel %vm931, %v2296, %v2300
        %v2303 = vshrl.u32 %v2202, 16
        %v2305 = vrot.slane %v2303, 4
        %v2306 = vshll.u32 %v2202, 16
        %v2308 = vrot.slane %v2306, 5
        %v2309 = vor.u32 %v2305, %v2308
        %v2310 = vrot.slane %v2309, 4
        %v2312 = vshll.u32 %v2203, 16
        %v2314 = vrot.slane %v2312, 5
        %v2315 = vsel %vm931, %v2310, %v2314
        %2316 = vrot.lane.b32.xlu0 %v2217, 112
        %v2317 = vpop.permute.xlu0 %2316
        %2318 = vrot.lane.b32.xlu0 %v2231, 112
        %v2319 = vpop.permute.xlu0 %2318
        %2320 = vrot.lane.b32.xlu0 %v2245, 112
        %v2321 = vpop.permute.xlu0 %2320
        %2322 = vrot.lane.b32.xlu0 %v2259, 112
        %v2323 = vpop.permute.xlu0 %2322
        %2324 = vrot.lane.b32.xlu0 %v2273, 112
        %v2325 = vpop.permute.xlu0 %2324
        %2326 = vrot.lane.b32.xlu0 %v2287, 112
        %v2327 = vpop.permute.xlu0 %2326
        %2328 = vrot.lane.b32.xlu0 %v2301, 112
        %v2329 = vpop.permute.xlu0 %2328
        %2330 = vrot.lane.b32.xlu0 %v2315, 112
        %v2331 = vpop.permute.xlu0 %2330
        %2340 = vst.msk [vmem:[#allocation4 + $0x40] sm:$0xf] %vm1229, %v2317
        %2341 = vst.msk [vmem:[#allocation4 + $0x48] sm:$0xf] %vm1229, %v2319
        %2342 = vst.msk [vmem:[#allocation4 + $0x50] sm:$0xf] %vm1229, %v2321
        %2343 = vst.msk [vmem:[#allocation4 + $0x58] sm:$0xf] %vm1229, %v2323
        %2344 = vst.msk [vmem:[#allocation4 + $0x60] sm:$0xf] %vm1229, %v2325
        %2345 = vst.msk [vmem:[#allocation4 + $0x68] sm:$0xf] %vm1229, %v2327
        %2346 = vst.msk [vmem:[#allocation4 + $0x70] sm:$0xf] %vm1229, %v2329
        %2347 = vst.msk [vmem:[#allocation4 + $0x78] sm:$0xf] %vm1229, %v2331
        %s2348 = scalar_lea.vmem [#allocation2], 80
        %v2349 = vld [vmem:[%s2348] sm:$0xf]
        %v2350 = vld [vmem:[%s2348 + $0x8] sm:$0xf]
        %v2351 = vld [vmem:[%s2348 + $0x10] sm:$0xf]
        %v2352 = vld [vmem:[%s2348 + $0x18] sm:$0xf]
        %v2353 = vld [vmem:[%s2348 + $0x20] sm:$0xf]
        %v2354 = vld [vmem:[%s2348 + $0x28] sm:$0xf]
        %v2355 = vld [vmem:[%s2348 + $0x30] sm:$0xf]
        %v2356 = vld [vmem:[%s2348 + $0x38] sm:$0xf]
        %2365 = vrot.lane.b32.xlu0 %v2349, 32
        %v2366 = vpop.permute.xlu0 %2365
        %2367 = vrot.lane.b32.xlu0 %v2350, 32
        %v2368 = vpop.permute.xlu0 %2367
        %2369 = vrot.lane.b32.xlu0 %v2351, 32
        %v2370 = vpop.permute.xlu0 %2369
        %2371 = vrot.lane.b32.xlu0 %v2352, 32
        %v2372 = vpop.permute.xlu0 %2371
        %2373 = vrot.lane.b32.xlu0 %v2353, 32
        %v2374 = vpop.permute.xlu0 %2373
        %2375 = vrot.lane.b32.xlu0 %v2354, 32
        %v2376 = vpop.permute.xlu0 %2375
        %2377 = vrot.lane.b32.xlu0 %v2355, 32
        %v2378 = vpop.permute.xlu0 %2377
        %2379 = vrot.lane.b32.xlu0 %v2356, 32
        %v2380 = vpop.permute.xlu0 %2379
        %2389 = vst.msk [vmem:[#allocation4 + $0x40] sm:$0xf] %vm1278, %v2366
        %2390 = vst.msk [vmem:[#allocation4 + $0x48] sm:$0xf] %vm1278, %v2368
        %2391 = vst.msk [vmem:[#allocation4 + $0x50] sm:$0xf] %vm1278, %v2370
        %2392 = vst.msk [vmem:[#allocation4 + $0x58] sm:$0xf] %vm1278, %v2372
        %2393 = vst.msk [vmem:[#allocation4 + $0x60] sm:$0xf] %vm1278, %v2374
        %2394 = vst.msk [vmem:[#allocation4 + $0x68] sm:$0xf] %vm1278, %v2376
        %2395 = vst.msk [vmem:[#allocation4 + $0x70] sm:$0xf] %vm1278, %v2378
        %2396 = vst.msk [vmem:[#allocation4 + $0x78] sm:$0xf] %vm1278, %v2380
        %v2397 = vld [vmem:[%s2348] sm:$0xf]
        %v2398 = vld [vmem:[%s2348 + $0x4] sm:$0x1]
        %v2399 = vld [vmem:[%s2348 + $0x8] sm:$0xf]
        %v2400 = vld [vmem:[%s2348 + $0xc] sm:$0x1]
        %v2401 = vld [vmem:[%s2348 + $0x10] sm:$0xf]
        %v2402 = vld [vmem:[%s2348 + $0x14] sm:$0x1]
        %v2403 = vld [vmem:[%s2348 + $0x18] sm:$0xf]
        %v2404 = vld [vmem:[%s2348 + $0x1c] sm:$0x1]
        %v2405 = vld [vmem:[%s2348 + $0x20] sm:$0xf]
        %v2406 = vld [vmem:[%s2348 + $0x24] sm:$0x1]
        %v2407 = vld [vmem:[%s2348 + $0x28] sm:$0xf]
        %v2408 = vld [vmem:[%s2348 + $0x2c] sm:$0x1]
        %v2409 = vld [vmem:[%s2348 + $0x30] sm:$0xf]
        %v2410 = vld [vmem:[%s2348 + $0x34] sm:$0x1]
        %v2411 = vld [vmem:[%s2348 + $0x38] sm:$0xf]
        %v2412 = vld [vmem:[%s2348 + $0x3c] sm:$0x1]
        %v2414 = vshrl.u32 %v2397, 16
        %v2416 = vrot.slane %v2414, 4
        %v2417 = vshll.u32 %v2397, 16
        %v2419 = vrot.slane %v2417, 5
        %v2420 = vor.u32 %v2416, %v2419
        %v2421 = vrot.slane %v2420, 4
        %v2423 = vshll.u32 %v2398, 16
        %v2425 = vrot.slane %v2423, 5
        %v2426 = vsel %vm931, %v2421, %v2425
        %v2428 = vshrl.u32 %v2399, 16
        %v2430 = vrot.slane %v2428, 4
        %v2431 = vshll.u32 %v2399, 16
        %v2433 = vrot.slane %v2431, 5
        %v2434 = vor.u32 %v2430, %v2433
        %v2435 = vrot.slane %v2434, 4
        %v2437 = vshll.u32 %v2400, 16
        %v2439 = vrot.slane %v2437, 5
        %v2440 = vsel %vm931, %v2435, %v2439
        %v2442 = vshrl.u32 %v2401, 16
        %v2444 = vrot.slane %v2442, 4
        %v2445 = vshll.u32 %v2401, 16
        %v2447 = vrot.slane %v2445, 5
        %v2448 = vor.u32 %v2444, %v2447
        %v2449 = vrot.slane %v2448, 4
        %v2451 = vshll.u32 %v2402, 16
        %v2453 = vrot.slane %v2451, 5
        %v2454 = vsel %vm931, %v2449, %v2453
        %v2456 = vshrl.u32 %v2403, 16
        %v2458 = vrot.slane %v2456, 4
        %v2459 = vshll.u32 %v2403, 16
        %v2461 = vrot.slane %v2459, 5
        %v2462 = vor.u32 %v2458, %v2461
        %v2463 = vrot.slane %v2462, 4
        %v2465 = vshll.u32 %v2404, 16
        %v2467 = vrot.slane %v2465, 5
        %v2468 = vsel %vm931, %v2463, %v2467
        %v2470 = vshrl.u32 %v2405, 16
        %v2472 = vrot.slane %v2470, 4
        %v2473 = vshll.u32 %v2405, 16
        %v2475 = vrot.slane %v2473, 5
        %v2476 = vor.u32 %v2472, %v2475
        %v2477 = vrot.slane %v2476, 4
        %v2479 = vshll.u32 %v2406, 16
        %v2481 = vrot.slane %v2479, 5
        %v2482 = vsel %vm931, %v2477, %v2481
        %v2484 = vshrl.u32 %v2407, 16
        %v2486 = vrot.slane %v2484, 4
        %v2487 = vshll.u32 %v2407, 16
        %v2489 = vrot.slane %v2487, 5
        %v2490 = vor.u32 %v2486, %v2489
        %v2491 = vrot.slane %v2490, 4
        %v2493 = vshll.u32 %v2408, 16
        %v2495 = vrot.slane %v2493, 5
        %v2496 = vsel %vm931, %v2491, %v2495
        %v2498 = vshrl.u32 %v2409, 16
        %v2500 = vrot.slane %v2498, 4
        %v2501 = vshll.u32 %v2409, 16
        %v2503 = vrot.slane %v2501, 5
        %v2504 = vor.u32 %v2500, %v2503
        %v2505 = vrot.slane %v2504, 4
        %v2507 = vshll.u32 %v2410, 16
        %v2509 = vrot.slane %v2507, 5
        %v2510 = vsel %vm931, %v2505, %v2509
        %v2512 = vshrl.u32 %v2411, 16
        %v2514 = vrot.slane %v2512, 4
        %v2515 = vshll.u32 %v2411, 16
        %v2517 = vrot.slane %v2515, 5
        %v2518 = vor.u32 %v2514, %v2517
        %v2519 = vrot.slane %v2518, 4
        %v2521 = vshll.u32 %v2412, 16
        %v2523 = vrot.slane %v2521, 5
        %v2524 = vsel %vm931, %v2519, %v2523
        %2525 = vrot.lane.b32.xlu0 %v2426, 64
        %v2526 = vpop.permute.xlu0 %2525
        %2527 = vrot.lane.b32.xlu0 %v2440, 64
        %v2528 = vpop.permute.xlu0 %2527
        %2529 = vrot.lane.b32.xlu0 %v2454, 64
        %v2530 = vpop.permute.xlu0 %2529
        %2531 = vrot.lane.b32.xlu0 %v2468, 64
        %v2532 = vpop.permute.xlu0 %2531
        %2533 = vrot.lane.b32.xlu0 %v2482, 64
        %v2534 = vpop.permute.xlu0 %2533
        %2535 = vrot.lane.b32.xlu0 %v2496, 64
        %v2536 = vpop.permute.xlu0 %2535
        %2537 = vrot.lane.b32.xlu0 %v2510, 64
        %v2538 = vpop.permute.xlu0 %2537
        %2539 = vrot.lane.b32.xlu0 %v2524, 64
        %v2540 = vpop.permute.xlu0 %2539
        %2549 = vst.msk [vmem:[#allocation4 + $0x40] sm:$0xf] %vm1439, %v2526
        %2550 = vst.msk [vmem:[#allocation4 + $0x48] sm:$0xf] %vm1439, %v2528
        %2551 = vst.msk [vmem:[#allocation4 + $0x50] sm:$0xf] %vm1439, %v2530
        %2552 = vst.msk [vmem:[#allocation4 + $0x58] sm:$0xf] %vm1439, %v2532
        %2553 = vst.msk [vmem:[#allocation4 + $0x60] sm:$0xf] %vm1439, %v2534
        %2554 = vst.msk [vmem:[#allocation4 + $0x68] sm:$0xf] %vm1439, %v2536
        %2555 = vst.msk [vmem:[#allocation4 + $0x70] sm:$0xf] %vm1439, %v2538
        %2556 = vst.msk [vmem:[#allocation4 + $0x78] sm:$0xf] %vm1439, %v2540
        %v2557 = vld [vmem:[%s2348] sm:$0xf]
        %v2558 = vld [vmem:[%s2348 + $0x4] sm:$0x1]
        %v2559 = vld [vmem:[%s2348 + $0x8] sm:$0xf]
        %v2560 = vld [vmem:[%s2348 + $0xc] sm:$0x1]
        %v2561 = vld [vmem:[%s2348 + $0x10] sm:$0xf]
        %v2562 = vld [vmem:[%s2348 + $0x14] sm:$0x1]
        %v2563 = vld [vmem:[%s2348 + $0x18] sm:$0xf]
        %v2564 = vld [vmem:[%s2348 + $0x1c] sm:$0x1]
        %v2565 = vld [vmem:[%s2348 + $0x20] sm:$0xf]
        %v2566 = vld [vmem:[%s2348 + $0x24] sm:$0x1]
        %v2567 = vld [vmem:[%s2348 + $0x28] sm:$0xf]
        %v2568 = vld [vmem:[%s2348 + $0x2c] sm:$0x1]
        %v2569 = vld [vmem:[%s2348 + $0x30] sm:$0xf]
        %v2570 = vld [vmem:[%s2348 + $0x34] sm:$0x1]
        %v2571 = vld [vmem:[%s2348 + $0x38] sm:$0xf]
        %v2572 = vld [vmem:[%s2348 + $0x3c] sm:$0x1]
        %v2574 = vshrl.u32 %v2557, 16
        %v2576 = vrot.slane %v2574, 4
        %v2577 = vshll.u32 %v2557, 16
        %v2579 = vrot.slane %v2577, 5
        %v2580 = vor.u32 %v2576, %v2579
        %v2581 = vrot.slane %v2580, 4
        %v2583 = vshll.u32 %v2558, 16
        %v2585 = vrot.slane %v2583, 5
        %v2586 = vsel %vm931, %v2581, %v2585
        %v2588 = vshrl.u32 %v2559, 16
        %v2590 = vrot.slane %v2588, 4
        %v2591 = vshll.u32 %v2559, 16
        %v2593 = vrot.slane %v2591, 5
        %v2594 = vor.u32 %v2590, %v2593
        %v2595 = vrot.slane %v2594, 4
        %v2597 = vshll.u32 %v2560, 16
        %v2599 = vrot.slane %v2597, 5
        %v2600 = vsel %vm931, %v2595, %v2599
        %v2602 = vshrl.u32 %v2561, 16
        %v2604 = vrot.slane %v2602, 4
        %v2605 = vshll.u32 %v2561, 16
        %v2607 = vrot.slane %v2605, 5
        %v2608 = vor.u32 %v2604, %v2607
        %v2609 = vrot.slane %v2608, 4
        %v2611 = vshll.u32 %v2562, 16
        %v2613 = vrot.slane %v2611, 5
        %v2614 = vsel %vm931, %v2609, %v2613
        %v2616 = vshrl.u32 %v2563, 16
        %v2618 = vrot.slane %v2616, 4
        %v2619 = vshll.u32 %v2563, 16
        %v2621 = vrot.slane %v2619, 5
        %v2622 = vor.u32 %v2618, %v2621
        %v2623 = vrot.slane %v2622, 4
        %v2625 = vshll.u32 %v2564, 16
        %v2627 = vrot.slane %v2625, 5
        %v2628 = vsel %vm931, %v2623, %v2627
        %v2630 = vshrl.u32 %v2565, 16
        %v2632 = vrot.slane %v2630, 4
        %v2633 = vshll.u32 %v2565, 16
        %v2635 = vrot.slane %v2633, 5
        %v2636 = vor.u32 %v2632, %v2635
        %v2637 = vrot.slane %v2636, 4
        %v2639 = vshll.u32 %v2566, 16
        %v2641 = vrot.slane %v2639, 5
        %v2642 = vsel %vm931, %v2637, %v2641
        %v2644 = vshrl.u32 %v2567, 16
        %v2646 = vrot.slane %v2644, 4
        %v2647 = vshll.u32 %v2567, 16
        %v2649 = vrot.slane %v2647, 5
        %v2650 = vor.u32 %v2646, %v2649
        %v2651 = vrot.slane %v2650, 4
        %v2653 = vshll.u32 %v2568, 16
        %v2655 = vrot.slane %v2653, 5
        %v2656 = vsel %vm931, %v2651, %v2655
        %v2658 = vshrl.u32 %v2569, 16
        %v2660 = vrot.slane %v2658, 4
        %v2661 = vshll.u32 %v2569, 16
        %v2663 = vrot.slane %v2661, 5
        %v2664 = vor.u32 %v2660, %v2663
        %v2665 = vrot.slane %v2664, 4
        %v2667 = vshll.u32 %v2570, 16
        %v2669 = vrot.slane %v2667, 5
        %v2670 = vsel %vm931, %v2665, %v2669
        %v2672 = vshrl.u32 %v2571, 16
        %v2674 = vrot.slane %v2672, 4
        %v2675 = vshll.u32 %v2571, 16
        %v2677 = vrot.slane %v2675, 5
        %v2678 = vor.u32 %v2674, %v2677
        %v2679 = vrot.slane %v2678, 4
        %v2681 = vshll.u32 %v2572, 16
        %v2683 = vrot.slane %v2681, 5
        %v2684 = vsel %vm931, %v2679, %v2683
        %2685 = vrot.lane.b32.xlu0 %v2586, 64
        %v2686 = vpop.permute.xlu0 %2685
        %2687 = vrot.lane.b32.xlu0 %v2600, 64
        %v2688 = vpop.permute.xlu0 %2687
        %2689 = vrot.lane.b32.xlu0 %v2614, 64
        %v2690 = vpop.permute.xlu0 %2689
        %2691 = vrot.lane.b32.xlu0 %v2628, 64
        %v2692 = vpop.permute.xlu0 %2691
        %2693 = vrot.lane.b32.xlu0 %v2642, 64
        %v2694 = vpop.permute.xlu0 %2693
        %2695 = vrot.lane.b32.xlu0 %v2656, 64
        %v2696 = vpop.permute.xlu0 %2695
        %2697 = vrot.lane.b32.xlu0 %v2670, 64
        %v2698 = vpop.permute.xlu0 %2697
        %2699 = vrot.lane.b32.xlu0 %v2684, 64
        %v2700 = vpop.permute.xlu0 %2699
        %2709 = vst.msk [vmem:[#allocation4 + $0x40] sm:$0xf] %vm1600, %v2686
        %2710 = vst.msk [vmem:[#allocation4 + $0x48] sm:$0xf] %vm1600, %v2688
        %2711 = vst.msk [vmem:[#allocation4 + $0x50] sm:$0xf] %vm1600, %v2690
        %2712 = vst.msk [vmem:[#allocation4 + $0x58] sm:$0xf] %vm1600, %v2692
        %2713 = vst.msk [vmem:[#allocation4 + $0x60] sm:$0xf] %vm1600, %v2694
        %2714 = vst.msk [vmem:[#allocation4 + $0x68] sm:$0xf] %vm1600, %v2696
        %2715 = vst.msk [vmem:[#allocation4 + $0x70] sm:$0xf] %vm1600, %v2698
        %2716 = vst.msk [vmem:[#allocation4 + $0x78] sm:$0xf] %vm1600, %v2700
        %v2717 = vld [vmem:[%s2348] sm:$0xf]
        %v2718 = vld [vmem:[%s2348 + $0x8] sm:$0xf]
        %v2719 = vld [vmem:[%s2348 + $0x10] sm:$0xf]
        %v2720 = vld [vmem:[%s2348 + $0x18] sm:$0xf]
        %v2721 = vld [vmem:[%s2348 + $0x20] sm:$0xf]
        %v2722 = vld [vmem:[%s2348 + $0x28] sm:$0xf]
        %v2723 = vld [vmem:[%s2348 + $0x30] sm:$0xf]
        %v2724 = vld [vmem:[%s2348 + $0x38] sm:$0xf]
        %2733 = vrot.lane.b32.xlu0 %v2717, 48
        %v2734 = vpop.permute.xlu0 %2733
        %2735 = vrot.lane.b32.xlu0 %v2718, 48
        %v2736 = vpop.permute.xlu0 %2735
        %2737 = vrot.lane.b32.xlu0 %v2719, 48
        %v2738 = vpop.permute.xlu0 %2737
        %2739 = vrot.lane.b32.xlu0 %v2720, 48
        %v2740 = vpop.permute.xlu0 %2739
        %2741 = vrot.lane.b32.xlu0 %v2721, 48
        %v2742 = vpop.permute.xlu0 %2741
        %2743 = vrot.lane.b32.xlu0 %v2722, 48
        %v2744 = vpop.permute.xlu0 %2743
        %2745 = vrot.lane.b32.xlu0 %v2723, 48
        %v2746 = vpop.permute.xlu0 %2745
        %2747 = vrot.lane.b32.xlu0 %v2724, 48
        %v2748 = vpop.permute.xlu0 %2747
        %2757 = vst.msk [vmem:[#allocation4 + $0x40] sm:$0xf] %vm1649, %v2734
        %2758 = vst.msk [vmem:[#allocation4 + $0x48] sm:$0xf] %vm1649, %v2736
        %2759 = vst.msk [vmem:[#allocation4 + $0x50] sm:$0xf] %vm1649, %v2738
        %2760 = vst.msk [vmem:[#allocation4 + $0x58] sm:$0xf] %vm1649, %v2740
        %2761 = vst.msk [vmem:[#allocation4 + $0x60] sm:$0xf] %vm1649, %v2742
        %2762 = vst.msk [vmem:[#allocation4 + $0x68] sm:$0xf] %vm1649, %v2744
        %2763 = vst.msk [vmem:[#allocation4 + $0x70] sm:$0xf] %vm1649, %v2746
        %2764 = vst.msk [vmem:[#allocation4 + $0x78] sm:$0xf] %vm1649, %v2748
        %v2765 = vld [vmem:[%s2348] sm:$0xf]
        %v2766 = vld [vmem:[%s2348 + $0x4] sm:$0x1]
        %v2767 = vld [vmem:[%s2348 + $0x8] sm:$0xf]
        %v2768 = vld [vmem:[%s2348 + $0xc] sm:$0x1]
        %v2769 = vld [vmem:[%s2348 + $0x10] sm:$0xf]
        %v2770 = vld [vmem:[%s2348 + $0x14] sm:$0x1]
        %v2771 = vld [vmem:[%s2348 + $0x18] sm:$0xf]
        %v2772 = vld [vmem:[%s2348 + $0x1c] sm:$0x1]
        %v2773 = vld [vmem:[%s2348 + $0x20] sm:$0xf]
        %v2774 = vld [vmem:[%s2348 + $0x24] sm:$0x1]
        %v2775 = vld [vmem:[%s2348 + $0x28] sm:$0xf]
        %v2776 = vld [vmem:[%s2348 + $0x2c] sm:$0x1]
        %v2777 = vld [vmem:[%s2348 + $0x30] sm:$0xf]
        %v2778 = vld [vmem:[%s2348 + $0x34] sm:$0x1]
        %v2779 = vld [vmem:[%s2348 + $0x38] sm:$0xf]
        %v2780 = vld [vmem:[%s2348 + $0x3c] sm:$0x1]
        %v2782 = vshrl.u32 %v2765, 16
        %v2784 = vrot.slane %v2782, 4
        %v2785 = vshll.u32 %v2765, 16
        %v2787 = vrot.slane %v2785, 5
        %v2788 = vor.u32 %v2784, %v2787
        %v2789 = vrot.slane %v2788, 4
        %v2791 = vshll.u32 %v2766, 16
        %v2793 = vrot.slane %v2791, 5
        %v2794 = vsel %vm931, %v2789, %v2793
        %v2796 = vshrl.u32 %v2767, 16
        %v2798 = vrot.slane %v2796, 4
        %v2799 = vshll.u32 %v2767, 16
        %v2801 = vrot.slane %v2799, 5
        %v2802 = vor.u32 %v2798, %v2801
        %v2803 = vrot.slane %v2802, 4
        %v2805 = vshll.u32 %v2768, 16
        %v2807 = vrot.slane %v2805, 5
        %v2808 = vsel %vm931, %v2803, %v2807
        %v2810 = vshrl.u32 %v2769, 16
        %v2812 = vrot.slane %v2810, 4
        %v2813 = vshll.u32 %v2769, 16
        %v2815 = vrot.slane %v2813, 5
        %v2816 = vor.u32 %v2812, %v2815
        %v2817 = vrot.slane %v2816, 4
        %v2819 = vshll.u32 %v2770, 16
        %v2821 = vrot.slane %v2819, 5
        %v2822 = vsel %vm931, %v2817, %v2821
        %v2824 = vshrl.u32 %v2771, 16
        %v2826 = vrot.slane %v2824, 4
        %v2827 = vshll.u32 %v2771, 16
        %v2829 = vrot.slane %v2827, 5
        %v2830 = vor.u32 %v2826, %v2829
        %v2831 = vrot.slane %v2830, 4
        %v2833 = vshll.u32 %v2772, 16
        %v2835 = vrot.slane %v2833, 5
        %v2836 = vsel %vm931, %v2831, %v2835
        %v2838 = vshrl.u32 %v2773, 16
        %v2840 = vrot.slane %v2838, 4
        %v2841 = vshll.u32 %v2773, 16
        %v2843 = vrot.slane %v2841, 5
        %v2844 = vor.u32 %v2840, %v2843
        %v2845 = vrot.slane %v2844, 4
        %v2847 = vshll.u32 %v2774, 16
        %v2849 = vrot.slane %v2847, 5
        %v2850 = vsel %vm931, %v2845, %v2849
        %v2852 = vshrl.u32 %v2775, 16
        %v2854 = vrot.slane %v2852, 4
        %v2855 = vshll.u32 %v2775, 16
        %v2857 = vrot.slane %v2855, 5
        %v2858 = vor.u32 %v2854, %v2857
        %v2859 = vrot.slane %v2858, 4
        %v2861 = vshll.u32 %v2776, 16
        %v2863 = vrot.slane %v2861, 5
        %v2864 = vsel %vm931, %v2859, %v2863
        %v2866 = vshrl.u32 %v2777, 16
        %v2868 = vrot.slane %v2866, 4
        %v2869 = vshll.u32 %v2777, 16
        %v2871 = vrot.slane %v2869, 5
        %v2872 = vor.u32 %v2868, %v2871
        %v2873 = vrot.slane %v2872, 4
        %v2875 = vshll.u32 %v2778, 16
        %v2877 = vrot.slane %v2875, 5
        %v2878 = vsel %vm931, %v2873, %v2877
        %v2880 = vshrl.u32 %v2779, 16
        %v2882 = vrot.slane %v2880, 4
        %v2883 = vshll.u32 %v2779, 16
        %v2885 = vrot.slane %v2883, 5
        %v2886 = vor.u32 %v2882, %v2885
        %v2887 = vrot.slane %v2886, 4
        %v2889 = vshll.u32 %v2780, 16
        %v2891 = vrot.slane %v2889, 5
        %v2892 = vsel %vm931, %v2887, %v2891
        %2893 = vrot.lane.b32.xlu0 %v2794, 80
        %v2894 = vpop.permute.xlu0 %2893
        %2895 = vrot.lane.b32.xlu0 %v2808, 80
        %v2896 = vpop.permute.xlu0 %2895
        %2897 = vrot.lane.b32.xlu0 %v2822, 80
        %v2898 = vpop.permute.xlu0 %2897
        %2899 = vrot.lane.b32.xlu0 %v2836, 80
        %v2900 = vpop.permute.xlu0 %2899
        %2901 = vrot.lane.b32.xlu0 %v2850, 80
        %v2902 = vpop.permute.xlu0 %2901
        %2903 = vrot.lane.b32.xlu0 %v2864, 80
        %v2904 = vpop.permute.xlu0 %2903
        %2905 = vrot.lane.b32.xlu0 %v2878, 80
        %v2906 = vpop.permute.xlu0 %2905
        %2907 = vrot.lane.b32.xlu0 %v2892, 80
        %v2908 = vpop.permute.xlu0 %2907
        %2917 = vst.msk [vmem:[#allocation4 + $0x40] sm:$0xf] %vm1810, %v2894
        %2918 = vst.msk [vmem:[#allocation4 + $0x48] sm:$0xf] %vm1810, %v2896
        %2919 = vst.msk [vmem:[#allocation4 + $0x50] sm:$0xf] %vm1810, %v2898
        %2920 = vst.msk [vmem:[#allocation4 + $0x58] sm:$0xf] %vm1810, %v2900
        %2921 = vst.msk [vmem:[#allocation4 + $0x60] sm:$0xf] %vm1810, %v2902
        %2922 = vst.msk [vmem:[#allocation4 + $0x68] sm:$0xf] %vm1810, %v2904
        %2923 = vst.msk [vmem:[#allocation4 + $0x70] sm:$0xf] %vm1810, %v2906
        %2924 = vst.msk [vmem:[#allocation4 + $0x78] sm:$0xf] %vm1810, %v2908
        %v2925 = vld [vmem:[%s2348] sm:$0xf]
        %v2926 = vld [vmem:[%s2348 + $0x4] sm:$0x1]
        %v2927 = vld [vmem:[%s2348 + $0x8] sm:$0xf]
        %v2928 = vld [vmem:[%s2348 + $0xc] sm:$0x1]
        %v2929 = vld [vmem:[%s2348 + $0x10] sm:$0xf]
        %v2930 = vld [vmem:[%s2348 + $0x14] sm:$0x1]
        %v2931 = vld [vmem:[%s2348 + $0x18] sm:$0xf]
        %v2932 = vld [vmem:[%s2348 + $0x1c] sm:$0x1]
        %v2933 = vld [vmem:[%s2348 + $0x20] sm:$0xf]
        %v2934 = vld [vmem:[%s2348 + $0x24] sm:$0x1]
        %v2935 = vld [vmem:[%s2348 + $0x28] sm:$0xf]
        %v2936 = vld [vmem:[%s2348 + $0x2c] sm:$0x1]
        %v2937 = vld [vmem:[%s2348 + $0x30] sm:$0xf]
        %v2938 = vld [vmem:[%s2348 + $0x34] sm:$0x1]
        %v2939 = vld [vmem:[%s2348 + $0x38] sm:$0xf]
        %v2940 = vld [vmem:[%s2348 + $0x3c] sm:$0x1]
        %v2942 = vshrl.u32 %v2925, 16
        %v2944 = vrot.slane %v2942, 4
        %v2945 = vshll.u32 %v2925, 16
        %v2947 = vrot.slane %v2945, 5
        %v2948 = vor.u32 %v2944, %v2947
        %v2949 = vrot.slane %v2948, 4
        %v2951 = vshll.u32 %v2926, 16
        %v2953 = vrot.slane %v2951, 5
        %v2954 = vsel %vm931, %v2949, %v2953
        %v2956 = vshrl.u32 %v2927, 16
        %v2958 = vrot.slane %v2956, 4
        %v2959 = vshll.u32 %v2927, 16
        %v2961 = vrot.slane %v2959, 5
        %v2962 = vor.u32 %v2958, %v2961
        %v2963 = vrot.slane %v2962, 4
        %v2965 = vshll.u32 %v2928, 16
        %v2967 = vrot.slane %v2965, 5
        %v2968 = vsel %vm931, %v2963, %v2967
        %v2970 = vshrl.u32 %v2929, 16
        %v2972 = vrot.slane %v2970, 4
        %v2973 = vshll.u32 %v2929, 16
        %v2975 = vrot.slane %v2973, 5
        %v2976 = vor.u32 %v2972, %v2975
        %v2977 = vrot.slane %v2976, 4
        %v2979 = vshll.u32 %v2930, 16
        %v2981 = vrot.slane %v2979, 5
        %v2982 = vsel %vm931, %v2977, %v2981
        %v2984 = vshrl.u32 %v2931, 16
        %v2986 = vrot.slane %v2984, 4
        %v2987 = vshll.u32 %v2931, 16
        %v2989 = vrot.slane %v2987, 5
        %v2990 = vor.u32 %v2986, %v2989
        %v2991 = vrot.slane %v2990, 4
        %v2993 = vshll.u32 %v2932, 16
        %v2995 = vrot.slane %v2993, 5
        %v2996 = vsel %vm931, %v2991, %v2995
        %v2998 = vshrl.u32 %v2933, 16
        %v3000 = vrot.slane %v2998, 4
        %v3001 = vshll.u32 %v2933, 16
        %v3003 = vrot.slane %v3001, 5
        %v3004 = vor.u32 %v3000, %v3003
        %v3005 = vrot.slane %v3004, 4
        %v3007 = vshll.u32 %v2934, 16
        %v3009 = vrot.slane %v3007, 5
        %v3010 = vsel %vm931, %v3005, %v3009
        %v3012 = vshrl.u32 %v2935, 16
        %v3014 = vrot.slane %v3012, 4
        %v3015 = vshll.u32 %v2935, 16
        %v3017 = vrot.slane %v3015, 5
        %v3018 = vor.u32 %v3014, %v3017
        %v3019 = vrot.slane %v3018, 4
        %v3021 = vshll.u32 %v2936, 16
        %v3023 = vrot.slane %v3021, 5
        %v3024 = vsel %vm931, %v3019, %v3023
        %v3026 = vshrl.u32 %v2937, 16
        %v3028 = vrot.slane %v3026, 4
        %v3029 = vshll.u32 %v2937, 16
        %v3031 = vrot.slane %v3029, 5
        %v3032 = vor.u32 %v3028, %v3031
        %v3033 = vrot.slane %v3032, 4
        %v3035 = vshll.u32 %v2938, 16
        %v3037 = vrot.slane %v3035, 5
        %v3038 = vsel %vm931, %v3033, %v3037
        %v3040 = vshrl.u32 %v2939, 16
        %v3042 = vrot.slane %v3040, 4
        %v3043 = vshll.u32 %v2939, 16
        %v3045 = vrot.slane %v3043, 5
        %v3046 = vor.u32 %v3042, %v3045
        %v3047 = vrot.slane %v3046, 4
        %v3049 = vshll.u32 %v2940, 16
        %v3051 = vrot.slane %v3049, 5
        %v3052 = vsel %vm931, %v3047, %v3051
        %3053 = vrot.lane.b32.xlu0 %v2954, 80
        %v3054 = vpop.permute.xlu0 %3053
        %3055 = vrot.lane.b32.xlu0 %v2968, 80
        %v3056 = vpop.permute.xlu0 %3055
        %3057 = vrot.lane.b32.xlu0 %v2982, 80
        %v3058 = vpop.permute.xlu0 %3057
        %3059 = vrot.lane.b32.xlu0 %v2996, 80
        %v3060 = vpop.permute.xlu0 %3059
        %3061 = vrot.lane.b32.xlu0 %v3010, 80
        %v3062 = vpop.permute.xlu0 %3061
        %3063 = vrot.lane.b32.xlu0 %v3024, 80
        %v3064 = vpop.permute.xlu0 %3063
        %3065 = vrot.lane.b32.xlu0 %v3038, 80
        %v3066 = vpop.permute.xlu0 %3065
        %3067 = vrot.lane.b32.xlu0 %v3052, 80
        %v3068 = vpop.permute.xlu0 %3067
        %3077 = vst.msk [vmem:[#allocation4 + $0x44] sm:$0xf] %vm904, %v3054
        %3078 = vst.msk [vmem:[#allocation4 + $0x4c] sm:$0xf] %vm904, %v3056
        %3079 = vst.msk [vmem:[#allocation4 + $0x54] sm:$0xf] %vm904, %v3058
        %3080 = vst.msk [vmem:[#allocation4 + $0x5c] sm:$0xf] %vm904, %v3060
        %3081 = vst.msk [vmem:[#allocation4 + $0x64] sm:$0xf] %vm904, %v3062
        %3082 = vst.msk [vmem:[#allocation4 + $0x6c] sm:$0xf] %vm904, %v3064
        %3083 = vst.msk [vmem:[#allocation4 + $0x74] sm:$0xf] %vm904, %v3066
        %3084 = vst.msk [vmem:[#allocation4 + $0x7c] sm:$0xf] %vm904, %v3068
        %v3085 = vld [vmem:[#allocation4] sm:$0xff]
        %v3086 = vld [vmem:[#allocation4 + $0x8] sm:$0xff]
        %v3087 = vld [vmem:[#allocation4 + $0x10] sm:$0xff]
        %v3088 = vld [vmem:[#allocation4 + $0x18] sm:$0xff]
        %v3089 = vld [vmem:[#allocation4 + $0x20] sm:$0xff]
        %v3090 = vld [vmem:[#allocation4 + $0x28] sm:$0xff]
        %v3091 = vld [vmem:[#allocation4 + $0x30] sm:$0xff]
        %v3092 = vld [vmem:[#allocation4 + $0x38] sm:$0xff]
        %v3093 = vld [vmem:[#allocation4 + $0x40] sm:$0xff]
        %v3094 = vld [vmem:[#allocation4 + $0x48] sm:$0xff]
        %v3095 = vld [vmem:[#allocation4 + $0x50] sm:$0xff]
        %v3096 = vld [vmem:[#allocation4 + $0x58] sm:$0xff]
        %v3097 = vld [vmem:[#allocation4 + $0x60] sm:$0xff]
        %v3098 = vld [vmem:[#allocation4 + $0x68] sm:$0xff]
        %v3099 = vld [vmem:[#allocation4 + $0x70] sm:$0xff]
        %v3100 = vld [vmem:[#allocation4 + $0x78] sm:$0xff]
        %v3101 = vld [vmem:[%s3] sm:$0xf]
        %v3102 = vld [vmem:[%s3 + $0x4] sm:$0xf]
        %v3103 = vld [vmem:[%s3 + $0x8] sm:$0xf]
        %v3104 = vld [vmem:[%s3 + $0xc] sm:$0xf]
        %v3105 = vld [vmem:[%s3 + $0x10] sm:$0xf]
        %v3106 = vld [vmem:[%s3 + $0x14] sm:$0xf]
        %v3107 = vld [vmem:[%s3 + $0x18] sm:$0xf]
        %v3108 = vld [vmem:[%s3 + $0x1c] sm:$0xf]
        %v3109 = vld [vmem:[%s3 + $0x20] sm:$0xf]
        %v3110 = vld [vmem:[%s3 + $0x24] sm:$0xf]
        %v3111 = vld [vmem:[%s3 + $0x28] sm:$0xf]
        %v3112 = vld [vmem:[%s3 + $0x2c] sm:$0xf]
        %v3113 = vld [vmem:[%s3 + $0x30] sm:$0xf]
        %v3114 = vld [vmem:[%s3 + $0x34] sm:$0xf]
        %v3115 = vld [vmem:[%s3 + $0x38] sm:$0xf]
        %v3116 = vld [vmem:[%s3 + $0x3c] sm:$0xf]
        %v3117 = vld [vmem:[%s3 + $0x40] sm:$0xf]
        %v3118 = vld [vmem:[%s3 + $0x44] sm:$0xf]
        %v3135 = vunpack.c.l.b16 %v3085
        %v3136 = vunpack.c.h.b16 %v3085
        %v3137 = vunpack.c.l.b16 %v3086
        %v3138 = vunpack.c.h.b16 %v3086
        %v3139 = vunpack.c.l.b16 %v3087
        %v3140 = vunpack.c.h.b16 %v3087
        %v3141 = vunpack.c.l.b16 %v3088
        %v3142 = vunpack.c.h.b16 %v3088
        %v3143 = vunpack.c.l.b16 %v3089
        %v3144 = vunpack.c.h.b16 %v3089
        %v3145 = vunpack.c.l.b16 %v3090
        %v3146 = vunpack.c.h.b16 %v3090
        %v3147 = vunpack.c.l.b16 %v3091
        %v3148 = vunpack.c.h.b16 %v3091
        %v3149 = vunpack.c.l.b16 %v3092
        %v3150 = vunpack.c.h.b16 %v3092
        %v3151 = vunpack.c.l.b16 %v3093
        %v3152 = vunpack.c.h.b16 %v3093
        %v3153 = vunpack.c.l.b16 %v3094
        %v3154 = vunpack.c.h.b16 %v3094
        %v3155 = vunpack.c.l.b16 %v3095
        %v3156 = vunpack.c.h.b16 %v3095
        %v3157 = vunpack.c.l.b16 %v3096
        %v3158 = vunpack.c.h.b16 %v3096
        %v3159 = vunpack.c.l.b16 %v3097
        %v3160 = vunpack.c.h.b16 %v3097
        %v3161 = vunpack.c.l.b16 %v3098
        %v3162 = vunpack.c.h.b16 %v3098
        %v3163 = vunpack.c.l.b16 %v3099
        %v3164 = vunpack.c.h.b16 %v3099
        %v3165 = vunpack.c.l.b16 %v3100
        %v3166 = vunpack.c.h.b16 %v3100
        %v3167 = vpack.c.b16 %v3137, %v3135
        %v3168 = vpack.c.b16 %v3138, %v3136
        %v3169 = vpack.c.b16 %v3141, %v3139
        %v3170 = vpack.c.b16 %v3142, %v3140
        %v3171 = vpack.c.b16 %v3145, %v3143
        %v3172 = vpack.c.b16 %v3146, %v3144
        %v3173 = vpack.c.b16 %v3149, %v3147
        %v3174 = vpack.c.b16 %v3150, %v3148
        %v3175 = vpack.c.b16 %v3153, %v3151
        %v3176 = vpack.c.b16 %v3154, %v3152
        %v3177 = vpack.c.b16 %v3157, %v3155
        %v3178 = vpack.c.b16 %v3158, %v3156
        %v3179 = vpack.c.b16 %v3161, %v3159
        %v3180 = vpack.c.b16 %v3162, %v3160
        %v3181 = vpack.c.b16 %v3165, %v3163
        %v3182 = vpack.c.b16 %v3166, %v3164
        %v3209 = vunpack.c.l.b16 %v3101
        %v3210 = vunpack.c.l.b16 %v3102
        %v3211 = vunpack.c.l.b16 %v3103
        %v3212 = vunpack.c.l.b16 %v3104
        %v3213 = vunpack.c.l.b16 %v3105
        %v3214 = vunpack.c.l.b16 %v3106
        %v3215 = vunpack.c.l.b16 %v3107
        %v3216 = vunpack.c.l.b16 %v3108
        %v3217 = vunpack.c.l.b16 %v3109
        %v3218 = vunpack.c.l.b16 %v3110
        %v3219 = vunpack.c.l.b16 %v3111
        %v3220 = vunpack.c.l.b16 %v3112
        %v3221 = vunpack.c.l.b16 %v3113
        %v3222 = vunpack.c.l.b16 %v3114
        %v3223 = vunpack.c.l.b16 %v3115
        %v3224 = vunpack.c.l.b16 %v3116
        %v3225 = vunpack.c.l.b16 %v3117
        %v3226 = vunpack.c.l.b16 %v3118
        %v3227 = vpack.c.b16 %v3210, %v3209
        %v3228 = vpack.c.b16 %v3212, %v3211
        %v3229 = vpack.c.b16 %v3214, %v3213
        %v3230 = vpack.c.b16 %v3216, %v3215
        %v3231 = vpack.c.b16 %v3218, %v3217
        %v3232 = vpack.c.b16 %v3220, %v3219
        %v3233 = vpack.c.b16 %v3222, %v3221
        %v3234 = vpack.c.b16 %v3224, %v3223
        %v3235 = vpack.c.b16 %v3226, %v3225
        %vm3245 = vcmask 130048
        %v3247 = vsel %vm3245, %v3168, 0
        %v3250 = vsel %vm3245, %v3170, 0
        %v3253 = vsel %vm3245, %v3172, 0
        %v3256 = vsel %vm3245, %v3174, 0
        %v3259 = vsel %vm3245, %v3176, 0
        %v3262 = vsel %vm3245, %v3178, 0
        %v3265 = vsel %vm3245, %v3180, 0
        %v3268 = vsel %vm3245, %v3182, 0
        %3270 = vmatpush.bf16.msra.mxu0 %v3234
        %3271 = vmatpush.bf16.msra.mxu0 %v3233
        %3272 = vmatpush.bf16.msra.mxu0 %v3232
        %3273 = vmatpush.bf16.msra.mxu0 %v3231
        %3274 = vmatpush.bf16.msra.mxu0 %v3230
        %3275 = vmatpush.bf16.msra.mxu0 %v3229
        %3276 = vmatpush.bf16.msra.mxu0 %v3228
        %3277 = vmatpush.bf16.msra.mxu0 %v3227
        %3278 = vmatmul.bf16.gmra.mxu0 %v3167
        %v3279 = vpop.f32.mrf.mxu0
        %v3280 = vadd.f32 0.0, %v3279
        %v3281 = vpop.f32.mrf.mxu0
        %v3282 = vadd.f32 0.0, %v3281
        %3283 = vmatmul.bf16.gmra.mxu0 %v3169
        %v3284 = vpop.f32.mrf.mxu0
        %v3285 = vadd.f32 0.0, %v3284
        %v3286 = vpop.f32.mrf.mxu0
        %v3287 = vadd.f32 0.0, %v3286
        %3288 = vmatmul.bf16.gmra.mxu0 %v3171
        %v3289 = vpop.f32.mrf.mxu0
        %v3290 = vadd.f32 0.0, %v3289
        %v3291 = vpop.f32.mrf.mxu0
        %v3292 = vadd.f32 0.0, %v3291
        %3293 = vmatmul.bf16.gmra.mxu0 %v3173
        %v3294 = vpop.f32.mrf.mxu0
        %v3295 = vadd.f32 0.0, %v3294
        %v3296 = vpop.f32.mrf.mxu0
        %v3297 = vadd.f32 0.0, %v3296
        %3298 = vmatmul.bf16.gmra.mxu0 %v3175
        %v3299 = vpop.f32.mrf.mxu0
        %v3300 = vadd.f32 0.0, %v3299
        %v3301 = vpop.f32.mrf.mxu0
        %v3302 = vadd.f32 0.0, %v3301
        %3303 = vmatmul.bf16.gmra.mxu0 %v3177
        %v3304 = vpop.f32.mrf.mxu0
        %v3305 = vadd.f32 0.0, %v3304
        %v3306 = vpop.f32.mrf.mxu0
        %v3307 = vadd.f32 0.0, %v3306
        %3308 = vmatmul.bf16.gmra.mxu0 %v3179
        %v3309 = vpop.f32.mrf.mxu0
        %v3310 = vadd.f32 0.0, %v3309
        %v3311 = vpop.f32.mrf.mxu0
        %v3312 = vadd.f32 0.0, %v3311
        %3313 = vmatmul.bf16.gmra.mxu0 %v3181
        %v3314 = vpop.f32.mrf.mxu0
        %v3315 = vadd.f32 0.0, %v3314
        %v3316 = vpop.f32.mrf.mxu0
        %v3317 = vadd.f32 0.0, %v3316
        %3318 = vdwg.mxu0
        %3319 = vmatpush.bf16.msra.mxu0 0
        %3320 = vmatpush.bf16.msra.mxu0 0
        %3321 = vmatpush.bf16.msra.mxu0 0
        %3322 = vmatpush.bf16.msra.mxu0 0
        %3323 = vmatpush.bf16.msra.mxu0 0
        %3324 = vmatpush.bf16.msra.mxu0 0
        %3325 = vmatpush.bf16.msra.mxu0 0
        %3326 = vmatpush.bf16.msra.mxu0 %v3235
        %3327 = vmatmul.bf16.gmra.mxu0 %v3247
        %v3328 = vpop.f32.mrf.mxu0
        %v3329 = vadd.f32 %v3280, %v3328
        %v3330 = vpop.f32.mrf.mxu0
        %v3331 = vadd.f32 %v3282, %v3330
        %3332 = vmatmul.bf16.gmra.mxu0 %v3250
        %v3333 = vpop.f32.mrf.mxu0
        %v3334 = vadd.f32 %v3285, %v3333
        %v3335 = vpop.f32.mrf.mxu0
        %v3336 = vadd.f32 %v3287, %v3335
        %3337 = vmatmul.bf16.gmra.mxu0 %v3253
        %v3338 = vpop.f32.mrf.mxu0
        %v3339 = vadd.f32 %v3290, %v3338
        %v3340 = vpop.f32.mrf.mxu0
        %v3341 = vadd.f32 %v3292, %v3340
        %3342 = vmatmul.bf16.gmra.mxu0 %v3256
        %v3343 = vpop.f32.mrf.mxu0
        %v3344 = vadd.f32 %v3295, %v3343
        %v3345 = vpop.f32.mrf.mxu0
        %v3346 = vadd.f32 %v3297, %v3345
        %3347 = vmatmul.bf16.gmra.mxu0 %v3259
        %v3348 = vpop.f32.mrf.mxu0
        %v3349 = vadd.f32 %v3300, %v3348
        %v3350 = vpop.f32.mrf.mxu0
        %v3351 = vadd.f32 %v3302, %v3350
        %3352 = vmatmul.bf16.gmra.mxu0 %v3262
        %v3353 = vpop.f32.mrf.mxu0
        %v3354 = vadd.f32 %v3305, %v3353
        %v3355 = vpop.f32.mrf.mxu0
        %v3356 = vadd.f32 %v3307, %v3355
        %3357 = vmatmul.bf16.gmra.mxu0 %v3265
        %v3358 = vpop.f32.mrf.mxu0
        %v3359 = vadd.f32 %v3310, %v3358
        %v3360 = vpop.f32.mrf.mxu0
        %v3361 = vadd.f32 %v3312, %v3360
        %3362 = vmatmul.bf16.gmra.mxu0 %v3268
        %v3363 = vpop.f32.mrf.mxu0
        %v3364 = vadd.f32 %v3315, %v3363
        %v3365 = vpop.f32.mrf.mxu0
        %v3366 = vadd.f32 %v3317, %v3365
        %3367 = vdwg.mxu0
        %v3368 = vld [vmem:[%s4] sm:$0x1]
        %v3370 = vperm.slane %v3368, 0
        %v3372 = vmul.f32 %v3329, %v3370
        %v3373 = vmul.f32 %v3331, %v3370
        %v3374 = vmul.f32 %v3334, %v3370
        %v3375 = vmul.f32 %v3336, %v3370
        %v3376 = vmul.f32 %v3339, %v3370
        %v3377 = vmul.f32 %v3341, %v3370
        %v3378 = vmul.f32 %v3344, %v3370
        %v3379 = vmul.f32 %v3346, %v3370
        %v3380 = vmul.f32 %v3349, %v3370
        %v3381 = vmul.f32 %v3351, %v3370
        %v3382 = vmul.f32 %v3354, %v3370
        %v3383 = vmul.f32 %v3356, %v3370
        %v3384 = vmul.f32 %v3359, %v3370
        %v3385 = vmul.f32 %v3361, %v3370
        %v3386 = vmul.f32 %v3364, %v3370
        %v3387 = vmul.f32 %v3366, %v3370
        %v3388 = vld [vmem:[%s5] sm:$0x1]
        %v3390 = vperm.slane %v3388, 0
        %v3392 = vadd.f32 %v3372, %v3390
        %v3393 = vadd.f32 %v3373, %v3390
        %v3394 = vadd.f32 %v3374, %v3390
        %v3395 = vadd.f32 %v3375, %v3390
        %v3396 = vadd.f32 %v3376, %v3390
        %v3397 = vadd.f32 %v3377, %v3390
        %v3398 = vadd.f32 %v3378, %v3390
        %v3399 = vadd.f32 %v3379, %v3390
        %v3400 = vadd.f32 %v3380, %v3390
        %v3401 = vadd.f32 %v3381, %v3390
        %v3402 = vadd.f32 %v3382, %v3390
        %v3403 = vadd.f32 %v3383, %v3390
        %v3404 = vadd.f32 %v3384, %v3390
        %v3405 = vadd.f32 %v3385, %v3390
        %v3406 = vadd.f32 %v3386, %v3390
        %v3407 = vadd.f32 %v3387, %v3390
        %v3408 = vmax.f32 %v3392, 0.0
        %v3409 = vmax.f32 %v3393, 0.0
        %v3410 = vmax.f32 %v3394, 0.0
        %v3411 = vmax.f32 %v3395, 0.0
        %v3412 = vmax.f32 %v3396, 0.0
        %v3413 = vmax.f32 %v3397, 0.0
        %v3414 = vmax.f32 %v3398, 0.0
        %v3415 = vmax.f32 %v3399, 0.0
        %v3416 = vmax.f32 %v3400, 0.0
        %v3417 = vmax.f32 %v3401, 0.0
        %v3418 = vmax.f32 %v3402, 0.0
        %v3419 = vmax.f32 %v3403, 0.0
        %v3420 = vmax.f32 %v3404, 0.0
        %v3421 = vmax.f32 %v3405, 0.0
        %v3422 = vmax.f32 %v3406, 0.0
        %v3423 = vmax.f32 %v3407, 0.0
        %vm3424 = vcmask 257024
        %3425 = vst.msk [vmem:[#allocation3] sm:$0xf] %vm3424, 0
        %vm3426 = vcmask 253952
        %3427 = vst.msk [vmem:[#allocation3 + $0x4] sm:$0x1] %vm3426, 0
        %3428 = vst.msk [vmem:[#allocation3 + $0x50] sm:$0xf] %vm3424, 0
        %3429 = vst.msk [vmem:[#allocation3 + $0x54] sm:$0x1] %vm3426, 0
        %s3430 = scalar_lea.vmem [#allocation3], 72
        %3431 = vst.msk [vmem:[%s3430] sm:$0xf] %vm3424, 0
        %3432 = vst.msk [vmem:[%s3430 + $0x4] sm:$0x1] %vm3426, 0
        %3433 = vst.msk [vmem:[%s3430 + $0x50] sm:$0xf] %vm3424, 0
        %3434 = vst.msk [vmem:[%s3430 + $0x54] sm:$0x1] %vm3426, 0
        %vm3435 = vcmask 253952
        %vm3436 = vmand %vm3435, %vm541
        %v3437 = vld [vmem:[#allocation3] sm:$0x1]
        %v3438 = vsel %vm3436, 0, %v3437
        %3439 = vst [vmem:[#allocation3] sm:$0x1] %v3438
        %v3440 = vld [vmem:[#allocation3 + $0x8] sm:$0x1]
        %v3441 = vsel %vm3436, 0, %v3440
        %3442 = vst [vmem:[#allocation3 + $0x8] sm:$0x1] %v3441
        %v3443 = vld [vmem:[#allocation3 + $0x10] sm:$0x1]
        %v3444 = vsel %vm3436, 0, %v3443
        %3445 = vst [vmem:[#allocation3 + $0x10] sm:$0x1] %v3444
        %v3446 = vld [vmem:[#allocation3 + $0x18] sm:$0x1]
        %v3447 = vsel %vm3436, 0, %v3446
        %3448 = vst [vmem:[#allocation3 + $0x18] sm:$0x1] %v3447
        %v3449 = vld [vmem:[#allocation3 + $0x20] sm:$0x1]
        %v3450 = vsel %vm3436, 0, %v3449
        %3451 = vst [vmem:[#allocation3 + $0x20] sm:$0x1] %v3450
        %v3452 = vld [vmem:[#allocation3 + $0x28] sm:$0x1]
        %v3453 = vsel %vm3436, 0, %v3452
        %3454 = vst [vmem:[#allocation3 + $0x28] sm:$0x1] %v3453
        %v3455 = vld [vmem:[#allocation3 + $0x30] sm:$0x1]
        %v3456 = vsel %vm3436, 0, %v3455
        %3457 = vst [vmem:[#allocation3 + $0x30] sm:$0x1] %v3456
        %v3458 = vld [vmem:[#allocation3 + $0x38] sm:$0x1]
        %v3459 = vsel %vm3436, 0, %v3458
        %3460 = vst [vmem:[#allocation3 + $0x38] sm:$0x1] %v3459
        %v3461 = vld [vmem:[#allocation3 + $0x40] sm:$0x1]
        %v3462 = vsel %vm3436, 0, %v3461
        %3463 = vst [vmem:[#allocation3 + $0x40] sm:$0x1] %v3462
        %v3464 = vld [vmem:[#allocation3 + $0x48] sm:$0x1]
        %v3465 = vsel %vm3436, 0, %v3464
        %3466 = vst [vmem:[#allocation3 + $0x48] sm:$0x1] %v3465
        %v3467 = vld [vmem:[#allocation3 + $0x50] sm:$0x1]
        %v3468 = vsel %vm3436, 0, %v3467
        %3469 = vst [vmem:[#allocation3 + $0x50] sm:$0x1] %v3468
        %v3470 = vld [vmem:[#allocation3 + $0x58] sm:$0x1]
        %v3471 = vsel %vm3436, 0, %v3470
        %3472 = vst [vmem:[#allocation3 + $0x58] sm:$0x1] %v3471
        %v3473 = vld [vmem:[#allocation3 + $0x60] sm:$0x1]
        %v3474 = vsel %vm3436, 0, %v3473
        %3475 = vst [vmem:[#allocation3 + $0x60] sm:$0x1] %v3474
        %v3476 = vld [vmem:[#allocation3 + $0x68] sm:$0x1]
        %v3477 = vsel %vm3436, 0, %v3476
        %3478 = vst [vmem:[#allocation3 + $0x68] sm:$0x1] %v3477
        %v3479 = vld [vmem:[#allocation3 + $0x70] sm:$0x1]
        %v3480 = vsel %vm3436, 0, %v3479
        %3481 = vst [vmem:[#allocation3 + $0x70] sm:$0x1] %v3480
        %v3482 = vld [vmem:[#allocation3 + $0x78] sm:$0x1]
        %v3483 = vsel %vm3436, 0, %v3482
        %3484 = vst [vmem:[#allocation3 + $0x78] sm:$0x1] %v3483
        %v3485 = vld [vmem:[#allocation3 + $0x80] sm:$0x1]
        %v3486 = vsel %vm3436, 0, %v3485
        %3487 = vst [vmem:[#allocation3 + $0x80] sm:$0x1] %v3486
        %v3488 = vld [vmem:[#allocation3 + $0x88] sm:$0x1]
        %v3489 = vsel %vm3436, 0, %v3488
        %3490 = vst [vmem:[#allocation3 + $0x88] sm:$0x1] %v3489
        %v3491 = vld [vmem:[#allocation3 + $0x90] sm:$0x1]
        %v3492 = vsel %vm3436, 0, %v3491
        %3493 = vst [vmem:[#allocation3 + $0x90] sm:$0x1] %v3492
        %v3494 = vld [vmem:[#allocation3 + $0x98] sm:$0x1]
        %v3495 = vsel %vm3436, 0, %v3494
        %3496 = vst [vmem:[#allocation3 + $0x98] sm:$0x1] %v3495
        %vm3497 = vmand %vm3435, %vm766
        %v3498 = vld [vmem:[#allocation3 + $0x4] sm:$0x1]
        %v3499 = vsel %vm3497, 0, %v3498
        %3500 = vst [vmem:[#allocation3 + $0x4] sm:$0x1] %v3499
        %v3501 = vld [vmem:[#allocation3 + $0xc] sm:$0x1]
        %v3502 = vsel %vm3497, 0, %v3501
        %3503 = vst [vmem:[#allocation3 + $0xc] sm:$0x1] %v3502
        %v3504 = vld [vmem:[#allocation3 + $0x14] sm:$0x1]
        %v3505 = vsel %vm3497, 0, %v3504
        %3506 = vst [vmem:[#allocation3 + $0x14] sm:$0x1] %v3505
        %v3507 = vld [vmem:[#allocation3 + $0x1c] sm:$0x1]
        %v3508 = vsel %vm3497, 0, %v3507
        %3509 = vst [vmem:[#allocation3 + $0x1c] sm:$0x1] %v3508
        %v3510 = vld [vmem:[#allocation3 + $0x24] sm:$0x1]
        %v3511 = vsel %vm3497, 0, %v3510
        %3512 = vst [vmem:[#allocation3 + $0x24] sm:$0x1] %v3511
        %v3513 = vld [vmem:[#allocation3 + $0x2c] sm:$0x1]
        %v3514 = vsel %vm3497, 0, %v3513
        %3515 = vst [vmem:[#allocation3 + $0x2c] sm:$0x1] %v3514
        %v3516 = vld [vmem:[#allocation3 + $0x34] sm:$0x1]
        %v3517 = vsel %vm3497, 0, %v3516
        %3518 = vst [vmem:[#allocation3 + $0x34] sm:$0x1] %v3517
        %v3519 = vld [vmem:[#allocation3 + $0x3c] sm:$0x1]
        %v3520 = vsel %vm3497, 0, %v3519
        %3521 = vst [vmem:[#allocation3 + $0x3c] sm:$0x1] %v3520
        %v3522 = vld [vmem:[#allocation3 + $0x44] sm:$0x1]
        %v3523 = vsel %vm3497, 0, %v3522
        %3524 = vst [vmem:[#allocation3 + $0x44] sm:$0x1] %v3523
        %v3525 = vld [vmem:[#allocation3 + $0x4c] sm:$0x1]
        %v3526 = vsel %vm3497, 0, %v3525
        %3527 = vst [vmem:[#allocation3 + $0x4c] sm:$0x1] %v3526
        %v3528 = vld [vmem:[#allocation3 + $0x54] sm:$0x1]
        %v3529 = vsel %vm3497, 0, %v3528
        %3530 = vst [vmem:[#allocation3 + $0x54] sm:$0x1] %v3529
        %v3531 = vld [vmem:[#allocation3 + $0x5c] sm:$0x1]
        %v3532 = vsel %vm3497, 0, %v3531
        %3533 = vst [vmem:[#allocation3 + $0x5c] sm:$0x1] %v3532
        %v3534 = vld [vmem:[#allocation3 + $0x64] sm:$0x1]
        %v3535 = vsel %vm3497, 0, %v3534
        %3536 = vst [vmem:[#allocation3 + $0x64] sm:$0x1] %v3535
        %v3537 = vld [vmem:[#allocation3 + $0x6c] sm:$0x1]
        %v3538 = vsel %vm3497, 0, %v3537
        %3539 = vst [vmem:[#allocation3 + $0x6c] sm:$0x1] %v3538
        %v3540 = vld [vmem:[#allocation3 + $0x74] sm:$0x1]
        %v3541 = vsel %vm3497, 0, %v3540
        %3542 = vst [vmem:[#allocation3 + $0x74] sm:$0x1] %v3541
        %v3543 = vld [vmem:[#allocation3 + $0x7c] sm:$0x1]
        %v3544 = vsel %vm3497, 0, %v3543
        %3545 = vst [vmem:[#allocation3 + $0x7c] sm:$0x1] %v3544
        %v3546 = vld [vmem:[#allocation3 + $0x84] sm:$0x1]
        %v3547 = vsel %vm3497, 0, %v3546
        %3548 = vst [vmem:[#allocation3 + $0x84] sm:$0x1] %v3547
        %v3549 = vld [vmem:[#allocation3 + $0x8c] sm:$0x1]
        %v3550 = vsel %vm3497, 0, %v3549
        %3551 = vst [vmem:[#allocation3 + $0x8c] sm:$0x1] %v3550
        %v3552 = vld [vmem:[#allocation3 + $0x94] sm:$0x1]
        %v3553 = vsel %vm3497, 0, %v3552
        %3554 = vst [vmem:[#allocation3 + $0x94] sm:$0x1] %v3553
        %v3555 = vld [vmem:[#allocation3 + $0x9c] sm:$0x1]
        %v3556 = vsel %vm3497, 0, %v3555
        %3557 = vst [vmem:[#allocation3 + $0x9c] sm:$0x1] %v3556
        %v3558 = vpack.c.bf16 %v3408, %v3408
        %v3559 = vpack.c.bf16 %v3409, %v3409
        %v3560 = vpack.c.bf16 %v3410, %v3410
        %v3561 = vpack.c.bf16 %v3411, %v3411
        %v3562 = vpack.c.bf16 %v3412, %v3412
        %v3563 = vpack.c.bf16 %v3413, %v3413
        %v3564 = vpack.c.bf16 %v3414, %v3414
        %v3565 = vpack.c.bf16 %v3415, %v3415
        %v3567 = vshrl.u32 %v3558, 16
        %v3569 = vrot.slane %v3567, 7
        %v3570 = vshll.u32 %v3558, 16
        %v3572 = vor.u32 %v3569, %v3570
        %v3573 = vrot.slane %v3569, 4
        %v3575 = vshrl.u32 %v3559, 16
        %v3577 = vrot.slane %v3575, 7
        %v3578 = vshll.u32 %v3559, 16
        %v3580 = vor.u32 %v3577, %v3578
        %v3581 = vrot.slane %v3577, 4
        %v3583 = vshrl.u32 %v3560, 16
        %v3585 = vrot.slane %v3583, 7
        %v3586 = vshll.u32 %v3560, 16
        %v3588 = vor.u32 %v3585, %v3586
        %v3589 = vrot.slane %v3585, 4
        %v3591 = vshrl.u32 %v3561, 16
        %v3593 = vrot.slane %v3591, 7
        %v3594 = vshll.u32 %v3561, 16
        %v3596 = vor.u32 %v3593, %v3594
        %v3597 = vrot.slane %v3593, 4
        %v3599 = vshrl.u32 %v3562, 16
        %v3601 = vrot.slane %v3599, 7
        %v3602 = vshll.u32 %v3562, 16
        %v3604 = vor.u32 %v3601, %v3602
        %v3605 = vrot.slane %v3601, 4
        %v3607 = vshrl.u32 %v3563, 16
        %v3609 = vrot.slane %v3607, 7
        %v3610 = vshll.u32 %v3563, 16
        %v3612 = vor.u32 %v3609, %v3610
        %v3613 = vrot.slane %v3609, 4
        %v3615 = vshrl.u32 %v3564, 16
        %v3617 = vrot.slane %v3615, 7
        %v3618 = vshll.u32 %v3564, 16
        %v3620 = vor.u32 %v3617, %v3618
        %v3621 = vrot.slane %v3617, 4
        %v3623 = vshrl.u32 %v3565, 16
        %v3625 = vrot.slane %v3623, 7
        %v3626 = vshll.u32 %v3565, 16
        %v3628 = vor.u32 %v3625, %v3626
        %v3629 = vrot.slane %v3625, 4
        %s3646 = scalar_lea.vmem [#allocation3], 8
        %vm3647 = vcmask 257024
        %vm3648 = vmand %vm3647, %vm766
        %v3649 = vld [vmem:[%s3646] sm:$0xf]
        %v3650 = vsel %vm3648, %v3572, %v3649
        %3651 = vst [vmem:[%s3646] sm:$0xf] %v3650
        %v3652 = vld [vmem:[%s3646 + $0x4] sm:$0x1]
        %v3653 = vsel %vm3436, %v3573, %v3652
        %3654 = vst [vmem:[%s3646 + $0x4] sm:$0x1] %v3653
        %v3655 = vld [vmem:[%s3646 + $0x8] sm:$0xf]
        %v3656 = vsel %vm3648, %v3580, %v3655
        %3657 = vst [vmem:[%s3646 + $0x8] sm:$0xf] %v3656
        %v3658 = vld [vmem:[%s3646 + $0xc] sm:$0x1]
        %v3659 = vsel %vm3436, %v3581, %v3658
        %3660 = vst [vmem:[%s3646 + $0xc] sm:$0x1] %v3659
        %v3661 = vld [vmem:[%s3646 + $0x10] sm:$0xf]
        %v3662 = vsel %vm3648, %v3588, %v3661
        %3663 = vst [vmem:[%s3646 + $0x10] sm:$0xf] %v3662
        %v3664 = vld [vmem:[%s3646 + $0x14] sm:$0x1]
        %v3665 = vsel %vm3436, %v3589, %v3664
        %3666 = vst [vmem:[%s3646 + $0x14] sm:$0x1] %v3665
        %v3667 = vld [vmem:[%s3646 + $0x18] sm:$0xf]
        %v3668 = vsel %vm3648, %v3596, %v3667
        %3669 = vst [vmem:[%s3646 + $0x18] sm:$0xf] %v3668
        %v3670 = vld [vmem:[%s3646 + $0x1c] sm:$0x1]
        %v3671 = vsel %vm3436, %v3597, %v3670
        %3672 = vst [vmem:[%s3646 + $0x1c] sm:$0x1] %v3671
        %v3673 = vld [vmem:[%s3646 + $0x20] sm:$0xf]
        %v3674 = vsel %vm3648, %v3604, %v3673
        %3675 = vst [vmem:[%s3646 + $0x20] sm:$0xf] %v3674
        %v3676 = vld [vmem:[%s3646 + $0x24] sm:$0x1]
        %v3677 = vsel %vm3436, %v3605, %v3676
        %3678 = vst [vmem:[%s3646 + $0x24] sm:$0x1] %v3677
        %v3679 = vld [vmem:[%s3646 + $0x28] sm:$0xf]
        %v3680 = vsel %vm3648, %v3612, %v3679
        %3681 = vst [vmem:[%s3646 + $0x28] sm:$0xf] %v3680
        %v3682 = vld [vmem:[%s3646 + $0x2c] sm:$0x1]
        %v3683 = vsel %vm3436, %v3613, %v3682
        %3684 = vst [vmem:[%s3646 + $0x2c] sm:$0x1] %v3683
        %v3685 = vld [vmem:[%s3646 + $0x30] sm:$0xf]
        %v3686 = vsel %vm3648, %v3620, %v3685
        %3687 = vst [vmem:[%s3646 + $0x30] sm:$0xf] %v3686
        %v3688 = vld [vmem:[%s3646 + $0x34] sm:$0x1]
        %v3689 = vsel %vm3436, %v3621, %v3688
        %3690 = vst [vmem:[%s3646 + $0x34] sm:$0x1] %v3689
        %v3691 = vld [vmem:[%s3646 + $0x38] sm:$0xf]
        %v3692 = vsel %vm3648, %v3628, %v3691
        %3693 = vst [vmem:[%s3646 + $0x38] sm:$0xf] %v3692
        %v3694 = vld [vmem:[%s3646 + $0x3c] sm:$0x1]
        %v3695 = vsel %vm3436, %v3629, %v3694
        %3696 = vst [vmem:[%s3646 + $0x3c] sm:$0x1] %v3695
        %v3697 = vpack.c.bf16 %v3416, %v3416
        %v3698 = vpack.c.bf16 %v3417, %v3417
        %v3699 = vpack.c.bf16 %v3418, %v3418
        %v3700 = vpack.c.bf16 %v3419, %v3419
        %v3701 = vpack.c.bf16 %v3420, %v3420
        %v3702 = vpack.c.bf16 %v3421, %v3421
        %v3703 = vpack.c.bf16 %v3422, %v3422
        %v3704 = vpack.c.bf16 %v3423, %v3423
        %v3706 = vshrl.u32 %v3697, 16
        %v3708 = vrot.slane %v3706, 7
        %v3709 = vshll.u32 %v3697, 16
        %v3711 = vor.u32 %v3708, %v3709
        %v3712 = vrot.slane %v3708, 4
        %v3714 = vshrl.u32 %v3698, 16
        %v3716 = vrot.slane %v3714, 7
        %v3717 = vshll.u32 %v3698, 16
        %v3719 = vor.u32 %v3716, %v3717
        %v3720 = vrot.slane %v3716, 4
        %v3722 = vshrl.u32 %v3699, 16
        %v3724 = vrot.slane %v3722, 7
        %v3725 = vshll.u32 %v3699, 16
        %v3727 = vor.u32 %v3724, %v3725
        %v3728 = vrot.slane %v3724, 4
        %v3730 = vshrl.u32 %v3700, 16
        %v3732 = vrot.slane %v3730, 7
        %v3733 = vshll.u32 %v3700, 16
        %v3735 = vor.u32 %v3732, %v3733
        %v3736 = vrot.slane %v3732, 4
        %v3738 = vshrl.u32 %v3701, 16
        %v3740 = vrot.slane %v3738, 7
        %v3741 = vshll.u32 %v3701, 16
        %v3743 = vor.u32 %v3740, %v3741
        %v3744 = vrot.slane %v3740, 4
        %v3746 = vshrl.u32 %v3702, 16
        %v3748 = vrot.slane %v3746, 7
        %v3749 = vshll.u32 %v3702, 16
        %v3751 = vor.u32 %v3748, %v3749
        %v3752 = vrot.slane %v3748, 4
        %v3754 = vshrl.u32 %v3703, 16
        %v3756 = vrot.slane %v3754, 7
        %v3757 = vshll.u32 %v3703, 16
        %v3759 = vor.u32 %v3756, %v3757
        %v3760 = vrot.slane %v3756, 4
        %v3762 = vshrl.u32 %v3704, 16
        %v3764 = vrot.slane %v3762, 7
        %v3765 = vshll.u32 %v3704, 16
        %v3767 = vor.u32 %v3764, %v3765
        %v3768 = vrot.slane %v3764, 4
        %s3785 = scalar_lea.vmem [#allocation3], 88
        %v3786 = vld [vmem:[%s3785] sm:$0xf]
        %v3787 = vsel %vm3648, %v3711, %v3786
        %3788 = vst [vmem:[%s3785] sm:$0xf] %v3787
        %v3789 = vld [vmem:[%s3785 + $0x4] sm:$0x1]
        %v3790 = vsel %vm3436, %v3712, %v3789
        %3791 = vst [vmem:[%s3785 + $0x4] sm:$0x1] %v3790
        %v3792 = vld [vmem:[%s3785 + $0x8] sm:$0xf]
        %v3793 = vsel %vm3648, %v3719, %v3792
        %3794 = vst [vmem:[%s3785 + $0x8] sm:$0xf] %v3793
        %v3795 = vld [vmem:[%s3785 + $0xc] sm:$0x1]
        %v3796 = vsel %vm3436, %v3720, %v3795
        %3797 = vst [vmem:[%s3785 + $0xc] sm:$0x1] %v3796
        %v3798 = vld [vmem:[%s3785 + $0x10] sm:$0xf]
        %v3799 = vsel %vm3648, %v3727, %v3798
        %3800 = vst [vmem:[%s3785 + $0x10] sm:$0xf] %v3799
        %v3801 = vld [vmem:[%s3785 + $0x14] sm:$0x1]
        %v3802 = vsel %vm3436, %v3728, %v3801
        %3803 = vst [vmem:[%s3785 + $0x14] sm:$0x1] %v3802
        %v3804 = vld [vmem:[%s3785 + $0x18] sm:$0xf]
        %v3805 = vsel %vm3648, %v3735, %v3804
        %3806 = vst [vmem:[%s3785 + $0x18] sm:$0xf] %v3805
        %v3807 = vld [vmem:[%s3785 + $0x1c] sm:$0x1]
        %v3808 = vsel %vm3436, %v3736, %v3807
        %3809 = vst [vmem:[%s3785 + $0x1c] sm:$0x1] %v3808
        %v3810 = vld [vmem:[%s3785 + $0x20] sm:$0xf]
        %v3811 = vsel %vm3648, %v3743, %v3810
        %3812 = vst [vmem:[%s3785 + $0x20] sm:$0xf] %v3811
        %v3813 = vld [vmem:[%s3785 + $0x24] sm:$0x1]
        %v3814 = vsel %vm3436, %v3744, %v3813
        %3815 = vst [vmem:[%s3785 + $0x24] sm:$0x1] %v3814
        %v3816 = vld [vmem:[%s3785 + $0x28] sm:$0xf]
        %v3817 = vsel %vm3648, %v3751, %v3816
        %3818 = vst [vmem:[%s3785 + $0x28] sm:$0xf] %v3817
        %v3819 = vld [vmem:[%s3785 + $0x2c] sm:$0x1]
        %v3820 = vsel %vm3436, %v3752, %v3819
        %3821 = vst [vmem:[%s3785 + $0x2c] sm:$0x1] %v3820
        %v3822 = vld [vmem:[%s3785 + $0x30] sm:$0xf]
        %v3823 = vsel %vm3648, %v3759, %v3822
        %3824 = vst [vmem:[%s3785 + $0x30] sm:$0xf] %v3823
        %v3825 = vld [vmem:[%s3785 + $0x34] sm:$0x1]
        %v3826 = vsel %vm3436, %v3760, %v3825
        %3827 = vst [vmem:[%s3785 + $0x34] sm:$0x1] %v3826
        %v3828 = vld [vmem:[%s3785 + $0x38] sm:$0xf]
        %v3829 = vsel %vm3648, %v3767, %v3828
        %3830 = vst [vmem:[%s3785 + $0x38] sm:$0xf] %v3829
        %v3831 = vld [vmem:[%s3785 + $0x3c] sm:$0x1]
        %v3832 = vsel %vm3436, %v3768, %v3831
        %3833 = vst [vmem:[%s3785 + $0x3c] sm:$0x1] %v3832
        %v3834 = vld [vmem:[#allocation3] sm:$0xf]
        %v3835 = vld [vmem:[#allocation3 + $0x8] sm:$0xf]
        %v3836 = vld [vmem:[#allocation3 + $0x10] sm:$0xf]
        %v3837 = vld [vmem:[#allocation3 + $0x18] sm:$0xf]
        %v3838 = vld [vmem:[#allocation3 + $0x20] sm:$0xf]
        %v3839 = vld [vmem:[#allocation3 + $0x28] sm:$0xf]
        %v3840 = vld [vmem:[#allocation3 + $0x30] sm:$0xf]
        %v3841 = vld [vmem:[#allocation3 + $0x38] sm:$0xf]
        %3842 = vst.msk [vmem:[#allocation5] sm:$0xf] %vm3424, %v3834
        %3843 = vst.msk [vmem:[#allocation5 + $0xc] sm:$0xf] %vm3424, %v3835
        %3844 = vst.msk [vmem:[#allocation5 + $0x18] sm:$0xf] %vm3424, %v3836
        %3845 = vst.msk [vmem:[#allocation5 + $0x24] sm:$0xf] %vm3424, %v3837
        %3846 = vst.msk [vmem:[#allocation5 + $0x30] sm:$0xf] %vm3424, %v3838
        %3847 = vst.msk [vmem:[#allocation5 + $0x3c] sm:$0xf] %vm3424, %v3839
        %3848 = vst.msk [vmem:[#allocation5 + $0x48] sm:$0xf] %vm3424, %v3840
        %3849 = vst.msk [vmem:[#allocation5 + $0x54] sm:$0xf] %vm3424, %v3841
        %v3850 = vld [vmem:[#allocation3] sm:$0xf]
        %v3851 = vld [vmem:[#allocation3 + $0x4] sm:$0x1]
        %v3852 = vld [vmem:[#allocation3 + $0x8] sm:$0xf]
        %v3853 = vld [vmem:[#allocation3 + $0xc] sm:$0x1]
        %v3854 = vld [vmem:[#allocation3 + $0x10] sm:$0xf]
        %v3855 = vld [vmem:[#allocation3 + $0x14] sm:$0x1]
        %v3856 = vld [vmem:[#allocation3 + $0x18] sm:$0xf]
        %v3857 = vld [vmem:[#allocation3 + $0x1c] sm:$0x1]
        %v3858 = vld [vmem:[#allocation3 + $0x20] sm:$0xf]
        %v3859 = vld [vmem:[#allocation3 + $0x24] sm:$0x1]
        %v3860 = vld [vmem:[#allocation3 + $0x28] sm:$0xf]
        %v3861 = vld [vmem:[#allocation3 + $0x2c] sm:$0x1]
        %v3862 = vld [vmem:[#allocation3 + $0x30] sm:$0xf]
        %v3863 = vld [vmem:[#allocation3 + $0x34] sm:$0x1]
        %v3864 = vld [vmem:[#allocation3 + $0x38] sm:$0xf]
        %v3865 = vld [vmem:[#allocation3 + $0x3c] sm:$0x1]
        %v3867 = vshrl.u32 %v3850, 16
        %v3869 = vrot.slane %v3867, 4
        %v3870 = vshll.u32 %v3850, 16
        %v3872 = vrot.slane %v3870, 5
        %v3873 = vor.u32 %v3869, %v3872
        %v3874 = vrot.slane %v3873, 4
        %v3876 = vshll.u32 %v3851, 16
        %v3878 = vrot.slane %v3876, 5
        %v3879 = vsel %vm931, %v3874, %v3878
        %v3881 = vshrl.u32 %v3852, 16
        %v3883 = vrot.slane %v3881, 4
        %v3884 = vshll.u32 %v3852, 16
        %v3886 = vrot.slane %v3884, 5
        %v3887 = vor.u32 %v3883, %v3886
        %v3888 = vrot.slane %v3887, 4
        %v3890 = vshll.u32 %v3853, 16
        %v3892 = vrot.slane %v3890, 5
        %v3893 = vsel %vm931, %v3888, %v3892
        %v3895 = vshrl.u32 %v3854, 16
        %v3897 = vrot.slane %v3895, 4
        %v3898 = vshll.u32 %v3854, 16
        %v3900 = vrot.slane %v3898, 5
        %v3901 = vor.u32 %v3897, %v3900
        %v3902 = vrot.slane %v3901, 4
        %v3904 = vshll.u32 %v3855, 16
        %v3906 = vrot.slane %v3904, 5
        %v3907 = vsel %vm931, %v3902, %v3906
        %v3909 = vshrl.u32 %v3856, 16
        %v3911 = vrot.slane %v3909, 4
        %v3912 = vshll.u32 %v3856, 16
        %v3914 = vrot.slane %v3912, 5
        %v3915 = vor.u32 %v3911, %v3914
        %v3916 = vrot.slane %v3915, 4
        %v3918 = vshll.u32 %v3857, 16
        %v3920 = vrot.slane %v3918, 5
        %v3921 = vsel %vm931, %v3916, %v3920
        %v3923 = vshrl.u32 %v3858, 16
        %v3925 = vrot.slane %v3923, 4
        %v3926 = vshll.u32 %v3858, 16
        %v3928 = vrot.slane %v3926, 5
        %v3929 = vor.u32 %v3925, %v3928
        %v3930 = vrot.slane %v3929, 4
        %v3932 = vshll.u32 %v3859, 16
        %v3934 = vrot.slane %v3932, 5
        %v3935 = vsel %vm931, %v3930, %v3934
        %v3937 = vshrl.u32 %v3860, 16
        %v3939 = vrot.slane %v3937, 4
        %v3940 = vshll.u32 %v3860, 16
        %v3942 = vrot.slane %v3940, 5
        %v3943 = vor.u32 %v3939, %v3942
        %v3944 = vrot.slane %v3943, 4
        %v3946 = vshll.u32 %v3861, 16
        %v3948 = vrot.slane %v3946, 5
        %v3949 = vsel %vm931, %v3944, %v3948
        %v3951 = vshrl.u32 %v3862, 16
        %v3953 = vrot.slane %v3951, 4
        %v3954 = vshll.u32 %v3862, 16
        %v3956 = vrot.slane %v3954, 5
        %v3957 = vor.u32 %v3953, %v3956
        %v3958 = vrot.slane %v3957, 4
        %v3960 = vshll.u32 %v3863, 16
        %v3962 = vrot.slane %v3960, 5
        %v3963 = vsel %vm931, %v3958, %v3962
        %v3965 = vshrl.u32 %v3864, 16
        %v3967 = vrot.slane %v3965, 4
        %v3968 = vshll.u32 %v3864, 16
        %v3970 = vrot.slane %v3968, 5
        %v3971 = vor.u32 %v3967, %v3970
        %v3972 = vrot.slane %v3971, 4
        %v3974 = vshll.u32 %v3865, 16
        %v3976 = vrot.slane %v3974, 5
        %v3977 = vsel %vm931, %v3972, %v3976
        %3978 = vrot.lane.b32.xlu0 %v3879, 32
        %v3979 = vpop.permute.xlu0 %3978
        %3980 = vrot.lane.b32.xlu0 %v3893, 32
        %v3981 = vpop.permute.xlu0 %3980
        %3982 = vrot.lane.b32.xlu0 %v3907, 32
        %v3983 = vpop.permute.xlu0 %3982
        %3984 = vrot.lane.b32.xlu0 %v3921, 32
        %v3985 = vpop.permute.xlu0 %3984
        %3986 = vrot.lane.b32.xlu0 %v3935, 32
        %v3987 = vpop.permute.xlu0 %3986
        %3988 = vrot.lane.b32.xlu0 %v3949, 32
        %v3989 = vpop.permute.xlu0 %3988
        %3990 = vrot.lane.b32.xlu0 %v3963, 32
        %v3991 = vpop.permute.xlu0 %3990
        %3992 = vrot.lane.b32.xlu0 %v3977, 32
        %v3993 = vpop.permute.xlu0 %3992
        %vm4002 = vcmask 519424
        %4003 = vst.msk [vmem:[#allocation5] sm:$0xf] %vm4002, %v3979
        %4004 = vst.msk [vmem:[#allocation5 + $0xc] sm:$0xf] %vm4002, %v3981
        %4005 = vst.msk [vmem:[#allocation5 + $0x18] sm:$0xf] %vm4002, %v3983
        %4006 = vst.msk [vmem:[#allocation5 + $0x24] sm:$0xf] %vm4002, %v3985
        %4007 = vst.msk [vmem:[#allocation5 + $0x30] sm:$0xf] %vm4002, %v3987
        %4008 = vst.msk [vmem:[#allocation5 + $0x3c] sm:$0xf] %vm4002, %v3989
        %4009 = vst.msk [vmem:[#allocation5 + $0x48] sm:$0xf] %vm4002, %v3991
        %4010 = vst.msk [vmem:[#allocation5 + $0x54] sm:$0xf] %vm4002, %v3993
        %v4011 = vld [vmem:[#allocation3] sm:$0xe]
        %v4012 = vld [vmem:[#allocation3 + $0x4] sm:$0x1]
        %v4013 = vld [vmem:[#allocation3 + $0x8] sm:$0xe]
        %v4014 = vld [vmem:[#allocation3 + $0xc] sm:$0x1]
        %v4015 = vld [vmem:[#allocation3 + $0x10] sm:$0xe]
        %v4016 = vld [vmem:[#allocation3 + $0x14] sm:$0x1]
        %v4017 = vld [vmem:[#allocation3 + $0x18] sm:$0xe]
        %v4018 = vld [vmem:[#allocation3 + $0x1c] sm:$0x1]
        %v4019 = vld [vmem:[#allocation3 + $0x20] sm:$0xe]
        %v4020 = vld [vmem:[#allocation3 + $0x24] sm:$0x1]
        %v4021 = vld [vmem:[#allocation3 + $0x28] sm:$0xe]
        %v4022 = vld [vmem:[#allocation3 + $0x2c] sm:$0x1]
        %v4023 = vld [vmem:[#allocation3 + $0x30] sm:$0xe]
        %v4024 = vld [vmem:[#allocation3 + $0x34] sm:$0x1]
        %v4025 = vld [vmem:[#allocation3 + $0x38] sm:$0xe]
        %v4026 = vld [vmem:[#allocation3 + $0x3c] sm:$0x1]
        %vm4043 = vcmask 1042432
        %vm4044 = vcmask 1046532
        %vm4045 = vmor %vm4043, %vm4044
        %v4046 = vrot.slane %v4011, 5
        %v4047 = vrot.slane %v4046, 4
        %v4048 = vrot.slane %v4012, 5
        %v4049 = vsel %vm4045, %v4047, %v4048
        %v4050 = vrot.slane %v4013, 5
        %v4051 = vrot.slane %v4050, 4
        %v4052 = vrot.slane %v4014, 5
        %v4053 = vsel %vm4045, %v4051, %v4052
        %v4054 = vrot.slane %v4015, 5
        %v4055 = vrot.slane %v4054, 4
        %v4056 = vrot.slane %v4016, 5
        %v4057 = vsel %vm4045, %v4055, %v4056
        %v4058 = vrot.slane %v4017, 5
        %v4059 = vrot.slane %v4058, 4
        %v4060 = vrot.slane %v4018, 5
        %v4061 = vsel %vm4045, %v4059, %v4060
        %v4062 = vrot.slane %v4019, 5
        %v4063 = vrot.slane %v4062, 4
        %v4064 = vrot.slane %v4020, 5
        %v4065 = vsel %vm4045, %v4063, %v4064
        %v4066 = vrot.slane %v4021, 5
        %v4067 = vrot.slane %v4066, 4
        %v4068 = vrot.slane %v4022, 5
        %v4069 = vsel %vm4045, %v4067, %v4068
        %v4070 = vrot.slane %v4023, 5
        %v4071 = vrot.slane %v4070, 4
        %v4072 = vrot.slane %v4024, 5
        %v4073 = vsel %vm4045, %v4071, %v4072
        %v4074 = vrot.slane %v4025, 5
        %v4075 = vrot.slane %v4074, 4
        %v4076 = vrot.slane %v4026, 5
        %v4077 = vsel %vm4045, %v4075, %v4076
        %4078 = vrot.lane.b32.xlu0 %v4049, 64
        %v4079 = vpop.permute.xlu0 %4078
        %4080 = vrot.lane.b32.xlu0 %v4053, 64
        %v4081 = vpop.permute.xlu0 %4080
        %4082 = vrot.lane.b32.xlu0 %v4057, 64
        %v4083 = vpop.permute.xlu0 %4082
        %4084 = vrot.lane.b32.xlu0 %v4061, 64
        %v4085 = vpop.permute.xlu0 %4084
        %4086 = vrot.lane.b32.xlu0 %v4065, 64
        %v4087 = vpop.permute.xlu0 %4086
        %4088 = vrot.lane.b32.xlu0 %v4069, 64
        %v4089 = vpop.permute.xlu0 %4088
        %4090 = vrot.lane.b32.xlu0 %v4073, 64
        %v4091 = vpop.permute.xlu0 %4090
        %4092 = vrot.lane.b32.xlu0 %v4077, 64
        %v4093 = vpop.permute.xlu0 %4092
        %vm4102 = vcmask 781824
        %4103 = vst.msk [vmem:[#allocation5] sm:$0xf] %vm4102, %v4079
        %4104 = vst.msk [vmem:[#allocation5 + $0xc] sm:$0xf] %vm4102, %v4081
        %4105 = vst.msk [vmem:[#allocation5 + $0x18] sm:$0xf] %vm4102, %v4083
        %4106 = vst.msk [vmem:[#allocation5 + $0x24] sm:$0xf] %vm4102, %v4085
        %4107 = vst.msk [vmem:[#allocation5 + $0x30] sm:$0xf] %vm4102, %v4087
        %4108 = vst.msk [vmem:[#allocation5 + $0x3c] sm:$0xf] %vm4102, %v4089
        %4109 = vst.msk [vmem:[#allocation5 + $0x48] sm:$0xf] %vm4102, %v4091
        %4110 = vst.msk [vmem:[#allocation5 + $0x54] sm:$0xf] %vm4102, %v4093
        %v4111 = vld [vmem:[%s3646] sm:$0xf]
        %v4112 = vld [vmem:[%s3646 + $0x8] sm:$0xf]
        %v4113 = vld [vmem:[%s3646 + $0x10] sm:$0xf]
        %v4114 = vld [vmem:[%s3646 + $0x18] sm:$0xf]
        %v4115 = vld [vmem:[%s3646 + $0x20] sm:$0xf]
        %v4116 = vld [vmem:[%s3646 + $0x28] sm:$0xf]
        %v4117 = vld [vmem:[%s3646 + $0x30] sm:$0xf]
        %v4118 = vld [vmem:[%s3646 + $0x38] sm:$0xf]
        %4127 = vrot.lane.b32.xlu0 %v4111, 96
        %v4128 = vpop.permute.xlu0 %4127
        %4129 = vrot.lane.b32.xlu0 %v4112, 96
        %v4130 = vpop.permute.xlu0 %4129
        %4131 = vrot.lane.b32.xlu0 %v4113, 96
        %v4132 = vpop.permute.xlu0 %4131
        %4133 = vrot.lane.b32.xlu0 %v4114, 96
        %v4134 = vpop.permute.xlu0 %4133
        %4135 = vrot.lane.b32.xlu0 %v4115, 96
        %v4136 = vpop.permute.xlu0 %4135
        %4137 = vrot.lane.b32.xlu0 %v4116, 96
        %v4138 = vpop.permute.xlu0 %4137
        %4139 = vrot.lane.b32.xlu0 %v4117, 96
        %v4140 = vpop.permute.xlu0 %4139
        %4141 = vrot.lane.b32.xlu0 %v4118, 96
        %v4142 = vpop.permute.xlu0 %4141
        %vm4151 = vcmask 1044224
        %4152 = vst.msk [vmem:[#allocation5] sm:$0xf] %vm4151, %v4128
        %4153 = vst.msk [vmem:[#allocation5 + $0xc] sm:$0xf] %vm4151, %v4130
        %4154 = vst.msk [vmem:[#allocation5 + $0x18] sm:$0xf] %vm4151, %v4132
        %4155 = vst.msk [vmem:[#allocation5 + $0x24] sm:$0xf] %vm4151, %v4134
        %4156 = vst.msk [vmem:[#allocation5 + $0x30] sm:$0xf] %vm4151, %v4136
        %4157 = vst.msk [vmem:[#allocation5 + $0x3c] sm:$0xf] %vm4151, %v4138
        %4158 = vst.msk [vmem:[#allocation5 + $0x48] sm:$0xf] %vm4151, %v4140
        %4159 = vst.msk [vmem:[#allocation5 + $0x54] sm:$0xf] %vm4151, %v4142
        %v4160 = vld [vmem:[%s3646] sm:$0xf]
        %v4161 = vld [vmem:[%s3646 + $0x4] sm:$0x1]
        %v4162 = vld [vmem:[%s3646 + $0x8] sm:$0xf]
        %v4163 = vld [vmem:[%s3646 + $0xc] sm:$0x1]
        %v4164 = vld [vmem:[%s3646 + $0x10] sm:$0xf]
        %v4165 = vld [vmem:[%s3646 + $0x14] sm:$0x1]
        %v4166 = vld [vmem:[%s3646 + $0x18] sm:$0xf]
        %v4167 = vld [vmem:[%s3646 + $0x1c] sm:$0x1]
        %v4168 = vld [vmem:[%s3646 + $0x20] sm:$0xf]
        %v4169 = vld [vmem:[%s3646 + $0x24] sm:$0x1]
        %v4170 = vld [vmem:[%s3646 + $0x28] sm:$0xf]
        %v4171 = vld [vmem:[%s3646 + $0x2c] sm:$0x1]
        %v4172 = vld [vmem:[%s3646 + $0x30] sm:$0xf]
        %v4173 = vld [vmem:[%s3646 + $0x34] sm:$0x1]
        %v4174 = vld [vmem:[%s3646 + $0x38] sm:$0xf]
        %v4175 = vld [vmem:[%s3646 + $0x3c] sm:$0x1]
        %v4177 = vshrl.u32 %v4160, 16
        %v4179 = vrot.slane %v4177, 4
        %v4180 = vshll.u32 %v4160, 16
        %v4182 = vrot.slane %v4180, 5
        %v4183 = vor.u32 %v4179, %v4182
        %v4184 = vrot.slane %v4183, 4
        %v4186 = vshll.u32 %v4161, 16
        %v4188 = vrot.slane %v4186, 5
        %v4189 = vsel %vm931, %v4184, %v4188
        %v4191 = vshrl.u32 %v4162, 16
        %v4193 = vrot.slane %v4191, 4
        %v4194 = vshll.u32 %v4162, 16
        %v4196 = vrot.slane %v4194, 5
        %v4197 = vor.u32 %v4193, %v4196
        %v4198 = vrot.slane %v4197, 4
        %v4200 = vshll.u32 %v4163, 16
        %v4202 = vrot.slane %v4200, 5
        %v4203 = vsel %vm931, %v4198, %v4202
        %v4205 = vshrl.u32 %v4164, 16
        %v4207 = vrot.slane %v4205, 4
        %v4208 = vshll.u32 %v4164, 16
        %v4210 = vrot.slane %v4208, 5
        %v4211 = vor.u32 %v4207, %v4210
        %v4212 = vrot.slane %v4211, 4
        %v4214 = vshll.u32 %v4165, 16
        %v4216 = vrot.slane %v4214, 5
        %v4217 = vsel %vm931, %v4212, %v4216
        %v4219 = vshrl.u32 %v4166, 16
        %v4221 = vrot.slane %v4219, 4
        %v4222 = vshll.u32 %v4166, 16
        %v4224 = vrot.slane %v4222, 5
        %v4225 = vor.u32 %v4221, %v4224
        %v4226 = vrot.slane %v4225, 4
        %v4228 = vshll.u32 %v4167, 16
        %v4230 = vrot.slane %v4228, 5
        %v4231 = vsel %vm931, %v4226, %v4230
        %v4233 = vshrl.u32 %v4168, 16
        %v4235 = vrot.slane %v4233, 4
        %v4236 = vshll.u32 %v4168, 16
        %v4238 = vrot.slane %v4236, 5
        %v4239 = vor.u32 %v4235, %v4238
        %v4240 = vrot.slane %v4239, 4
        %v4242 = vshll.u32 %v4169, 16
        %v4244 = vrot.slane %v4242, 5
        %v4245 = vsel %vm931, %v4240, %v4244
        %v4247 = vshrl.u32 %v4170, 16
        %v4249 = vrot.slane %v4247, 4
        %v4250 = vshll.u32 %v4170, 16
        %v4252 = vrot.slane %v4250, 5
        %v4253 = vor.u32 %v4249, %v4252
        %v4254 = vrot.slane %v4253, 4
        %v4256 = vshll.u32 %v4171, 16
        %v4258 = vrot.slane %v4256, 5
        %v4259 = vsel %vm931, %v4254, %v4258
        %v4261 = vshrl.u32 %v4172, 16
        %v4263 = vrot.slane %v4261, 4
        %v4264 = vshll.u32 %v4172, 16
        %v4266 = vrot.slane %v4264, 5
        %v4267 = vor.u32 %v4263, %v4266
        %v4268 = vrot.slane %v4267, 4
        %v4270 = vshll.u32 %v4173, 16
        %v4272 = vrot.slane %v4270, 5
        %v4273 = vsel %vm931, %v4268, %v4272
        %v4275 = vshrl.u32 %v4174, 16
        %v4277 = vrot.slane %v4275, 4
        %v4278 = vshll.u32 %v4174, 16
        %v4280 = vrot.slane %v4278, 5
        %v4281 = vor.u32 %v4277, %v4280
        %v4282 = vrot.slane %v4281, 4
        %v4284 = vshll.u32 %v4175, 16
        %v4286 = vrot.slane %v4284, 5
        %v4287 = vsel %vm931, %v4282, %v4286
        %4296 = vst.msk [vmem:[#allocation5 + $0x4] sm:$0xf] %vm3424, %v4189
        %4297 = vst.msk [vmem:[#allocation5 + $0x10] sm:$0xf] %vm3424, %v4203
        %4298 = vst.msk [vmem:[#allocation5 + $0x1c] sm:$0xf] %vm3424, %v4217
        %4299 = vst.msk [vmem:[#allocation5 + $0x28] sm:$0xf] %vm3424, %v4231
        %4300 = vst.msk [vmem:[#allocation5 + $0x34] sm:$0xf] %vm3424, %v4245
        %4301 = vst.msk [vmem:[#allocation5 + $0x40] sm:$0xf] %vm3424, %v4259
        %4302 = vst.msk [vmem:[#allocation5 + $0x4c] sm:$0xf] %vm3424, %v4273
        %4303 = vst.msk [vmem:[#allocation5 + $0x58] sm:$0xf] %vm3424, %v4287
        %v4304 = vld [vmem:[%s3646] sm:$0xe]
        %v4305 = vld [vmem:[%s3646 + $0x4] sm:$0x1]
        %v4306 = vld [vmem:[%s3646 + $0x8] sm:$0xe]
        %v4307 = vld [vmem:[%s3646 + $0xc] sm:$0x1]
        %v4308 = vld [vmem:[%s3646 + $0x10] sm:$0xe]
        %v4309 = vld [vmem:[%s3646 + $0x14] sm:$0x1]
        %v4310 = vld [vmem:[%s3646 + $0x18] sm:$0xe]
        %v4311 = vld [vmem:[%s3646 + $0x1c] sm:$0x1]
        %v4312 = vld [vmem:[%s3646 + $0x20] sm:$0xe]
        %v4313 = vld [vmem:[%s3646 + $0x24] sm:$0x1]
        %v4314 = vld [vmem:[%s3646 + $0x28] sm:$0xe]
        %v4315 = vld [vmem:[%s3646 + $0x2c] sm:$0x1]
        %v4316 = vld [vmem:[%s3646 + $0x30] sm:$0xe]
        %v4317 = vld [vmem:[%s3646 + $0x34] sm:$0x1]
        %v4318 = vld [vmem:[%s3646 + $0x38] sm:$0xe]
        %v4319 = vld [vmem:[%s3646 + $0x3c] sm:$0x1]
        %v4336 = vrot.slane %v4304, 5
        %v4337 = vrot.slane %v4336, 4
        %v4338 = vrot.slane %v4305, 5
        %v4339 = vsel %vm4045, %v4337, %v4338
        %v4340 = vrot.slane %v4306, 5
        %v4341 = vrot.slane %v4340, 4
        %v4342 = vrot.slane %v4307, 5
        %v4343 = vsel %vm4045, %v4341, %v4342
        %v4344 = vrot.slane %v4308, 5
        %v4345 = vrot.slane %v4344, 4
        %v4346 = vrot.slane %v4309, 5
        %v4347 = vsel %vm4045, %v4345, %v4346
        %v4348 = vrot.slane %v4310, 5
        %v4349 = vrot.slane %v4348, 4
        %v4350 = vrot.slane %v4311, 5
        %v4351 = vsel %vm4045, %v4349, %v4350
        %v4352 = vrot.slane %v4312, 5
        %v4353 = vrot.slane %v4352, 4
        %v4354 = vrot.slane %v4313, 5
        %v4355 = vsel %vm4045, %v4353, %v4354
        %v4356 = vrot.slane %v4314, 5
        %v4357 = vrot.slane %v4356, 4
        %v4358 = vrot.slane %v4315, 5
        %v4359 = vsel %vm4045, %v4357, %v4358
        %v4360 = vrot.slane %v4316, 5
        %v4361 = vrot.slane %v4360, 4
        %v4362 = vrot.slane %v4317, 5
        %v4363 = vsel %vm4045, %v4361, %v4362
        %v4364 = vrot.slane %v4318, 5
        %v4365 = vrot.slane %v4364, 4
        %v4366 = vrot.slane %v4319, 5
        %v4367 = vsel %vm4045, %v4365, %v4366
        %4368 = vrot.lane.b32.xlu0 %v4339, 32
        %v4369 = vpop.permute.xlu0 %4368
        %4370 = vrot.lane.b32.xlu0 %v4343, 32
        %v4371 = vpop.permute.xlu0 %4370
        %4372 = vrot.lane.b32.xlu0 %v4347, 32
        %v4373 = vpop.permute.xlu0 %4372
        %4374 = vrot.lane.b32.xlu0 %v4351, 32
        %v4375 = vpop.permute.xlu0 %4374
        %4376 = vrot.lane.b32.xlu0 %v4355, 32
        %v4377 = vpop.permute.xlu0 %4376
        %4378 = vrot.lane.b32.xlu0 %v4359, 32
        %v4379 = vpop.permute.xlu0 %4378
        %4380 = vrot.lane.b32.xlu0 %v4363, 32
        %v4381 = vpop.permute.xlu0 %4380
        %4382 = vrot.lane.b32.xlu0 %v4367, 32
        %v4383 = vpop.permute.xlu0 %4382
        %4392 = vst.msk [vmem:[#allocation5 + $0x4] sm:$0xf] %vm4002, %v4369
        %4393 = vst.msk [vmem:[#allocation5 + $0x10] sm:$0xf] %vm4002, %v4371
        %4394 = vst.msk [vmem:[#allocation5 + $0x1c] sm:$0xf] %vm4002, %v4373
        %4395 = vst.msk [vmem:[#allocation5 + $0x28] sm:$0xf] %vm4002, %v4375
        %4396 = vst.msk [vmem:[#allocation5 + $0x34] sm:$0xf] %vm4002, %v4377
        %4397 = vst.msk [vmem:[#allocation5 + $0x40] sm:$0xf] %vm4002, %v4379
        %4398 = vst.msk [vmem:[#allocation5 + $0x4c] sm:$0xf] %vm4002, %v4381
        %4399 = vst.msk [vmem:[#allocation5 + $0x58] sm:$0xf] %vm4002, %v4383
        %s4400 = scalar_lea.vmem [#allocation3], 16
        %v4401 = vld [vmem:[%s4400] sm:$0xf]
        %v4402 = vld [vmem:[%s4400 + $0x8] sm:$0xf]
        %v4403 = vld [vmem:[%s4400 + $0x10] sm:$0xf]
        %v4404 = vld [vmem:[%s4400 + $0x18] sm:$0xf]
        %v4405 = vld [vmem:[%s4400 + $0x20] sm:$0xf]
        %v4406 = vld [vmem:[%s4400 + $0x28] sm:$0xf]
        %v4407 = vld [vmem:[%s4400 + $0x30] sm:$0xf]
        %v4408 = vld [vmem:[%s4400 + $0x38] sm:$0xf]
        %4417 = vrot.lane.b32.xlu0 %v4401, 64
        %v4418 = vpop.permute.xlu0 %4417
        %4419 = vrot.lane.b32.xlu0 %v4402, 64
        %v4420 = vpop.permute.xlu0 %4419
        %4421 = vrot.lane.b32.xlu0 %v4403, 64
        %v4422 = vpop.permute.xlu0 %4421
        %4423 = vrot.lane.b32.xlu0 %v4404, 64
        %v4424 = vpop.permute.xlu0 %4423
        %4425 = vrot.lane.b32.xlu0 %v4405, 64
        %v4426 = vpop.permute.xlu0 %4425
        %4427 = vrot.lane.b32.xlu0 %v4406, 64
        %v4428 = vpop.permute.xlu0 %4427
        %4429 = vrot.lane.b32.xlu0 %v4407, 64
        %v4430 = vpop.permute.xlu0 %4429
        %4431 = vrot.lane.b32.xlu0 %v4408, 64
        %v4432 = vpop.permute.xlu0 %4431
        %4441 = vst.msk [vmem:[#allocation5 + $0x4] sm:$0xf] %vm4102, %v4418
        %4442 = vst.msk [vmem:[#allocation5 + $0x10] sm:$0xf] %vm4102, %v4420
        %4443 = vst.msk [vmem:[#allocation5 + $0x1c] sm:$0xf] %vm4102, %v4422
        %4444 = vst.msk [vmem:[#allocation5 + $0x28] sm:$0xf] %vm4102, %v4424
        %4445 = vst.msk [vmem:[#allocation5 + $0x34] sm:$0xf] %vm4102, %v4426
        %4446 = vst.msk [vmem:[#allocation5 + $0x40] sm:$0xf] %vm4102, %v4428
        %4447 = vst.msk [vmem:[#allocation5 + $0x4c] sm:$0xf] %vm4102, %v4430
        %4448 = vst.msk [vmem:[#allocation5 + $0x58] sm:$0xf] %vm4102, %v4432
        %v4449 = vld [vmem:[%s4400] sm:$0xf]
        %v4450 = vld [vmem:[%s4400 + $0x4] sm:$0x1]
        %v4451 = vld [vmem:[%s4400 + $0x8] sm:$0xf]
        %v4452 = vld [vmem:[%s4400 + $0xc] sm:$0x1]
        %v4453 = vld [vmem:[%s4400 + $0x10] sm:$0xf]
        %v4454 = vld [vmem:[%s4400 + $0x14] sm:$0x1]
        %v4455 = vld [vmem:[%s4400 + $0x18] sm:$0xf]
        %v4456 = vld [vmem:[%s4400 + $0x1c] sm:$0x1]
        %v4457 = vld [vmem:[%s4400 + $0x20] sm:$0xf]
        %v4458 = vld [vmem:[%s4400 + $0x24] sm:$0x1]
        %v4459 = vld [vmem:[%s4400 + $0x28] sm:$0xf]
        %v4460 = vld [vmem:[%s4400 + $0x2c] sm:$0x1]
        %v4461 = vld [vmem:[%s4400 + $0x30] sm:$0xf]
        %v4462 = vld [vmem:[%s4400 + $0x34] sm:$0x1]
        %v4463 = vld [vmem:[%s4400 + $0x38] sm:$0xf]
        %v4464 = vld [vmem:[%s4400 + $0x3c] sm:$0x1]
        %v4466 = vshrl.u32 %v4449, 16
        %v4468 = vrot.slane %v4466, 4
        %v4469 = vshll.u32 %v4449, 16
        %v4471 = vrot.slane %v4469, 5
        %v4472 = vor.u32 %v4468, %v4471
        %v4473 = vrot.slane %v4472, 4
        %v4475 = vshll.u32 %v4450, 16
        %v4477 = vrot.slane %v4475, 5
        %v4478 = vsel %vm931, %v4473, %v4477
        %v4480 = vshrl.u32 %v4451, 16
        %v4482 = vrot.slane %v4480, 4
        %v4483 = vshll.u32 %v4451, 16
        %v4485 = vrot.slane %v4483, 5
        %v4486 = vor.u32 %v4482, %v4485
        %v4487 = vrot.slane %v4486, 4
        %v4489 = vshll.u32 %v4452, 16
        %v4491 = vrot.slane %v4489, 5
        %v4492 = vsel %vm931, %v4487, %v4491
        %v4494 = vshrl.u32 %v4453, 16
        %v4496 = vrot.slane %v4494, 4
        %v4497 = vshll.u32 %v4453, 16
        %v4499 = vrot.slane %v4497, 5
        %v4500 = vor.u32 %v4496, %v4499
        %v4501 = vrot.slane %v4500, 4
        %v4503 = vshll.u32 %v4454, 16
        %v4505 = vrot.slane %v4503, 5
        %v4506 = vsel %vm931, %v4501, %v4505
        %v4508 = vshrl.u32 %v4455, 16
        %v4510 = vrot.slane %v4508, 4
        %v4511 = vshll.u32 %v4455, 16
        %v4513 = vrot.slane %v4511, 5
        %v4514 = vor.u32 %v4510, %v4513
        %v4515 = vrot.slane %v4514, 4
        %v4517 = vshll.u32 %v4456, 16
        %v4519 = vrot.slane %v4517, 5
        %v4520 = vsel %vm931, %v4515, %v4519
        %v4522 = vshrl.u32 %v4457, 16
        %v4524 = vrot.slane %v4522, 4
        %v4525 = vshll.u32 %v4457, 16
        %v4527 = vrot.slane %v4525, 5
        %v4528 = vor.u32 %v4524, %v4527
        %v4529 = vrot.slane %v4528, 4
        %v4531 = vshll.u32 %v4458, 16
        %v4533 = vrot.slane %v4531, 5
        %v4534 = vsel %vm931, %v4529, %v4533
        %v4536 = vshrl.u32 %v4459, 16
        %v4538 = vrot.slane %v4536, 4
        %v4539 = vshll.u32 %v4459, 16
        %v4541 = vrot.slane %v4539, 5
        %v4542 = vor.u32 %v4538, %v4541
        %v4543 = vrot.slane %v4542, 4
        %v4545 = vshll.u32 %v4460, 16
        %v4547 = vrot.slane %v4545, 5
        %v4548 = vsel %vm931, %v4543, %v4547
        %v4550 = vshrl.u32 %v4461, 16
        %v4552 = vrot.slane %v4550, 4
        %v4553 = vshll.u32 %v4461, 16
        %v4555 = vrot.slane %v4553, 5
        %v4556 = vor.u32 %v4552, %v4555
        %v4557 = vrot.slane %v4556, 4
        %v4559 = vshll.u32 %v4462, 16
        %v4561 = vrot.slane %v4559, 5
        %v4562 = vsel %vm931, %v4557, %v4561
        %v4564 = vshrl.u32 %v4463, 16
        %v4566 = vrot.slane %v4564, 4
        %v4567 = vshll.u32 %v4463, 16
        %v4569 = vrot.slane %v4567, 5
        %v4570 = vor.u32 %v4566, %v4569
        %v4571 = vrot.slane %v4570, 4
        %v4573 = vshll.u32 %v4464, 16
        %v4575 = vrot.slane %v4573, 5
        %v4576 = vsel %vm931, %v4571, %v4575
        %4577 = vrot.lane.b32.xlu0 %v4478, 96
        %v4578 = vpop.permute.xlu0 %4577
        %4579 = vrot.lane.b32.xlu0 %v4492, 96
        %v4580 = vpop.permute.xlu0 %4579
        %4581 = vrot.lane.b32.xlu0 %v4506, 96
        %v4582 = vpop.permute.xlu0 %4581
        %4583 = vrot.lane.b32.xlu0 %v4520, 96
        %v4584 = vpop.permute.xlu0 %4583
        %4585 = vrot.lane.b32.xlu0 %v4534, 96
        %v4586 = vpop.permute.xlu0 %4585
        %4587 = vrot.lane.b32.xlu0 %v4548, 96
        %v4588 = vpop.permute.xlu0 %4587
        %4589 = vrot.lane.b32.xlu0 %v4562, 96
        %v4590 = vpop.permute.xlu0 %4589
        %4591 = vrot.lane.b32.xlu0 %v4576, 96
        %v4592 = vpop.permute.xlu0 %4591
        %4601 = vst.msk [vmem:[#allocation5 + $0x4] sm:$0xf] %vm4151, %v4578
        %4602 = vst.msk [vmem:[#allocation5 + $0x10] sm:$0xf] %vm4151, %v4580
        %4603 = vst.msk [vmem:[#allocation5 + $0x1c] sm:$0xf] %vm4151, %v4582
        %4604 = vst.msk [vmem:[#allocation5 + $0x28] sm:$0xf] %vm4151, %v4584
        %4605 = vst.msk [vmem:[#allocation5 + $0x34] sm:$0xf] %vm4151, %v4586
        %4606 = vst.msk [vmem:[#allocation5 + $0x40] sm:$0xf] %vm4151, %v4588
        %4607 = vst.msk [vmem:[#allocation5 + $0x4c] sm:$0xf] %vm4151, %v4590
        %4608 = vst.msk [vmem:[#allocation5 + $0x58] sm:$0xf] %vm4151, %v4592
        %v4609 = vld [vmem:[%s4400] sm:$0xe]
        %v4610 = vld [vmem:[%s4400 + $0x4] sm:$0x1]
        %v4611 = vld [vmem:[%s4400 + $0x8] sm:$0xe]
        %v4612 = vld [vmem:[%s4400 + $0xc] sm:$0x1]
        %v4613 = vld [vmem:[%s4400 + $0x10] sm:$0xe]
        %v4614 = vld [vmem:[%s4400 + $0x14] sm:$0x1]
        %v4615 = vld [vmem:[%s4400 + $0x18] sm:$0xe]
        %v4616 = vld [vmem:[%s4400 + $0x1c] sm:$0x1]
        %v4617 = vld [vmem:[%s4400 + $0x20] sm:$0xe]
        %v4618 = vld [vmem:[%s4400 + $0x24] sm:$0x1]
        %v4619 = vld [vmem:[%s4400 + $0x28] sm:$0xe]
        %v4620 = vld [vmem:[%s4400 + $0x2c] sm:$0x1]
        %v4621 = vld [vmem:[%s4400 + $0x30] sm:$0xe]
        %v4622 = vld [vmem:[%s4400 + $0x34] sm:$0x1]
        %v4623 = vld [vmem:[%s4400 + $0x38] sm:$0xe]
        %v4624 = vld [vmem:[%s4400 + $0x3c] sm:$0x1]
        %v4641 = vrot.slane %v4609, 5
        %v4642 = vrot.slane %v4641, 4
        %v4643 = vrot.slane %v4610, 5
        %v4644 = vsel %vm4045, %v4642, %v4643
        %v4645 = vrot.slane %v4611, 5
        %v4646 = vrot.slane %v4645, 4
        %v4647 = vrot.slane %v4612, 5
        %v4648 = vsel %vm4045, %v4646, %v4647
        %v4649 = vrot.slane %v4613, 5
        %v4650 = vrot.slane %v4649, 4
        %v4651 = vrot.slane %v4614, 5
        %v4652 = vsel %vm4045, %v4650, %v4651
        %v4653 = vrot.slane %v4615, 5
        %v4654 = vrot.slane %v4653, 4
        %v4655 = vrot.slane %v4616, 5
        %v4656 = vsel %vm4045, %v4654, %v4655
        %v4657 = vrot.slane %v4617, 5
        %v4658 = vrot.slane %v4657, 4
        %v4659 = vrot.slane %v4618, 5
        %v4660 = vsel %vm4045, %v4658, %v4659
        %v4661 = vrot.slane %v4619, 5
        %v4662 = vrot.slane %v4661, 4
        %v4663 = vrot.slane %v4620, 5
        %v4664 = vsel %vm4045, %v4662, %v4663
        %v4665 = vrot.slane %v4621, 5
        %v4666 = vrot.slane %v4665, 4
        %v4667 = vrot.slane %v4622, 5
        %v4668 = vsel %vm4045, %v4666, %v4667
        %v4669 = vrot.slane %v4623, 5
        %v4670 = vrot.slane %v4669, 4
        %v4671 = vrot.slane %v4624, 5
        %v4672 = vsel %vm4045, %v4670, %v4671
        %4681 = vst.msk [vmem:[#allocation5 + $0x8] sm:$0xf] %vm3424, %v4644
        %4682 = vst.msk [vmem:[#allocation5 + $0x14] sm:$0xf] %vm3424, %v4648
        %4683 = vst.msk [vmem:[#allocation5 + $0x20] sm:$0xf] %vm3424, %v4652
        %4684 = vst.msk [vmem:[#allocation5 + $0x2c] sm:$0xf] %vm3424, %v4656
        %4685 = vst.msk [vmem:[#allocation5 + $0x38] sm:$0xf] %vm3424, %v4660
        %4686 = vst.msk [vmem:[#allocation5 + $0x44] sm:$0xf] %vm3424, %v4664
        %4687 = vst.msk [vmem:[#allocation5 + $0x50] sm:$0xf] %vm3424, %v4668
        %4688 = vst.msk [vmem:[#allocation5 + $0x5c] sm:$0xf] %vm3424, %v4672
        %s4689 = scalar_lea.vmem [#allocation3], 80
        %v4690 = vld [vmem:[%s4689] sm:$0xf]
        %v4691 = vld [vmem:[%s4689 + $0x8] sm:$0xf]
        %v4692 = vld [vmem:[%s4689 + $0x10] sm:$0xf]
        %v4693 = vld [vmem:[%s4689 + $0x18] sm:$0xf]
        %v4694 = vld [vmem:[%s4689 + $0x20] sm:$0xf]
        %v4695 = vld [vmem:[%s4689 + $0x28] sm:$0xf]
        %v4696 = vld [vmem:[%s4689 + $0x30] sm:$0xf]
        %v4697 = vld [vmem:[%s4689 + $0x38] sm:$0xf]
        %4698 = vst.msk [vmem:[#allocation5 + $0x60] sm:$0xf] %vm3424, %v4690
        %4699 = vst.msk [vmem:[#allocation5 + $0x6c] sm:$0xf] %vm3424, %v4691
        %4700 = vst.msk [vmem:[#allocation5 + $0x78] sm:$0xf] %vm3424, %v4692
        %4701 = vst.msk [vmem:[#allocation5 + $0x84] sm:$0xf] %vm3424, %v4693
        %4702 = vst.msk [vmem:[#allocation5 + $0x90] sm:$0xf] %vm3424, %v4694
        %4703 = vst.msk [vmem:[#allocation5 + $0x9c] sm:$0xf] %vm3424, %v4695
        %4704 = vst.msk [vmem:[#allocation5 + $0xa8] sm:$0xf] %vm3424, %v4696
        %4705 = vst.msk [vmem:[#allocation5 + $0xb4] sm:$0xf] %vm3424, %v4697
        %v4706 = vld [vmem:[%s4689] sm:$0xf]
        %v4707 = vld [vmem:[%s4689 + $0x4] sm:$0x1]
        %v4708 = vld [vmem:[%s4689 + $0x8] sm:$0xf]
        %v4709 = vld [vmem:[%s4689 + $0xc] sm:$0x1]
        %v4710 = vld [vmem:[%s4689 + $0x10] sm:$0xf]
        %v4711 = vld [vmem:[%s4689 + $0x14] sm:$0x1]
        %v4712 = vld [vmem:[%s4689 + $0x18] sm:$0xf]
        %v4713 = vld [vmem:[%s4689 + $0x1c] sm:$0x1]
        %v4714 = vld [vmem:[%s4689 + $0x20] sm:$0xf]
        %v4715 = vld [vmem:[%s4689 + $0x24] sm:$0x1]
        %v4716 = vld [vmem:[%s4689 + $0x28] sm:$0xf]
        %v4717 = vld [vmem:[%s4689 + $0x2c] sm:$0x1]
        %v4718 = vld [vmem:[%s4689 + $0x30] sm:$0xf]
        %v4719 = vld [vmem:[%s4689 + $0x34] sm:$0x1]
        %v4720 = vld [vmem:[%s4689 + $0x38] sm:$0xf]
        %v4721 = vld [vmem:[%s4689 + $0x3c] sm:$0x1]
        %v4723 = vshrl.u32 %v4706, 16
        %v4725 = vrot.slane %v4723, 4
        %v4726 = vshll.u32 %v4706, 16
        %v4728 = vrot.slane %v4726, 5
        %v4729 = vor.u32 %v4725, %v4728
        %v4730 = vrot.slane %v4729, 4
        %v4732 = vshll.u32 %v4707, 16
        %v4734 = vrot.slane %v4732, 5
        %v4735 = vsel %vm931, %v4730, %v4734
        %v4737 = vshrl.u32 %v4708, 16
        %v4739 = vrot.slane %v4737, 4
        %v4740 = vshll.u32 %v4708, 16
        %v4742 = vrot.slane %v4740, 5
        %v4743 = vor.u32 %v4739, %v4742
        %v4744 = vrot.slane %v4743, 4
        %v4746 = vshll.u32 %v4709, 16
        %v4748 = vrot.slane %v4746, 5
        %v4749 = vsel %vm931, %v4744, %v4748
        %v4751 = vshrl.u32 %v4710, 16
        %v4753 = vrot.slane %v4751, 4
        %v4754 = vshll.u32 %v4710, 16
        %v4756 = vrot.slane %v4754, 5
        %v4757 = vor.u32 %v4753, %v4756
        %v4758 = vrot.slane %v4757, 4
        %v4760 = vshll.u32 %v4711, 16
        %v4762 = vrot.slane %v4760, 5
        %v4763 = vsel %vm931, %v4758, %v4762
        %v4765 = vshrl.u32 %v4712, 16
        %v4767 = vrot.slane %v4765, 4
        %v4768 = vshll.u32 %v4712, 16
        %v4770 = vrot.slane %v4768, 5
        %v4771 = vor.u32 %v4767, %v4770
        %v4772 = vrot.slane %v4771, 4
        %v4774 = vshll.u32 %v4713, 16
        %v4776 = vrot.slane %v4774, 5
        %v4777 = vsel %vm931, %v4772, %v4776
        %v4779 = vshrl.u32 %v4714, 16
        %v4781 = vrot.slane %v4779, 4
        %v4782 = vshll.u32 %v4714, 16
        %v4784 = vrot.slane %v4782, 5
        %v4785 = vor.u32 %v4781, %v4784
        %v4786 = vrot.slane %v4785, 4
        %v4788 = vshll.u32 %v4715, 16
        %v4790 = vrot.slane %v4788, 5
        %v4791 = vsel %vm931, %v4786, %v4790
        %v4793 = vshrl.u32 %v4716, 16
        %v4795 = vrot.slane %v4793, 4
        %v4796 = vshll.u32 %v4716, 16
        %v4798 = vrot.slane %v4796, 5
        %v4799 = vor.u32 %v4795, %v4798
        %v4800 = vrot.slane %v4799, 4
        %v4802 = vshll.u32 %v4717, 16
        %v4804 = vrot.slane %v4802, 5
        %v4805 = vsel %vm931, %v4800, %v4804
        %v4807 = vshrl.u32 %v4718, 16
        %v4809 = vrot.slane %v4807, 4
        %v4810 = vshll.u32 %v4718, 16
        %v4812 = vrot.slane %v4810, 5
        %v4813 = vor.u32 %v4809, %v4812
        %v4814 = vrot.slane %v4813, 4
        %v4816 = vshll.u32 %v4719, 16
        %v4818 = vrot.slane %v4816, 5
        %v4819 = vsel %vm931, %v4814, %v4818
        %v4821 = vshrl.u32 %v4720, 16
        %v4823 = vrot.slane %v4821, 4
        %v4824 = vshll.u32 %v4720, 16
        %v4826 = vrot.slane %v4824, 5
        %v4827 = vor.u32 %v4823, %v4826
        %v4828 = vrot.slane %v4827, 4
        %v4830 = vshll.u32 %v4721, 16
        %v4832 = vrot.slane %v4830, 5
        %v4833 = vsel %vm931, %v4828, %v4832
        %4834 = vrot.lane.b32.xlu0 %v4735, 32
        %v4835 = vpop.permute.xlu0 %4834
        %4836 = vrot.lane.b32.xlu0 %v4749, 32
        %v4837 = vpop.permute.xlu0 %4836
        %4838 = vrot.lane.b32.xlu0 %v4763, 32
        %v4839 = vpop.permute.xlu0 %4838
        %4840 = vrot.lane.b32.xlu0 %v4777, 32
        %v4841 = vpop.permute.xlu0 %4840
        %4842 = vrot.lane.b32.xlu0 %v4791, 32
        %v4843 = vpop.permute.xlu0 %4842
        %4844 = vrot.lane.b32.xlu0 %v4805, 32
        %v4845 = vpop.permute.xlu0 %4844
        %4846 = vrot.lane.b32.xlu0 %v4819, 32
        %v4847 = vpop.permute.xlu0 %4846
        %4848 = vrot.lane.b32.xlu0 %v4833, 32
        %v4849 = vpop.permute.xlu0 %4848
        %4858 = vst.msk [vmem:[#allocation5 + $0x60] sm:$0xf] %vm4002, %v4835
        %4859 = vst.msk [vmem:[#allocation5 + $0x6c] sm:$0xf] %vm4002, %v4837
        %4860 = vst.msk [vmem:[#allocation5 + $0x78] sm:$0xf] %vm4002, %v4839
        %4861 = vst.msk [vmem:[#allocation5 + $0x84] sm:$0xf] %vm4002, %v4841
        %4862 = vst.msk [vmem:[#allocation5 + $0x90] sm:$0xf] %vm4002, %v4843
        %4863 = vst.msk [vmem:[#allocation5 + $0x9c] sm:$0xf] %vm4002, %v4845
        %4864 = vst.msk [vmem:[#allocation5 + $0xa8] sm:$0xf] %vm4002, %v4847
        %4865 = vst.msk [vmem:[#allocation5 + $0xb4] sm:$0xf] %vm4002, %v4849
        %v4866 = vld [vmem:[%s4689] sm:$0xe]
        %v4867 = vld [vmem:[%s4689 + $0x4] sm:$0x1]
        %v4868 = vld [vmem:[%s4689 + $0x8] sm:$0xe]
        %v4869 = vld [vmem:[%s4689 + $0xc] sm:$0x1]
        %v4870 = vld [vmem:[%s4689 + $0x10] sm:$0xe]
        %v4871 = vld [vmem:[%s4689 + $0x14] sm:$0x1]
        %v4872 = vld [vmem:[%s4689 + $0x18] sm:$0xe]
        %v4873 = vld [vmem:[%s4689 + $0x1c] sm:$0x1]
        %v4874 = vld [vmem:[%s4689 + $0x20] sm:$0xe]
        %v4875 = vld [vmem:[%s4689 + $0x24] sm:$0x1]
        %v4876 = vld [vmem:[%s4689 + $0x28] sm:$0xe]
        %v4877 = vld [vmem:[%s4689 + $0x2c] sm:$0x1]
        %v4878 = vld [vmem:[%s4689 + $0x30] sm:$0xe]
        %v4879 = vld [vmem:[%s4689 + $0x34] sm:$0x1]
        %v4880 = vld [vmem:[%s4689 + $0x38] sm:$0xe]
        %v4881 = vld [vmem:[%s4689 + $0x3c] sm:$0x1]
        %v4898 = vrot.slane %v4866, 5
        %v4899 = vrot.slane %v4898, 4
        %v4900 = vrot.slane %v4867, 5
        %v4901 = vsel %vm4045, %v4899, %v4900
        %v4902 = vrot.slane %v4868, 5
        %v4903 = vrot.slane %v4902, 4
        %v4904 = vrot.slane %v4869, 5
        %v4905 = vsel %vm4045, %v4903, %v4904
        %v4906 = vrot.slane %v4870, 5
        %v4907 = vrot.slane %v4906, 4
        %v4908 = vrot.slane %v4871, 5
        %v4909 = vsel %vm4045, %v4907, %v4908
        %v4910 = vrot.slane %v4872, 5
        %v4911 = vrot.slane %v4910, 4
        %v4912 = vrot.slane %v4873, 5
        %v4913 = vsel %vm4045, %v4911, %v4912
        %v4914 = vrot.slane %v4874, 5
        %v4915 = vrot.slane %v4914, 4
        %v4916 = vrot.slane %v4875, 5
        %v4917 = vsel %vm4045, %v4915, %v4916
        %v4918 = vrot.slane %v4876, 5
        %v4919 = vrot.slane %v4918, 4
        %v4920 = vrot.slane %v4877, 5
        %v4921 = vsel %vm4045, %v4919, %v4920
        %v4922 = vrot.slane %v4878, 5
        %v4923 = vrot.slane %v4922, 4
        %v4924 = vrot.slane %v4879, 5
        %v4925 = vsel %vm4045, %v4923, %v4924
        %v4926 = vrot.slane %v4880, 5
        %v4927 = vrot.slane %v4926, 4
        %v4928 = vrot.slane %v4881, 5
        %v4929 = vsel %vm4045, %v4927, %v4928
        %4930 = vrot.lane.b32.xlu0 %v4901, 64
        %v4931 = vpop.permute.xlu0 %4930
        %4932 = vrot.lane.b32.xlu0 %v4905, 64
        %v4933 = vpop.permute.xlu0 %4932
        %4934 = vrot.lane.b32.xlu0 %v4909, 64
        %v4935 = vpop.permute.xlu0 %4934
        %4936 = vrot.lane.b32.xlu0 %v4913, 64
        %v4937 = vpop.permute.xlu0 %4936
        %4938 = vrot.lane.b32.xlu0 %v4917, 64
        %v4939 = vpop.permute.xlu0 %4938
        %4940 = vrot.lane.b32.xlu0 %v4921, 64
        %v4941 = vpop.permute.xlu0 %4940
        %4942 = vrot.lane.b32.xlu0 %v4925, 64
        %v4943 = vpop.permute.xlu0 %4942
        %4944 = vrot.lane.b32.xlu0 %v4929, 64
        %v4945 = vpop.permute.xlu0 %4944
        %4954 = vst.msk [vmem:[#allocation5 + $0x60] sm:$0xf] %vm4102, %v4931
        %4955 = vst.msk [vmem:[#allocation5 + $0x6c] sm:$0xf] %vm4102, %v4933
        %4956 = vst.msk [vmem:[#allocation5 + $0x78] sm:$0xf] %vm4102, %v4935
        %4957 = vst.msk [vmem:[#allocation5 + $0x84] sm:$0xf] %vm4102, %v4937
        %4958 = vst.msk [vmem:[#allocation5 + $0x90] sm:$0xf] %vm4102, %v4939
        %4959 = vst.msk [vmem:[#allocation5 + $0x9c] sm:$0xf] %vm4102, %v4941
        %4960 = vst.msk [vmem:[#allocation5 + $0xa8] sm:$0xf] %vm4102, %v4943
        %4961 = vst.msk [vmem:[#allocation5 + $0xb4] sm:$0xf] %vm4102, %v4945
        %v4962 = vld [vmem:[%s3785] sm:$0xf]
        %v4963 = vld [vmem:[%s3785 + $0x8] sm:$0xf]
        %v4964 = vld [vmem:[%s3785 + $0x10] sm:$0xf]
        %v4965 = vld [vmem:[%s3785 + $0x18] sm:$0xf]
        %v4966 = vld [vmem:[%s3785 + $0x20] sm:$0xf]
        %v4967 = vld [vmem:[%s3785 + $0x28] sm:$0xf]
        %v4968 = vld [vmem:[%s3785 + $0x30] sm:$0xf]
        %v4969 = vld [vmem:[%s3785 + $0x38] sm:$0xf]
        %4978 = vrot.lane.b32.xlu0 %v4962, 96
        %v4979 = vpop.permute.xlu0 %4978
        %4980 = vrot.lane.b32.xlu0 %v4963, 96
        %v4981 = vpop.permute.xlu0 %4980
        %4982 = vrot.lane.b32.xlu0 %v4964, 96
        %v4983 = vpop.permute.xlu0 %4982
        %4984 = vrot.lane.b32.xlu0 %v4965, 96
        %v4985 = vpop.permute.xlu0 %4984
        %4986 = vrot.lane.b32.xlu0 %v4966, 96
        %v4987 = vpop.permute.xlu0 %4986
        %4988 = vrot.lane.b32.xlu0 %v4967, 96
        %v4989 = vpop.permute.xlu0 %4988
        %4990 = vrot.lane.b32.xlu0 %v4968, 96
        %v4991 = vpop.permute.xlu0 %4990
        %4992 = vrot.lane.b32.xlu0 %v4969, 96
        %v4993 = vpop.permute.xlu0 %4992
        %5002 = vst.msk [vmem:[#allocation5 + $0x60] sm:$0xf] %vm4151, %v4979
        %5003 = vst.msk [vmem:[#allocation5 + $0x6c] sm:$0xf] %vm4151, %v4981
        %5004 = vst.msk [vmem:[#allocation5 + $0x78] sm:$0xf] %vm4151, %v4983
        %5005 = vst.msk [vmem:[#allocation5 + $0x84] sm:$0xf] %vm4151, %v4985
        %5006 = vst.msk [vmem:[#allocation5 + $0x90] sm:$0xf] %vm4151, %v4987
        %5007 = vst.msk [vmem:[#allocation5 + $0x9c] sm:$0xf] %vm4151, %v4989
        %5008 = vst.msk [vmem:[#allocation5 + $0xa8] sm:$0xf] %vm4151, %v4991
        %5009 = vst.msk [vmem:[#allocation5 + $0xb4] sm:$0xf] %vm4151, %v4993
        %v5010 = vld [vmem:[%s3785] sm:$0xf]
        %v5011 = vld [vmem:[%s3785 + $0x4] sm:$0x1]
        %v5012 = vld [vmem:[%s3785 + $0x8] sm:$0xf]
        %v5013 = vld [vmem:[%s3785 + $0xc] sm:$0x1]
        %v5014 = vld [vmem:[%s3785 + $0x10] sm:$0xf]
        %v5015 = vld [vmem:[%s3785 + $0x14] sm:$0x1]
        %v5016 = vld [vmem:[%s3785 + $0x18] sm:$0xf]
        %v5017 = vld [vmem:[%s3785 + $0x1c] sm:$0x1]
        %v5018 = vld [vmem:[%s3785 + $0x20] sm:$0xf]
        %v5019 = vld [vmem:[%s3785 + $0x24] sm:$0x1]
        %v5020 = vld [vmem:[%s3785 + $0x28] sm:$0xf]
        %v5021 = vld [vmem:[%s3785 + $0x2c] sm:$0x1]
        %v5022 = vld [vmem:[%s3785 + $0x30] sm:$0xf]
        %v5023 = vld [vmem:[%s3785 + $0x34] sm:$0x1]
        %v5024 = vld [vmem:[%s3785 + $0x38] sm:$0xf]
        %v5025 = vld [vmem:[%s3785 + $0x3c] sm:$0x1]
        %v5027 = vshrl.u32 %v5010, 16
        %v5029 = vrot.slane %v5027, 4
        %v5030 = vshll.u32 %v5010, 16
        %v5032 = vrot.slane %v5030, 5
        %v5033 = vor.u32 %v5029, %v5032
        %v5034 = vrot.slane %v5033, 4
        %v5036 = vshll.u32 %v5011, 16
        %v5038 = vrot.slane %v5036, 5
        %v5039 = vsel %vm931, %v5034, %v5038
        %v5041 = vshrl.u32 %v5012, 16
        %v5043 = vrot.slane %v5041, 4
        %v5044 = vshll.u32 %v5012, 16
        %v5046 = vrot.slane %v5044, 5
        %v5047 = vor.u32 %v5043, %v5046
        %v5048 = vrot.slane %v5047, 4
        %v5050 = vshll.u32 %v5013, 16
        %v5052 = vrot.slane %v5050, 5
        %v5053 = vsel %vm931, %v5048, %v5052
        %v5055 = vshrl.u32 %v5014, 16
        %v5057 = vrot.slane %v5055, 4
        %v5058 = vshll.u32 %v5014, 16
        %v5060 = vrot.slane %v5058, 5
        %v5061 = vor.u32 %v5057, %v5060
        %v5062 = vrot.slane %v5061, 4
        %v5064 = vshll.u32 %v5015, 16
        %v5066 = vrot.slane %v5064, 5
        %v5067 = vsel %vm931, %v5062, %v5066
        %v5069 = vshrl.u32 %v5016, 16
        %v5071 = vrot.slane %v5069, 4
        %v5072 = vshll.u32 %v5016, 16
        %v5074 = vrot.slane %v5072, 5
        %v5075 = vor.u32 %v5071, %v5074
        %v5076 = vrot.slane %v5075, 4
        %v5078 = vshll.u32 %v5017, 16
        %v5080 = vrot.slane %v5078, 5
        %v5081 = vsel %vm931, %v5076, %v5080
        %v5083 = vshrl.u32 %v5018, 16
        %v5085 = vrot.slane %v5083, 4
        %v5086 = vshll.u32 %v5018, 16
        %v5088 = vrot.slane %v5086, 5
        %v5089 = vor.u32 %v5085, %v5088
        %v5090 = vrot.slane %v5089, 4
        %v5092 = vshll.u32 %v5019, 16
        %v5094 = vrot.slane %v5092, 5
        %v5095 = vsel %vm931, %v5090, %v5094
        %v5097 = vshrl.u32 %v5020, 16
        %v5099 = vrot.slane %v5097, 4
        %v5100 = vshll.u32 %v5020, 16
        %v5102 = vrot.slane %v5100, 5
        %v5103 = vor.u32 %v5099, %v5102
        %v5104 = vrot.slane %v5103, 4
        %v5106 = vshll.u32 %v5021, 16
        %v5108 = vrot.slane %v5106, 5
        %v5109 = vsel %vm931, %v5104, %v5108
        %v5111 = vshrl.u32 %v5022, 16
        %v5113 = vrot.slane %v5111, 4
        %v5114 = vshll.u32 %v5022, 16
        %v5116 = vrot.slane %v5114, 5
        %v5117 = vor.u32 %v5113, %v5116
        %v5118 = vrot.slane %v5117, 4
        %v5120 = vshll.u32 %v5023, 16
        %v5122 = vrot.slane %v5120, 5
        %v5123 = vsel %vm931, %v5118, %v5122
        %v5125 = vshrl.u32 %v5024, 16
        %v5127 = vrot.slane %v5125, 4
        %v5128 = vshll.u32 %v5024, 16
        %v5130 = vrot.slane %v5128, 5
        %v5131 = vor.u32 %v5127, %v5130
        %v5132 = vrot.slane %v5131, 4
        %v5134 = vshll.u32 %v5025, 16
        %v5136 = vrot.slane %v5134, 5
        %v5137 = vsel %vm931, %v5132, %v5136
        %5146 = vst.msk [vmem:[#allocation5 + $0x64] sm:$0xf] %vm3424, %v5039
        %5147 = vst.msk [vmem:[#allocation5 + $0x70] sm:$0xf] %vm3424, %v5053
        %5148 = vst.msk [vmem:[#allocation5 + $0x7c] sm:$0xf] %vm3424, %v5067
        %5149 = vst.msk [vmem:[#allocation5 + $0x88] sm:$0xf] %vm3424, %v5081
        %5150 = vst.msk [vmem:[#allocation5 + $0x94] sm:$0xf] %vm3424, %v5095
        %5151 = vst.msk [vmem:[#allocation5 + $0xa0] sm:$0xf] %vm3424, %v5109
        %5152 = vst.msk [vmem:[#allocation5 + $0xac] sm:$0xf] %vm3424, %v5123
        %5153 = vst.msk [vmem:[#allocation5 + $0xb8] sm:$0xf] %vm3424, %v5137
        %v5154 = vld [vmem:[%s3785] sm:$0xe]
        %v5155 = vld [vmem:[%s3785 + $0x4] sm:$0x1]
        %v5156 = vld [vmem:[%s3785 + $0x8] sm:$0xe]
        %v5157 = vld [vmem:[%s3785 + $0xc] sm:$0x1]
        %v5158 = vld [vmem:[%s3785 + $0x10] sm:$0xe]
        %v5159 = vld [vmem:[%s3785 + $0x14] sm:$0x1]
        %v5160 = vld [vmem:[%s3785 + $0x18] sm:$0xe]
        %v5161 = vld [vmem:[%s3785 + $0x1c] sm:$0x1]
        %v5162 = vld [vmem:[%s3785 + $0x20] sm:$0xe]
        %v5163 = vld [vmem:[%s3785 + $0x24] sm:$0x1]
        %v5164 = vld [vmem:[%s3785 + $0x28] sm:$0xe]
        %v5165 = vld [vmem:[%s3785 + $0x2c] sm:$0x1]
        %v5166 = vld [vmem:[%s3785 + $0x30] sm:$0xe]
        %v5167 = vld [vmem:[%s3785 + $0x34] sm:$0x1]
        %v5168 = vld [vmem:[%s3785 + $0x38] sm:$0xe]
        %v5169 = vld [vmem:[%s3785 + $0x3c] sm:$0x1]
        %v5186 = vrot.slane %v5154, 5
        %v5187 = vrot.slane %v5186, 4
        %v5188 = vrot.slane %v5155, 5
        %v5189 = vsel %vm4045, %v5187, %v5188
        %v5190 = vrot.slane %v5156, 5
        %v5191 = vrot.slane %v5190, 4
        %v5192 = vrot.slane %v5157, 5
        %v5193 = vsel %vm4045, %v5191, %v5192
        %v5194 = vrot.slane %v5158, 5
        %v5195 = vrot.slane %v5194, 4
        %v5196 = vrot.slane %v5159, 5
        %v5197 = vsel %vm4045, %v5195, %v5196
        %v5198 = vrot.slane %v5160, 5
        %v5199 = vrot.slane %v5198, 4
        %v5200 = vrot.slane %v5161, 5
        %v5201 = vsel %vm4045, %v5199, %v5200
        %v5202 = vrot.slane %v5162, 5
        %v5203 = vrot.slane %v5202, 4
        %v5204 = vrot.slane %v5163, 5
        %v5205 = vsel %vm4045, %v5203, %v5204
        %v5206 = vrot.slane %v5164, 5
        %v5207 = vrot.slane %v5206, 4
        %v5208 = vrot.slane %v5165, 5
        %v5209 = vsel %vm4045, %v5207, %v5208
        %v5210 = vrot.slane %v5166, 5
        %v5211 = vrot.slane %v5210, 4
        %v5212 = vrot.slane %v5167, 5
        %v5213 = vsel %vm4045, %v5211, %v5212
        %v5214 = vrot.slane %v5168, 5
        %v5215 = vrot.slane %v5214, 4
        %v5216 = vrot.slane %v5169, 5
        %v5217 = vsel %vm4045, %v5215, %v5216
        %5218 = vrot.lane.b32.xlu0 %v5189, 32
        %v5219 = vpop.permute.xlu0 %5218
        %5220 = vrot.lane.b32.xlu0 %v5193, 32
        %v5221 = vpop.permute.xlu0 %5220
        %5222 = vrot.lane.b32.xlu0 %v5197, 32
        %v5223 = vpop.permute.xlu0 %5222
        %5224 = vrot.lane.b32.xlu0 %v5201, 32
        %v5225 = vpop.permute.xlu0 %5224
        %5226 = vrot.lane.b32.xlu0 %v5205, 32
        %v5227 = vpop.permute.xlu0 %5226
        %5228 = vrot.lane.b32.xlu0 %v5209, 32
        %v5229 = vpop.permute.xlu0 %5228
        %5230 = vrot.lane.b32.xlu0 %v5213, 32
        %v5231 = vpop.permute.xlu0 %5230
        %5232 = vrot.lane.b32.xlu0 %v5217, 32
        %v5233 = vpop.permute.xlu0 %5232
        %5242 = vst.msk [vmem:[#allocation5 + $0x64] sm:$0xf] %vm4002, %v5219
        %5243 = vst.msk [vmem:[#allocation5 + $0x70] sm:$0xf] %vm4002, %v5221
        %5244 = vst.msk [vmem:[#allocation5 + $0x7c] sm:$0xf] %vm4002, %v5223
        %5245 = vst.msk [vmem:[#allocation5 + $0x88] sm:$0xf] %vm4002, %v5225
        %5246 = vst.msk [vmem:[#allocation5 + $0x94] sm:$0xf] %vm4002, %v5227
        %5247 = vst.msk [vmem:[#allocation5 + $0xa0] sm:$0xf] %vm4002, %v5229
        %5248 = vst.msk [vmem:[#allocation5 + $0xac] sm:$0xf] %vm4002, %v5231
        %5249 = vst.msk [vmem:[#allocation5 + $0xb8] sm:$0xf] %vm4002, %v5233
        %s5250 = scalar_lea.vmem [#allocation3], 96
        %v5251 = vld [vmem:[%s5250] sm:$0xf]
        %v5252 = vld [vmem:[%s5250 + $0x8] sm:$0xf]
        %v5253 = vld [vmem:[%s5250 + $0x10] sm:$0xf]
        %v5254 = vld [vmem:[%s5250 + $0x18] sm:$0xf]
        %v5255 = vld [vmem:[%s5250 + $0x20] sm:$0xf]
        %v5256 = vld [vmem:[%s5250 + $0x28] sm:$0xf]
        %v5257 = vld [vmem:[%s5250 + $0x30] sm:$0xf]
        %v5258 = vld [vmem:[%s5250 + $0x38] sm:$0xf]
        %5267 = vrot.lane.b32.xlu0 %v5251, 64
        %v5268 = vpop.permute.xlu0 %5267
        %5269 = vrot.lane.b32.xlu0 %v5252, 64
        %v5270 = vpop.permute.xlu0 %5269
        %5271 = vrot.lane.b32.xlu0 %v5253, 64
        %v5272 = vpop.permute.xlu0 %5271
        %5273 = vrot.lane.b32.xlu0 %v5254, 64
        %v5274 = vpop.permute.xlu0 %5273
        %5275 = vrot.lane.b32.xlu0 %v5255, 64
        %v5276 = vpop.permute.xlu0 %5275
        %5277 = vrot.lane.b32.xlu0 %v5256, 64
        %v5278 = vpop.permute.xlu0 %5277
        %5279 = vrot.lane.b32.xlu0 %v5257, 64
        %v5280 = vpop.permute.xlu0 %5279
        %5281 = vrot.lane.b32.xlu0 %v5258, 64
        %v5282 = vpop.permute.xlu0 %5281
        %5291 = vst.msk [vmem:[#allocation5 + $0x64] sm:$0xf] %vm4102, %v5268
        %5292 = vst.msk [vmem:[#allocation5 + $0x70] sm:$0xf] %vm4102, %v5270
        %5293 = vst.msk [vmem:[#allocation5 + $0x7c] sm:$0xf] %vm4102, %v5272
        %5294 = vst.msk [vmem:[#allocation5 + $0x88] sm:$0xf] %vm4102, %v5274
        %5295 = vst.msk [vmem:[#allocation5 + $0x94] sm:$0xf] %vm4102, %v5276
        %5296 = vst.msk [vmem:[#allocation5 + $0xa0] sm:$0xf] %vm4102, %v5278
        %5297 = vst.msk [vmem:[#allocation5 + $0xac] sm:$0xf] %vm4102, %v5280
        %5298 = vst.msk [vmem:[#allocation5 + $0xb8] sm:$0xf] %vm4102, %v5282
        %v5299 = vld [vmem:[%s5250] sm:$0xf]
        %v5300 = vld [vmem:[%s5250 + $0x4] sm:$0x1]
        %v5301 = vld [vmem:[%s5250 + $0x8] sm:$0xf]
        %v5302 = vld [vmem:[%s5250 + $0xc] sm:$0x1]
        %v5303 = vld [vmem:[%s5250 + $0x10] sm:$0xf]
        %v5304 = vld [vmem:[%s5250 + $0x14] sm:$0x1]
        %v5305 = vld [vmem:[%s5250 + $0x18] sm:$0xf]
        %v5306 = vld [vmem:[%s5250 + $0x1c] sm:$0x1]
        %v5307 = vld [vmem:[%s5250 + $0x20] sm:$0xf]
        %v5308 = vld [vmem:[%s5250 + $0x24] sm:$0x1]
        %v5309 = vld [vmem:[%s5250 + $0x28] sm:$0xf]
        %v5310 = vld [vmem:[%s5250 + $0x2c] sm:$0x1]
        %v5311 = vld [vmem:[%s5250 + $0x30] sm:$0xf]
        %v5312 = vld [vmem:[%s5250 + $0x34] sm:$0x1]
        %v5313 = vld [vmem:[%s5250 + $0x38] sm:$0xf]
        %v5314 = vld [vmem:[%s5250 + $0x3c] sm:$0x1]
        %v5316 = vshrl.u32 %v5299, 16
        %v5318 = vrot.slane %v5316, 4
        %v5319 = vshll.u32 %v5299, 16
        %v5321 = vrot.slane %v5319, 5
        %v5322 = vor.u32 %v5318, %v5321
        %v5323 = vrot.slane %v5322, 4
        %v5325 = vshll.u32 %v5300, 16
        %v5327 = vrot.slane %v5325, 5
        %v5328 = vsel %vm931, %v5323, %v5327
        %v5330 = vshrl.u32 %v5301, 16
        %v5332 = vrot.slane %v5330, 4
        %v5333 = vshll.u32 %v5301, 16
        %v5335 = vrot.slane %v5333, 5
        %v5336 = vor.u32 %v5332, %v5335
        %v5337 = vrot.slane %v5336, 4
        %v5339 = vshll.u32 %v5302, 16
        %v5341 = vrot.slane %v5339, 5
        %v5342 = vsel %vm931, %v5337, %v5341
        %v5344 = vshrl.u32 %v5303, 16
        %v5346 = vrot.slane %v5344, 4
        %v5347 = vshll.u32 %v5303, 16
        %v5349 = vrot.slane %v5347, 5
        %v5350 = vor.u32 %v5346, %v5349
        %v5351 = vrot.slane %v5350, 4
        %v5353 = vshll.u32 %v5304, 16
        %v5355 = vrot.slane %v5353, 5
        %v5356 = vsel %vm931, %v5351, %v5355
        %v5358 = vshrl.u32 %v5305, 16
        %v5360 = vrot.slane %v5358, 4
        %v5361 = vshll.u32 %v5305, 16
        %v5363 = vrot.slane %v5361, 5
        %v5364 = vor.u32 %v5360, %v5363
        %v5365 = vrot.slane %v5364, 4
        %v5367 = vshll.u32 %v5306, 16
        %v5369 = vrot.slane %v5367, 5
        %v5370 = vsel %vm931, %v5365, %v5369
        %v5372 = vshrl.u32 %v5307, 16
        %v5374 = vrot.slane %v5372, 4
        %v5375 = vshll.u32 %v5307, 16
        %v5377 = vrot.slane %v5375, 5
        %v5378 = vor.u32 %v5374, %v5377
        %v5379 = vrot.slane %v5378, 4
        %v5381 = vshll.u32 %v5308, 16
        %v5383 = vrot.slane %v5381, 5
        %v5384 = vsel %vm931, %v5379, %v5383
        %v5386 = vshrl.u32 %v5309, 16
        %v5388 = vrot.slane %v5386, 4
        %v5389 = vshll.u32 %v5309, 16
        %v5391 = vrot.slane %v5389, 5
        %v5392 = vor.u32 %v5388, %v5391
        %v5393 = vrot.slane %v5392, 4
        %v5395 = vshll.u32 %v5310, 16
        %v5397 = vrot.slane %v5395, 5
        %v5398 = vsel %vm931, %v5393, %v5397
        %v5400 = vshrl.u32 %v5311, 16
        %v5402 = vrot.slane %v5400, 4
        %v5403 = vshll.u32 %v5311, 16
        %v5405 = vrot.slane %v5403, 5
        %v5406 = vor.u32 %v5402, %v5405
        %v5407 = vrot.slane %v5406, 4
        %v5409 = vshll.u32 %v5312, 16
        %v5411 = vrot.slane %v5409, 5
        %v5412 = vsel %vm931, %v5407, %v5411
        %v5414 = vshrl.u32 %v5313, 16
        %v5416 = vrot.slane %v5414, 4
        %v5417 = vshll.u32 %v5313, 16
        %v5419 = vrot.slane %v5417, 5
        %v5420 = vor.u32 %v5416, %v5419
        %v5421 = vrot.slane %v5420, 4
        %v5423 = vshll.u32 %v5314, 16
        %v5425 = vrot.slane %v5423, 5
        %v5426 = vsel %vm931, %v5421, %v5425
        %5427 = vrot.lane.b32.xlu0 %v5328, 96
        %v5428 = vpop.permute.xlu0 %5427
        %5429 = vrot.lane.b32.xlu0 %v5342, 96
        %v5430 = vpop.permute.xlu0 %5429
        %5431 = vrot.lane.b32.xlu0 %v5356, 96
        %v5432 = vpop.permute.xlu0 %5431
        %5433 = vrot.lane.b32.xlu0 %v5370, 96
        %v5434 = vpop.permute.xlu0 %5433
        %5435 = vrot.lane.b32.xlu0 %v5384, 96
        %v5436 = vpop.permute.xlu0 %5435
        %5437 = vrot.lane.b32.xlu0 %v5398, 96
        %v5438 = vpop.permute.xlu0 %5437
        %5439 = vrot.lane.b32.xlu0 %v5412, 96
        %v5440 = vpop.permute.xlu0 %5439
        %5441 = vrot.lane.b32.xlu0 %v5426, 96
        %v5442 = vpop.permute.xlu0 %5441
        %5451 = vst.msk [vmem:[#allocation5 + $0x64] sm:$0xf] %vm4151, %v5428
        %5452 = vst.msk [vmem:[#allocation5 + $0x70] sm:$0xf] %vm4151, %v5430
        %5453 = vst.msk [vmem:[#allocation5 + $0x7c] sm:$0xf] %vm4151, %v5432
        %5454 = vst.msk [vmem:[#allocation5 + $0x88] sm:$0xf] %vm4151, %v5434
        %5455 = vst.msk [vmem:[#allocation5 + $0x94] sm:$0xf] %vm4151, %v5436
        %5456 = vst.msk [vmem:[#allocation5 + $0xa0] sm:$0xf] %vm4151, %v5438
        %5457 = vst.msk [vmem:[#allocation5 + $0xac] sm:$0xf] %vm4151, %v5440
        %5458 = vst.msk [vmem:[#allocation5 + $0xb8] sm:$0xf] %vm4151, %v5442
        %v5459 = vld [vmem:[%s5250] sm:$0xe]
        %v5460 = vld [vmem:[%s5250 + $0x4] sm:$0x1]
        %v5461 = vld [vmem:[%s5250 + $0x8] sm:$0xe]
        %v5462 = vld [vmem:[%s5250 + $0xc] sm:$0x1]
        %v5463 = vld [vmem:[%s5250 + $0x10] sm:$0xe]
        %v5464 = vld [vmem:[%s5250 + $0x14] sm:$0x1]
        %v5465 = vld [vmem:[%s5250 + $0x18] sm:$0xe]
        %v5466 = vld [vmem:[%s5250 + $0x1c] sm:$0x1]
        %v5467 = vld [vmem:[%s5250 + $0x20] sm:$0xe]
        %v5468 = vld [vmem:[%s5250 + $0x24] sm:$0x1]
        %v5469 = vld [vmem:[%s5250 + $0x28] sm:$0xe]
        %v5470 = vld [vmem:[%s5250 + $0x2c] sm:$0x1]
        %v5471 = vld [vmem:[%s5250 + $0x30] sm:$0xe]
        %v5472 = vld [vmem:[%s5250 + $0x34] sm:$0x1]
        %v5473 = vld [vmem:[%s5250 + $0x38] sm:$0xe]
        %v5474 = vld [vmem:[%s5250 + $0x3c] sm:$0x1]
        %v5491 = vrot.slane %v5459, 5
        %v5492 = vrot.slane %v5491, 4
        %v5493 = vrot.slane %v5460, 5
        %v5494 = vsel %vm4045, %v5492, %v5493
        %v5495 = vrot.slane %v5461, 5
        %v5496 = vrot.slane %v5495, 4
        %v5497 = vrot.slane %v5462, 5
        %v5498 = vsel %vm4045, %v5496, %v5497
        %v5499 = vrot.slane %v5463, 5
        %v5500 = vrot.slane %v5499, 4
        %v5501 = vrot.slane %v5464, 5
        %v5502 = vsel %vm4045, %v5500, %v5501
        %v5503 = vrot.slane %v5465, 5
        %v5504 = vrot.slane %v5503, 4
        %v5505 = vrot.slane %v5466, 5
        %v5506 = vsel %vm4045, %v5504, %v5505
        %v5507 = vrot.slane %v5467, 5
        %v5508 = vrot.slane %v5507, 4
        %v5509 = vrot.slane %v5468, 5
        %v5510 = vsel %vm4045, %v5508, %v5509
        %v5511 = vrot.slane %v5469, 5
        %v5512 = vrot.slane %v5511, 4
        %v5513 = vrot.slane %v5470, 5
        %v5514 = vsel %vm4045, %v5512, %v5513
        %v5515 = vrot.slane %v5471, 5
        %v5516 = vrot.slane %v5515, 4
        %v5517 = vrot.slane %v5472, 5
        %v5518 = vsel %vm4045, %v5516, %v5517
        %v5519 = vrot.slane %v5473, 5
        %v5520 = vrot.slane %v5519, 4
        %v5521 = vrot.slane %v5474, 5
        %v5522 = vsel %vm4045, %v5520, %v5521
        %5531 = vst.msk [vmem:[#allocation5 + $0x68] sm:$0xf] %vm3424, %v5494
        %5532 = vst.msk [vmem:[#allocation5 + $0x74] sm:$0xf] %vm3424, %v5498
        %5533 = vst.msk [vmem:[#allocation5 + $0x80] sm:$0xf] %vm3424, %v5502
        %5534 = vst.msk [vmem:[#allocation5 + $0x8c] sm:$0xf] %vm3424, %v5506
        %5535 = vst.msk [vmem:[#allocation5 + $0x98] sm:$0xf] %vm3424, %v5510
        %5536 = vst.msk [vmem:[#allocation5 + $0xa4] sm:$0xf] %vm3424, %v5514
        %5537 = vst.msk [vmem:[#allocation5 + $0xb0] sm:$0xf] %vm3424, %v5518
        %5538 = vst.msk [vmem:[#allocation5 + $0xbc] sm:$0xf] %vm3424, %v5522
        %v5539 = vld [vmem:[#allocation5] sm:$0xff]
        %v5540 = vld [vmem:[#allocation5 + $0x8] sm:$0xf]
        %v5541 = vld [vmem:[#allocation5 + $0xc] sm:$0xff]
        %v5542 = vld [vmem:[#allocation5 + $0x14] sm:$0xf]
        %v5543 = vld [vmem:[#allocation5 + $0x18] sm:$0xff]
        %v5544 = vld [vmem:[#allocation5 + $0x20] sm:$0xf]
        %v5545 = vld [vmem:[#allocation5 + $0x24] sm:$0xff]
        %v5546 = vld [vmem:[#allocation5 + $0x2c] sm:$0xf]
        %v5547 = vld [vmem:[#allocation5 + $0x30] sm:$0xff]
        %v5548 = vld [vmem:[#allocation5 + $0x38] sm:$0xf]
        %v5549 = vld [vmem:[#allocation5 + $0x3c] sm:$0xff]
        %v5550 = vld [vmem:[#allocation5 + $0x44] sm:$0xf]
        %v5551 = vld [vmem:[#allocation5 + $0x48] sm:$0xff]
        %v5552 = vld [vmem:[#allocation5 + $0x50] sm:$0xf]
        %v5553 = vld [vmem:[#allocation5 + $0x54] sm:$0xff]
        %v5554 = vld [vmem:[#allocation5 + $0x5c] sm:$0xf]
        %v5555 = vld [vmem:[#allocation5 + $0x60] sm:$0xff]
        %v5556 = vld [vmem:[#allocation5 + $0x68] sm:$0xf]
        %v5557 = vld [vmem:[#allocation5 + $0x6c] sm:$0xff]
        %v5558 = vld [vmem:[#allocation5 + $0x74] sm:$0xf]
        %v5559 = vld [vmem:[#allocation5 + $0x78] sm:$0xff]
        %v5560 = vld [vmem:[#allocation5 + $0x80] sm:$0xf]
        %v5561 = vld [vmem:[#allocation5 + $0x84] sm:$0xff]
        %v5562 = vld [vmem:[#allocation5 + $0x8c] sm:$0xf]
        %v5563 = vld [vmem:[#allocation5 + $0x90] sm:$0xff]
        %v5564 = vld [vmem:[#allocation5 + $0x98] sm:$0xf]
        %v5565 = vld [vmem:[#allocation5 + $0x9c] sm:$0xff]
        %v5566 = vld [vmem:[#allocation5 + $0xa4] sm:$0xf]
        %v5567 = vld [vmem:[#allocation5 + $0xa8] sm:$0xff]
        %v5568 = vld [vmem:[#allocation5 + $0xb0] sm:$0xf]
        %v5569 = vld [vmem:[#allocation5 + $0xb4] sm:$0xff]
        %v5570 = vld [vmem:[#allocation5 + $0xbc] sm:$0xf]
        %v5571 = vld [vmem:[%s6] sm:$0xf]
        %v5572 = vld [vmem:[%s6 + $0x4] sm:$0xf]
        %v5573 = vld [vmem:[%s6 + $0x8] sm:$0xf]
        %v5574 = vld [vmem:[%s6 + $0xc] sm:$0xf]
        %v5575 = vld [vmem:[%s6 + $0x10] sm:$0xf]
        %v5576 = vld [vmem:[%s6 + $0x14] sm:$0xf]
        %v5577 = vld [vmem:[%s6 + $0x18] sm:$0xf]
        %v5578 = vld [vmem:[%s6 + $0x1c] sm:$0xf]
        %v5579 = vld [vmem:[%s6 + $0x20] sm:$0xf]
        %v5580 = vld [vmem:[%s6 + $0x24] sm:$0xf]
        %v5581 = vld [vmem:[%s6 + $0x28] sm:$0xf]
        %v5582 = vld [vmem:[%s6 + $0x2c] sm:$0xf]
        %v5583 = vld [vmem:[%s6 + $0x30] sm:$0xf]
        %v5584 = vld [vmem:[%s6 + $0x34] sm:$0xf]
        %v5585 = vld [vmem:[%s6 + $0x38] sm:$0xf]
        %v5586 = vld [vmem:[%s6 + $0x3c] sm:$0xf]
        %v5587 = vld [vmem:[%s6 + $0x40] sm:$0xf]
        %v5588 = vld [vmem:[%s6 + $0x44] sm:$0xf]
        %v5589 = vld [vmem:[%s6 + $0x48] sm:$0xf]
        %v5590 = vld [vmem:[%s6 + $0x4c] sm:$0xf]
        %v5591 = vld [vmem:[%s6 + $0x50] sm:$0xf]
        %v5592 = vld [vmem:[%s6 + $0x54] sm:$0xf]
        %v5593 = vld [vmem:[%s6 + $0x58] sm:$0xf]
        %v5594 = vld [vmem:[%s6 + $0x5c] sm:$0xf]
        %v5595 = vld [vmem:[%s6 + $0x60] sm:$0xf]
        %v5596 = vld [vmem:[%s6 + $0x64] sm:$0xf]
        %v5597 = vld [vmem:[%s6 + $0x68] sm:$0xf]
        %v5598 = vld [vmem:[%s6 + $0x6c] sm:$0xf]
        %v5599 = vld [vmem:[%s6 + $0x70] sm:$0xf]
        %v5600 = vld [vmem:[%s6 + $0x74] sm:$0xf]
        %v5601 = vld [vmem:[%s6 + $0x78] sm:$0xf]
        %v5602 = vld [vmem:[%s6 + $0x7c] sm:$0xf]
        %v5603 = vld [vmem:[%s6 + $0x80] sm:$0xf]
        %v5604 = vld [vmem:[%s6 + $0x84] sm:$0xf]
        %v5605 = vld [vmem:[%s6 + $0x88] sm:$0xf]
        %v5606 = vld [vmem:[%s6 + $0x8c] sm:$0xf]
        %v5639 = vunpack.c.l.b16 %v5539
        %v5640 = vunpack.c.h.b16 %v5539
        %v5641 = vunpack.c.l.b16 %v5540
        %v5642 = vunpack.c.l.b16 %v5541
        %v5643 = vunpack.c.h.b16 %v5541
        %v5644 = vunpack.c.l.b16 %v5542
        %v5645 = vunpack.c.l.b16 %v5543
        %v5646 = vunpack.c.h.b16 %v5543
        %v5647 = vunpack.c.l.b16 %v5544
        %v5648 = vunpack.c.l.b16 %v5545
        %v5649 = vunpack.c.h.b16 %v5545
        %v5650 = vunpack.c.l.b16 %v5546
        %v5651 = vunpack.c.l.b16 %v5547
        %v5652 = vunpack.c.h.b16 %v5547
        %v5653 = vunpack.c.l.b16 %v5548
        %v5654 = vunpack.c.l.b16 %v5549
        %v5655 = vunpack.c.h.b16 %v5549
        %v5656 = vunpack.c.l.b16 %v5550
        %v5657 = vunpack.c.l.b16 %v5551
        %v5658 = vunpack.c.h.b16 %v5551
        %v5659 = vunpack.c.l.b16 %v5552
        %v5660 = vunpack.c.l.b16 %v5553
        %v5661 = vunpack.c.h.b16 %v5553
        %v5662 = vunpack.c.l.b16 %v5554
        %v5663 = vunpack.c.l.b16 %v5555
        %v5664 = vunpack.c.h.b16 %v5555
        %v5665 = vunpack.c.l.b16 %v5556
        %v5666 = vunpack.c.l.b16 %v5557
        %v5667 = vunpack.c.h.b16 %v5557
        %v5668 = vunpack.c.l.b16 %v5558
        %v5669 = vunpack.c.l.b16 %v5559
        %v5670 = vunpack.c.h.b16 %v5559
        %v5671 = vunpack.c.l.b16 %v5560
        %v5672 = vunpack.c.l.b16 %v5561
        %v5673 = vunpack.c.h.b16 %v5561
        %v5674 = vunpack.c.l.b16 %v5562
        %v5675 = vunpack.c.l.b16 %v5563
        %v5676 = vunpack.c.h.b16 %v5563
        %v5677 = vunpack.c.l.b16 %v5564
        %v5678 = vunpack.c.l.b16 %v5565
        %v5679 = vunpack.c.h.b16 %v5565
        %v5680 = vunpack.c.l.b16 %v5566
        %v5681 = vunpack.c.l.b16 %v5567
        %v5682 = vunpack.c.h.b16 %v5567
        %v5683 = vunpack.c.l.b16 %v5568
        %v5684 = vunpack.c.l.b16 %v5569
        %v5685 = vunpack.c.h.b16 %v5569
        %v5686 = vunpack.c.l.b16 %v5570
        %v5687 = vpack.c.b16 %v5642, %v5639
        %v5688 = vpack.c.b16 %v5643, %v5640
        %v5689 = vpack.c.b16 %v5644, %v5641
        %v5690 = vpack.c.b16 %v5648, %v5645
        %v5691 = vpack.c.b16 %v5649, %v5646
        %v5692 = vpack.c.b16 %v5650, %v5647
        %v5693 = vpack.c.b16 %v5654, %v5651
        %v5694 = vpack.c.b16 %v5655, %v5652
        %v5695 = vpack.c.b16 %v5656, %v5653
        %v5696 = vpack.c.b16 %v5660, %v5657
        %v5697 = vpack.c.b16 %v5661, %v5658
        %v5698 = vpack.c.b16 %v5662, %v5659
        %v5699 = vpack.c.b16 %v5666, %v5663
        %v5700 = vpack.c.b16 %v5667, %v5664
        %v5701 = vpack.c.b16 %v5668, %v5665
        %v5702 = vpack.c.b16 %v5672, %v5669
        %v5703 = vpack.c.b16 %v5673, %v5670
        %v5704 = vpack.c.b16 %v5674, %v5671
        %v5705 = vpack.c.b16 %v5678, %v5675
        %v5706 = vpack.c.b16 %v5679, %v5676
        %v5707 = vpack.c.b16 %v5680, %v5677
        %v5708 = vpack.c.b16 %v5684, %v5681
        %v5709 = vpack.c.b16 %v5685, %v5682
        %v5710 = vpack.c.b16 %v5686, %v5683
        %v5763 = vunpack.c.l.b16 %v5571
        %v5764 = vunpack.c.l.b16 %v5572
        %v5765 = vunpack.c.l.b16 %v5573
        %v5766 = vunpack.c.l.b16 %v5574
        %v5767 = vunpack.c.l.b16 %v5575
        %v5768 = vunpack.c.l.b16 %v5576
        %v5769 = vunpack.c.l.b16 %v5577
        %v5770 = vunpack.c.l.b16 %v5578
        %v5771 = vunpack.c.l.b16 %v5579
        %v5772 = vunpack.c.l.b16 %v5580
        %v5773 = vunpack.c.l.b16 %v5581
        %v5774 = vunpack.c.l.b16 %v5582
        %v5775 = vunpack.c.l.b16 %v5583
        %v5776 = vunpack.c.l.b16 %v5584
        %v5777 = vunpack.c.l.b16 %v5585
        %v5778 = vunpack.c.l.b16 %v5586
        %v5779 = vunpack.c.l.b16 %v5587
        %v5780 = vunpack.c.l.b16 %v5588
        %v5781 = vunpack.c.l.b16 %v5589
        %v5782 = vunpack.c.l.b16 %v5590
        %v5783 = vunpack.c.l.b16 %v5591
        %v5784 = vunpack.c.l.b16 %v5592
        %v5785 = vunpack.c.l.b16 %v5593
        %v5786 = vunpack.c.l.b16 %v5594
        %v5787 = vunpack.c.l.b16 %v5595
        %v5788 = vunpack.c.l.b16 %v5596
        %v5789 = vunpack.c.l.b16 %v5597
        %v5790 = vunpack.c.l.b16 %v5598
        %v5791 = vunpack.c.l.b16 %v5599
        %v5792 = vunpack.c.l.b16 %v5600
        %v5793 = vunpack.c.l.b16 %v5601
        %v5794 = vunpack.c.l.b16 %v5602
        %v5795 = vunpack.c.l.b16 %v5603
        %v5796 = vunpack.c.l.b16 %v5604
        %v5797 = vunpack.c.l.b16 %v5605
        %v5798 = vunpack.c.l.b16 %v5606
        %v5799 = vpack.c.b16 %v5764, %v5763
        %v5800 = vpack.c.b16 %v5766, %v5765
        %v5801 = vpack.c.b16 %v5768, %v5767
        %v5802 = vpack.c.b16 %v5770, %v5769
        %v5803 = vpack.c.b16 %v5772, %v5771
        %v5804 = vpack.c.b16 %v5774, %v5773
        %v5805 = vpack.c.b16 %v5776, %v5775
        %v5806 = vpack.c.b16 %v5778, %v5777
        %v5807 = vpack.c.b16 %v5780, %v5779
        %v5808 = vpack.c.b16 %v5782, %v5781
        %v5809 = vpack.c.b16 %v5784, %v5783
        %v5810 = vpack.c.b16 %v5786, %v5785
        %v5811 = vpack.c.b16 %v5788, %v5787
        %v5812 = vpack.c.b16 %v5790, %v5789
        %v5813 = vpack.c.b16 %v5792, %v5791
        %v5814 = vpack.c.b16 %v5794, %v5793
        %v5815 = vpack.c.b16 %v5796, %v5795
        %v5816 = vpack.c.b16 %v5798, %v5797
        %vm5835 = vcmask 261120
        %v5837 = vsel %vm5835, %v5689, 0
        %v5840 = vsel %vm5835, %v5692, 0
        %v5843 = vsel %vm5835, %v5695, 0
        %v5846 = vsel %vm5835, %v5698, 0
        %v5849 = vsel %vm5835, %v5701, 0
        %v5852 = vsel %vm5835, %v5704, 0
        %v5855 = vsel %vm5835, %v5707, 0
        %v5858 = vsel %vm5835, %v5710, 0
        %5860 = vmatpush.bf16.msra.mxu0 %v5806
        %5861 = vmatpush.bf16.msra.mxu0 %v5805
        %5862 = vmatpush.bf16.msra.mxu0 %v5804
        %5863 = vmatpush.bf16.msra.mxu0 %v5803
        %5864 = vmatpush.bf16.msra.mxu0 %v5802
        %5865 = vmatpush.bf16.msra.mxu0 %v5801
        %5866 = vmatpush.bf16.msra.mxu0 %v5800
        %5867 = vmatpush.bf16.msra.mxu0 %v5799
        %5868 = vmatmul.bf16.gmra.mxu0 %v5687
        %v5869 = vpop.f32.mrf.mxu0
        %v5870 = vadd.f32 0.0, %v5869
        %v5871 = vpop.f32.mrf.mxu0
        %v5872 = vadd.f32 0.0, %v5871
        %5873 = vmatmul.bf16.gmra.mxu0 %v5690
        %v5874 = vpop.f32.mrf.mxu0
        %v5875 = vadd.f32 0.0, %v5874
        %v5876 = vpop.f32.mrf.mxu0
        %v5877 = vadd.f32 0.0, %v5876
        %5878 = vmatmul.bf16.gmra.mxu0 %v5693
        %v5879 = vpop.f32.mrf.mxu0
        %v5880 = vadd.f32 0.0, %v5879
        %v5881 = vpop.f32.mrf.mxu0
        %v5882 = vadd.f32 0.0, %v5881
        %5883 = vmatmul.bf16.gmra.mxu0 %v5696
        %v5884 = vpop.f32.mrf.mxu0
        %v5885 = vadd.f32 0.0, %v5884
        %v5886 = vpop.f32.mrf.mxu0
        %v5887 = vadd.f32 0.0, %v5886
        %5888 = vmatmul.bf16.gmra.mxu0 %v5699
        %v5889 = vpop.f32.mrf.mxu0
        %v5890 = vadd.f32 0.0, %v5889
        %v5891 = vpop.f32.mrf.mxu0
        %v5892 = vadd.f32 0.0, %v5891
        %5893 = vmatmul.bf16.gmra.mxu0 %v5702
        %v5894 = vpop.f32.mrf.mxu0
        %v5895 = vadd.f32 0.0, %v5894
        %v5896 = vpop.f32.mrf.mxu0
        %v5897 = vadd.f32 0.0, %v5896
        %5898 = vmatmul.bf16.gmra.mxu0 %v5705
        %v5899 = vpop.f32.mrf.mxu0
        %v5900 = vadd.f32 0.0, %v5899
        %v5901 = vpop.f32.mrf.mxu0
        %v5902 = vadd.f32 0.0, %v5901
        %5903 = vmatmul.bf16.gmra.mxu0 %v5708
        %v5904 = vpop.f32.mrf.mxu0
        %v5905 = vadd.f32 0.0, %v5904
        %v5906 = vpop.f32.mrf.mxu0
        %v5907 = vadd.f32 0.0, %v5906
        %5908 = vdwg.mxu0
        %5909 = vmatpush.bf16.msra.mxu0 %v5814
        %5910 = vmatpush.bf16.msra.mxu0 %v5813
        %5911 = vmatpush.bf16.msra.mxu0 %v5812
        %5912 = vmatpush.bf16.msra.mxu0 %v5811
        %5913 = vmatpush.bf16.msra.mxu0 %v5810
        %5914 = vmatpush.bf16.msra.mxu0 %v5809
        %5915 = vmatpush.bf16.msra.mxu0 %v5808
        %5916 = vmatpush.bf16.msra.mxu0 %v5807
        %5917 = vmatmul.bf16.gmra.mxu0 %v5688
        %v5918 = vpop.f32.mrf.mxu0
        %v5919 = vadd.f32 %v5870, %v5918
        %v5920 = vpop.f32.mrf.mxu0
        %v5921 = vadd.f32 %v5872, %v5920
        %5922 = vmatmul.bf16.gmra.mxu0 %v5691
        %v5923 = vpop.f32.mrf.mxu0
        %v5924 = vadd.f32 %v5875, %v5923
        %v5925 = vpop.f32.mrf.mxu0
        %v5926 = vadd.f32 %v5877, %v5925
        %5927 = vmatmul.bf16.gmra.mxu0 %v5694
        %v5928 = vpop.f32.mrf.mxu0
        %v5929 = vadd.f32 %v5880, %v5928
        %v5930 = vpop.f32.mrf.mxu0
        %v5931 = vadd.f32 %v5882, %v5930
        %5932 = vmatmul.bf16.gmra.mxu0 %v5697
        %v5933 = vpop.f32.mrf.mxu0
        %v5934 = vadd.f32 %v5885, %v5933
        %v5935 = vpop.f32.mrf.mxu0
        %v5936 = vadd.f32 %v5887, %v5935
        %5937 = vmatmul.bf16.gmra.mxu0 %v5700
        %v5938 = vpop.f32.mrf.mxu0
        %v5939 = vadd.f32 %v5890, %v5938
        %v5940 = vpop.f32.mrf.mxu0
        %v5941 = vadd.f32 %v5892, %v5940
        %5942 = vmatmul.bf16.gmra.mxu0 %v5703
        %v5943 = vpop.f32.mrf.mxu0
        %v5944 = vadd.f32 %v5895, %v5943
        %v5945 = vpop.f32.mrf.mxu0
        %v5946 = vadd.f32 %v5897, %v5945
        %5947 = vmatmul.bf16.gmra.mxu0 %v5706
        %v5948 = vpop.f32.mrf.mxu0
        %v5949 = vadd.f32 %v5900, %v5948
        %v5950 = vpop.f32.mrf.mxu0
        %v5951 = vadd.f32 %v5902, %v5950
        %5952 = vmatmul.bf16.gmra.mxu0 %v5709
        %v5953 = vpop.f32.mrf.mxu0
        %v5954 = vadd.f32 %v5905, %v5953
        %v5955 = vpop.f32.mrf.mxu0
        %v5956 = vadd.f32 %v5907, %v5955
        %5957 = vdwg.mxu0
        %5958 = vmatpush.bf16.msra.mxu0 0
        %5959 = vmatpush.bf16.msra.mxu0 0
        %5960 = vmatpush.bf16.msra.mxu0 0
        %5961 = vmatpush.bf16.msra.mxu0 0
        %5962 = vmatpush.bf16.msra.mxu0 0
        %5963 = vmatpush.bf16.msra.mxu0 0
        %5964 = vmatpush.bf16.msra.mxu0 %v5816
        %5965 = vmatpush.bf16.msra.mxu0 %v5815
        %5966 = vmatmul.bf16.gmra.mxu0 %v5837
        %v5967 = vpop.f32.mrf.mxu0
        %v5968 = vadd.f32 %v5919, %v5967
        %v5969 = vpop.f32.mrf.mxu0
        %v5970 = vadd.f32 %v5921, %v5969
        %5971 = vmatmul.bf16.gmra.mxu0 %v5840
        %v5972 = vpop.f32.mrf.mxu0
        %v5973 = vadd.f32 %v5924, %v5972
        %v5974 = vpop.f32.mrf.mxu0
        %v5975 = vadd.f32 %v5926, %v5974
        %5976 = vmatmul.bf16.gmra.mxu0 %v5843
        %v5977 = vpop.f32.mrf.mxu0
        %v5978 = vadd.f32 %v5929, %v5977
        %v5979 = vpop.f32.mrf.mxu0
        %v5980 = vadd.f32 %v5931, %v5979
        %5981 = vmatmul.bf16.gmra.mxu0 %v5846
        %v5982 = vpop.f32.mrf.mxu0
        %v5983 = vadd.f32 %v5934, %v5982
        %v5984 = vpop.f32.mrf.mxu0
        %v5985 = vadd.f32 %v5936, %v5984
        %5986 = vmatmul.bf16.gmra.mxu0 %v5849
        %v5987 = vpop.f32.mrf.mxu0
        %v5988 = vadd.f32 %v5939, %v5987
        %v5989 = vpop.f32.mrf.mxu0
        %v5990 = vadd.f32 %v5941, %v5989
        %5991 = vmatmul.bf16.gmra.mxu0 %v5852
        %v5992 = vpop.f32.mrf.mxu0
        %v5993 = vadd.f32 %v5944, %v5992
        %v5994 = vpop.f32.mrf.mxu0
        %v5995 = vadd.f32 %v5946, %v5994
        %5996 = vmatmul.bf16.gmra.mxu0 %v5855
        %v5997 = vpop.f32.mrf.mxu0
        %v5998 = vadd.f32 %v5949, %v5997
        %v5999 = vpop.f32.mrf.mxu0
        %v6000 = vadd.f32 %v5951, %v5999
        %6001 = vmatmul.bf16.gmra.mxu0 %v5858
        %v6002 = vpop.f32.mrf.mxu0
        %v6003 = vadd.f32 %v5954, %v6002
        %v6004 = vpop.f32.mrf.mxu0
        %v6005 = vadd.f32 %v5956, %v6004
        %6006 = vdwg.mxu0
        %v6007 = vsel %vm5835, %v5968, 0.0
        %v6008 = vsel %vm5835, %v5970, 0.0
        %v6009 = vadd.f32 %v6007, %v6008
        %v6010 = vsel %vm5835, %v5973, 0.0
        %v6011 = vadd.f32 %v6009, %v6010
        %v6012 = vsel %vm5835, %v5975, 0.0
        %v6013 = vadd.f32 %v6011, %v6012
        %v6014 = vsel %vm5835, %v5978, 0.0
        %v6015 = vadd.f32 %v6013, %v6014
        %v6016 = vsel %vm5835, %v5980, 0.0
        %v6017 = vadd.f32 %v6015, %v6016
        %v6018 = vsel %vm5835, %v5983, 0.0
        %v6019 = vadd.f32 %v6017, %v6018
        %v6020 = vsel %vm5835, %v5985, 0.0
        %v6021 = vadd.f32 %v6019, %v6020
        %v6022 = vrot.slane %v6021, 4
        %v6023 = vadd.f32 %v6021, %v6022
        %v6024 = vrot.slane %v6023, 2
        %v6025 = vadd.f32 %v6023, %v6024
        %v6026 = vrot.slane %v6025, 1
        %v6027 = vadd.f32 %v6025, %v6026
        %v6028 = vsel %vm5835, %v5988, 0.0
        %v6029 = vsel %vm5835, %v5990, 0.0
        %v6030 = vadd.f32 %v6028, %v6029
        %v6031 = vsel %vm5835, %v5993, 0.0
        %v6032 = vadd.f32 %v6030, %v6031
        %v6033 = vsel %vm5835, %v5995, 0.0
        %v6034 = vadd.f32 %v6032, %v6033
        %v6035 = vsel %vm5835, %v5998, 0.0
        %v6036 = vadd.f32 %v6034, %v6035
        %v6037 = vsel %vm5835, %v6000, 0.0
        %v6038 = vadd.f32 %v6036, %v6037
        %v6039 = vsel %vm5835, %v6003, 0.0
        %v6040 = vadd.f32 %v6038, %v6039
        %v6041 = vsel %vm5835, %v6005, 0.0
        %v6042 = vadd.f32 %v6040, %v6041
        %v6043 = vrot.slane %v6042, 4
        %v6044 = vadd.f32 %v6042, %v6043
        %v6045 = vrot.slane %v6044, 2
        %v6046 = vadd.f32 %v6044, %v6045
        %v6047 = vrot.slane %v6046, 1
        %v6048 = vadd.f32 %v6046, %v6047
        %v6049 = vmul.f32 %v6027, 0.015625
        %v6050 = vmul.f32 %v6048, 0.015625
        %v6051 = vld [vmem:[%s7] sm:$0x3]
        %v6052 = vmul.f32 %v6049, %v6051
        %v6053 = vmul.f32 %v6050, %v6051
        %vm6054 = vcmask 254976
        %v6055 = vsel %vm6054, %v6052, 0.0
        %6056 = vadd.xlane.f32.xlu0 %v6055
        %v6057 = vpop.xlane.xlu0 %6056
        %v6058 = vsel %vm6054, %v6053, 0.0
        %6059 = vadd.xlane.f32.xlu0 %v6058
        %v6060 = vpop.xlane.xlu0 %6059
        %v6061 = vmax.f32 %v6057, 0.0
        %v6062 = vmax.f32 %v6060, 0.0
        %v6063 = vld [vmem:[%s8] sm:$0xff]
        %v6064 = vld [vmem:[%s8 + $0x8] sm:$0xff]
        %v6065 = vld [vmem:[%s8 + $0x10] sm:$0xff]
        %v6066 = vld [vmem:[%s8 + $0x18] sm:$0xff]
        %v6071 = vperm.slane %v6063, 0
        %v6072 = vlaneseq
        %v6073 = vshrl.u32 %v6072, 7
        %6075 = vset.pattern.permute.xlu0 %v6073
        %6076 = vperm.xlu0 %6075, %v6071
        %v6077 = vpop.permute.xlu0 %6076
        %v6078 = vperm.slane %v6063, 1
        %v6079 = vlaneseq
        %v6080 = vshrl.u32 %v6079, 7
        %6082 = vset.pattern.permute.xlu0 %v6080
        %6083 = vperm.xlu0 %6082, %v6078
        %v6084 = vpop.permute.xlu0 %6083
        %v6085 = vperm.slane %v6063, 2
        %v6086 = vlaneseq
        %v6087 = vshrl.u32 %v6086, 7
        %6089 = vset.pattern.permute.xlu0 %v6087
        %6090 = vperm.xlu0 %6089, %v6085
        %v6091 = vpop.permute.xlu0 %6090
        %v6092 = vperm.slane %v6063, 3
        %v6093 = vlaneseq
        %v6094 = vshrl.u32 %v6093, 7
        %6096 = vset.pattern.permute.xlu0 %v6094
        %6097 = vperm.xlu0 %6096, %v6092
        %v6098 = vpop.permute.xlu0 %6097
        %v6099 = vperm.slane %v6063, 4
        %v6100 = vlaneseq
        %v6101 = vshrl.u32 %v6100, 7
        %6103 = vset.pattern.permute.xlu0 %v6101
        %6104 = vperm.xlu0 %6103, %v6099
        %v6105 = vpop.permute.xlu0 %6104
        %v6106 = vperm.slane %v6063, 5
        %v6107 = vlaneseq
        %v6108 = vshrl.u32 %v6107, 7
        %6110 = vset.pattern.permute.xlu0 %v6108
        %6111 = vperm.xlu0 %6110, %v6106
        %v6112 = vpop.permute.xlu0 %6111
        %v6113 = vperm.slane %v6063, 6
        %v6114 = vlaneseq
        %v6115 = vshrl.u32 %v6114, 7
        %6117 = vset.pattern.permute.xlu0 %v6115
        %6118 = vperm.xlu0 %6117, %v6113
        %v6119 = vpop.permute.xlu0 %6118
        %v6120 = vperm.slane %v6063, 7
        %v6121 = vlaneseq
        %v6122 = vshrl.u32 %v6121, 7
        %6124 = vset.pattern.permute.xlu0 %v6122
        %6125 = vperm.xlu0 %6124, %v6120
        %v6126 = vpop.permute.xlu0 %6125
        %v6127 = vperm.slane %v6064, 0
        %v6128 = vlaneseq
        %v6129 = vshrl.u32 %v6128, 7
        %6131 = vset.pattern.permute.xlu0 %v6129
        %6132 = vperm.xlu0 %6131, %v6127
        %v6133 = vpop.permute.xlu0 %6132
        %v6134 = vperm.slane %v6064, 1
        %v6135 = vlaneseq
        %v6136 = vshrl.u32 %v6135, 7
        %6138 = vset.pattern.permute.xlu0 %v6136
        %6139 = vperm.xlu0 %6138, %v6134
        %v6140 = vpop.permute.xlu0 %6139
        %v6141 = vperm.slane %v6064, 2
        %v6142 = vlaneseq
        %v6143 = vshrl.u32 %v6142, 7
        %6145 = vset.pattern.permute.xlu0 %v6143
        %6146 = vperm.xlu0 %6145, %v6141
        %v6147 = vpop.permute.xlu0 %6146
        %v6148 = vperm.slane %v6064, 3
        %v6149 = vlaneseq
        %v6150 = vshrl.u32 %v6149, 7
        %6152 = vset.pattern.permute.xlu0 %v6150
        %6153 = vperm.xlu0 %6152, %v6148
        %v6154 = vpop.permute.xlu0 %6153
        %v6155 = vperm.slane %v6064, 4
        %v6156 = vlaneseq
        %v6157 = vshrl.u32 %v6156, 7
        %6159 = vset.pattern.permute.xlu0 %v6157
        %6160 = vperm.xlu0 %6159, %v6155
        %v6161 = vpop.permute.xlu0 %6160
        %v6162 = vperm.slane %v6064, 5
        %v6163 = vlaneseq
        %v6164 = vshrl.u32 %v6163, 7
        %6166 = vset.pattern.permute.xlu0 %v6164
        %6167 = vperm.xlu0 %6166, %v6162
        %v6168 = vpop.permute.xlu0 %6167
        %v6169 = vperm.slane %v6064, 6
        %v6170 = vlaneseq
        %v6171 = vshrl.u32 %v6170, 7
        %6173 = vset.pattern.permute.xlu0 %v6171
        %6174 = vperm.xlu0 %6173, %v6169
        %v6175 = vpop.permute.xlu0 %6174
        %v6176 = vperm.slane %v6064, 7
        %v6177 = vlaneseq
        %v6178 = vshrl.u32 %v6177, 7
        %6180 = vset.pattern.permute.xlu0 %v6178
        %6181 = vperm.xlu0 %6180, %v6176
        %v6182 = vpop.permute.xlu0 %6181
        %v6183 = vperm.slane %v6065, 0
        %v6184 = vlaneseq
        %v6185 = vshrl.u32 %v6184, 7
        %6187 = vset.pattern.permute.xlu0 %v6185
        %6188 = vperm.xlu0 %6187, %v6183
        %v6189 = vpop.permute.xlu0 %6188
        %v6190 = vperm.slane %v6065, 1
        %v6191 = vlaneseq
        %v6192 = vshrl.u32 %v6191, 7
        %6194 = vset.pattern.permute.xlu0 %v6192
        %6195 = vperm.xlu0 %6194, %v6190
        %v6196 = vpop.permute.xlu0 %6195
        %v6197 = vperm.slane %v6065, 2
        %v6198 = vlaneseq
        %v6199 = vshrl.u32 %v6198, 7
        %6201 = vset.pattern.permute.xlu0 %v6199
        %6202 = vperm.xlu0 %6201, %v6197
        %v6203 = vpop.permute.xlu0 %6202
        %v6204 = vperm.slane %v6065, 3
        %v6205 = vlaneseq
        %v6206 = vshrl.u32 %v6205, 7
        %6208 = vset.pattern.permute.xlu0 %v6206
        %6209 = vperm.xlu0 %6208, %v6204
        %v6210 = vpop.permute.xlu0 %6209
        %v6211 = vperm.slane %v6065, 4
        %v6212 = vlaneseq
        %v6213 = vshrl.u32 %v6212, 7
        %6215 = vset.pattern.permute.xlu0 %v6213
        %6216 = vperm.xlu0 %6215, %v6211
        %v6217 = vpop.permute.xlu0 %6216
        %v6218 = vperm.slane %v6065, 5
        %v6219 = vlaneseq
        %v6220 = vshrl.u32 %v6219, 7
        %6222 = vset.pattern.permute.xlu0 %v6220
        %6223 = vperm.xlu0 %6222, %v6218
        %v6224 = vpop.permute.xlu0 %6223
        %v6225 = vperm.slane %v6065, 6
        %v6226 = vlaneseq
        %v6227 = vshrl.u32 %v6226, 7
        %6229 = vset.pattern.permute.xlu0 %v6227
        %6230 = vperm.xlu0 %6229, %v6225
        %v6231 = vpop.permute.xlu0 %6230
        %v6232 = vperm.slane %v6065, 7
        %v6233 = vlaneseq
        %v6234 = vshrl.u32 %v6233, 7
        %6236 = vset.pattern.permute.xlu0 %v6234
        %6237 = vperm.xlu0 %6236, %v6232
        %v6238 = vpop.permute.xlu0 %6237
        %v6239 = vperm.slane %v6066, 0
        %v6240 = vlaneseq
        %v6241 = vshrl.u32 %v6240, 7
        %6243 = vset.pattern.permute.xlu0 %v6241
        %6244 = vperm.xlu0 %6243, %v6239
        %v6245 = vpop.permute.xlu0 %6244
        %v6246 = vperm.slane %v6066, 1
        %v6247 = vlaneseq
        %v6248 = vshrl.u32 %v6247, 7
        %6250 = vset.pattern.permute.xlu0 %v6248
        %6251 = vperm.xlu0 %6250, %v6246
        %v6252 = vpop.permute.xlu0 %6251
        %v6253 = vperm.slane %v6066, 2
        %v6254 = vlaneseq
        %v6255 = vshrl.u32 %v6254, 7
        %6257 = vset.pattern.permute.xlu0 %v6255
        %6258 = vperm.xlu0 %6257, %v6253
        %v6259 = vpop.permute.xlu0 %6258
        %v6260 = vperm.slane %v6066, 3
        %v6261 = vlaneseq
        %v6262 = vshrl.u32 %v6261, 7
        %6264 = vset.pattern.permute.xlu0 %v6262
        %6265 = vperm.xlu0 %6264, %v6260
        %v6266 = vpop.permute.xlu0 %6265
        %v6267 = vperm.slane %v6066, 4
        %v6268 = vlaneseq
        %v6269 = vshrl.u32 %v6268, 7
        %6271 = vset.pattern.permute.xlu0 %v6269
        %6272 = vperm.xlu0 %6271, %v6267
        %v6273 = vpop.permute.xlu0 %6272
        %v6274 = vperm.slane %v6066, 5
        %v6275 = vlaneseq
        %v6276 = vshrl.u32 %v6275, 7
        %6278 = vset.pattern.permute.xlu0 %v6276
        %6279 = vperm.xlu0 %6278, %v6274
        %v6280 = vpop.permute.xlu0 %6279
        %v6281 = vperm.slane %v6066, 6
        %v6282 = vlaneseq
        %v6283 = vshrl.u32 %v6282, 7
        %6285 = vset.pattern.permute.xlu0 %v6283
        %6286 = vperm.xlu0 %6285, %v6281
        %v6287 = vpop.permute.xlu0 %6286
        %v6288 = vperm.slane %v6066, 7
        %v6289 = vlaneseq
        %v6290 = vshrl.u32 %v6289, 7
        %6292 = vset.pattern.permute.xlu0 %v6290
        %6293 = vperm.xlu0 %6292, %v6288
        %v6294 = vpop.permute.xlu0 %6293
        %v6327 = vmul.f32 %v6061, %v6077
        %v6328 = vmul.f32 %v6061, %v6084
        %v6329 = vmul.f32 %v6061, %v6091
        %v6330 = vmul.f32 %v6061, %v6098
        %v6331 = vmul.f32 %v6061, %v6105
        %v6332 = vmul.f32 %v6061, %v6112
        %v6333 = vmul.f32 %v6061, %v6119
        %v6334 = vmul.f32 %v6061, %v6126
        %v6335 = vmul.f32 %v6061, %v6133
        %v6336 = vmul.f32 %v6061, %v6140
        %v6337 = vmul.f32 %v6061, %v6147
        %v6338 = vmul.f32 %v6061, %v6154
        %v6339 = vmul.f32 %v6061, %v6161
        %v6340 = vmul.f32 %v6061, %v6168
        %v6341 = vmul.f32 %v6061, %v6175
        %v6342 = vmul.f32 %v6061, %v6182
        %v6343 = vmul.f32 %v6061, %v6189
        %v6344 = vmul.f32 %v6061, %v6196
        %v6345 = vmul.f32 %v6061, %v6203
        %v6346 = vmul.f32 %v6061, %v6210
        %v6347 = vmul.f32 %v6061, %v6217
        %v6348 = vmul.f32 %v6061, %v6224
        %v6349 = vmul.f32 %v6061, %v6231
        %v6350 = vmul.f32 %v6061, %v6238
        %v6351 = vmul.f32 %v6061, %v6245
        %v6352 = vmul.f32 %v6061, %v6252
        %v6353 = vmul.f32 %v6061, %v6259
        %v6354 = vmul.f32 %v6061, %v6266
        %v6355 = vmul.f32 %v6061, %v6273
        %v6356 = vmul.f32 %v6061, %v6280
        %v6357 = vmul.f32 %v6061, %v6287
        %v6358 = vmul.f32 %v6061, %v6294
        %v6359 = vmul.f32 %v6062, %v6077
        %v6360 = vmul.f32 %v6062, %v6084
        %v6361 = vmul.f32 %v6062, %v6091
        %v6362 = vmul.f32 %v6062, %v6098
        %v6363 = vmul.f32 %v6062, %v6105
        %v6364 = vmul.f32 %v6062, %v6112
        %v6365 = vmul.f32 %v6062, %v6119
        %v6366 = vmul.f32 %v6062, %v6126
        %v6367 = vmul.f32 %v6062, %v6133
        %v6368 = vmul.f32 %v6062, %v6140
        %v6369 = vmul.f32 %v6062, %v6147
        %v6370 = vmul.f32 %v6062, %v6154
        %v6371 = vmul.f32 %v6062, %v6161
        %v6372 = vmul.f32 %v6062, %v6168
        %v6373 = vmul.f32 %v6062, %v6175
        %v6374 = vmul.f32 %v6062, %v6182
        %v6375 = vmul.f32 %v6062, %v6189
        %v6376 = vmul.f32 %v6062, %v6196
        %v6377 = vmul.f32 %v6062, %v6203
        %v6378 = vmul.f32 %v6062, %v6210
        %v6379 = vmul.f32 %v6062, %v6217
        %v6380 = vmul.f32 %v6062, %v6224
        %v6381 = vmul.f32 %v6062, %v6231
        %v6382 = vmul.f32 %v6062, %v6238
        %v6383 = vmul.f32 %v6062, %v6245
        %v6384 = vmul.f32 %v6062, %v6252
        %v6385 = vmul.f32 %v6062, %v6259
        %v6386 = vmul.f32 %v6062, %v6266
        %v6387 = vmul.f32 %v6062, %v6273
        %v6388 = vmul.f32 %v6062, %v6280
        %v6389 = vmul.f32 %v6062, %v6287
        %v6390 = vmul.f32 %v6062, %v6294
        %6455 = vset.pattern.permute.xlu0 0
        %6456 = vperm.xlu0 %6455, %v6327
        %v6457 = vpop.permute.xlu0 %6456
        %6458 = vset.pattern.permute.xlu0 0
        %6459 = vperm.xlu0 %6458, %v6328
        %v6460 = vpop.permute.xlu0 %6459
        %6461 = vset.pattern.permute.xlu0 0
        %6462 = vperm.xlu0 %6461, %v6329
        %v6463 = vpop.permute.xlu0 %6462
        %6464 = vset.pattern.permute.xlu0 0
        %6465 = vperm.xlu0 %6464, %v6330
        %v6466 = vpop.permute.xlu0 %6465
        %6467 = vset.pattern.permute.xlu0 0
        %6468 = vperm.xlu0 %6467, %v6331
        %v6469 = vpop.permute.xlu0 %6468
        %6470 = vset.pattern.permute.xlu0 0
        %6471 = vperm.xlu0 %6470, %v6332
        %v6472 = vpop.permute.xlu0 %6471
        %6473 = vset.pattern.permute.xlu0 0
        %6474 = vperm.xlu0 %6473, %v6333
        %v6475 = vpop.permute.xlu0 %6474
        %6476 = vset.pattern.permute.xlu0 0
        %6477 = vperm.xlu0 %6476, %v6334
        %v6478 = vpop.permute.xlu0 %6477
        %6479 = vset.pattern.permute.xlu0 0
        %6480 = vperm.xlu0 %6479, %v6335
        %v6481 = vpop.permute.xlu0 %6480
        %6482 = vset.pattern.permute.xlu0 0
        %6483 = vperm.xlu0 %6482, %v6336
        %v6484 = vpop.permute.xlu0 %6483
        %6485 = vset.pattern.permute.xlu0 0
        %6486 = vperm.xlu0 %6485, %v6337
        %v6487 = vpop.permute.xlu0 %6486
        %6488 = vset.pattern.permute.xlu0 0
        %6489 = vperm.xlu0 %6488, %v6338
        %v6490 = vpop.permute.xlu0 %6489
        %6491 = vset.pattern.permute.xlu0 0
        %6492 = vperm.xlu0 %6491, %v6339
        %v6493 = vpop.permute.xlu0 %6492
        %6494 = vset.pattern.permute.xlu0 0
        %6495 = vperm.xlu0 %6494, %v6340
        %v6496 = vpop.permute.xlu0 %6495
        %6497 = vset.pattern.permute.xlu0 0
        %6498 = vperm.xlu0 %6497, %v6341
        %v6499 = vpop.permute.xlu0 %6498
        %6500 = vset.pattern.permute.xlu0 0
        %6501 = vperm.xlu0 %6500, %v6342
        %v6502 = vpop.permute.xlu0 %6501
        %6503 = vset.pattern.permute.xlu0 0
        %6504 = vperm.xlu0 %6503, %v6343
        %v6505 = vpop.permute.xlu0 %6504
        %6506 = vset.pattern.permute.xlu0 0
        %6507 = vperm.xlu0 %6506, %v6344
        %v6508 = vpop.permute.xlu0 %6507
        %6509 = vset.pattern.permute.xlu0 0
        %6510 = vperm.xlu0 %6509, %v6345
        %v6511 = vpop.permute.xlu0 %6510
        %6512 = vset.pattern.permute.xlu0 0
        %6513 = vperm.xlu0 %6512, %v6346
        %v6514 = vpop.permute.xlu0 %6513
        %6515 = vset.pattern.permute.xlu0 0
        %6516 = vperm.xlu0 %6515, %v6347
        %v6517 = vpop.permute.xlu0 %6516
        %6518 = vset.pattern.permute.xlu0 0
        %6519 = vperm.xlu0 %6518, %v6348
        %v6520 = vpop.permute.xlu0 %6519
        %6521 = vset.pattern.permute.xlu0 0
        %6522 = vperm.xlu0 %6521, %v6349
        %v6523 = vpop.permute.xlu0 %6522
        %6524 = vset.pattern.permute.xlu0 0
        %6525 = vperm.xlu0 %6524, %v6350
        %v6526 = vpop.permute.xlu0 %6525
        %6527 = vset.pattern.permute.xlu0 0
        %6528 = vperm.xlu0 %6527, %v6351
        %v6529 = vpop.permute.xlu0 %6528
        %6530 = vset.pattern.permute.xlu0 0
        %6531 = vperm.xlu0 %6530, %v6352
        %v6532 = vpop.permute.xlu0 %6531
        %6533 = vset.pattern.permute.xlu0 0
        %6534 = vperm.xlu0 %6533, %v6353
        %v6535 = vpop.permute.xlu0 %6534
        %6536 = vset.pattern.permute.xlu0 0
        %6537 = vperm.xlu0 %6536, %v6354
        %v6538 = vpop.permute.xlu0 %6537
        %6539 = vset.pattern.permute.xlu0 0
        %6540 = vperm.xlu0 %6539, %v6355
        %v6541 = vpop.permute.xlu0 %6540
        %6542 = vset.pattern.permute.xlu0 0
        %6543 = vperm.xlu0 %6542, %v6356
        %v6544 = vpop.permute.xlu0 %6543
        %6545 = vset.pattern.permute.xlu0 0
        %6546 = vperm.xlu0 %6545, %v6357
        %v6547 = vpop.permute.xlu0 %6546
        %6548 = vset.pattern.permute.xlu0 0
        %6549 = vperm.xlu0 %6548, %v6358
        %v6550 = vpop.permute.xlu0 %6549
        %6551 = vset.pattern.permute.xlu0 0
        %6552 = vperm.xlu0 %6551, %v6359
        %v6553 = vpop.permute.xlu0 %6552
        %6554 = vset.pattern.permute.xlu0 0
        %6555 = vperm.xlu0 %6554, %v6360
        %v6556 = vpop.permute.xlu0 %6555
        %6557 = vset.pattern.permute.xlu0 0
        %6558 = vperm.xlu0 %6557, %v6361
        %v6559 = vpop.permute.xlu0 %6558
        %6560 = vset.pattern.permute.xlu0 0
        %6561 = vperm.xlu0 %6560, %v6362
        %v6562 = vpop.permute.xlu0 %6561
        %6563 = vset.pattern.permute.xlu0 0
        %6564 = vperm.xlu0 %6563, %v6363
        %v6565 = vpop.permute.xlu0 %6564
        %6566 = vset.pattern.permute.xlu0 0
        %6567 = vperm.xlu0 %6566, %v6364
        %v6568 = vpop.permute.xlu0 %6567
        %6569 = vset.pattern.permute.xlu0 0
        %6570 = vperm.xlu0 %6569, %v6365
        %v6571 = vpop.permute.xlu0 %6570
        %6572 = vset.pattern.permute.xlu0 0
        %6573 = vperm.xlu0 %6572, %v6366
        %v6574 = vpop.permute.xlu0 %6573
        %6575 = vset.pattern.permute.xlu0 0
        %6576 = vperm.xlu0 %6575, %v6367
        %v6577 = vpop.permute.xlu0 %6576
        %6578 = vset.pattern.permute.xlu0 0
        %6579 = vperm.xlu0 %6578, %v6368
        %v6580 = vpop.permute.xlu0 %6579
        %6581 = vset.pattern.permute.xlu0 0
        %6582 = vperm.xlu0 %6581, %v6369
        %v6583 = vpop.permute.xlu0 %6582
        %6584 = vset.pattern.permute.xlu0 0
        %6585 = vperm.xlu0 %6584, %v6370
        %v6586 = vpop.permute.xlu0 %6585
        %6587 = vset.pattern.permute.xlu0 0
        %6588 = vperm.xlu0 %6587, %v6371
        %v6589 = vpop.permute.xlu0 %6588
        %6590 = vset.pattern.permute.xlu0 0
        %6591 = vperm.xlu0 %6590, %v6372
        %v6592 = vpop.permute.xlu0 %6591
        %6593 = vset.pattern.permute.xlu0 0
        %6594 = vperm.xlu0 %6593, %v6373
        %v6595 = vpop.permute.xlu0 %6594
        %6596 = vset.pattern.permute.xlu0 0
        %6597 = vperm.xlu0 %6596, %v6374
        %v6598 = vpop.permute.xlu0 %6597
        %6599 = vset.pattern.permute.xlu0 0
        %6600 = vperm.xlu0 %6599, %v6375
        %v6601 = vpop.permute.xlu0 %6600
        %6602 = vset.pattern.permute.xlu0 0
        %6603 = vperm.xlu0 %6602, %v6376
        %v6604 = vpop.permute.xlu0 %6603
        %6605 = vset.pattern.permute.xlu0 0
        %6606 = vperm.xlu0 %6605, %v6377
        %v6607 = vpop.permute.xlu0 %6606
        %6608 = vset.pattern.permute.xlu0 0
        %6609 = vperm.xlu0 %6608, %v6378
        %v6610 = vpop.permute.xlu0 %6609
        %6611 = vset.pattern.permute.xlu0 0
        %6612 = vperm.xlu0 %6611, %v6379
        %v6613 = vpop.permute.xlu0 %6612
        %6614 = vset.pattern.permute.xlu0 0
        %6615 = vperm.xlu0 %6614, %v6380
        %v6616 = vpop.permute.xlu0 %6615
        %6617 = vset.pattern.permute.xlu0 0
        %6618 = vperm.xlu0 %6617, %v6381
        %v6619 = vpop.permute.xlu0 %6618
        %6620 = vset.pattern.permute.xlu0 0
        %6621 = vperm.xlu0 %6620, %v6382
        %v6622 = vpop.permute.xlu0 %6621
        %6623 = vset.pattern.permute.xlu0 0
        %6624 = vperm.xlu0 %6623, %v6383
        %v6625 = vpop.permute.xlu0 %6624
        %6626 = vset.pattern.permute.xlu0 0
        %6627 = vperm.xlu0 %6626, %v6384
        %v6628 = vpop.permute.xlu0 %6627
        %6629 = vset.pattern.permute.xlu0 0
        %6630 = vperm.xlu0 %6629, %v6385
        %v6631 = vpop.permute.xlu0 %6630
        %6632 = vset.pattern.permute.xlu0 0
        %6633 = vperm.xlu0 %6632, %v6386
        %v6634 = vpop.permute.xlu0 %6633
        %6635 = vset.pattern.permute.xlu0 0
        %6636 = vperm.xlu0 %6635, %v6387
        %v6637 = vpop.permute.xlu0 %6636
        %6638 = vset.pattern.permute.xlu0 0
        %6639 = vperm.xlu0 %6638, %v6388
        %v6640 = vpop.permute.xlu0 %6639
        %6641 = vset.pattern.permute.xlu0 0
        %6642 = vperm.xlu0 %6641, %v6389
        %v6643 = vpop.permute.xlu0 %6642
        %6644 = vset.pattern.permute.xlu0 0
        %6645 = vperm.xlu0 %6644, %v6390
        %v6646 = vpop.permute.xlu0 %6645
        %v6647 = vlaneseq
        %v6648 = vand.u32 %v6647, 127
        %v6649 = vperm.slane %v6457, %v6648
        %v6650 = vperm.slane %v6460, %v6648
        %v6651 = vperm.slane %v6463, %v6648
        %v6652 = vperm.slane %v6466, %v6648
        %v6653 = vperm.slane %v6469, %v6648
        %v6654 = vperm.slane %v6472, %v6648
        %v6655 = vperm.slane %v6475, %v6648
        %v6656 = vperm.slane %v6478, %v6648
        %v6657 = vperm.slane %v6481, %v6648
        %v6658 = vperm.slane %v6484, %v6648
        %v6659 = vperm.slane %v6487, %v6648
        %v6660 = vperm.slane %v6490, %v6648
        %v6661 = vperm.slane %v6493, %v6648
        %v6662 = vperm.slane %v6496, %v6648
        %v6663 = vperm.slane %v6499, %v6648
        %v6664 = vperm.slane %v6502, %v6648
        %v6665 = vperm.slane %v6505, %v6648
        %v6666 = vperm.slane %v6508, %v6648
        %v6667 = vperm.slane %v6511, %v6648
        %v6668 = vperm.slane %v6514, %v6648
        %v6669 = vperm.slane %v6517, %v6648
        %v6670 = vperm.slane %v6520, %v6648
        %v6671 = vperm.slane %v6523, %v6648
        %v6672 = vperm.slane %v6526, %v6648
        %v6673 = vperm.slane %v6529, %v6648
        %v6674 = vperm.slane %v6532, %v6648
        %v6675 = vperm.slane %v6535, %v6648
        %v6676 = vperm.slane %v6538, %v6648
        %v6677 = vperm.slane %v6541, %v6648
        %v6678 = vperm.slane %v6544, %v6648
        %v6679 = vperm.slane %v6547, %v6648
        %v6680 = vperm.slane %v6550, %v6648
        %v6681 = vperm.slane %v6553, %v6648
        %v6682 = vperm.slane %v6556, %v6648
        %v6683 = vperm.slane %v6559, %v6648
        %v6684 = vperm.slane %v6562, %v6648
        %v6685 = vperm.slane %v6565, %v6648
        %v6686 = vperm.slane %v6568, %v6648
        %v6687 = vperm.slane %v6571, %v6648
        %v6688 = vperm.slane %v6574, %v6648
        %v6689 = vperm.slane %v6577, %v6648
        %v6690 = vperm.slane %v6580, %v6648
        %v6691 = vperm.slane %v6583, %v6648
        %v6692 = vperm.slane %v6586, %v6648
        %v6693 = vperm.slane %v6589, %v6648
        %v6694 = vperm.slane %v6592, %v6648
        %v6695 = vperm.slane %v6595, %v6648
        %v6696 = vperm.slane %v6598, %v6648
        %v6697 = vperm.slane %v6601, %v6648
        %v6698 = vperm.slane %v6604, %v6648
        %v6699 = vperm.slane %v6607, %v6648
        %v6700 = vperm.slane %v6610, %v6648
        %v6701 = vperm.slane %v6613, %v6648
        %v6702 = vperm.slane %v6616, %v6648
        %v6703 = vperm.slane %v6619, %v6648
        %v6704 = vperm.slane %v6622, %v6648
        %v6705 = vperm.slane %v6625, %v6648
        %v6706 = vperm.slane %v6628, %v6648
        %v6707 = vperm.slane %v6631, %v6648
        %v6708 = vperm.slane %v6634, %v6648
        %v6709 = vperm.slane %v6637, %v6648
        %v6710 = vperm.slane %v6640, %v6648
        %v6711 = vperm.slane %v6643, %v6648
        %v6712 = vperm.slane %v6646, %v6648
        %vm6713 = vcmask 1041409
        %v6714 = vsel %vm6713, %v6650, %v6649
        %vm6715 = vcmask 1042434
        %v6716 = vsel %vm6715, %v6651, %v6714
        %vm6717 = vcmask 1043459
        %v6718 = vsel %vm6717, %v6652, %v6716
        %vm6719 = vcmask 1044484
        %v6720 = vsel %vm6719, %v6653, %v6718
        %vm6721 = vcmask 1045509
        %v6722 = vsel %vm6721, %v6654, %v6720
        %vm6723 = vcmask 1046534
        %v6724 = vsel %vm6723, %v6655, %v6722
        %vm6725 = vcmask 1047559
        %v6726 = vsel %vm6725, %v6656, %v6724
        %v6727 = vsel %vm6713, %v6658, %v6657
        %v6728 = vsel %vm6715, %v6659, %v6727
        %v6729 = vsel %vm6717, %v6660, %v6728
        %v6730 = vsel %vm6719, %v6661, %v6729
        %v6731 = vsel %vm6721, %v6662, %v6730
        %v6732 = vsel %vm6723, %v6663, %v6731
        %v6733 = vsel %vm6725, %v6664, %v6732
        %v6734 = vsel %vm6713, %v6666, %v6665
        %v6735 = vsel %vm6715, %v6667, %v6734
        %v6736 = vsel %vm6717, %v6668, %v6735
        %v6737 = vsel %vm6719, %v6669, %v6736
        %v6738 = vsel %vm6721, %v6670, %v6737
        %v6739 = vsel %vm6723, %v6671, %v6738
        %v6740 = vsel %vm6725, %v6672, %v6739
        %v6741 = vsel %vm6713, %v6674, %v6673
        %v6742 = vsel %vm6715, %v6675, %v6741
        %v6743 = vsel %vm6717, %v6676, %v6742
        %v6744 = vsel %vm6719, %v6677, %v6743
        %v6745 = vsel %vm6721, %v6678, %v6744
        %v6746 = vsel %vm6723, %v6679, %v6745
        %v6747 = vsel %vm6725, %v6680, %v6746
        %v6748 = vsel %vm6713, %v6682, %v6681
        %v6749 = vsel %vm6715, %v6683, %v6748
        %v6750 = vsel %vm6717, %v6684, %v6749
        %v6751 = vsel %vm6719, %v6685, %v6750
        %v6752 = vsel %vm6721, %v6686, %v6751
        %v6753 = vsel %vm6723, %v6687, %v6752
        %v6754 = vsel %vm6725, %v6688, %v6753
        %v6755 = vsel %vm6713, %v6690, %v6689
        %v6756 = vsel %vm6715, %v6691, %v6755
        %v6757 = vsel %vm6717, %v6692, %v6756
        %v6758 = vsel %vm6719, %v6693, %v6757
        %v6759 = vsel %vm6721, %v6694, %v6758
        %v6760 = vsel %vm6723, %v6695, %v6759
        %v6761 = vsel %vm6725, %v6696, %v6760
        %v6762 = vsel %vm6713, %v6698, %v6697
        %v6763 = vsel %vm6715, %v6699, %v6762
        %v6764 = vsel %vm6717, %v6700, %v6763
        %v6765 = vsel %vm6719, %v6701, %v6764
        %v6766 = vsel %vm6721, %v6702, %v6765
        %v6767 = vsel %vm6723, %v6703, %v6766
        %v6768 = vsel %vm6725, %v6704, %v6767
        %v6769 = vsel %vm6713, %v6706, %v6705
        %v6770 = vsel %vm6715, %v6707, %v6769
        %v6771 = vsel %vm6717, %v6708, %v6770
        %v6772 = vsel %vm6719, %v6709, %v6771
        %v6773 = vsel %vm6721, %v6710, %v6772
        %v6774 = vsel %vm6723, %v6711, %v6773
        %v6775 = vsel %vm6725, %v6712, %v6774
        %vm6784 = vcmask 15360
        %v6785 = vsel %vm6784, %v6726, 0.0
        %6786 = vadd.xlane.f32.xlu0 %v6785
        %v6787 = vpop.xlane.xlu0 %6786
        %v6788 = vsel %vm6784, %v6733, 0.0
        %6789 = vadd.xlane.f32.xlu0 %v6788
        %v6790 = vpop.xlane.xlu0 %6789
        %v6791 = vsel %vm6784, %v6740, 0.0
        %6792 = vadd.xlane.f32.xlu0 %v6791
        %v6793 = vpop.xlane.xlu0 %6792
        %v6794 = vsel %vm6784, %v6747, 0.0
        %6795 = vadd.xlane.f32.xlu0 %v6794
        %v6796 = vpop.xlane.xlu0 %6795
        %v6797 = vsel %vm6784, %v6754, 0.0
        %6798 = vadd.xlane.f32.xlu0 %v6797
        %v6799 = vpop.xlane.xlu0 %6798
        %v6800 = vsel %vm6784, %v6761, 0.0
        %6801 = vadd.xlane.f32.xlu0 %v6800
        %v6802 = vpop.xlane.xlu0 %6801
        %v6803 = vsel %vm6784, %v6768, 0.0
        %6804 = vadd.xlane.f32.xlu0 %v6803
        %v6805 = vpop.xlane.xlu0 %6804
        %v6806 = vsel %vm6784, %v6775, 0.0
        %6807 = vadd.xlane.f32.xlu0 %v6806
        %v6808 = vpop.xlane.xlu0 %6807
        %v6809 = vld [vmem:[%s445] sm:$0x1]
        %v6810 = vld [vmem:[%s445 + $0x1] sm:$0x1]
        %v6811 = vld [vmem:[%s10] sm:$0xff]
        %v6812 = vld [vmem:[%s10 + $0x8] sm:$0xff]
        %v6813 = vld [vmem:[%s10 + $0x10] sm:$0xff]
        %v6814 = vld [vmem:[%s10 + $0x18] sm:$0xff]
        %v6817 = vperm.slane %v6809, 0
        %v6818 = vperm.slane %v6810, 0
        %v6821 = vmul.f32 %v6817, %v6811
        %v6822 = vmul.f32 %v6817, %v6812
        %v6823 = vmul.f32 %v6817, %v6813
        %v6824 = vmul.f32 %v6817, %v6814
        %v6825 = vmul.f32 %v6818, %v6811
        %v6826 = vmul.f32 %v6818, %v6812
        %v6827 = vmul.f32 %v6818, %v6813
        %v6828 = vmul.f32 %v6818, %v6814
        %v6829 = vsel %vm3245, %v6821, 0.0
        %6830 = vadd.xlane.f32.xlu0 %v6829
        %v6831 = vpop.xlane.xlu0 %6830
        %v6832 = vsel %vm3245, %v6822, 0.0
        %6833 = vadd.xlane.f32.xlu0 %v6832
        %v6834 = vpop.xlane.xlu0 %6833
        %v6835 = vsel %vm3245, %v6823, 0.0
        %6836 = vadd.xlane.f32.xlu0 %v6835
        %v6837 = vpop.xlane.xlu0 %6836
        %v6838 = vsel %vm3245, %v6824, 0.0
        %6839 = vadd.xlane.f32.xlu0 %v6838
        %v6840 = vpop.xlane.xlu0 %6839
        %v6841 = vsel %vm3245, %v6825, 0.0
        %6842 = vadd.xlane.f32.xlu0 %v6841
        %v6843 = vpop.xlane.xlu0 %6842
        %v6844 = vsel %vm3245, %v6826, 0.0
        %6845 = vadd.xlane.f32.xlu0 %v6844
        %v6846 = vpop.xlane.xlu0 %6845
        %v6847 = vsel %vm3245, %v6827, 0.0
        %6848 = vadd.xlane.f32.xlu0 %v6847
        %v6849 = vpop.xlane.xlu0 %6848
        %v6850 = vsel %vm3245, %v6828, 0.0
        %6851 = vadd.xlane.f32.xlu0 %v6850
        %v6852 = vpop.xlane.xlu0 %6851
        %v6853 = vadd.f32 %v6787, %v6831
        %v6854 = vadd.f32 %v6790, %v6834
        %v6855 = vadd.f32 %v6793, %v6837
        %v6856 = vadd.f32 %v6796, %v6840
        %v6857 = vadd.f32 %v6799, %v6843
        %v6858 = vadd.f32 %v6802, %v6846
        %v6859 = vadd.f32 %v6805, %v6849
        %v6860 = vadd.f32 %v6808, %v6852
        %v6869 = vperm.slane %v6853, %v6648
        %v6870 = vadd.s32 %v6648, 4294967288
        %v6871 = vperm.slane %v6854, %v6870
        %vm6872 = vcmask 130112
        %v6873 = vsel %vm6872, %v6871, %v6869
        %v6874 = vadd.s32 %v6648, 4294967280
        %v6875 = vperm.slane %v6855, %v6874
        %vm6876 = vcmask 195712
        %v6877 = vsel %vm6876, %v6875, %v6873
        %v6878 = vadd.s32 %v6648, 4294967272
        %v6879 = vperm.slane %v6856, %v6878
        %vm6880 = vcmask 261312
        %v6881 = vsel %vm6880, %v6879, %v6877
        %v6882 = vperm.slane %v6857, %v6648
        %v6883 = vperm.slane %v6858, %v6870
        %v6884 = vsel %vm6872, %v6883, %v6882
        %v6885 = vperm.slane %v6859, %v6874
        %v6886 = vsel %vm6876, %v6885, %v6884
        %v6887 = vperm.slane %v6860, %v6878
        %v6888 = vsel %vm6880, %v6887, %v6886
        %6891 = vst.msk [vmem:[%s434] sm:$0x1] %vm3426, %v6881
        %6892 = vst.msk [vmem:[%s434 + $0x1] sm:$0x1] %vm3426, %v6888
        %v6893 = vsub.f32 0.0, %v6853
        %v6894 = vsub.f32 0.0, %v6854
        %v6895 = vsub.f32 0.0, %v6855
        %v6896 = vsub.f32 0.0, %v6856
        %v6897 = vsub.f32 0.0, %v6857
        %v6898 = vsub.f32 0.0, %v6858
        %v6899 = vsub.f32 0.0, %v6859
        %v6900 = vsub.f32 0.0, %v6860
        %v6901 = vmul.f32 %v6893, 1.442695
        %v6902 = vpow.pop %v6901
        %v6903 = vmul.f32 %v6894, 1.442695
        %v6904 = vpow.pop %v6903
        %v6905 = vmul.f32 %v6895, 1.442695
        %v6906 = vpow.pop %v6905
        %v6907 = vmul.f32 %v6896, 1.442695
        %v6908 = vpow.pop %v6907
        %v6909 = vmul.f32 %v6897, 1.442695
        %v6910 = vpow.pop %v6909
        %v6911 = vmul.f32 %v6898, 1.442695
        %v6912 = vpow.pop %v6911
        %v6913 = vmul.f32 %v6899, 1.442695
        %v6914 = vpow.pop %v6913
        %v6915 = vmul.f32 %v6900, 1.442695
        %v6916 = vpow.pop %v6915
        %v6917 = vadd.f32 %v6902, 1.0
        %v6918 = vadd.f32 %v6904, 1.0
        %v6919 = vadd.f32 %v6906, 1.0
        %v6920 = vadd.f32 %v6908, 1.0
        %v6921 = vadd.f32 %v6910, 1.0
        %v6922 = vadd.f32 %v6912, 1.0
        %v6923 = vadd.f32 %v6914, 1.0
        %v6924 = vadd.f32 %v6916, 1.0
        %v6925 = vrcp.pop %v6917
        %v6926 = vrcp.pop %v6918
        %v6927 = vrcp.pop %v6919
        %v6928 = vrcp.pop %v6920
        %v6929 = vrcp.pop %v6921
        %v6930 = vrcp.pop %v6922
        %v6931 = vrcp.pop %v6923
        %v6932 = vrcp.pop %v6924
        %v6941 = vperm.slane %v6925, %v6648
        %v6942 = vperm.slane %v6926, %v6870
        %v6943 = vsel %vm6872, %v6942, %v6941
        %v6944 = vperm.slane %v6927, %v6874
        %v6945 = vsel %vm6876, %v6944, %v6943
        %v6946 = vperm.slane %v6928, %v6878
        %v6947 = vsel %vm6880, %v6946, %v6945
        %v6948 = vperm.slane %v6929, %v6648
        %v6949 = vperm.slane %v6930, %v6870
        %v6950 = vsel %vm6872, %v6949, %v6948
        %v6951 = vperm.slane %v6931, %v6874
        %v6952 = vsel %vm6876, %v6951, %v6950
        %v6953 = vperm.slane %v6932, %v6878
        %v6954 = vsel %vm6880, %v6953, %v6952
        %v6955 = vsel %vm6715, %v6947, %v6947
        %v6956 = vsel %vm6717, %v6947, %v6955
        %v6957 = vsel %vm6719, %v6947, %v6956
        %v6958 = vsel %vm6721, %v6947, %v6957
        %v6959 = vsel %vm6723, %v6947, %v6958
        %v6960 = vsel %vm6725, %v6947, %v6959
        %v6961 = vsel %vm6715, %v6954, %v6954
        %v6962 = vsel %vm6717, %v6954, %v6961
        %v6963 = vsel %vm6719, %v6954, %v6962
        %v6964 = vsel %vm6721, %v6954, %v6963
        %v6965 = vsel %vm6723, %v6954, %v6964
        %v6966 = vsel %vm6725, %v6954, %v6965
        %v6969 = vmul.f32 %v5968, %v6960
        %v6970 = vmul.f32 %v5970, %v6960
        %v6971 = vmul.f32 %v5973, %v6960
        %v6972 = vmul.f32 %v5975, %v6960
        %v6973 = vmul.f32 %v5978, %v6960
        %v6974 = vmul.f32 %v5980, %v6960
        %v6975 = vmul.f32 %v5983, %v6960
        %v6976 = vmul.f32 %v5985, %v6960
        %v6977 = vmul.f32 %v5988, %v6966
        %v6978 = vmul.f32 %v5990, %v6966
        %v6979 = vmul.f32 %v5993, %v6966
        %v6980 = vmul.f32 %v5995, %v6966
        %v6981 = vmul.f32 %v5998, %v6966
        %v6982 = vmul.f32 %v6000, %v6966
        %v6983 = vmul.f32 %v6003, %v6966
        %v6984 = vmul.f32 %v6005, %v6966
        %7001 = vrot.lane.b32.xlu0 %v3329, 96
        %v7002 = vpop.permute.xlu0 %7001
        %7003 = vrot.lane.b32.xlu0 %v3331, 96
        %v7004 = vpop.permute.xlu0 %7003
        %7005 = vrot.lane.b32.xlu0 %v3334, 96
        %v7006 = vpop.permute.xlu0 %7005
        %7007 = vrot.lane.b32.xlu0 %v3336, 96
        %v7008 = vpop.permute.xlu0 %7007
        %7009 = vrot.lane.b32.xlu0 %v3339, 96
        %v7010 = vpop.permute.xlu0 %7009
        %7011 = vrot.lane.b32.xlu0 %v3341, 96
        %v7012 = vpop.permute.xlu0 %7011
        %7013 = vrot.lane.b32.xlu0 %v3344, 96
        %v7014 = vpop.permute.xlu0 %7013
        %7015 = vrot.lane.b32.xlu0 %v3346, 96
        %v7016 = vpop.permute.xlu0 %7015
        %7017 = vrot.lane.b32.xlu0 %v3349, 96
        %v7018 = vpop.permute.xlu0 %7017
        %7019 = vrot.lane.b32.xlu0 %v3351, 96
        %v7020 = vpop.permute.xlu0 %7019
        %7021 = vrot.lane.b32.xlu0 %v3354, 96
        %v7022 = vpop.permute.xlu0 %7021
        %7023 = vrot.lane.b32.xlu0 %v3356, 96
        %v7024 = vpop.permute.xlu0 %7023
        %7025 = vrot.lane.b32.xlu0 %v3359, 96
        %v7026 = vpop.permute.xlu0 %7025
        %7027 = vrot.lane.b32.xlu0 %v3361, 96
        %v7028 = vpop.permute.xlu0 %7027
        %7029 = vrot.lane.b32.xlu0 %v3364, 96
        %v7030 = vpop.permute.xlu0 %7029
        %7031 = vrot.lane.b32.xlu0 %v3366, 96
        %v7032 = vpop.permute.xlu0 %7031
        %v7049 = vadd.f32 %v6969, %v7002
        %v7050 = vadd.f32 %v6970, %v7004
        %v7051 = vadd.f32 %v6971, %v7006
        %v7052 = vadd.f32 %v6972, %v7008
        %v7053 = vadd.f32 %v6973, %v7010
        %v7054 = vadd.f32 %v6974, %v7012
        %v7055 = vadd.f32 %v6975, %v7014
        %v7056 = vadd.f32 %v6976, %v7016
        %v7057 = vadd.f32 %v6977, %v7018
        %v7058 = vadd.f32 %v6978, %v7020
        %v7059 = vadd.f32 %v6979, %v7022
        %v7060 = vadd.f32 %v6980, %v7024
        %v7061 = vadd.f32 %v6981, %v7026
        %v7062 = vadd.f32 %v6982, %v7028
        %v7063 = vadd.f32 %v6983, %v7030
        %v7064 = vadd.f32 %v6984, %v7032
        %7065 = vst.msk [vmem:[%s427] sm:$0xff] %vm5835, %v7049
        %7066 = vst.msk [vmem:[%s427 + $0x8] sm:$0xff] %vm5835, %v7050
        %7067 = vst.msk [vmem:[%s427 + $0x10] sm:$0xff] %vm5835, %v7051
        %7068 = vst.msk [vmem:[%s427 + $0x18] sm:$0xff] %vm5835, %v7052
        %7069 = vst.msk [vmem:[%s427 + $0x20] sm:$0xff] %vm5835, %v7053
        %7070 = vst.msk [vmem:[%s427 + $0x28] sm:$0xff] %vm5835, %v7054
        %7071 = vst.msk [vmem:[%s427 + $0x30] sm:$0xff] %vm5835, %v7055
        %7072 = vst.msk [vmem:[%s427 + $0x38] sm:$0xff] %vm5835, %v7056
        %7073 = vst.msk [vmem:[%s427 + $0x40] sm:$0xff] %vm5835, %v7057
        %7074 = vst.msk [vmem:[%s427 + $0x48] sm:$0xff] %vm5835, %v7058
        %7075 = vst.msk [vmem:[%s427 + $0x50] sm:$0xff] %vm5835, %v7059
        %7076 = vst.msk [vmem:[%s427 + $0x58] sm:$0xff] %vm5835, %v7060
        %7077 = vst.msk [vmem:[%s427 + $0x60] sm:$0xff] %vm5835, %v7061
        %7078 = vst.msk [vmem:[%s427 + $0x68] sm:$0xff] %vm5835, %v7062
        %7079 = vst.msk [vmem:[%s427 + $0x70] sm:$0xff] %vm5835, %v7063
        %7080 = vst.msk [vmem:[%s427 + $0x78] sm:$0xff] %vm5835, %v7064
        %s7081 = sand.u32 %s279, 1
        %s7082 = scalar_lea.sflag [#allocation7], %s7081
        %s7083 = sand.u32 %s279, 1
        %s7084 = smul.addr %s7083, 128
        %s7085 = scalar_lea.vmem [#allocation6], %s7084
        %s7086 = sand.u32 %s305, 1
        %s7087 = scalar_lea.sflag [#allocation9], %s7086
        %s7088 = sand.u32 %s305, 1
        %s7089 = smul.addr %s7088, 2
        %s7090 = scalar_lea.vmem [#allocation8], %s7089
        // Predicated region
        $region65: #{preact_block.1} parent=63 // pred_check
          %p7091 = pneg %p289
        $region66: #{preact_block.1} parent=63 // pred_check_branch
          %7093 = sbr.rel (%p7091) target = $region68
        $region67: #{preact_block.1} parent=63 // pred_region
          %s7094 = smul.u32 2, %s30
          %7096 = vsyncadd %s7082, 0
          %s7097 = smul.addr %s7094, 8
          %s7098 = smul.addr %s7097, 8
          %s7099 = scalar_lea.hbm %s11, %s7098
          %s7100 = sshll.u32 %s7085, 4
          %s7101 = int_to_ptr.vmem [resolvable:$true] %s7100
          %s7102 = sshll.u32 %s7099, 4
          %s7103 = int_to_ptr.hbm [resolvable:$true] %s7102
          %7108 = dma.vmem_to_hbm [thread:$0]  %s7101, 2048, %s7103, %s7082, 128, 128, 8
        $region68: #{preact_block.1} parent=63 // pred_fallthru
          _
        // Predicated region
        $region69: #{preact_block.1} parent=63 // pred_check
          %p7109 = pneg %p315
        $region70: #{preact_block.1} parent=63 // pred_check_branch
          %7111 = sbr.rel (%p7109) target = $region72
        $region71: #{preact_block.1} parent=63 // pred_region
          %s7112 = smul.u32 2, %s30
          %7114 = vsyncadd %s7087, 0
          %s7115 = scalar_lea.hbm %s12, %s7112
          %s7116 = sshll.u32 %s7090, 4
          %s7117 = int_to_ptr.vmem [resolvable:$true] %s7116
          %s7118 = sshll.u32 %s7115, 4
          %s7119 = int_to_ptr.hbm [resolvable:$true] %s7118
          %7124 = dma.vmem_to_hbm [thread:$0]  %s7117, 32, %s7119, %s7087, 16, 16, 1
        $region72: #{preact_block.1} parent=63 // pred_fallthru
          _
      $region64: #{preact_block.1} parent=5 // pred_fallthru
        _
      %p7125 = scmp.le.s32.totalorder 2, %s25
      // Predicated region
      $region73: #{preact_block.1} parent=5 // pred_check
        %p7126 = pneg %p7125
      $region74: #{preact_block.1} parent=5 // pred_check_branch
        %7128 = sbr.rel (%p7126) target = $region76
      $region75: #{preact_block.1} parent=5 // pred_region
        %s7129 = ssub.s32 %s25, 2
        // Predicated region
        $region77: #{preact_block.1} parent=75 // pred_check
          %p7130 = pneg %p295
        $region78: #{preact_block.1} parent=75 // pred_check_branch
          %7132 = sbr.rel (%p7130) target = $region80
        $region79: #{preact_block.1} parent=75 // pred_region
          %s7133 = sand.u32 %s280, 1
          %s7134 = scalar_lea.sflag [#allocation7], %s7133
          %s7135 = sand.u32 %s280, 1
          %s7136 = smul.addr %s7135, 128
          %s7137 = scalar_lea.vmem [#allocation6], %s7136
          %7139 = dma.done %s7134, 2048
        $region80: #{preact_block.1} parent=75 // pred_fallthru
          _
        // Predicated region
        $region81: #{preact_block.1} parent=75 // pred_check
          %p7140 = pneg %p321
        $region82: #{preact_block.1} parent=75 // pred_check_branch
          %7142 = sbr.rel (%p7140) target = $region84
        $region83: #{preact_block.1} parent=75 // pred_region
          %s7143 = sand.u32 %s306, 1
          %s7144 = scalar_lea.sflag [#allocation9], %s7143
          %s7145 = sand.u32 %s306, 1
          %s7146 = smul.addr %s7145, 2
          %s7147 = scalar_lea.vmem [#allocation8], %s7146
          %7149 = dma.done %s7144, 32
        $region84: #{preact_block.1} parent=75 // pred_fallthru
          _
      $region76: #{preact_block.1} parent=5 // pred_fallthru
        _
    $region6: #{preact_block.1} parent=1 // loop_footer
      %s29 = sadd.s32 1, %s25
    $region7: #{preact_block.1} parent=1 // loop_footer_branch
      %24 = sbr.rel target = $region3
    $region8: #{preact_block.1} parent=1 // loop_exit
      _
    %7150 = vsyncpa [#allocation7], 1
    %s7151 = scalar_lea.sflag [#allocation7], 1
    %7152 = vsyncpa %s7151, 1
    %7153 = vsyncpa [#allocation9], 1
    %s7154 = scalar_lea.sflag [#allocation9], 1
    %7155 = vsyncpa %s7154, 1

</llo_original>
